<compile_context>
chip_gen: v7x
topology: tpu7x:2x2x1
jax: 0.10.0
libtpu: 0.0.40
codegen_flags: <defaults>
</compile_context>

<pallas_src>
import functools
import math

import jax
import jax.numpy as jnp
from jax import lax
from jax.experimental import pallas as pl
from jax.experimental.pallas import tpu as pltpu

F32 = jnp.float32
BF16 = jnp.bfloat16

_WKEYS = ("w_qk", "b_qk", "w_v", "b_v", "w_o", "b_o",
          "wv_s", "bv_s", "woa_s", "boa_s", "wo_s", "bo_s",
          "wv_t", "bv_t", "woa_t", "boa_t", "wo_t", "bo_t",
          "w1", "b1", "w2", "b2", "ng", "nb")
_MAT_KEYS = frozenset({"w_qk", "w_v", "w_o", "wv_s", "woa_s", "wo_s",
                       "wv_t", "woa_t", "wo_t", "w1", "w2"})


def _mm(a, w):
    """Activation (f32) x bf16 weight -> f32 accumulate on the MXU."""
    return jnp.dot(a.astype(BF16), w, preferred_element_type=F32)


def _bdot(lhs, rhs, dims):
    """Batched bf16 matmul with f32 accumulation."""
    return lax.dot_general(lhs.astype(BF16), rhs.astype(BF16), dims,
                           preferred_element_type=F32)


# --------------------------------------------------------------------------------------
# Fused decoder kernel: one grid step = (batch element, layer)
# --------------------------------------------------------------------------------------
def _fused_decoder_kernel(tgt_ref, qpos_ref, src_ref, txt_ref, svm_ref, tvm_ref,
                          qb_ref, refs_ref, reft_ref,
                          w_qk, b_qk, w_v, b_v, w_o, b_o,
                          wv_s, bv_s, woa_s, boa_s, wo_s, bo_s,
                          wv_t, bv_t, woa_t, boa_t, wo_t, bo_t,
                          w1, b1, w2, b2, ng, nb,
                          o_ref, carry_ref, *, n_heads, n_points,
                          src_shapes, src_starts, txt_shapes, txt_starts):
    layer = pl.program_id(1)

    @pl.when(layer == 0)
    def _():
        carry_ref[...] = tgt_ref[0]

    x = carry_ref[...]                                       # (Q, D) f32
    pos = qpos_ref[0]
    Q, D = x.shape
    H = n_heads
    dh = D // H

    def layer_norm(y, i):
        g = ng[0][i:i + 1, :]
        b = nb[0][i:i + 1, :]
        mu = jnp.mean(y, axis=-1, keepdims=True)
        yc = y - mu
        var = jnp.mean(yc * yc, axis=-1, keepdims=True)
        return yc * lax.rsqrt(var + 1e-5) * g + b

    def softmax_last(s):
        m = jnp.max(s, axis=-1, keepdims=True)
        e = jnp.exp(s - m)
        return e * pl.reciprocal(jnp.sum(e, axis=-1, keepdims=True), approx=True)

    # ---------------- self attention (heads as dot_general batch dim) ----------------
    xq = x + pos
    qk = _mm(xq, w_qk[0]) + b_qk[0]                          # (Q, 2D) fused q/k proj
    q3 = qk[:, :D].reshape(Q, H, dh)
    k3 = qk[:, D:].reshape(Q, H, dh)
    v3 = (_mm(x, w_v[0]) + b_v[0]).reshape(Q, H, dh)
    scores = _bdot(q3, k3, (((2,), (2,)), ((1,), (1,)))) * (1.0 / (dh ** 0.5))  # (H,Q,Q)
    scores = scores + qb_ref[0][None]                        # key-padding bias (1,1,Q)
    p = softmax_last(scores)
    ctx = _bdot(p, v3, (((2,), (0,)), ((0,), (1,))))         # (H, Q, dh)
    sa = jnp.swapaxes(ctx, 0, 1).reshape(Q, D)
    sa = _mm(sa, w_o[0]) + b_o[0]
    x = layer_norm(x + sa, 0)

    # ---------------- 1-D multi-scale deformable attention ----------------
    def deform(x_q, mem_ref, vmask_ref, ref_ref, w_val, b_val, w_oa, b_oa,
               w_out, b_out, shapes, starts):
        L = len(shapes)
        P = n_points
        LP = L * P
        K = H * LP
        mem = mem_ref[0]                                      # (S, D) bf16
        S = mem.shape[0]
        # value projection, padded positions zeroed
        val = (jnp.dot(mem, w_val[0], preferred_element_type=F32) + b_val[0]) * vmask_ref[0]
        val3 = val.reshape(S, H, dh)                          # (S, H, dh)

        oa = _mm(x_q, w_oa[0]) + b_oa[0]                      # (Q, 2K) fused offset/attn
        off3 = oa[:, :K].reshape(Q, H, LP)
        logit3 = oa[:, K:].reshape(Q, H, LP)
        aw3 = softmax_last(logit3)                            # per-(query, head) softmax

        ref = ref_ref[0]                                      # (Q, 2L): centers | widths
        cen = ref[:, :L]
        wid = ref[:, L:]

        fullv = jnp.zeros((H, Q, dh), F32)
        for l in range(L):
            T = int(shapes[l])
            st = int(starts[l])
            off_l = off3[:, :, l * P:(l + 1) * P]             # (Q, H, P)
            aw_l = aw3[:, :, l * P:(l + 1) * P]               # (Q, H, P)
            cen_l = cen[:, l:l + 1][:, :, None]               # (Q, 1, 1)
            wid_l = wid[:, l:l + 1][:, :, None]               # (Q, 1, 1)
            # normalized sampling loc -> pixel coords (align_corners=False)
            xpix = (cen_l + off_l * ((0.5 / P) * wid_l)) * T - 0.5     # (Q, H, P)
            idxf = lax.broadcasted_iota(jnp.int32, (1, 1, T), 2).astype(F32)
            # per-level interpolation-weight map (triangular kernel == linear interp
            # with zeros padding: out-of-range taps contribute nothing)
            wm = jnp.zeros((Q, H, T), F32)
            for pp in range(P):
                xp = xpix[:, :, pp:pp + 1]                    # (Q, H, 1)
                tri = jnp.maximum(0.0, 1.0 - jnp.abs(idxf - xp))
                wm = wm + aw_l[:, :, pp:pp + 1] * tri
            val_l = val3[st:st + T]                           # (T, H, dh) static slice
            fullv = fullv + _bdot(wm, val_l, (((2,), (0,)), ((1,), (1,))))  # (H, Q, dh)

        out = jnp.swapaxes(fullv, 0, 1).reshape(Q, D)
        return _mm(out, w_out[0]) + b_out[0]

    ca = deform(x + pos, src_ref, svm_ref, refs_ref, wv_s, bv_s, woa_s, boa_s,
                wo_s, bo_s, src_shapes, src_starts)
    x = layer_norm(x + ca, 1)

    ct = deform(x + pos, txt_ref, tvm_ref, reft_ref, wv_t, bv_t, woa_t, boa_t,
                wo_t, bo_t, txt_shapes, txt_starts)
    x = layer_norm(x + ct, 2)

    # ---------------- FFN ----------------
    h = jnp.maximum(_mm(x, w1[0]) + b1[0], 0.0)
    y = _mm(h, w2[0]) + b2[0]
    x = layer_norm(x + y, 3)

    carry_ref[...] = x
    o_ref[0, 0] = x


# --------------------------------------------------------------------------------------
# Decoder wrapper: ONE pallas_call for all layers, grid = (batch, layer)
# --------------------------------------------------------------------------------------
def deformable_transformer_decoder(params, tgt, reference_points, src,
                                   src_temporal_shapes, src_level_start_index,
                                   src_valid_ratios, query_pos, src_padding_mask,
                                   query_padding_mask, text_feat, txt_temporal_shapes,
                                   txt_level_start_index, txt_valid_ratios,
                                   txt_mask_flatten, *, n_heads, n_points,
                                   return_intermediate=False,
                                   disable_iterative_refine=False):
    assert reference_points.shape[-1] == 2
    num_layers = len(params["layers"])
    bs, nq, d = tgt.shape
    s_src = src.shape[1]
    s_txt = text_feat.shape[1]
    l_src = len(src_temporal_shapes)
    l_txt = len(txt_temporal_shapes)

    # reference_points_input: tiny, plain jnp.  Hoisted out of the layer loop because
    # reference_points never changes (bbox_head is None in the reference).
    def pack_ref(valid_ratios):
        ref = reference_points[:, :, None, :] * valid_ratios[:, None, :, None]  # (bs,Q,L,2)
        return jnp.concatenate([ref[..., 0], ref[..., 1]], axis=-1).astype(F32)  # (bs,Q,2L)

    ref_src = pack_ref(src_valid_ratios)
    ref_txt = pack_ref(txt_valid_ratios)
    src_vmask = (~src_padding_mask).astype(F32)[:, :, None]                 # (bs, S_src, 1)
    txt_vmask = (~txt_mask_flatten).astype(F32)[:, :, None]                 # (bs, S_txt, 1)
    q_bias = jnp.where(query_padding_mask, -1e9, 0.0).astype(F32)[:, None, :]  # (bs, 1, Q)

    # Stack per-layer weights along a leading layer axis; matrices -> bf16.
    weights = []
    for k in _WKEYS:
        w = jnp.stack([lp[k] for lp in params["layers"]])
        weights.append(w.astype(BF16) if k in _MAT_KEYS else w.astype(F32))

    data_inputs = [tgt.astype(F32), query_pos.astype(F32),
                   src.astype(BF16), text_feat.astype(BF16),
                   src_vmask, txt_vmask, q_bias, ref_src, ref_txt]

    def bspec(arr):   # batch-sliced, constant in layer axis -> DMA'd once per batch
        nd = arr.ndim
        return pl.BlockSpec((1,) + arr.shape[1:],
                            lambda b, l, _nd=nd: (b,) + (0,) * (_nd - 1))

    def wspec(arr):   # layer-stacked weight -> prefetched per layer step
        nd = arr.ndim
        return pl.BlockSpec((1,) + arr.shape[1:],
                            lambda b, l, _nd=nd: (l,) + (0,) * (_nd - 1))

    in_specs = [bspec(a) for a in data_inputs] + [wspec(w) for w in weights]
    out_spec = pl.BlockSpec((1, 1, nq, d), lambda b, l: (l, b, 0, 0))

    # VMEM budget from the actual block working set (double-buffered) + compute margin.
    def blk_bytes(a):
        return math.prod((1,) + a.shape[1:]) * a.dtype.itemsize
    est = 2 * sum(blk_bytes(a) for a in data_inputs + weights)
    est += 2 * nq * d * 4 + nq * d * 4                          # output block + carry
    est += 4 * (s_src + s_txt) * d * 4                          # value / intermediate f32
    est += 4 * nq * nq * n_heads * 4 + (2 << 20)                # scores + slack
    vmem_limit = int(min(max(2 * est, 16 << 20), 56 << 20))     # v7x-safe cap

    kernel = functools.partial(
        _fused_decoder_kernel, n_heads=n_heads, n_points=n_points,
        src_shapes=tuple(int(t) for t in src_temporal_shapes),
        src_starts=tuple(int(t) for t in src_level_start_index),
        txt_shapes=tuple(int(t) for t in txt_temporal_shapes),
        txt_starts=tuple(int(t) for t in txt_level_start_index))

    out_all = pl.pallas_call(
        kernel,
        grid=(bs, num_layers),
        in_specs=in_specs,
        out_specs=out_spec,
        out_shape=jax.ShapeDtypeStruct((num_layers, bs, nq, d), F32),
        scratch_shapes=[pltpu.VMEM((nq, d), F32)],
        compiler_params=pltpu.CompilerParams(
            dimension_semantics=("parallel", "arbitrary"),
            vmem_limit_bytes=vmem_limit),
    )(*data_inputs, *weights)

    # bbox_head is None -> reference_points unchanged (disable_iterative_refine moot).
    if return_intermediate:
        refs_all = jnp.broadcast_to(reference_points,
                                    (num_layers,) + reference_points.shape)
        return out_all, refs_all
    return out_all[-1], reference_points


# --------------------------------------------------------------------------------------
# Deterministic parameter initialization
# --------------------------------------------------------------------------------------
def init_params(key, num_layers, d_model, d_ffn, n_heads, n_levels, n_points):
    k_oa = n_heads * n_levels * n_points

    def lin(k, din, dout, scale=0.05):
        return (scale * jax.random.normal(k, (din, dout), F32),
                jnp.zeros((1, dout), F32))

    layers = []
    for lk in jax.random.split(key, num_layers):
        ks = jax.random.split(lk, 11)
        p = {}
        p["w_qk"], p["b_qk"] = lin(ks[0], d_model, 2 * d_model)
        p["w_v"], p["b_v"] = lin(ks[1], d_model, d_model)
        p["w_o"], p["b_o"] = lin(ks[2], d_model, d_model)
        p["wv_s"], p["bv_s"] = lin(ks[3], d_model, d_model)
        p["woa_s"], p["boa_s"] = lin(ks[4], d_model, 2 * k_oa, 0.1)
        p["wo_s"], p["bo_s"] = lin(ks[5], d_model, d_model)
        p["wv_t"], p["bv_t"] = lin(ks[6], d_model, d_model)
        p["woa_t"], p["boa_t"] = lin(ks[7], d_model, 2 * k_oa, 0.1)
        p["wo_t"], p["bo_t"] = lin(ks[8], d_model, d_model)
        p["w1"], p["b1"] = lin(ks[9], d_model, d_ffn)
        p["w2"], p["b2"] = lin(ks[10], d_ffn, d_model)
        p["ng"] = jnp.ones((4, d_model), F32)
        p["nb"] = jnp.zeros((4, d_model), F32)
        layers.append(p)
    return {"layers": layers}


# --------------------------------------------------------------------------------------
if __name__ == "__main__":
    bs, num_queries, d_model, n_heads, n_points, d_ffn = 2, 8, 32, 4, 2, 64
    num_layers = 2
    src_temporal_shapes = (16, 8)
    src_level_start_index = (0, 16)
    txt_temporal_shapes = (8, 4)
    txt_level_start_index = (0, 8)
    n_levels = len(src_temporal_shapes)
    s_src = sum(src_temporal_shapes)
    s_txt = sum(txt_temporal_shapes)

    key = jax.random.PRNGKey(0)
    keys = jax.random.split(key, 10)
    params = init_params(keys[0], num_layers, d_model, d_ffn, n_heads, n_levels, n_points)

    tgt = jax.random.normal(keys[1], (bs, num_queries, d_model), F32)
    query_pos = jax.random.normal(keys[2], (bs, num_queries, d_model), F32)
    reference_points = jax.nn.sigmoid(
        jax.random.normal(keys[3], (bs, num_queries, 2), F32))            # (center,width)
    src = jax.random.normal(keys[4], (bs, s_src, d_model), F32)
    text_feat = jax.random.normal(keys[5], (bs, s_txt, d_model), F32)
    src_valid_ratios = 0.5 + 0.5 * jax.nn.sigmoid(
        jax.random.normal(keys[6], (bs, n_levels), F32))
    txt_valid_ratios = 0.5 + 0.5 * jax.nn.sigmoid(
        jax.random.normal(keys[7], (bs, n_levels), F32))
    src_padding_mask = jnp.zeros((bs, s_src), bool).at[:, -2:].set(True)
    txt_mask_flatten = jnp.zeros((bs, s_txt), bool).at[:, -1:].set(True)
    query_padding_mask = jnp.zeros((bs, num_queries), bool)

    def run(params, tgt, reference_points, src, src_valid_ratios, query_pos,
            src_padding_mask, query_padding_mask, text_feat, txt_valid_ratios,
            txt_mask_flatten):
        return deformable_transformer_decoder(
            params, tgt, reference_points, src, src_temporal_shapes,
            src_level_start_index, src_valid_ratios, query_pos, src_padding_mask,
            query_padding_mask, text_feat, txt_temporal_shapes,
            txt_level_start_index, txt_valid_ratios, txt_mask_flatten,
            n_heads=n_heads, n_points=n_points, return_intermediate=False)

    out, refs = jax.jit(run)(params, tgt, reference_points, src, src_valid_ratios,
                             query_pos, src_padding_mask, query_padding_mask,
                             text_feat, txt_valid_ratios, txt_mask_flatten)
    jax.block_until_ready((out, refs))

    assert out.shape == (bs, num_queries, d_model)
    assert refs.shape == (bs, num_queries, 2)
    assert bool(jnp.all(jnp.isfinite(out))) and bool(jnp.all(jnp.isfinite(refs)))
    print("KERNEL_OK")
</pallas_src>

<mosaic_0001>
module attributes {stable_mosaic.version = 11 : i64} {
  func.func @_fused_decoder_kernel(%arg0: i32, %arg1: i32, %arg2: memref<1x8x32xf32, #tpu.memory_space<vmem>>, %arg3: memref<1x8x32xf32, #tpu.memory_space<vmem>>, %arg4: memref<1x24x32xbf16, #tpu.memory_space<vmem>>, %arg5: memref<1x12x32xbf16, #tpu.memory_space<vmem>>, %arg6: memref<1x24x1xf32, #tpu.memory_space<vmem>>, %arg7: memref<1x12x1xf32, #tpu.memory_space<vmem>>, %arg8: memref<1x1x8xf32, #tpu.memory_space<vmem>>, %arg9: memref<1x8x4xf32, #tpu.memory_space<vmem>>, %arg10: memref<1x8x4xf32, #tpu.memory_space<vmem>>, %arg11: memref<1x32x64xbf16, #tpu.memory_space<vmem>>, %arg12: memref<1x1x64xf32, #tpu.memory_space<vmem>>, %arg13: memref<1x32x32xbf16, #tpu.memory_space<vmem>>, %arg14: memref<1x1x32xf32, #tpu.memory_space<vmem>>, %arg15: memref<1x32x32xbf16, #tpu.memory_space<vmem>>, %arg16: memref<1x1x32xf32, #tpu.memory_space<vmem>>, %arg17: memref<1x32x32xbf16, #tpu.memory_space<vmem>>, %arg18: memref<1x1x32xf32, #tpu.memory_space<vmem>>, %arg19: memref<1x32x32xbf16, #tpu.memory_space<vmem>>, %arg20: memref<1x1x32xf32, #tpu.memory_space<vmem>>, %arg21: memref<1x32x32xbf16, #tpu.memory_space<vmem>>, %arg22: memref<1x1x32xf32, #tpu.memory_space<vmem>>, %arg23: memref<1x32x32xbf16, #tpu.memory_space<vmem>>, %arg24: memref<1x1x32xf32, #tpu.memory_space<vmem>>, %arg25: memref<1x32x32xbf16, #tpu.memory_space<vmem>>, %arg26: memref<1x1x32xf32, #tpu.memory_space<vmem>>, %arg27: memref<1x32x32xbf16, #tpu.memory_space<vmem>>, %arg28: memref<1x1x32xf32, #tpu.memory_space<vmem>>, %arg29: memref<1x32x64xbf16, #tpu.memory_space<vmem>>, %arg30: memref<1x1x64xf32, #tpu.memory_space<vmem>>, %arg31: memref<1x64x32xbf16, #tpu.memory_space<vmem>>, %arg32: memref<1x1x32xf32, #tpu.memory_space<vmem>>, %arg33: memref<1x4x32xf32, #tpu.memory_space<vmem>>, %arg34: memref<1x4x32xf32, #tpu.memory_space<vmem>>, %arg35: memref<1x1x8x32xf32, #tpu.memory_space<vmem>>, %arg36: memref<8x32xf32, #tpu.memory_space<vmem>>) attributes {dimension_semantics = [#tpu.dimension_semantics<parallel>, #tpu.dimension_semantics<arbitrary>], iteration_bounds = array<i64: 2, 2>, scalar_prefetch = 0 : i64, scratch_operands = 1 : i64, tpu.core_type = #tpu.core_type<tc>, window_params = [{transform_indices = @transform_0, window_bounds = array<i64: 1, 8, 32>}, {transform_indices = @transform_1, window_bounds = array<i64: 1, 8, 32>}, {transform_indices = @transform_2, window_bounds = array<i64: 1, 24, 32>}, {transform_indices = @transform_3, window_bounds = array<i64: 1, 12, 32>}, {transform_indices = @transform_4, window_bounds = array<i64: 1, 24, 1>}, {transform_indices = @transform_5, window_bounds = array<i64: 1, 12, 1>}, {transform_indices = @transform_6, window_bounds = array<i64: 1, 1, 8>}, {transform_indices = @transform_7, window_bounds = array<i64: 1, 8, 4>}, {transform_indices = @transform_8, window_bounds = array<i64: 1, 8, 4>}, {transform_indices = @transform_9, window_bounds = array<i64: 1, 32, 64>}, {transform_indices = @transform_10, window_bounds = array<i64: 1, 1, 64>}, {transform_indices = @transform_11, window_bounds = array<i64: 1, 32, 32>}, {transform_indices = @transform_12, window_bounds = array<i64: 1, 1, 32>}, {transform_indices = @transform_13, window_bounds = array<i64: 1, 32, 32>}, {transform_indices = @transform_14, window_bounds = array<i64: 1, 1, 32>}, {transform_indices = @transform_15, window_bounds = array<i64: 1, 32, 32>}, {transform_indices = @transform_16, window_bounds = array<i64: 1, 1, 32>}, {transform_indices = @transform_17, window_bounds = array<i64: 1, 32, 32>}, {transform_indices = @transform_18, window_bounds = array<i64: 1, 1, 32>}, {transform_indices = @transform_19, window_bounds = array<i64: 1, 32, 32>}, {transform_indices = @transform_20, window_bounds = array<i64: 1, 1, 32>}, {transform_indices = @transform_21, window_bounds = array<i64: 1, 32, 32>}, {transform_indices = @transform_22, window_bounds = array<i64: 1, 1, 32>}, {transform_indices = @transform_23, window_bounds = array<i64: 1, 32, 32>}, {transform_indices = @transform_24, window_bounds = array<i64: 1, 1, 32>}, {transform_indices = @transform_25, window_bounds = array<i64: 1, 32, 32>}, {transform_indices = @transform_26, window_bounds = array<i64: 1, 1, 32>}, {transform_indices = @transform_27, window_bounds = array<i64: 1, 32, 64>}, {transform_indices = @transform_28, window_bounds = array<i64: 1, 1, 64>}, {transform_indices = @transform_29, window_bounds = array<i64: 1, 64, 32>}, {transform_indices = @transform_30, window_bounds = array<i64: 1, 1, 32>}, {transform_indices = @transform_31, window_bounds = array<i64: 1, 4, 32>}, {transform_indices = @transform_32, window_bounds = array<i64: 1, 4, 32>}, {transform_indices = @transform_33, window_bounds = array<i64: 1, 1, 8, 32>}]} {
    %c0_i32 = arith.constant 0 : i32
    %0 = arith.cmpi eq, %arg1, %c0_i32 : i32
    %1 = arith.extui %0 : i1 to i32
    %c0_i32_0 = arith.constant 0 : i32
    %2 = arith.cmpi ne, %1, %c0_i32_0 : i32
    scf.if %2 {
      %c0_200 = arith.constant 0 : index
      %c0_201 = arith.constant 0 : index
      %c0_202 = arith.constant 0 : index
      %495 = vector.load %arg2[%c0_200, %c0_201, %c0_202] : memref<1x8x32xf32, #tpu.memory_space<vmem>>, vector<1x8x32xf32>
      %496 = vector.shape_cast %495 : vector<1x8x32xf32> to vector<8x32xf32>
      %c0_203 = arith.constant 0 : index
      %c0_204 = arith.constant 0 : index
      %497 = vector.load %arg36[%c0_203, %c0_204] : memref<8x32xf32, #tpu.memory_space<vmem>>, vector<8x32xf32>
      tpu.vector_store %arg36[%c0_203, %c0_204], %496 {strides = array<i32>} : memref<8x32xf32, #tpu.memory_space<vmem>>, vector<8x32xf32>,
    } else {
    }
    %c0 = arith.constant 0 : index
    %c0_1 = arith.constant 0 : index
    %3 = vector.load %arg36[%c0, %c0_1] : memref<8x32xf32, #tpu.memory_space<vmem>>, vector<8x32xf32>
    %c0_2 = arith.constant 0 : index
    %c0_3 = arith.constant 0 : index
    %c0_4 = arith.constant 0 : index
    %4 = vector.load %arg3[%c0_2, %c0_3, %c0_4] : memref<1x8x32xf32, #tpu.memory_space<vmem>>, vector<1x8x32xf32>
    %5 = vector.shape_cast %4 : vector<1x8x32xf32> to vector<8x32xf32>
    %6 = arith.addf %3, %5 : vector<8x32xf32>
    %c0_5 = arith.constant 0 : index
    %c0_6 = arith.constant 0 : index
    %c0_7 = arith.constant 0 : index
    %7 = vector.load %arg11[%c0_5, %c0_6, %c0_7] : memref<1x32x64xbf16, #tpu.memory_space<vmem>>, vector<1x32x64xbf16>
    %8 = vector.shape_cast %7 : vector<1x32x64xbf16> to vector<32x64xbf16>
    %9 = arith.truncf %6 : vector<8x32xf32> to vector<8x32xbf16>
    %cst = arith.constant dense<0.000000e+00> : vector<8x64xf32>
    %10 = tpu.matmul %9, %8, %cst {dimension_numbers = #tpu.dot_dimension_numbers<[1], [0], [0], [1], [0, 0, 1, 1], [], []>} : vector<8x32xbf16>, vector<32x64xbf16>, vector<8x64xf32> -> vector<8x64xf32>
    %c0_8 = arith.constant 0 : index
    %c0_9 = arith.constant 0 : index
    %c0_10 = arith.constant 0 : index
    %11 = vector.load %arg12[%c0_8, %c0_9, %c0_10] : memref<1x1x64xf32, #tpu.memory_space<vmem>>, vector<1x1x64xf32>
    %12 = vector.shape_cast %11 : vector<1x1x64xf32> to vector<1x64xf32>
    %13 = vector.broadcast %12 : vector<1x64xf32> to vector<8x64xf32>
    %14 = arith.addf %10, %13 : vector<8x64xf32>
    %15 = vector.extract_strided_slice %14 {offsets = [0, 0], sizes = [8, 32], strides = [1, 1]} : vector<8x64xf32> to vector<8x32xf32>
    %16 = vector.shape_cast %15 : vector<8x32xf32> to vector<8x4x8xf32>
    %17 = vector.extract_strided_slice %14 {offsets = [0, 32], sizes = [8, 32], strides = [1, 1]} : vector<8x64xf32> to vector<8x32xf32>
    %18 = vector.shape_cast %17 : vector<8x32xf32> to vector<8x4x8xf32>
    %c0_11 = arith.constant 0 : index
    %c0_12 = arith.constant 0 : index
    %c0_13 = arith.constant 0 : index
    %19 = vector.load %arg13[%c0_11, %c0_12, %c0_13] : memref<1x32x32xbf16, #tpu.memory_space<vmem>>, vector<1x32x32xbf16>
    %20 = vector.shape_cast %19 : vector<1x32x32xbf16> to vector<32x32xbf16>
    %21 = arith.truncf %3 : vector<8x32xf32> to vector<8x32xbf16>
    %cst_14 = arith.constant dense<0.000000e+00> : vector<8x32xf32>
    %22 = tpu.matmul %21, %20, %cst_14 {dimension_numbers = #tpu.dot_dimension_numbers<[1], [0], [0], [1], [0, 0, 1, 1], [], []>} : vector<8x32xbf16>, vector<32x32xbf16>, vector<8x32xf32> -> vector<8x32xf32>
    %c0_15 = arith.constant 0 : index
    %c0_16 = arith.constant 0 : index
    %c0_17 = arith.constant 0 : index
    %23 = vector.load %arg14[%c0_15, %c0_16, %c0_17] : memref<1x1x32xf32, #tpu.memory_space<vmem>>, vector<1x1x32xf32>
    %24 = vector.shape_cast %23 : vector<1x1x32xf32> to vector<1x32xf32>
    %25 = vector.broadcast %24 : vector<1x32xf32> to vector<8x32xf32>
    %26 = arith.addf %22, %25 : vector<8x32xf32>
    %27 = vector.shape_cast %26 : vector<8x32xf32> to vector<8x4x8xf32>
    %28 = arith.truncf %16 : vector<8x4x8xf32> to vector<8x4x8xbf16>
    %29 = arith.truncf %18 : vector<8x4x8xf32> to vector<8x4x8xbf16>
    %cst_18 = arith.constant dense<0.000000e+00> : vector<4x8x8xf32>
    %30 = tpu.matmul %28, %29, %cst_18 {dimension_numbers = #tpu.dot_dimension_numbers<[2], [2], [0], [0], [0, 1, 0, 0, 1, 0], [1], [1]>} : vector<8x4x8xbf16>, vector<8x4x8xbf16>, vector<4x8x8xf32> -> vector<4x8x8xf32>
    %cst_19 = arith.constant 0.353553385 : f32
    %31 = vector.broadcast %cst_19 : f32 to vector<4x8x8xf32>
    %32 = arith.mulf %30, %31 : vector<4x8x8xf32>
    %c0_20 = arith.constant 0 : index
    %c0_21 = arith.constant 0 : index
    %c0_22 = arith.constant 0 : index
    %33 = vector.load %arg8[%c0_20, %c0_21, %c0_22] : memref<1x1x8xf32, #tpu.memory_space<vmem>>, vector<1x1x8xf32>
    %34 = vector.shape_cast %33 : vector<1x1x8xf32> to vector<1x8xf32>
    %35 = vector.shape_cast %34 : vector<1x8xf32> to vector<1x1x8xf32>
    %36 = vector.broadcast %35 : vector<1x1x8xf32> to vector<4x8x8xf32>
    %37 = arith.addf %32, %36 : vector<4x8x8xf32>
    %cst_23 = arith.constant dense<0xFF800000> : vector<4x8xf32>
    %38 = vector.multi_reduction <maximumf>, %37, %cst_23 [2] : vector<4x8x8xf32> to vector<4x8xf32>
    %39 = vector.shape_cast %38 : vector<4x8xf32> to vector<4x8x1xf32>
    %40 = vector.broadcast %39 : vector<4x8x1xf32> to vector<4x8x8xf32>
    %41 = arith.subf %37, %40 : vector<4x8x8xf32>
    %42 = math.exp %41 : vector<4x8x8xf32>
    %cst_24 = arith.constant dense<0.000000e+00> : vector<4x8xf32>
    %43 = vector.multi_reduction <add>, %42, %cst_24 [2] : vector<4x8x8xf32> to vector<4x8xf32>
    %44 = vector.shape_cast %43 : vector<4x8xf32> to vector<4x8x1xf32>
    %45 = tpu.reciprocal %44 {approx = true} : vector<4x8x1xf32> -> vector<4x8x1xf32>
    %46 = vector.broadcast %45 : vector<4x8x1xf32> to vector<4x8x8xf32>
    %47 = arith.mulf %42, %46 : vector<4x8x8xf32>
    %48 = arith.truncf %47 : vector<4x8x8xf32> to vector<4x8x8xbf16>
    %49 = arith.truncf %27 : vector<8x4x8xf32> to vector<8x4x8xbf16>
    %cst_25 = arith.constant dense<0.000000e+00> : vector<4x8x8xf32>
    %50 = tpu.matmul %48, %49, %cst_25 {dimension_numbers = #tpu.dot_dimension_numbers<[2], [0], [1], [2], [0, 0, 0, 1, 1, 2], [0], [1]>} : vector<4x8x8xbf16>, vector<8x4x8xbf16>, vector<4x8x8xf32> -> vector<4x8x8xf32>
    %51 = tpu.transpose %50, [1, 0, 2] : vector<4x8x8xf32> -> vector<8x4x8xf32>
    %52 = vector.shape_cast %51 : vector<8x4x8xf32> to vector<8x32xf32>
    %c0_26 = arith.constant 0 : index
    %c0_27 = arith.constant 0 : index
    %c0_28 = arith.constant 0 : index
    %53 = vector.load %arg15[%c0_26, %c0_27, %c0_28] : memref<1x32x32xbf16, #tpu.memory_space<vmem>>, vector<1x32x32xbf16>
    %54 = vector.shape_cast %53 : vector<1x32x32xbf16> to vector<32x32xbf16>
    %55 = arith.truncf %52 : vector<8x32xf32> to vector<8x32xbf16>
    %cst_29 = arith.constant dense<0.000000e+00> : vector<8x32xf32>
    %56 = tpu.matmul %55, %54, %cst_29 {dimension_numbers = #tpu.dot_dimension_numbers<[1], [0], [0], [1], [0, 0, 1, 1], [], []>} : vector<8x32xbf16>, vector<32x32xbf16>, vector<8x32xf32> -> vector<8x32xf32>
    %c0_30 = arith.constant 0 : index
    %c0_31 = arith.constant 0 : index
    %c0_32 = arith.constant 0 : index
    %57 = vector.load %arg16[%c0_30, %c0_31, %c0_32] : memref<1x1x32xf32, #tpu.memory_space<vmem>>, vector<1x1x32xf32>
    %58 = vector.shape_cast %57 : vector<1x1x32xf32> to vector<1x32xf32>
    %59 = vector.broadcast %58 : vector<1x32xf32> to vector<8x32xf32>
    %60 = arith.addf %56, %59 : vector<8x32xf32>
    %61 = arith.addf %3, %60 : vector<8x32xf32>
    %c0_33 = arith.constant 0 : index
    %c0_34 = arith.constant 0 : index
    %c0_35 = arith.constant 0 : index
    %62 = vector.load %arg33[%c0_33, %c0_34, %c0_35] : memref<1x4x32xf32, #tpu.memory_space<vmem>>, vector<1x4x32xf32>
    %63 = vector.shape_cast %62 : vector<1x4x32xf32> to vector<4x32xf32>
    %64 = vector.extract_strided_slice %63 {offsets = [0, 0], sizes = [1, 32], strides = [1, 1]} : vector<4x32xf32> to vector<1x32xf32>
    %c0_36 = arith.constant 0 : index
    %c0_37 = arith.constant 0 : index
    %c0_38 = arith.constant 0 : index
    %65 = vector.load %arg34[%c0_36, %c0_37, %c0_38] : memref<1x4x32xf32, #tpu.memory_space<vmem>>, vector<1x4x32xf32>
    %66 = vector.shape_cast %65 : vector<1x4x32xf32> to vector<4x32xf32>
    %67 = vector.extract_strided_slice %66 {offsets = [0, 0], sizes = [1, 32], strides = [1, 1]} : vector<4x32xf32> to vector<1x32xf32>
    %cst_39 = arith.constant dense<0.000000e+00> : vector<8xf32>
    %68 = vector.multi_reduction <add>, %61, %cst_39 [1] : vector<8x32xf32> to vector<8xf32>
    %69 = vector.shape_cast %68 : vector<8xf32> to vector<8x1xf32>
    %cst_40 = arith.constant 3.200000e+01 : f32
    %70 = vector.broadcast %cst_40 : f32 to vector<8x1xf32>
    %71 = arith.divf %69, %70 : vector<8x1xf32>
    %72 = vector.broadcast %71 : vector<8x1xf32> to vector<8x32xf32>
    %73 = arith.subf %61, %72 : vector<8x32xf32>
    %74 = arith.mulf %73, %73 : vector<8x32xf32>
    %cst_41 = arith.constant dense<0.000000e+00> : vector<8xf32>
    %75 = vector.multi_reduction <add>, %74, %cst_41 [1] : vector<8x32xf32> to vector<8xf32>
    %76 = vector.shape_cast %75 : vector<8xf32> to vector<8x1xf32>
    %cst_42 = arith.constant 3.200000e+01 : f32
    %77 = vector.broadcast %cst_42 : f32 to vector<8x1xf32>
    %78 = arith.divf %76, %77 : vector<8x1xf32>
    %cst_43 = arith.constant 9.99999974E-6 : f32
    %79 = vector.broadcast %cst_43 : f32 to vector<8x1xf32>
    %80 = arith.addf %78, %79 : vector<8x1xf32>
    %81 = math.rsqrt %80 : vector<8x1xf32>
    %82 = vector.broadcast %81 : vector<8x1xf32> to vector<8x32xf32>
    %83 = arith.mulf %73, %82 : vector<8x32xf32>
    %84 = vector.broadcast %64 : vector<1x32xf32> to vector<8x32xf32>
    %85 = arith.mulf %83, %84 : vector<8x32xf32>
    %86 = vector.broadcast %67 : vector<1x32xf32> to vector<8x32xf32>
    %87 = arith.addf %85, %86 : vector<8x32xf32>
    %88 = arith.addf %87, %5 : vector<8x32xf32>
    %c0_44 = arith.constant 0 : index
    %c0_45 = arith.constant 0 : index
    %c0_46 = arith.constant 0 : index
    %89 = vector.load %arg4[%c0_44, %c0_45, %c0_46] : memref<1x24x32xbf16, #tpu.memory_space<vmem>>, vector<1x24x32xbf16>
    %90 = vector.shape_cast %89 : vector<1x24x32xbf16> to vector<24x32xbf16>
    %c0_47 = arith.constant 0 : index
    %c0_48 = arith.constant 0 : index
    %c0_49 = arith.constant 0 : index
    %91 = vector.load %arg17[%c0_47, %c0_48, %c0_49] : memref<1x32x32xbf16, #tpu.memory_space<vmem>>, vector<1x32x32xbf16>
    %92 = vector.shape_cast %91 : vector<1x32x32xbf16> to vector<32x32xbf16>
    %cst_50 = arith.constant dense<0.000000e+00> : vector<24x32xf32>
    %93 = tpu.matmul %90, %92, %cst_50 {dimension_numbers = #tpu.dot_dimension_numbers<[1], [0], [0], [1], [0, 0, 1, 1], [], []>} : vector<24x32xbf16>, vector<32x32xbf16>, vector<24x32xf32> -> vector<24x32xf32>
    %c0_51 = arith.constant 0 : index
    %c0_52 = arith.constant 0 : index
    %c0_53 = arith.constant 0 : index
    %94 = vector.load %arg18[%c0_51, %c0_52, %c0_53] : memref<1x1x32xf32, #tpu.memory_space<vmem>>, vector<1x1x32xf32>
    %95 = vector.shape_cast %94 : vector<1x1x32xf32> to vector<1x32xf32>
    %96 = vector.broadcast %95 : vector<1x32xf32> to vector<24x32xf32>
    %97 = arith.addf %93, %96 : vector<24x32xf32>
    %c0_54 = arith.constant 0 : index
    %c0_55 = arith.constant 0 : index
    %c0_56 = arith.constant 0 : index
    %98 = vector.load %arg6[%c0_54, %c0_55, %c0_56] : memref<1x24x1xf32, #tpu.memory_space<vmem>>, vector<1x24x1xf32>
    %99 = vector.shape_cast %98 : vector<1x24x1xf32> to vector<24x1xf32>
    %100 = vector.broadcast %99 : vector<24x1xf32> to vector<24x32xf32>
    %101 = arith.mulf %97, %100 : vector<24x32xf32>
    %102 = vector.shape_cast %101 : vector<24x32xf32> to vector<24x4x8xf32>
    %c0_57 = arith.constant 0 : index
    %c0_58 = arith.constant 0 : index
    %c0_59 = arith.constant 0 : index
    %103 = vector.load %arg19[%c0_57, %c0_58, %c0_59] : memref<1x32x32xbf16, #tpu.memory_space<vmem>>, vector<1x32x32xbf16>
    %104 = vector.shape_cast %103 : vector<1x32x32xbf16> to vector<32x32xbf16>
    %105 = arith.truncf %88 : vector<8x32xf32> to vector<8x32xbf16>
    %cst_60 = arith.constant dense<0.000000e+00> : vector<8x32xf32>
    %106 = tpu.matmul %105, %104, %cst_60 {dimension_numbers = #tpu.dot_dimension_numbers<[1], [0], [0], [1], [0, 0, 1, 1], [], []>} : vector<8x32xbf16>, vector<32x32xbf16>, vector<8x32xf32> -> vector<8x32xf32>
    %c0_61 = arith.constant 0 : index
    %c0_62 = arith.constant 0 : index
    %c0_63 = arith.constant 0 : index
    %107 = vector.load %arg20[%c0_61, %c0_62, %c0_63] : memref<1x1x32xf32, #tpu.memory_space<vmem>>, vector<1x1x32xf32>
    %108 = vector.shape_cast %107 : vector<1x1x32xf32> to vector<1x32xf32>
    %109 = vector.broadcast %108 : vector<1x32xf32> to vector<8x32xf32>
    %110 = arith.addf %106, %109 : vector<8x32xf32>
    %111 = vector.extract_strided_slice %110 {offsets = [0, 0], sizes = [8, 16], strides = [1, 1]} : vector<8x32xf32> to vector<8x16xf32>
    %112 = vector.shape_cast %111 : vector<8x16xf32> to vector<8x4x4xf32>
    %113 = vector.extract_strided_slice %110 {offsets = [0, 16], sizes = [8, 16], strides = [1, 1]} : vector<8x32xf32> to vector<8x16xf32>
    %114 = vector.shape_cast %113 : vector<8x16xf32> to vector<8x4x4xf32>
    %cst_64 = arith.constant dense<0xFF800000> : vector<8x4xf32>
    %115 = vector.multi_reduction <maximumf>, %114, %cst_64 [2] : vector<8x4x4xf32> to vector<8x4xf32>
    %116 = vector.shape_cast %115 : vector<8x4xf32> to vector<8x4x1xf32>
    %117 = vector.broadcast %116 : vector<8x4x1xf32> to vector<8x4x4xf32>
    %118 = arith.subf %114, %117 : vector<8x4x4xf32>
    %119 = math.exp %118 : vector<8x4x4xf32>
    %cst_65 = arith.constant dense<0.000000e+00> : vector<8x4xf32>
    %120 = vector.multi_reduction <add>, %119, %cst_65 [2] : vector<8x4x4xf32> to vector<8x4xf32>
    %121 = vector.shape_cast %120 : vector<8x4xf32> to vector<8x4x1xf32>
    %122 = tpu.reciprocal %121 {approx = true} : vector<8x4x1xf32> -> vector<8x4x1xf32>
    %123 = vector.broadcast %122 : vector<8x4x1xf32> to vector<8x4x4xf32>
    %124 = arith.mulf %119, %123 : vector<8x4x4xf32>
    %c0_66 = arith.constant 0 : index
    %c0_67 = arith.constant 0 : index
    %c0_68 = arith.constant 0 : index
    %125 = vector.load %arg9[%c0_66, %c0_67, %c0_68] : memref<1x8x4xf32, #tpu.memory_space<vmem>>, vector<1x8x4xf32>
    %126 = vector.shape_cast %125 : vector<1x8x4xf32> to vector<8x4xf32>
    %127 = vector.extract_strided_slice %126 {offsets = [0, 0], sizes = [8, 2], strides = [1, 1]} : vector<8x4xf32> to vector<8x2xf32>
    %128 = vector.extract_strided_slice %126 {offsets = [0, 2], sizes = [8, 2], strides = [1, 1]} : vector<8x4xf32> to vector<8x2xf32>
    %cst_69 = arith.constant 0.000000e+00 : f32
    %129 = vector.broadcast %cst_69 : f32 to vector<4x8x8xf32>
    %130 = vector.extract_strided_slice %112 {offsets = [0, 0, 0], sizes = [8, 4, 2], strides = [1, 1, 1]} : vector<8x4x4xf32> to vector<8x4x2xf32>
    %131 = vector.extract_strided_slice %124 {offsets = [0, 0, 0], sizes = [8, 4, 2], strides = [1, 1, 1]} : vector<8x4x4xf32> to vector<8x4x2xf32>
    %132 = vector.extract_strided_slice %127 {offsets = [0, 0], sizes = [8, 1], strides = [1, 1]} : vector<8x2xf32> to vector<8x1xf32>
    %133 = vector.shape_cast %132 : vector<8x1xf32> to vector<8x1x1xf32>
    %134 = vector.extract_strided_slice %128 {offsets = [0, 0], sizes = [8, 1], strides = [1, 1]} : vector<8x2xf32> to vector<8x1xf32>
    %135 = vector.shape_cast %134 : vector<8x1xf32> to vector<8x1x1xf32>
    %cst_70 = arith.constant 2.500000e-01 : f32
    %136 = vector.broadcast %cst_70 : f32 to vector<8x1x1xf32>
    %137 = arith.mulf %136, %135 : vector<8x1x1xf32>
    %138 = vector.broadcast %137 : vector<8x1x1xf32> to vector<8x4x2xf32>
    %139 = arith.mulf %130, %138 : vector<8x4x2xf32>
    %140 = vector.broadcast %133 : vector<8x1x1xf32> to vector<8x4x2xf32>
    %141 = arith.addf %140, %139 : vector<8x4x2xf32>
    %cst_71 = arith.constant 1.600000e+01 : f32
    %142 = vector.broadcast %cst_71 : f32 to vector<8x4x2xf32>
    %143 = arith.mulf %141, %142 : vector<8x4x2xf32>
    %cst_72 = arith.constant 5.000000e-01 : f32
    %144 = vector.broadcast %cst_72 : f32 to vector<8x4x2xf32>
    %145 = arith.subf %143, %144 : vector<8x4x2xf32>
    %146 = tpu.iota {dimensions = array<i32: 2>} : vector<1x1x16xi32>
    %147 = arith.sitofp %146 : vector<1x1x16xi32> to vector<1x1x16xf32>
    %cst_73 = arith.constant 0.000000e+00 : f32
    %148 = vector.broadcast %cst_73 : f32 to vector<8x4x16xf32>
    %149 = vector.extract_strided_slice %145 {offsets = [0, 0, 0], sizes = [8, 4, 1], strides = [1, 1, 1]} : vector<8x4x2xf32> to vector<8x4x1xf32>
    %150 = vector.broadcast %147 : vector<1x1x16xf32> to vector<8x4x16xf32>
    %151 = vector.broadcast %149 : vector<8x4x1xf32> to vector<8x4x16xf32>
    %152 = arith.subf %150, %151 : vector<8x4x16xf32>
    %153 = math.absf %152 : vector<8x4x16xf32>
    %cst_74 = arith.constant 1.000000e+00 : f32
    %154 = vector.broadcast %cst_74 : f32 to vector<8x4x16xf32>
    %155 = arith.subf %154, %153 : vector<8x4x16xf32>
    %cst_75 = arith.constant 0.000000e+00 : f32
    %156 = vector.broadcast %cst_75 : f32 to vector<8x4x16xf32>
    %157 = arith.maximumf %156, %155 : vector<8x4x16xf32>
    %158 = vector.extract_strided_slice %131 {offsets = [0, 0, 0], sizes = [8, 4, 1], strides = [1, 1, 1]} : vector<8x4x2xf32> to vector<8x4x1xf32>
    %159 = vector.broadcast %158 : vector<8x4x1xf32> to vector<8x4x16xf32>
    %160 = arith.mulf %159, %157 : vector<8x4x16xf32>
    %161 = arith.addf %148, %160 : vector<8x4x16xf32>
    %162 = vector.extract_strided_slice %145 {offsets = [0, 0, 1], sizes = [8, 4, 1], strides = [1, 1, 1]} : vector<8x4x2xf32> to vector<8x4x1xf32>
    %163 = vector.broadcast %147 : vector<1x1x16xf32> to vector<8x4x16xf32>
    %164 = vector.broadcast %162 : vector<8x4x1xf32> to vector<8x4x16xf32>
    %165 = arith.subf %163, %164 : vector<8x4x16xf32>
    %166 = math.absf %165 : vector<8x4x16xf32>
    %cst_76 = arith.constant 1.000000e+00 : f32
    %167 = vector.broadcast %cst_76 : f32 to vector<8x4x16xf32>
    %168 = arith.subf %167, %166 : vector<8x4x16xf32>
    %cst_77 = arith.constant 0.000000e+00 : f32
    %169 = vector.broadcast %cst_77 : f32 to vector<8x4x16xf32>
    %170 = arith.maximumf %169, %168 : vector<8x4x16xf32>
    %171 = vector.extract_strided_slice %131 {offsets = [0, 0, 1], sizes = [8, 4, 1], strides = [1, 1, 1]} : vector<8x4x2xf32> to vector<8x4x1xf32>
    %172 = vector.broadcast %171 : vector<8x4x1xf32> to vector<8x4x16xf32>
    %173 = arith.mulf %172, %170 : vector<8x4x16xf32>
    %174 = arith.addf %161, %173 : vector<8x4x16xf32>
    %175 = vector.extract_strided_slice %102 {offsets = [0, 0, 0], sizes = [16, 4, 8], strides = [1, 1, 1]} : vector<24x4x8xf32> to vector<16x4x8xf32>
    %176 = arith.truncf %174 : vector<8x4x16xf32> to vector<8x4x16xbf16>
    %177 = arith.truncf %175 : vector<16x4x8xf32> to vector<16x4x8xbf16>
    %cst_78 = arith.constant dense<0.000000e+00> : vector<4x8x8xf32>
    %178 = tpu.matmul %176, %177, %cst_78 {dimension_numbers = #tpu.dot_dimension_numbers<[2], [0], [0], [2], [0, 1, 0, 0, 1, 2], [1], [1]>} : vector<8x4x16xbf16>, vector<16x4x8xbf16>, vector<4x8x8xf32> -> vector<4x8x8xf32>
    %179 = arith.addf %129, %178 : vector<4x8x8xf32>
    %180 = vector.extract_strided_slice %112 {offsets = [0, 0, 2], sizes = [8, 4, 2], strides = [1, 1, 1]} : vector<8x4x4xf32> to vector<8x4x2xf32>
    %181 = vector.extract_strided_slice %124 {offsets = [0, 0, 2], sizes = [8, 4, 2], strides = [1, 1, 1]} : vector<8x4x4xf32> to vector<8x4x2xf32>
    %182 = vector.extract_strided_slice %127 {offsets = [0, 1], sizes = [8, 1], strides = [1, 1]} : vector<8x2xf32> to vector<8x1xf32>
    %183 = vector.shape_cast %182 : vector<8x1xf32> to vector<8x1x1xf32>
    %184 = vector.extract_strided_slice %128 {offsets = [0, 1], sizes = [8, 1], strides = [1, 1]} : vector<8x2xf32> to vector<8x1xf32>
    %185 = vector.shape_cast %184 : vector<8x1xf32> to vector<8x1x1xf32>
    %cst_79 = arith.constant 2.500000e-01 : f32
    %186 = vector.broadcast %cst_79 : f32 to vector<8x1x1xf32>
    %187 = arith.mulf %186, %185 : vector<8x1x1xf32>
    %188 = vector.broadcast %187 : vector<8x1x1xf32> to vector<8x4x2xf32>
    %189 = arith.mulf %180, %188 : vector<8x4x2xf32>
    %190 = vector.broadcast %183 : vector<8x1x1xf32> to vector<8x4x2xf32>
    %191 = arith.addf %190, %189 : vector<8x4x2xf32>
    %cst_80 = arith.constant 8.000000e+00 : f32
    %192 = vector.broadcast %cst_80 : f32 to vector<8x4x2xf32>
    %193 = arith.mulf %191, %192 : vector<8x4x2xf32>
    %cst_81 = arith.constant 5.000000e-01 : f32
    %194 = vector.broadcast %cst_81 : f32 to vector<8x4x2xf32>
    %195 = arith.subf %193, %194 : vector<8x4x2xf32>
    %196 = tpu.iota {dimensions = array<i32: 2>} : vector<1x1x8xi32>
    %197 = arith.sitofp %196 : vector<1x1x8xi32> to vector<1x1x8xf32>
    %cst_82 = arith.constant 0.000000e+00 : f32
    %198 = vector.broadcast %cst_82 : f32 to vector<8x4x8xf32>
    %199 = vector.extract_strided_slice %195 {offsets = [0, 0, 0], sizes = [8, 4, 1], strides = [1, 1, 1]} : vector<8x4x2xf32> to vector<8x4x1xf32>
    %200 = vector.broadcast %197 : vector<1x1x8xf32> to vector<8x4x8xf32>
    %201 = vector.broadcast %199 : vector<8x4x1xf32> to vector<8x4x8xf32>
    %202 = arith.subf %200, %201 : vector<8x4x8xf32>
    %203 = math.absf %202 : vector<8x4x8xf32>
    %cst_83 = arith.constant 1.000000e+00 : f32
    %204 = vector.broadcast %cst_83 : f32 to vector<8x4x8xf32>
    %205 = arith.subf %204, %203 : vector<8x4x8xf32>
    %cst_84 = arith.constant 0.000000e+00 : f32
    %206 = vector.broadcast %cst_84 : f32 to vector<8x4x8xf32>
    %207 = arith.maximumf %206, %205 : vector<8x4x8xf32>
    %208 = vector.extract_strided_slice %181 {offsets = [0, 0, 0], sizes = [8, 4, 1], strides = [1, 1, 1]} : vector<8x4x2xf32> to vector<8x4x1xf32>
    %209 = vector.broadcast %208 : vector<8x4x1xf32> to vector<8x4x8xf32>
    %210 = arith.mulf %209, %207 : vector<8x4x8xf32>
    %211 = arith.addf %198, %210 : vector<8x4x8xf32>
    %212 = vector.extract_strided_slice %195 {offsets = [0, 0, 1], sizes = [8, 4, 1], strides = [1, 1, 1]} : vector<8x4x2xf32> to vector<8x4x1xf32>
    %213 = vector.broadcast %197 : vector<1x1x8xf32> to vector<8x4x8xf32>
    %214 = vector.broadcast %212 : vector<8x4x1xf32> to vector<8x4x8xf32>
    %215 = arith.subf %213, %214 : vector<8x4x8xf32>
    %216 = math.absf %215 : vector<8x4x8xf32>
    %cst_85 = arith.constant 1.000000e+00 : f32
    %217 = vector.broadcast %cst_85 : f32 to vector<8x4x8xf32>
    %218 = arith.subf %217, %216 : vector<8x4x8xf32>
    %cst_86 = arith.constant 0.000000e+00 : f32
    %219 = vector.broadcast %cst_86 : f32 to vector<8x4x8xf32>
    %220 = arith.maximumf %219, %218 : vector<8x4x8xf32>
    %221 = vector.extract_strided_slice %181 {offsets = [0, 0, 1], sizes = [8, 4, 1], strides = [1, 1, 1]} : vector<8x4x2xf32> to vector<8x4x1xf32>
    %222 = vector.broadcast %221 : vector<8x4x1xf32> to vector<8x4x8xf32>
    %223 = arith.mulf %222, %220 : vector<8x4x8xf32>
    %224 = arith.addf %211, %223 : vector<8x4x8xf32>
    %225 = vector.extract_strided_slice %102 {offsets = [16, 0, 0], sizes = [8, 4, 8], strides = [1, 1, 1]} : vector<24x4x8xf32> to vector<8x4x8xf32>
    %226 = arith.truncf %224 : vector<8x4x8xf32> to vector<8x4x8xbf16>
    %227 = arith.truncf %225 : vector<8x4x8xf32> to vector<8x4x8xbf16>
    %cst_87 = arith.constant dense<0.000000e+00> : vector<4x8x8xf32>
    %228 = tpu.matmul %226, %227, %cst_87 {dimension_numbers = #tpu.dot_dimension_numbers<[2], [0], [0], [2], [0, 1, 0, 0, 1, 2], [1], [1]>} : vector<8x4x8xbf16>, vector<8x4x8xbf16>, vector<4x8x8xf32> -> vector<4x8x8xf32>
    %229 = arith.addf %179, %228 : vector<4x8x8xf32>
    %230 = tpu.transpose %229, [1, 0, 2] : vector<4x8x8xf32> -> vector<8x4x8xf32>
    %231 = vector.shape_cast %230 : vector<8x4x8xf32> to vector<8x32xf32>
    %c0_88 = arith.constant 0 : index
    %c0_89 = arith.constant 0 : index
    %c0_90 = arith.constant 0 : index
    %232 = vector.load %arg21[%c0_88, %c0_89, %c0_90] : memref<1x32x32xbf16, #tpu.memory_space<vmem>>, vector<1x32x32xbf16>
    %233 = vector.shape_cast %232 : vector<1x32x32xbf16> to vector<32x32xbf16>
    %234 = arith.truncf %231 : vector<8x32xf32> to vector<8x32xbf16>
    %cst_91 = arith.constant dense<0.000000e+00> : vector<8x32xf32>
    %235 = tpu.matmul %234, %233, %cst_91 {dimension_numbers = #tpu.dot_dimension_numbers<[1], [0], [0], [1], [0, 0, 1, 1], [], []>} : vector<8x32xbf16>, vector<32x32xbf16>, vector<8x32xf32> -> vector<8x32xf32>
    %c0_92 = arith.constant 0 : index
    %c0_93 = arith.constant 0 : index
    %c0_94 = arith.constant 0 : index
    %236 = vector.load %arg22[%c0_92, %c0_93, %c0_94] : memref<1x1x32xf32, #tpu.memory_space<vmem>>, vector<1x1x32xf32>
    %237 = vector.shape_cast %236 : vector<1x1x32xf32> to vector<1x32xf32>
    %238 = vector.broadcast %237 : vector<1x32xf32> to vector<8x32xf32>
    %239 = arith.addf %235, %238 : vector<8x32xf32>
    %240 = arith.addf %87, %239 : vector<8x32xf32>
    %c0_95 = arith.constant 0 : index
    %c0_96 = arith.constant 0 : index
    %c0_97 = arith.constant 0 : index
    %241 = vector.load %arg33[%c0_95, %c0_96, %c0_97] : memref<1x4x32xf32, #tpu.memory_space<vmem>>, vector<1x4x32xf32>
    %242 = vector.shape_cast %241 : vector<1x4x32xf32> to vector<4x32xf32>
    %243 = vector.extract_strided_slice %242 {offsets = [1, 0], sizes = [1, 32], strides = [1, 1]} : vector<4x32xf32> to vector<1x32xf32>
    %c0_98 = arith.constant 0 : index
    %c0_99 = arith.constant 0 : index
    %c0_100 = arith.constant 0 : index
    %244 = vector.load %arg34[%c0_98, %c0_99, %c0_100] : memref<1x4x32xf32, #tpu.memory_space<vmem>>, vector<1x4x32xf32>
    %245 = vector.shape_cast %244 : vector<1x4x32xf32> to vector<4x32xf32>
    %246 = vector.extract_strided_slice %245 {offsets = [1, 0], sizes = [1, 32], strides = [1, 1]} : vector<4x32xf32> to vector<1x32xf32>
    %cst_101 = arith.constant dense<0.000000e+00> : vector<8xf32>
    %247 = vector.multi_reduction <add>, %240, %cst_101 [1] : vector<8x32xf32> to vector<8xf32>
    %248 = vector.shape_cast %247 : vector<8xf32> to vector<8x1xf32>
    %cst_102 = arith.constant 3.200000e+01 : f32
    %249 = vector.broadcast %cst_102 : f32 to vector<8x1xf32>
    %250 = arith.divf %248, %249 : vector<8x1xf32>
    %251 = vector.broadcast %250 : vector<8x1xf32> to vector<8x32xf32>
    %252 = arith.subf %240, %251 : vector<8x32xf32>
    %253 = arith.mulf %252, %252 : vector<8x32xf32>
    %cst_103 = arith.constant dense<0.000000e+00> : vector<8xf32>
    %254 = vector.multi_reduction <add>, %253, %cst_103 [1] : vector<8x32xf32> to vector<8xf32>
    %255 = vector.shape_cast %254 : vector<8xf32> to vector<8x1xf32>
    %cst_104 = arith.constant 3.200000e+01 : f32
    %256 = vector.broadcast %cst_104 : f32 to vector<8x1xf32>
    %257 = arith.divf %255, %256 : vector<8x1xf32>
    %cst_105 = arith.constant 9.99999974E-6 : f32
    %258 = vector.broadcast %cst_105 : f32 to vector<8x1xf32>
    %259 = arith.addf %257, %258 : vector<8x1xf32>
    %260 = math.rsqrt %259 : vector<8x1xf32>
    %261 = vector.broadcast %260 : vector<8x1xf32> to vector<8x32xf32>
    %262 = arith.mulf %252, %261 : vector<8x32xf32>
    %263 = vector.broadcast %243 : vector<1x32xf32> to vector<8x32xf32>
    %264 = arith.mulf %262, %263 : vector<8x32xf32>
    %265 = vector.broadcast %246 : vector<1x32xf32> to vector<8x32xf32>
    %266 = arith.addf %264, %265 : vector<8x32xf32>
    %267 = arith.addf %266, %5 : vector<8x32xf32>
    %c0_106 = arith.constant 0 : index
    %c0_107 = arith.constant 0 : index
    %c0_108 = arith.constant 0 : index
    %268 = vector.load %arg5[%c0_106, %c0_107, %c0_108] : memref<1x12x32xbf16, #tpu.memory_space<vmem>>, vector<1x12x32xbf16>
    %269 = vector.shape_cast %268 : vector<1x12x32xbf16> to vector<12x32xbf16>
    %c0_109 = arith.constant 0 : index
    %c0_110 = arith.constant 0 : index
    %c0_111 = arith.constant 0 : index
    %270 = vector.load %arg23[%c0_109, %c0_110, %c0_111] : memref<1x32x32xbf16, #tpu.memory_space<vmem>>, vector<1x32x32xbf16>
    %271 = vector.shape_cast %270 : vector<1x32x32xbf16> to vector<32x32xbf16>
    %cst_112 = arith.constant dense<0.000000e+00> : vector<12x32xf32>
    %272 = tpu.matmul %269, %271, %cst_112 {dimension_numbers = #tpu.dot_dimension_numbers<[1], [0], [0], [1], [0, 0, 1, 1], [], []>} : vector<12x32xbf16>, vector<32x32xbf16>, vector<12x32xf32> -> vector<12x32xf32>
    %c0_113 = arith.constant 0 : index
    %c0_114 = arith.constant 0 : index
    %c0_115 = arith.constant 0 : index
    %273 = vector.load %arg24[%c0_113, %c0_114, %c0_115] : memref<1x1x32xf32, #tpu.memory_space<vmem>>, vector<1x1x32xf32>
    %274 = vector.shape_cast %273 : vector<1x1x32xf32> to vector<1x32xf32>
    %275 = vector.broadcast %274 : vector<1x32xf32> to vector<12x32xf32>
    %276 = arith.addf %272, %275 : vector<12x32xf32>
    %c0_116 = arith.constant 0 : index
    %c0_117 = arith.constant 0 : index
    %c0_118 = arith.constant 0 : index
    %277 = vector.load %arg7[%c0_116, %c0_117, %c0_118] : memref<1x12x1xf32, #tpu.memory_space<vmem>>, vector<1x12x1xf32>
    %278 = vector.shape_cast %277 : vector<1x12x1xf32> to vector<12x1xf32>
    %279 = vector.broadcast %278 : vector<12x1xf32> to vector<12x32xf32>
    %280 = arith.mulf %276, %279 : vector<12x32xf32>
    %281 = vector.shape_cast %280 : vector<12x32xf32> to vector<12x4x8xf32>
    %c0_119 = arith.constant 0 : index
    %c0_120 = arith.constant 0 : index
    %c0_121 = arith.constant 0 : index
    %282 = vector.load %arg25[%c0_119, %c0_120, %c0_121] : memref<1x32x32xbf16, #tpu.memory_space<vmem>>, vector<1x32x32xbf16>
    %283 = vector.shape_cast %282 : vector<1x32x32xbf16> to vector<32x32xbf16>
    %284 = arith.truncf %267 : vector<8x32xf32> to vector<8x32xbf16>
    %cst_122 = arith.constant dense<0.000000e+00> : vector<8x32xf32>
    %285 = tpu.matmul %284, %283, %cst_122 {dimension_numbers = #tpu.dot_dimension_numbers<[1], [0], [0], [1], [0, 0, 1, 1], [], []>} : vector<8x32xbf16>, vector<32x32xbf16>, vector<8x32xf32> -> vector<8x32xf32>
    %c0_123 = arith.constant 0 : index
    %c0_124 = arith.constant 0 : index
    %c0_125 = arith.constant 0 : index
    %286 = vector.load %arg26[%c0_123, %c0_124, %c0_125] : memref<1x1x32xf32, #tpu.memory_space<vmem>>, vector<1x1x32xf32>
    %287 = vector.shape_cast %286 : vector<1x1x32xf32> to vector<1x32xf32>
    %288 = vector.broadcast %287 : vector<1x32xf32> to vector<8x32xf32>
    %289 = arith.addf %285, %288 : vector<8x32xf32>
    %290 = vector.extract_strided_slice %289 {offsets = [0, 0], sizes = [8, 16], strides = [1, 1]} : vector<8x32xf32> to vector<8x16xf32>
    %291 = vector.shape_cast %290 : vector<8x16xf32> to vector<8x4x4xf32>
    %292 = vector.extract_strided_slice %289 {offsets = [0, 16], sizes = [8, 16], strides = [1, 1]} : vector<8x32xf32> to vector<8x16xf32>
    %293 = vector.shape_cast %292 : vector<8x16xf32> to vector<8x4x4xf32>
    %cst_126 = arith.constant dense<0xFF800000> : vector<8x4xf32>
    %294 = vector.multi_reduction <maximumf>, %293, %cst_126 [2] : vector<8x4x4xf32> to vector<8x4xf32>
    %295 = vector.shape_cast %294 : vector<8x4xf32> to vector<8x4x1xf32>
    %296 = vector.broadcast %295 : vector<8x4x1xf32> to vector<8x4x4xf32>
    %297 = arith.subf %293, %296 : vector<8x4x4xf32>
    %298 = math.exp %297 : vector<8x4x4xf32>
    %cst_127 = arith.constant dense<0.000000e+00> : vector<8x4xf32>
    %299 = vector.multi_reduction <add>, %298, %cst_127 [2] : vector<8x4x4xf32> to vector<8x4xf32>
    %300 = vector.shape_cast %299 : vector<8x4xf32> to vector<8x4x1xf32>
    %301 = tpu.reciprocal %300 {approx = true} : vector<8x4x1xf32> -> vector<8x4x1xf32>
    %302 = vector.broadcast %301 : vector<8x4x1xf32> to vector<8x4x4xf32>
    %303 = arith.mulf %298, %302 : vector<8x4x4xf32>
    %c0_128 = arith.constant 0 : index
    %c0_129 = arith.constant 0 : index
    %c0_130 = arith.constant 0 : index
    %304 = vector.load %arg10[%c0_128, %c0_129, %c0_130] : memref<1x8x4xf32, #tpu.memory_space<vmem>>, vector<1x8x4xf32>
    %305 = vector.shape_cast %304 : vector<1x8x4xf32> to vector<8x4xf32>
    %306 = vector.extract_strided_slice %305 {offsets = [0, 0], sizes = [8, 2], strides = [1, 1]} : vector<8x4xf32> to vector<8x2xf32>
    %307 = vector.extract_strided_slice %305 {offsets = [0, 2], sizes = [8, 2], strides = [1, 1]} : vector<8x4xf32> to vector<8x2xf32>
    %cst_131 = arith.constant 0.000000e+00 : f32
    %308 = vector.broadcast %cst_131 : f32 to vector<4x8x8xf32>
    %309 = vector.extract_strided_slice %291 {offsets = [0, 0, 0], sizes = [8, 4, 2], strides = [1, 1, 1]} : vector<8x4x4xf32> to vector<8x4x2xf32>
    %310 = vector.extract_strided_slice %303 {offsets = [0, 0, 0], sizes = [8, 4, 2], strides = [1, 1, 1]} : vector<8x4x4xf32> to vector<8x4x2xf32>
    %311 = vector.extract_strided_slice %306 {offsets = [0, 0], sizes = [8, 1], strides = [1, 1]} : vector<8x2xf32> to vector<8x1xf32>
    %312 = vector.shape_cast %311 : vector<8x1xf32> to vector<8x1x1xf32>
    %313 = vector.extract_strided_slice %307 {offsets = [0, 0], sizes = [8, 1], strides = [1, 1]} : vector<8x2xf32> to vector<8x1xf32>
    %314 = vector.shape_cast %313 : vector<8x1xf32> to vector<8x1x1xf32>
    %cst_132 = arith.constant 2.500000e-01 : f32
    %315 = vector.broadcast %cst_132 : f32 to vector<8x1x1xf32>
    %316 = arith.mulf %315, %314 : vector<8x1x1xf32>
    %317 = vector.broadcast %316 : vector<8x1x1xf32> to vector<8x4x2xf32>
    %318 = arith.mulf %309, %317 : vector<8x4x2xf32>
    %319 = vector.broadcast %312 : vector<8x1x1xf32> to vector<8x4x2xf32>
    %320 = arith.addf %319, %318 : vector<8x4x2xf32>
    %cst_133 = arith.constant 8.000000e+00 : f32
    %321 = vector.broadcast %cst_133 : f32 to vector<8x4x2xf32>
    %322 = arith.mulf %320, %321 : vector<8x4x2xf32>
    %cst_134 = arith.constant 5.000000e-01 : f32
    %323 = vector.broadcast %cst_134 : f32 to vector<8x4x2xf32>
    %324 = arith.subf %322, %323 : vector<8x4x2xf32>
    %325 = tpu.iota {dimensions = array<i32: 2>} : vector<1x1x8xi32>
    %326 = arith.sitofp %325 : vector<1x1x8xi32> to vector<1x1x8xf32>
    %cst_135 = arith.constant 0.000000e+00 : f32
    %327 = vector.broadcast %cst_135 : f32 to vector<8x4x8xf32>
    %328 = vector.extract_strided_slice %324 {offsets = [0, 0, 0], sizes = [8, 4, 1], strides = [1, 1, 1]} : vector<8x4x2xf32> to vector<8x4x1xf32>
    %329 = vector.broadcast %326 : vector<1x1x8xf32> to vector<8x4x8xf32>
    %330 = vector.broadcast %328 : vector<8x4x1xf32> to vector<8x4x8xf32>
    %331 = arith.subf %329, %330 : vector<8x4x8xf32>
    %332 = math.absf %331 : vector<8x4x8xf32>
    %cst_136 = arith.constant 1.000000e+00 : f32
    %333 = vector.broadcast %cst_136 : f32 to vector<8x4x8xf32>
    %334 = arith.subf %333, %332 : vector<8x4x8xf32>
    %cst_137 = arith.constant 0.000000e+00 : f32
    %335 = vector.broadcast %cst_137 : f32 to vector<8x4x8xf32>
    %336 = arith.maximumf %335, %334 : vector<8x4x8xf32>
    %337 = vector.extract_strided_slice %310 {offsets = [0, 0, 0], sizes = [8, 4, 1], strides = [1, 1, 1]} : vector<8x4x2xf32> to vector<8x4x1xf32>
    %338 = vector.broadcast %337 : vector<8x4x1xf32> to vector<8x4x8xf32>
    %339 = arith.mulf %338, %336 : vector<8x4x8xf32>
    %340 = arith.addf %327, %339 : vector<8x4x8xf32>
    %341 = vector.extract_strided_slice %324 {offsets = [0, 0, 1], sizes = [8, 4, 1], strides = [1, 1, 1]} : vector<8x4x2xf32> to vector<8x4x1xf32>
    %342 = vector.broadcast %326 : vector<1x1x8xf32> to vector<8x4x8xf32>
    %343 = vector.broadcast %341 : vector<8x4x1xf32> to vector<8x4x8xf32>
    %344 = arith.subf %342, %343 : vector<8x4x8xf32>
    %345 = math.absf %344 : vector<8x4x8xf32>
    %cst_138 = arith.constant 1.000000e+00 : f32
    %346 = vector.broadcast %cst_138 : f32 to vector<8x4x8xf32>
    %347 = arith.subf %346, %345 : vector<8x4x8xf32>
    %cst_139 = arith.constant 0.000000e+00 : f32
    %348 = vector.broadcast %cst_139 : f32 to vector<8x4x8xf32>
    %349 = arith.maximumf %348, %347 : vector<8x4x8xf32>
    %350 = vector.extract_strided_slice %310 {offsets = [0, 0, 1], sizes = [8, 4, 1], strides = [1, 1, 1]} : vector<8x4x2xf32> to vector<8x4x1xf32>
    %351 = vector.broadcast %350 : vector<8x4x1xf32> to vector<8x4x8xf32>
    %352 = arith.mulf %351, %349 : vector<8x4x8xf32>
    %353 = arith.addf %340, %352 : vector<8x4x8xf32>
    %354 = vector.extract_strided_slice %281 {offsets = [0, 0, 0], sizes = [8, 4, 8], strides = [1, 1, 1]} : vector<12x4x8xf32> to vector<8x4x8xf32>
    %355 = arith.truncf %353 : vector<8x4x8xf32> to vector<8x4x8xbf16>
    %356 = arith.truncf %354 : vector<8x4x8xf32> to vector<8x4x8xbf16>
    %cst_140 = arith.constant dense<0.000000e+00> : vector<4x8x8xf32>
    %357 = tpu.matmul %355, %356, %cst_140 {dimension_numbers = #tpu.dot_dimension_numbers<[2], [0], [0], [2], [0, 1, 0, 0, 1, 2], [1], [1]>} : vector<8x4x8xbf16>, vector<8x4x8xbf16>, vector<4x8x8xf32> -> vector<4x8x8xf32>
    %358 = arith.addf %308, %357 : vector<4x8x8xf32>
    %359 = vector.extract_strided_slice %291 {offsets = [0, 0, 2], sizes = [8, 4, 2], strides = [1, 1, 1]} : vector<8x4x4xf32> to vector<8x4x2xf32>
    %360 = vector.extract_strided_slice %303 {offsets = [0, 0, 2], sizes = [8, 4, 2], strides = [1, 1, 1]} : vector<8x4x4xf32> to vector<8x4x2xf32>
    %361 = vector.extract_strided_slice %306 {offsets = [0, 1], sizes = [8, 1], strides = [1, 1]} : vector<8x2xf32> to vector<8x1xf32>
    %362 = vector.shape_cast %361 : vector<8x1xf32> to vector<8x1x1xf32>
    %363 = vector.extract_strided_slice %307 {offsets = [0, 1], sizes = [8, 1], strides = [1, 1]} : vector<8x2xf32> to vector<8x1xf32>
    %364 = vector.shape_cast %363 : vector<8x1xf32> to vector<8x1x1xf32>
    %cst_141 = arith.constant 2.500000e-01 : f32
    %365 = vector.broadcast %cst_141 : f32 to vector<8x1x1xf32>
    %366 = arith.mulf %365, %364 : vector<8x1x1xf32>
    %367 = vector.broadcast %366 : vector<8x1x1xf32> to vector<8x4x2xf32>
    %368 = arith.mulf %359, %367 : vector<8x4x2xf32>
    %369 = vector.broadcast %362 : vector<8x1x1xf32> to vector<8x4x2xf32>
    %370 = arith.addf %369, %368 : vector<8x4x2xf32>
    %cst_142 = arith.constant 4.000000e+00 : f32
    %371 = vector.broadcast %cst_142 : f32 to vector<8x4x2xf32>
    %372 = arith.mulf %370, %371 : vector<8x4x2xf32>
    %cst_143 = arith.constant 5.000000e-01 : f32
    %373 = vector.broadcast %cst_143 : f32 to vector<8x4x2xf32>
    %374 = arith.subf %372, %373 : vector<8x4x2xf32>
    %375 = tpu.iota {dimensions = array<i32: 2>} : vector<1x1x4xi32>
    %376 = arith.sitofp %375 : vector<1x1x4xi32> to vector<1x1x4xf32>
    %cst_144 = arith.constant 0.000000e+00 : f32
    %377 = vector.broadcast %cst_144 : f32 to vector<8x4x4xf32>
    %378 = vector.extract_strided_slice %374 {offsets = [0, 0, 0], sizes = [8, 4, 1], strides = [1, 1, 1]} : vector<8x4x2xf32> to vector<8x4x1xf32>
    %379 = vector.broadcast %376 : vector<1x1x4xf32> to vector<8x4x4xf32>
    %380 = vector.broadcast %378 : vector<8x4x1xf32> to vector<8x4x4xf32>
    %381 = arith.subf %379, %380 : vector<8x4x4xf32>
    %382 = math.absf %381 : vector<8x4x4xf32>
    %cst_145 = arith.constant 1.000000e+00 : f32
    %383 = vector.broadcast %cst_145 : f32 to vector<8x4x4xf32>
    %384 = arith.subf %383, %382 : vector<8x4x4xf32>
    %cst_146 = arith.constant 0.000000e+00 : f32
    %385 = vector.broadcast %cst_146 : f32 to vector<8x4x4xf32>
    %386 = arith.maximumf %385, %384 : vector<8x4x4xf32>
    %387 = vector.extract_strided_slice %360 {offsets = [0, 0, 0], sizes = [8, 4, 1], strides = [1, 1, 1]} : vector<8x4x2xf32> to vector<8x4x1xf32>
    %388 = vector.broadcast %387 : vector<8x4x1xf32> to vector<8x4x4xf32>
    %389 = arith.mulf %388, %386 : vector<8x4x4xf32>
    %390 = arith.addf %377, %389 : vector<8x4x4xf32>
    %391 = vector.extract_strided_slice %374 {offsets = [0, 0, 1], sizes = [8, 4, 1], strides = [1, 1, 1]} : vector<8x4x2xf32> to vector<8x4x1xf32>
    %392 = vector.broadcast %376 : vector<1x1x4xf32> to vector<8x4x4xf32>
    %393 = vector.broadcast %391 : vector<8x4x1xf32> to vector<8x4x4xf32>
    %394 = arith.subf %392, %393 : vector<8x4x4xf32>
    %395 = math.absf %394 : vector<8x4x4xf32>
    %cst_147 = arith.constant 1.000000e+00 : f32
    %396 = vector.broadcast %cst_147 : f32 to vector<8x4x4xf32>
    %397 = arith.subf %396, %395 : vector<8x4x4xf32>
    %cst_148 = arith.constant 0.000000e+00 : f32
    %398 = vector.broadcast %cst_148 : f32 to vector<8x4x4xf32>
    %399 = arith.maximumf %398, %397 : vector<8x4x4xf32>
    %400 = vector.extract_strided_slice %360 {offsets = [0, 0, 1], sizes = [8, 4, 1], strides = [1, 1, 1]} : vector<8x4x2xf32> to vector<8x4x1xf32>
    %401 = vector.broadcast %400 : vector<8x4x1xf32> to vector<8x4x4xf32>
    %402 = arith.mulf %401, %399 : vector<8x4x4xf32>
    %403 = arith.addf %390, %402 : vector<8x4x4xf32>
    %404 = vector.extract_strided_slice %281 {offsets = [8, 0, 0], sizes = [4, 4, 8], strides = [1, 1, 1]} : vector<12x4x8xf32> to vector<4x4x8xf32>
    %405 = arith.truncf %403 : vector<8x4x4xf32> to vector<8x4x4xbf16>
    %406 = arith.truncf %404 : vector<4x4x8xf32> to vector<4x4x8xbf16>
    %cst_149 = arith.constant dense<0.000000e+00> : vector<4x8x8xf32>
    %407 = tpu.matmul %405, %406, %cst_149 {dimension_numbers = #tpu.dot_dimension_numbers<[2], [0], [0], [2], [0, 1, 0, 0, 1, 2], [1], [1]>} : vector<8x4x4xbf16>, vector<4x4x8xbf16>, vector<4x8x8xf32> -> vector<4x8x8xf32>
    %408 = arith.addf %358, %407 : vector<4x8x8xf32>
    %409 = tpu.transpose %408, [1, 0, 2] : vector<4x8x8xf32> -> vector<8x4x8xf32>
    %410 = vector.shape_cast %409 : vector<8x4x8xf32> to vector<8x32xf32>
    %c0_150 = arith.constant 0 : index
    %c0_151 = arith.constant 0 : index
    %c0_152 = arith.constant 0 : index
    %411 = vector.load %arg27[%c0_150, %c0_151, %c0_152] : memref<1x32x32xbf16, #tpu.memory_space<vmem>>, vector<1x32x32xbf16>
    %412 = vector.shape_cast %411 : vector<1x32x32xbf16> to vector<32x32xbf16>
    %413 = arith.truncf %410 : vector<8x32xf32> to vector<8x32xbf16>
    %cst_153 = arith.constant dense<0.000000e+00> : vector<8x32xf32>
    %414 = tpu.matmul %413, %412, %cst_153 {dimension_numbers = #tpu.dot_dimension_numbers<[1], [0], [0], [1], [0, 0, 1, 1], [], []>} : vector<8x32xbf16>, vector<32x32xbf16>, vector<8x32xf32> -> vector<8x32xf32>
    %c0_154 = arith.constant 0 : index
    %c0_155 = arith.constant 0 : index
    %c0_156 = arith.constant 0 : index
    %415 = vector.load %arg28[%c0_154, %c0_155, %c0_156] : memref<1x1x32xf32, #tpu.memory_space<vmem>>, vector<1x1x32xf32>
    %416 = vector.shape_cast %415 : vector<1x1x32xf32> to vector<1x32xf32>
    %417 = vector.broadcast %416 : vector<1x32xf32> to vector<8x32xf32>
    %418 = arith.addf %414, %417 : vector<8x32xf32>
    %419 = arith.addf %266, %418 : vector<8x32xf32>
    %c0_157 = arith.constant 0 : index
    %c0_158 = arith.constant 0 : index
    %c0_159 = arith.constant 0 : index
    %420 = vector.load %arg33[%c0_157, %c0_158, %c0_159] : memref<1x4x32xf32, #tpu.memory_space<vmem>>, vector<1x4x32xf32>
    %421 = vector.shape_cast %420 : vector<1x4x32xf32> to vector<4x32xf32>
    %422 = vector.extract_strided_slice %421 {offsets = [2, 0], sizes = [1, 32], strides = [1, 1]} : vector<4x32xf32> to vector<1x32xf32>
    %c0_160 = arith.constant 0 : index
    %c0_161 = arith.constant 0 : index
    %c0_162 = arith.constant 0 : index
    %423 = vector.load %arg34[%c0_160, %c0_161, %c0_162] : memref<1x4x32xf32, #tpu.memory_space<vmem>>, vector<1x4x32xf32>
    %424 = vector.shape_cast %423 : vector<1x4x32xf32> to vector<4x32xf32>
    %425 = vector.extract_strided_slice %424 {offsets = [2, 0], sizes = [1, 32], strides = [1, 1]} : vector<4x32xf32> to vector<1x32xf32>
    %cst_163 = arith.constant dense<0.000000e+00> : vector<8xf32>
    %426 = vector.multi_reduction <add>, %419, %cst_163 [1] : vector<8x32xf32> to vector<8xf32>
    %427 = vector.shape_cast %426 : vector<8xf32> to vector<8x1xf32>
    %cst_164 = arith.constant 3.200000e+01 : f32
    %428 = vector.broadcast %cst_164 : f32 to vector<8x1xf32>
    %429 = arith.divf %427, %428 : vector<8x1xf32>
    %430 = vector.broadcast %429 : vector<8x1xf32> to vector<8x32xf32>
    %431 = arith.subf %419, %430 : vector<8x32xf32>
    %432 = arith.mulf %431, %431 : vector<8x32xf32>
    %cst_165 = arith.constant dense<0.000000e+00> : vector<8xf32>
    %433 = vector.multi_reduction <add>, %432, %cst_165 [1] : vector<8x32xf32> to vector<8xf32>
    %434 = vector.shape_cast %433 : vector<8xf32> to vector<8x1xf32>
    %cst_166 = arith.constant 3.200000e+01 : f32
    %435 = vector.broadcast %cst_166 : f32 to vector<8x1xf32>
    %436 = arith.divf %434, %435 : vector<8x1xf32>
    %cst_167 = arith.constant 9.99999974E-6 : f32
    %437 = vector.broadcast %cst_167 : f32 to vector<8x1xf32>
    %438 = arith.addf %436, %437 : vector<8x1xf32>
    %439 = math.rsqrt %438 : vector<8x1xf32>
    %440 = vector.broadcast %439 : vector<8x1xf32> to vector<8x32xf32>
    %441 = arith.mulf %431, %440 : vector<8x32xf32>
    %442 = vector.broadcast %422 : vector<1x32xf32> to vector<8x32xf32>
    %443 = arith.mulf %441, %442 : vector<8x32xf32>
    %444 = vector.broadcast %425 : vector<1x32xf32> to vector<8x32xf32>
    %445 = arith.addf %443, %444 : vector<8x32xf32>
    %c0_168 = arith.constant 0 : index
    %c0_169 = arith.constant 0 : index
    %c0_170 = arith.constant 0 : index
    %446 = vector.load %arg29[%c0_168, %c0_169, %c0_170] : memref<1x32x64xbf16, #tpu.memory_space<vmem>>, vector<1x32x64xbf16>
    %447 = vector.shape_cast %446 : vector<1x32x64xbf16> to vector<32x64xbf16>
    %448 = arith.truncf %445 : vector<8x32xf32> to vector<8x32xbf16>
    %cst_171 = arith.constant dense<0.000000e+00> : vector<8x64xf32>
    %449 = tpu.matmul %448, %447, %cst_171 {dimension_numbers = #tpu.dot_dimension_numbers<[1], [0], [0], [1], [0, 0, 1, 1], [], []>} : vector<8x32xbf16>, vector<32x64xbf16>, vector<8x64xf32> -> vector<8x64xf32>
    %c0_172 = arith.constant 0 : index
    %c0_173 = arith.constant 0 : index
    %c0_174 = arith.constant 0 : index
    %450 = vector.load %arg30[%c0_172, %c0_173, %c0_174] : memref<1x1x64xf32, #tpu.memory_space<vmem>>, vector<1x1x64xf32>
    %451 = vector.shape_cast %450 : vector<1x1x64xf32> to vector<1x64xf32>
    %452 = vector.broadcast %451 : vector<1x64xf32> to vector<8x64xf32>
    %453 = arith.addf %449, %452 : vector<8x64xf32>
    %cst_175 = arith.constant 0.000000e+00 : f32
    %454 = vector.broadcast %cst_175 : f32 to vector<8x64xf32>
    %455 = arith.maximumf %453, %454 : vector<8x64xf32>
    %c0_176 = arith.constant 0 : index
    %c0_177 = arith.constant 0 : index
    %c0_178 = arith.constant 0 : index
    %456 = vector.load %arg31[%c0_176, %c0_177, %c0_178] : memref<1x64x32xbf16, #tpu.memory_space<vmem>>, vector<1x64x32xbf16>
    %457 = vector.shape_cast %456 : vector<1x64x32xbf16> to vector<64x32xbf16>
    %458 = arith.truncf %455 : vector<8x64xf32> to vector<8x64xbf16>
    %cst_179 = arith.constant dense<0.000000e+00> : vector<8x32xf32>
    %459 = tpu.matmul %458, %457, %cst_179 {dimension_numbers = #tpu.dot_dimension_numbers<[1], [0], [0], [1], [0, 0, 1, 1], [], []>} : vector<8x64xbf16>, vector<64x32xbf16>, vector<8x32xf32> -> vector<8x32xf32>
    %c0_180 = arith.constant 0 : index
    %c0_181 = arith.constant 0 : index
    %c0_182 = arith.constant 0 : index
    %460 = vector.load %arg32[%c0_180, %c0_181, %c0_182] : memref<1x1x32xf32, #tpu.memory_space<vmem>>, vector<1x1x32xf32>
    %461 = vector.shape_cast %460 : vector<1x1x32xf32> to vector<1x32xf32>
    %462 = vector.broadcast %461 : vector<1x32xf32> to vector<8x32xf32>
    %463 = arith.addf %459, %462 : vector<8x32xf32>
    %464 = arith.addf %445, %463 : vector<8x32xf32>
    %c0_183 = arith.constant 0 : index
    %c0_184 = arith.constant 0 : index
    %c0_185 = arith.constant 0 : index
    %465 = vector.load %arg33[%c0_183, %c0_184, %c0_185] : memref<1x4x32xf32, #tpu.memory_space<vmem>>, vector<1x4x32xf32>
    %466 = vector.shape_cast %465 : vector<1x4x32xf32> to vector<4x32xf32>
    %467 = vector.extract_strided_slice %466 {offsets = [3, 0], sizes = [1, 32], strides = [1, 1]} : vector<4x32xf32> to vector<1x32xf32>
    %c0_186 = arith.constant 0 : index
    %c0_187 = arith.constant 0 : index
    %c0_188 = arith.constant 0 : index
    %468 = vector.load %arg34[%c0_186, %c0_187, %c0_188] : memref<1x4x32xf32, #tpu.memory_space<vmem>>, vector<1x4x32xf32>
    %469 = vector.shape_cast %468 : vector<1x4x32xf32> to vector<4x32xf32>
    %470 = vector.extract_strided_slice %469 {offsets = [3, 0], sizes = [1, 32], strides = [1, 1]} : vector<4x32xf32> to vector<1x32xf32>
    %cst_189 = arith.constant dense<0.000000e+00> : vector<8xf32>
    %471 = vector.multi_reduction <add>, %464, %cst_189 [1] : vector<8x32xf32> to vector<8xf32>
    %472 = vector.shape_cast %471 : vector<8xf32> to vector<8x1xf32>
    %cst_190 = arith.constant 3.200000e+01 : f32
    %473 = vector.broadcast %cst_190 : f32 to vector<8x1xf32>
    %474 = arith.divf %472, %473 : vector<8x1xf32>
    %475 = vector.broadcast %474 : vector<8x1xf32> to vector<8x32xf32>
    %476 = arith.subf %464, %475 : vector<8x32xf32>
    %477 = arith.mulf %476, %476 : vector<8x32xf32>
    %cst_191 = arith.constant dense<0.000000e+00> : vector<8xf32>
    %478 = vector.multi_reduction <add>, %477, %cst_191 [1] : vector<8x32xf32> to vector<8xf32>
    %479 = vector.shape_cast %478 : vector<8xf32> to vector<8x1xf32>
    %cst_192 = arith.constant 3.200000e+01 : f32
    %480 = vector.broadcast %cst_192 : f32 to vector<8x1xf32>
    %481 = arith.divf %479, %480 : vector<8x1xf32>
    %cst_193 = arith.constant 9.99999974E-6 : f32
    %482 = vector.broadcast %cst_193 : f32 to vector<8x1xf32>
    %483 = arith.addf %481, %482 : vector<8x1xf32>
    %484 = math.rsqrt %483 : vector<8x1xf32>
    %485 = vector.broadcast %484 : vector<8x1xf32> to vector<8x32xf32>
    %486 = arith.mulf %476, %485 : vector<8x32xf32>
    %487 = vector.broadcast %467 : vector<1x32xf32> to vector<8x32xf32>
    %488 = arith.mulf %486, %487 : vector<8x32xf32>
    %489 = vector.broadcast %470 : vector<1x32xf32> to vector<8x32xf32>
    %490 = arith.addf %488, %489 : vector<8x32xf32>
    %c0_194 = arith.constant 0 : index
    %c0_195 = arith.constant 0 : index
    %491 = vector.load %arg36[%c0_194, %c0_195] : memref<8x32xf32, #tpu.memory_space<vmem>>, vector<8x32xf32>
    tpu.vector_store %arg36[%c0_194, %c0_195], %490 {strides = array<i32>} : memref<8x32xf32, #tpu.memory_space<vmem>>, vector<8x32xf32>,
    %c0_196 = arith.constant 0 : index
    %c0_197 = arith.constant 0 : index
    %c0_198 = arith.constant 0 : index
    %c0_199 = arith.constant 0 : index
    %492 = vector.load %arg35[%c0_196, %c0_197, %c0_198, %c0_199] : memref<1x1x8x32xf32, #tpu.memory_space<vmem>>, vector<1x1x8x32xf32>
    %493 = vector.shape_cast %492 : vector<1x1x8x32xf32> to vector<8x32xf32>
    %494 = vector.shape_cast %490 : vector<8x32xf32> to vector<1x1x8x32xf32>
    tpu.vector_store %arg35[%c0_196, %c0_197, %c0_198, %c0_199], %494 {strides = array<i32>} : memref<1x1x8x32xf32, #tpu.memory_space<vmem>>, vector<1x1x8x32xf32>,
    return
  }
  func.func @transform_0(%arg0: i32, %arg1: i32) -> (i32, i32, i32) {
    %c0_i32 = arith.constant 0 : i32
    %c0_i32_0 = arith.constant 0 : i32
    %c0_i32_1 = arith.constant 0 : i32
    return %arg0, %c0_i32, %c0_i32_0 : i32, i32, i32
  }
  func.func @transform_1(%arg0: i32, %arg1: i32) -> (i32, i32, i32) {
    %c0_i32 = arith.constant 0 : i32
    %c0_i32_0 = arith.constant 0 : i32
    %c0_i32_1 = arith.constant 0 : i32
    return %arg0, %c0_i32, %c0_i32_0 : i32, i32, i32
  }
  func.func @transform_2(%arg0: i32, %arg1: i32) -> (i32, i32, i32) {
    %c0_i32 = arith.constant 0 : i32
    %c0_i32_0 = arith.constant 0 : i32
    %c0_i32_1 = arith.constant 0 : i32
    return %arg0, %c0_i32, %c0_i32_0 : i32, i32, i32
  }
  func.func @transform_3(%arg0: i32, %arg1: i32) -> (i32, i32, i32) {
    %c0_i32 = arith.constant 0 : i32
    %c0_i32_0 = arith.constant 0 : i32
    %c0_i32_1 = arith.constant 0 : i32
    return %arg0, %c0_i32, %c0_i32_0 : i32, i32, i32
  }
  func.func @transform_4(%arg0: i32, %arg1: i32) -> (i32, i32, i32) {
    %c0_i32 = arith.constant 0 : i32
    %c0_i32_0 = arith.constant 0 : i32
    %c0_i32_1 = arith.constant 0 : i32
    return %arg0, %c0_i32, %c0_i32_0 : i32, i32, i32
  }
  func.func @transform_5(%arg0: i32, %arg1: i32) -> (i32, i32, i32) {
    %c0_i32 = arith.constant 0 : i32
    %c0_i32_0 = arith.constant 0 : i32
    %c0_i32_1 = arith.constant 0 : i32
    return %arg0, %c0_i32, %c0_i32_0 : i32, i32, i32
  }
  func.func @transform_6(%arg0: i32, %arg1: i32) -> (i32, i32, i32) {
    %c0_i32 = arith.constant 0 : i32
    %c0_i32_0 = arith.constant 0 : i32
    %c0_i32_1 = arith.constant 0 : i32
    return %arg0, %c0_i32, %c0_i32_0 : i32, i32, i32
  }
  func.func @transform_7(%arg0: i32, %arg1: i32) -> (i32, i32, i32) {
    %c0_i32 = arith.constant 0 : i32
    %c0_i32_0 = arith.constant 0 : i32
    %c0_i32_1 = arith.constant 0 : i32
    return %arg0, %c0_i32, %c0_i32_0 : i32, i32, i32
  }
  func.func @transform_8(%arg0: i32, %arg1: i32) -> (i32, i32, i32) {
    %c0_i32 = arith.constant 0 : i32
    %c0_i32_0 = arith.constant 0 : i32
    %c0_i32_1 = arith.constant 0 : i32
    return %arg0, %c0_i32, %c0_i32_0 : i32, i32, i32
  }
  func.func @transform_9(%arg0: i32, %arg1: i32) -> (i32, i32, i32) {
    %c0_i32 = arith.constant 0 : i32
    %c0_i32_0 = arith.constant 0 : i32
    %c0_i32_1 = arith.constant 0 : i32
    return %arg1, %c0_i32, %c0_i32_0 : i32, i32, i32
  }
  func.func @transform_10(%arg0: i32, %arg1: i32) -> (i32, i32, i32) {
    %c0_i32 = arith.constant 0 : i32
    %c0_i32_0 = arith.constant 0 : i32
    %c0_i32_1 = arith.constant 0 : i32
    return %arg1, %c0_i32, %c0_i32_0 : i32, i32, i32
  }
  func.func @transform_11(%arg0: i32, %arg1: i32) -> (i32, i32, i32) {
    %c0_i32 = arith.constant 0 : i32
    %c0_i32_0 = arith.constant 0 : i32
    %c0_i32_1 = arith.constant 0 : i32
    return %arg1, %c0_i32, %c0_i32_0 : i32, i32, i32
  }
  func.func @transform_12(%arg0: i32, %arg1: i32) -> (i32, i32, i32) {
    %c0_i32 = arith.constant 0 : i32
    %c0_i32_0 = arith.constant 0 : i32
    %c0_i32_1 = arith.constant 0 : i32
    return %arg1, %c0_i32, %c0_i32_0 : i32, i32, i32
  }
  func.func @transform_13(%arg0: i32, %arg1: i32) -> (i32, i32, i32) {
    %c0_i32 = arith.constant 0 : i32
    %c0_i32_0 = arith.constant 0 : i32
    %c0_i32_1 = arith.constant 0 : i32
    return %arg1, %c0_i32, %c0_i32_0 : i32, i32, i32
  }
  func.func @transform_14(%arg0: i32, %arg1: i32) -> (i32, i32, i32) {
    %c0_i32 = arith.constant 0 : i32
    %c0_i32_0 = arith.constant 0 : i32
    %c0_i32_1 = arith.constant 0 : i32
    return %arg1, %c0_i32, %c0_i32_0 : i32, i32, i32
  }
  func.func @transform_15(%arg0: i32, %arg1: i32) -> (i32, i32, i32) {
    %c0_i32 = arith.constant 0 : i32
    %c0_i32_0 = arith.constant 0 : i32
    %c0_i32_1 = arith.constant 0 : i32
    return %arg1, %c0_i32, %c0_i32_0 : i32, i32, i32
  }
  func.func @transform_16(%arg0: i32, %arg1: i32) -> (i32, i32, i32) {
    %c0_i32 = arith.constant 0 : i32
    %c0_i32_0 = arith.constant 0 : i32
    %c0_i32_1 = arith.constant 0 : i32
    return %arg1, %c0_i32, %c0_i32_0 : i32, i32, i32
  }
  func.func @transform_17(%arg0: i32, %arg1: i32) -> (i32, i32, i32) {
    %c0_i32 = arith.constant 0 : i32
    %c0_i32_0 = arith.constant 0 : i32
    %c0_i32_1 = arith.constant 0 : i32
    return %arg1, %c0_i32, %c0_i32_0 : i32, i32, i32
  }
  func.func @transform_18(%arg0: i32, %arg1: i32) -> (i32, i32, i32) {
    %c0_i32 = arith.constant 0 : i32
    %c0_i32_0 = arith.constant 0 : i32
    %c0_i32_1 = arith.constant 0 : i32
    return %arg1, %c0_i32, %c0_i32_0 : i32, i32, i32
  }
  func.func @transform_19(%arg0: i32, %arg1: i32) -> (i32, i32, i32) {
    %c0_i32 = arith.constant 0 : i32
    %c0_i32_0 = arith.constant 0 : i32
    %c0_i32_1 = arith.constant 0 : i32
    return %arg1, %c0_i32, %c0_i32_0 : i32, i32, i32
  }
  func.func @transform_20(%arg0: i32, %arg1: i32) -> (i32, i32, i32) {
    %c0_i32 = arith.constant 0 : i32
    %c0_i32_0 = arith.constant 0 : i32
    %c0_i32_1 = arith.constant 0 : i32
    return %arg1, %c0_i32, %c0_i32_0 : i32, i32, i32
  }
  func.func @transform_21(%arg0: i32, %arg1: i32) -> (i32, i32, i32) {
    %c0_i32 = arith.constant 0 : i32
    %c0_i32_0 = arith.constant 0 : i32
    %c0_i32_1 = arith.constant 0 : i32
    return %arg1, %c0_i32, %c0_i32_0 : i32, i32, i32
  }
  func.func @transform_22(%arg0: i32, %arg1: i32) -> (i32, i32, i32) {
    %c0_i32 = arith.constant 0 : i32
    %c0_i32_0 = arith.constant 0 : i32
    %c0_i32_1 = arith.constant 0 : i32
    return %arg1, %c0_i32, %c0_i32_0 : i32, i32, i32
  }
  func.func @transform_23(%arg0: i32, %arg1: i32) -> (i32, i32, i32) {
    %c0_i32 = arith.constant 0 : i32
    %c0_i32_0 = arith.constant 0 : i32
    %c0_i32_1 = arith.constant 0 : i32
    return %arg1, %c0_i32, %c0_i32_0 : i32, i32, i32
  }
  func.func @transform_24(%arg0: i32, %arg1: i32) -> (i32, i32, i32) {
    %c0_i32 = arith.constant 0 : i32
    %c0_i32_0 = arith.constant 0 : i32
    %c0_i32_1 = arith.constant 0 : i32
    return %arg1, %c0_i32, %c0_i32_0 : i32, i32, i32
  }
  func.func @transform_25(%arg0: i32, %arg1: i32) -> (i32, i32, i32) {
    %c0_i32 = arith.constant 0 : i32
    %c0_i32_0 = arith.constant 0 : i32
    %c0_i32_1 = arith.constant 0 : i32
    return %arg1, %c0_i32, %c0_i32_0 : i32, i32, i32
  }
  func.func @transform_26(%arg0: i32, %arg1: i32) -> (i32, i32, i32) {
    %c0_i32 = arith.constant 0 : i32
    %c0_i32_0 = arith.constant 0 : i32
    %c0_i32_1 = arith.constant 0 : i32
    return %arg1, %c0_i32, %c0_i32_0 : i32, i32, i32
  }
  func.func @transform_27(%arg0: i32, %arg1: i32) -> (i32, i32, i32) {
    %c0_i32 = arith.constant 0 : i32
    %c0_i32_0 = arith.constant 0 : i32
    %c0_i32_1 = arith.constant 0 : i32
    return %arg1, %c0_i32, %c0_i32_0 : i32, i32, i32
  }
  func.func @transform_28(%arg0: i32, %arg1: i32) -> (i32, i32, i32) {
    %c0_i32 = arith.constant 0 : i32
    %c0_i32_0 = arith.constant 0 : i32
    %c0_i32_1 = arith.constant 0 : i32
    return %arg1, %c0_i32, %c0_i32_0 : i32, i32, i32
  }
  func.func @transform_29(%arg0: i32, %arg1: i32) -> (i32, i32, i32) {
    %c0_i32 = arith.constant 0 : i32
    %c0_i32_0 = arith.constant 0 : i32
    %c0_i32_1 = arith.constant 0 : i32
    return %arg1, %c0_i32, %c0_i32_0 : i32, i32, i32
  }
  func.func @transform_30(%arg0: i32, %arg1: i32) -> (i32, i32, i32) {
    %c0_i32 = arith.constant 0 : i32
    %c0_i32_0 = arith.constant 0 : i32
    %c0_i32_1 = arith.constant 0 : i32
    return %arg1, %c0_i32, %c0_i32_0 : i32, i32, i32
  }
  func.func @transform_31(%arg0: i32, %arg1: i32) -> (i32, i32, i32) {
    %c0_i32 = arith.constant 0 : i32
    %c0_i32_0 = arith.constant 0 : i32
    %c0_i32_1 = arith.constant 0 : i32
    return %arg1, %c0_i32, %c0_i32_0 : i32, i32, i32
  }
  func.func @transform_32(%arg0: i32, %arg1: i32) -> (i32, i32, i32) {
    %c0_i32 = arith.constant 0 : i32
    %c0_i32_0 = arith.constant 0 : i32
    %c0_i32_1 = arith.constant 0 : i32
    return %arg1, %c0_i32, %c0_i32_0 : i32, i32, i32
  }
  func.func @transform_33(%arg0: i32, %arg1: i32) -> (i32, i32, i32, i32) {
    %c0_i32 = arith.constant 0 : i32
    %c0_i32_0 = arith.constant 0 : i32
    %c0_i32_1 = arith.constant 0 : i32
    return %arg1, %arg0, %c0_i32, %c0_i32_0 : i32, i32, i32, i32
  }
}

</mosaic_0001>

<llo_original>
// kernel: run.1
$region0: #{run.1}
  #allocation0 [shape = 'u32[]', space=smem, size = 0x4, offset = 0x4, fixed_abs, tag = 'smem constant byte address 0x4 - core index']
  #allocation1 [shape = 'u32[144,128]{1,0:T(1,128)}', space=vmem, size = 0x12000, scoped, tag = 'internal scratch']
  #allocation2 [shape = 'f32[8,32]{1,0:T(8,128)}', space=vmem, size = 0x1000, scoped, tag = 'scratch operand']
  %s0 = inlined_call_operand.smem [shape: u32[34], index: -1, kind: input, shape index: {}]
  %s1 = sld [smem:[%s0]]
  %s2 = scalar_lea.smem %s0, 1
  %s3 = sld [smem:[%s2]]
  %s4 = scalar_lea.smem %s0, 2
  %s5 = sld [smem:[%s4]]
  %s6 = scalar_lea.smem %s0, 3
  %s7 = sld [smem:[%s6]]
  %s8 = scalar_lea.smem %s0, 4
  %s9 = sld [smem:[%s8]]
  %s10 = scalar_lea.smem %s0, 5
  %s11 = sld [smem:[%s10]]
  %s12 = scalar_lea.smem %s0, 6
  %s13 = sld [smem:[%s12]]
  %s14 = scalar_lea.smem %s0, 7
  %s15 = sld [smem:[%s14]]
  %s16 = scalar_lea.smem %s0, 8
  %s17 = sld [smem:[%s16]]
  %s18 = scalar_lea.smem %s0, 9
  %s19 = sld [smem:[%s18]]
  %s20 = scalar_lea.smem %s0, 10
  %s21 = sld [smem:[%s20]]
  %s22 = scalar_lea.smem %s0, 11
  %s23 = sld [smem:[%s22]]
  %s24 = scalar_lea.smem %s0, 12
  %s25 = sld [smem:[%s24]]
  %s26 = scalar_lea.smem %s0, 13
  %s27 = sld [smem:[%s26]]
  %s28 = scalar_lea.smem %s0, 14
  %s29 = sld [smem:[%s28]]
  %s30 = scalar_lea.smem %s0, 15
  %s31 = sld [smem:[%s30]]
  %s32 = scalar_lea.smem %s0, 16
  %s33 = sld [smem:[%s32]]
  %s34 = scalar_lea.smem %s0, 17
  %s35 = sld [smem:[%s34]]
  %s36 = scalar_lea.smem %s0, 18
  %s37 = sld [smem:[%s36]]
  %s38 = scalar_lea.smem %s0, 19
  %s39 = sld [smem:[%s38]]
  %s40 = scalar_lea.smem %s0, 20
  %s41 = sld [smem:[%s40]]
  %s42 = scalar_lea.smem %s0, 21
  %s43 = sld [smem:[%s42]]
  %s44 = scalar_lea.smem %s0, 22
  %s45 = sld [smem:[%s44]]
  %s46 = scalar_lea.smem %s0, 23
  %s47 = sld [smem:[%s46]]
  %s48 = scalar_lea.smem %s0, 24
  %s49 = sld [smem:[%s48]]
  %s50 = scalar_lea.smem %s0, 25
  %s51 = sld [smem:[%s50]]
  %s52 = scalar_lea.smem %s0, 26
  %s53 = sld [smem:[%s52]]
  %s54 = scalar_lea.smem %s0, 27
  %s55 = sld [smem:[%s54]]
  %s56 = scalar_lea.smem %s0, 28
  %s57 = sld [smem:[%s56]]
  %s58 = scalar_lea.smem %s0, 29
  %s59 = sld [smem:[%s58]]
  %s60 = scalar_lea.smem %s0, 30
  %s61 = sld [smem:[%s60]]
  %s62 = scalar_lea.smem %s0, 31
  %s63 = sld [smem:[%s62]]
  %s64 = scalar_lea.smem %s0, 32
  %s65 = sld [smem:[%s64]]
  %s66 = scalar_lea.smem %s0, 33
  %s67 = sld [smem:[%s66]]
  %s68 = sld [smem:[#allocation0]]
  $region169: #{run.1} parent=0
    _
  %s70 = ssub.s32 1, %s68
  %s71 = scalar_select 0, %s70, %s68
  loop: start=0, step=1, limit=6
  $region2: #{run.1} parent=0 // loop_pre_header
    _
  $region3: #{run.1} parent=0 // loop_header
    %s73 = sphi 0, %s77
    %p74 = scmp.ge.s32.totalorder %s73, 6
    %s80 = sphi 0, %s92
    %s81 = sphi 0, %s88
    %s82 = sphi 0, %s80
    %s83 = sphi 0, %s81
    %s84 = sphi 0, %s82
    %s85 = sphi 0, %s83
    %s95 = sphi 0, %s97
    %s98 = sphi 0, %s95
    %s99 = sphi 0, %s98
    %s115 = sphi 0, %s99
    %s121 = sphi 0, %s123
    %s124 = sphi 0, %s121
    %s125 = sphi 0, %s124
    %s141 = sphi 0, %s125
    %s147 = sphi 0, %s149
    %s150 = sphi 0, %s147
    %s151 = sphi 0, %s150
    %s167 = sphi 0, %s151
    %s173 = sphi 0, %s175
    %s176 = sphi 0, %s173
    %s177 = sphi 0, %s176
    %s193 = sphi 0, %s177
    %s199 = sphi 0, %s201
    %s202 = sphi 0, %s199
    %s203 = sphi 0, %s202
    %s219 = sphi 0, %s203
    %s225 = sphi 0, %s227
    %s228 = sphi 0, %s225
    %s229 = sphi 0, %s228
    %s245 = sphi 0, %s229
    %s251 = sphi 0, %s253
    %s254 = sphi 0, %s251
    %s255 = sphi 0, %s254
    %s271 = sphi 0, %s255
    %s277 = sphi 0, %s279
    %s280 = sphi 0, %s277
    %s281 = sphi 0, %s280
    %s297 = sphi 0, %s281
    %s303 = sphi 0, %s305
    %s306 = sphi 0, %s303
    %s307 = sphi 0, %s306
    %s323 = sphi 0, %s307
    %s329 = sphi 0, %s331
    %s332 = sphi 0, %s329
    %s333 = sphi 0, %s332
    %s349 = sphi 0, %s333
    %s355 = sphi 0, %s357
    %s358 = sphi 0, %s355
    %s359 = sphi 0, %s358
    %s375 = sphi 0, %s359
    %s381 = sphi 0, %s383
    %s384 = sphi 0, %s381
    %s385 = sphi 0, %s384
    %s401 = sphi 0, %s385
    %s407 = sphi 0, %s409
    %s410 = sphi 0, %s407
    %s411 = sphi 0, %s410
    %s427 = sphi 0, %s411
    %s433 = sphi 0, %s435
    %s436 = sphi 0, %s433
    %s437 = sphi 0, %s436
    %s453 = sphi 0, %s437
    %s459 = sphi 0, %s461
    %s462 = sphi 0, %s459
    %s463 = sphi 0, %s462
    %s479 = sphi 0, %s463
    %s485 = sphi 0, %s487
    %s488 = sphi 0, %s485
    %s489 = sphi 0, %s488
    %s505 = sphi 0, %s489
    %s511 = sphi 0, %s513
    %s514 = sphi 0, %s511
    %s515 = sphi 0, %s514
    %s531 = sphi 0, %s515
    %s537 = sphi 0, %s539
    %s540 = sphi 0, %s537
    %s541 = sphi 0, %s540
    %s557 = sphi 0, %s541
    %s563 = sphi 0, %s565
    %s566 = sphi 0, %s563
    %s567 = sphi 0, %s566
    %s583 = sphi 0, %s567
    %s589 = sphi 0, %s591
    %s592 = sphi 0, %s589
    %s593 = sphi 0, %s592
    %s609 = sphi 0, %s593
    %s615 = sphi 0, %s617
    %s618 = sphi 0, %s615
    %s619 = sphi 0, %s618
    %s635 = sphi 0, %s619
    %s641 = sphi 0, %s643
    %s644 = sphi 0, %s641
    %s645 = sphi 0, %s644
    %s661 = sphi 0, %s645
    %s667 = sphi 0, %s669
    %s670 = sphi 0, %s667
    %s671 = sphi 0, %s670
    %s687 = sphi 0, %s671
    %s693 = sphi 0, %s695
    %s696 = sphi 0, %s693
    %s697 = sphi 0, %s696
    %s713 = sphi 0, %s697
    %s719 = sphi 0, %s721
    %s722 = sphi 0, %s719
    %s723 = sphi 0, %s722
    %s739 = sphi 0, %s723
    %s745 = sphi 0, %s747
    %s748 = sphi 0, %s745
    %s749 = sphi 0, %s748
    %s765 = sphi 0, %s749
    %s771 = sphi 0, %s773
    %s774 = sphi 0, %s771
    %s775 = sphi 0, %s774
    %s791 = sphi 0, %s775
    %s797 = sphi 0, %s799
    %s800 = sphi 0, %s797
    %s801 = sphi 0, %s800
    %s817 = sphi 0, %s801
    %s823 = sphi 0, %s825
    %s826 = sphi 0, %s823
    %s827 = sphi 0, %s826
    %s843 = sphi 0, %s827
    %s849 = sphi 0, %s851
    %s852 = sphi 0, %s849
    %s853 = sphi 0, %s852
    %s869 = sphi 0, %s853
    %s875 = sphi 0, %s877
    %s878 = sphi 0, %s875
    %s879 = sphi 0, %s878
    %s895 = sphi 0, %s879
    %s901 = sphi 0, %s903
    %s904 = sphi 0, %s901
    %s905 = sphi 0, %s904
    %s921 = sphi 0, %s905
    %s927 = sphi 0, %s929
    %s930 = sphi 0, %s927
    %s931 = sphi 0, %s930
    %s947 = sphi 0, %s931
    %s955 = sphi 0, %s957
    %s958 = sphi 0, %s955
    %s959 = sphi 0, %s958
    %s975 = sphi 0, %s959
  $region4: #{run.1} parent=0 // loop_header_branch
    %76 = sbr.rel (%p74) target = $region8
  $region5: #{run.1} parent=0 // loop_body
    %s78 = ssub.s32 %s73, 1
    %s79 = ssub.s32 %s73, 2
    %s86 = sadd.s32 1, %s81
    %p87 = scmp.ge.s32.totalorder %s86, 2
    %s88 = scalar_select %p87, 0, %s86
    %s89 = sadd.s32 1, %s80
    %s90 = scalar_select %p87, %s89, %s80
    %p91 = scmp.ge.s32.totalorder %s90, 2
    %s92 = scalar_select %p91, 0, %s90
    %s93 = ssub.s32 %s80, %s92
    %p94 = scmp.eq.s32.totalorder %s93, 0
    %s96 = sadd.s32 %s95, 1
    %s97 = scalar_select %p94, %s95, %s96
    %p100 = pneg %p94
    %p101 = scmp.eq.s32.totalorder %s73, 3
    %p102 = por %p100, %p101
    %p103 = scmp.ne.s32.totalorder %s95, %s98
    %p104 = scmp.eq.s32.totalorder %s73, 0
    %p105 = por %p103, %p104
    %p106 = scmp.ne.s32.totalorder %s95, %s98
    %p107 = scmp.eq.s32.totalorder %s78, 3
    %p108 = por %p106, %p107
    %p109 = scmp.ne.s32.totalorder %s98, %s99
    %p110 = scmp.eq.s32.totalorder %s78, 0
    %p111 = por %p109, %p110
    %p112 = scmp.ne.s32.totalorder %s98, %s99
    %p113 = scmp.eq.s32.totalorder %s79, 3
    %p114 = por %p112, %p113
    %p116 = scmp.ne.s32.totalorder %s99, %s115
    %p117 = scmp.eq.s32.totalorder %s79, 0
    %p118 = por %p116, %p117
    %s119 = ssub.s32 %s80, %s92
    %p120 = scmp.eq.s32.totalorder %s119, 0
    %s122 = sadd.s32 %s121, 1
    %s123 = scalar_select %p120, %s121, %s122
    %p126 = pneg %p120
    %p127 = scmp.eq.s32.totalorder %s73, 3
    %p128 = por %p126, %p127
    %p129 = scmp.ne.s32.totalorder %s121, %s124
    %p130 = scmp.eq.s32.totalorder %s73, 0
    %p131 = por %p129, %p130
    %p132 = scmp.ne.s32.totalorder %s121, %s124
    %p133 = scmp.eq.s32.totalorder %s78, 3
    %p134 = por %p132, %p133
    %p135 = scmp.ne.s32.totalorder %s124, %s125
    %p136 = scmp.eq.s32.totalorder %s78, 0
    %p137 = por %p135, %p136
    %p138 = scmp.ne.s32.totalorder %s124, %s125
    %p139 = scmp.eq.s32.totalorder %s79, 3
    %p140 = por %p138, %p139
    %p142 = scmp.ne.s32.totalorder %s125, %s141
    %p143 = scmp.eq.s32.totalorder %s79, 0
    %p144 = por %p142, %p143
    %s145 = ssub.s32 %s80, %s92
    %p146 = scmp.eq.s32.totalorder %s145, 0
    %s148 = sadd.s32 %s147, 1
    %s149 = scalar_select %p146, %s147, %s148
    %p152 = pneg %p146
    %p153 = scmp.eq.s32.totalorder %s73, 3
    %p154 = por %p152, %p153
    %p155 = scmp.ne.s32.totalorder %s147, %s150
    %p156 = scmp.eq.s32.totalorder %s73, 0
    %p157 = por %p155, %p156
    %p158 = scmp.ne.s32.totalorder %s147, %s150
    %p159 = scmp.eq.s32.totalorder %s78, 3
    %p160 = por %p158, %p159
    %p161 = scmp.ne.s32.totalorder %s150, %s151
    %p162 = scmp.eq.s32.totalorder %s78, 0
    %p163 = por %p161, %p162
    %p164 = scmp.ne.s32.totalorder %s150, %s151
    %p165 = scmp.eq.s32.totalorder %s79, 3
    %p166 = por %p164, %p165
    %p168 = scmp.ne.s32.totalorder %s151, %s167
    %p169 = scmp.eq.s32.totalorder %s79, 0
    %p170 = por %p168, %p169
    %s171 = ssub.s32 %s80, %s92
    %p172 = scmp.eq.s32.totalorder %s171, 0
    %s174 = sadd.s32 %s173, 1
    %s175 = scalar_select %p172, %s173, %s174
    %p178 = pneg %p172
    %p179 = scmp.eq.s32.totalorder %s73, 3
    %p180 = por %p178, %p179
    %p181 = scmp.ne.s32.totalorder %s173, %s176
    %p182 = scmp.eq.s32.totalorder %s73, 0
    %p183 = por %p181, %p182
    %p184 = scmp.ne.s32.totalorder %s173, %s176
    %p185 = scmp.eq.s32.totalorder %s78, 3
    %p186 = por %p184, %p185
    %p187 = scmp.ne.s32.totalorder %s176, %s177
    %p188 = scmp.eq.s32.totalorder %s78, 0
    %p189 = por %p187, %p188
    %p190 = scmp.ne.s32.totalorder %s176, %s177
    %p191 = scmp.eq.s32.totalorder %s79, 3
    %p192 = por %p190, %p191
    %p194 = scmp.ne.s32.totalorder %s177, %s193
    %p195 = scmp.eq.s32.totalorder %s79, 0
    %p196 = por %p194, %p195
    %s197 = ssub.s32 %s80, %s92
    %p198 = scmp.eq.s32.totalorder %s197, 0
    %s200 = sadd.s32 %s199, 1
    %s201 = scalar_select %p198, %s199, %s200
    %p204 = pneg %p198
    %p205 = scmp.eq.s32.totalorder %s73, 3
    %p206 = por %p204, %p205
    %p207 = scmp.ne.s32.totalorder %s199, %s202
    %p208 = scmp.eq.s32.totalorder %s73, 0
    %p209 = por %p207, %p208
    %p210 = scmp.ne.s32.totalorder %s199, %s202
    %p211 = scmp.eq.s32.totalorder %s78, 3
    %p212 = por %p210, %p211
    %p213 = scmp.ne.s32.totalorder %s202, %s203
    %p214 = scmp.eq.s32.totalorder %s78, 0
    %p215 = por %p213, %p214
    %p216 = scmp.ne.s32.totalorder %s202, %s203
    %p217 = scmp.eq.s32.totalorder %s79, 3
    %p218 = por %p216, %p217
    %p220 = scmp.ne.s32.totalorder %s203, %s219
    %p221 = scmp.eq.s32.totalorder %s79, 0
    %p222 = por %p220, %p221
    %s223 = ssub.s32 %s80, %s92
    %p224 = scmp.eq.s32.totalorder %s223, 0
    %s226 = sadd.s32 %s225, 1
    %s227 = scalar_select %p224, %s225, %s226
    %p230 = pneg %p224
    %p231 = scmp.eq.s32.totalorder %s73, 3
    %p232 = por %p230, %p231
    %p233 = scmp.ne.s32.totalorder %s225, %s228
    %p234 = scmp.eq.s32.totalorder %s73, 0
    %p235 = por %p233, %p234
    %p236 = scmp.ne.s32.totalorder %s225, %s228
    %p237 = scmp.eq.s32.totalorder %s78, 3
    %p238 = por %p236, %p237
    %p239 = scmp.ne.s32.totalorder %s228, %s229
    %p240 = scmp.eq.s32.totalorder %s78, 0
    %p241 = por %p239, %p240
    %p242 = scmp.ne.s32.totalorder %s228, %s229
    %p243 = scmp.eq.s32.totalorder %s79, 3
    %p244 = por %p242, %p243
    %p246 = scmp.ne.s32.totalorder %s229, %s245
    %p247 = scmp.eq.s32.totalorder %s79, 0
    %p248 = por %p246, %p247
    %s249 = ssub.s32 %s80, %s92
    %p250 = scmp.eq.s32.totalorder %s249, 0
    %s252 = sadd.s32 %s251, 1
    %s253 = scalar_select %p250, %s251, %s252
    %p256 = pneg %p250
    %p257 = scmp.eq.s32.totalorder %s73, 3
    %p258 = por %p256, %p257
    %p259 = scmp.ne.s32.totalorder %s251, %s254
    %p260 = scmp.eq.s32.totalorder %s73, 0
    %p261 = por %p259, %p260
    %p262 = scmp.ne.s32.totalorder %s251, %s254
    %p263 = scmp.eq.s32.totalorder %s78, 3
    %p264 = por %p262, %p263
    %p265 = scmp.ne.s32.totalorder %s254, %s255
    %p266 = scmp.eq.s32.totalorder %s78, 0
    %p267 = por %p265, %p266
    %p268 = scmp.ne.s32.totalorder %s254, %s255
    %p269 = scmp.eq.s32.totalorder %s79, 3
    %p270 = por %p268, %p269
    %p272 = scmp.ne.s32.totalorder %s255, %s271
    %p273 = scmp.eq.s32.totalorder %s79, 0
    %p274 = por %p272, %p273
    %s275 = ssub.s32 %s80, %s92
    %p276 = scmp.eq.s32.totalorder %s275, 0
    %s278 = sadd.s32 %s277, 1
    %s279 = scalar_select %p276, %s277, %s278
    %p282 = pneg %p276
    %p283 = scmp.eq.s32.totalorder %s73, 3
    %p284 = por %p282, %p283
    %p285 = scmp.ne.s32.totalorder %s277, %s280
    %p286 = scmp.eq.s32.totalorder %s73, 0
    %p287 = por %p285, %p286
    %p288 = scmp.ne.s32.totalorder %s277, %s280
    %p289 = scmp.eq.s32.totalorder %s78, 3
    %p290 = por %p288, %p289
    %p291 = scmp.ne.s32.totalorder %s280, %s281
    %p292 = scmp.eq.s32.totalorder %s78, 0
    %p293 = por %p291, %p292
    %p294 = scmp.ne.s32.totalorder %s280, %s281
    %p295 = scmp.eq.s32.totalorder %s79, 3
    %p296 = por %p294, %p295
    %p298 = scmp.ne.s32.totalorder %s281, %s297
    %p299 = scmp.eq.s32.totalorder %s79, 0
    %p300 = por %p298, %p299
    %s301 = ssub.s32 %s80, %s92
    %p302 = scmp.eq.s32.totalorder %s301, 0
    %s304 = sadd.s32 %s303, 1
    %s305 = scalar_select %p302, %s303, %s304
    %p308 = pneg %p302
    %p309 = scmp.eq.s32.totalorder %s73, 3
    %p310 = por %p308, %p309
    %p311 = scmp.ne.s32.totalorder %s303, %s306
    %p312 = scmp.eq.s32.totalorder %s73, 0
    %p313 = por %p311, %p312
    %p314 = scmp.ne.s32.totalorder %s303, %s306
    %p315 = scmp.eq.s32.totalorder %s78, 3
    %p316 = por %p314, %p315
    %p317 = scmp.ne.s32.totalorder %s306, %s307
    %p318 = scmp.eq.s32.totalorder %s78, 0
    %p319 = por %p317, %p318
    %p320 = scmp.ne.s32.totalorder %s306, %s307
    %p321 = scmp.eq.s32.totalorder %s79, 3
    %p322 = por %p320, %p321
    %p324 = scmp.ne.s32.totalorder %s307, %s323
    %p325 = scmp.eq.s32.totalorder %s79, 0
    %p326 = por %p324, %p325
    %s327 = ssub.s32 %s81, %s88
    %p328 = scmp.eq.s32.totalorder %s327, 0
    %s330 = sadd.s32 %s329, 1
    %s331 = scalar_select %p328, %s329, %s330
    %p334 = pneg %p328
    %p335 = scmp.eq.s32.totalorder %s73, 3
    %p336 = por %p334, %p335
    %p337 = scmp.ne.s32.totalorder %s329, %s332
    %p338 = scmp.eq.s32.totalorder %s73, 0
    %p339 = por %p337, %p338
    %p340 = scmp.ne.s32.totalorder %s329, %s332
    %p341 = scmp.eq.s32.totalorder %s78, 3
    %p342 = por %p340, %p341
    %p343 = scmp.ne.s32.totalorder %s332, %s333
    %p344 = scmp.eq.s32.totalorder %s78, 0
    %p345 = por %p343, %p344
    %p346 = scmp.ne.s32.totalorder %s332, %s333
    %p347 = scmp.eq.s32.totalorder %s79, 3
    %p348 = por %p346, %p347
    %p350 = scmp.ne.s32.totalorder %s333, %s349
    %p351 = scmp.eq.s32.totalorder %s79, 0
    %p352 = por %p350, %p351
    %s353 = ssub.s32 %s81, %s88
    %p354 = scmp.eq.s32.totalorder %s353, 0
    %s356 = sadd.s32 %s355, 1
    %s357 = scalar_select %p354, %s355, %s356
    %p360 = pneg %p354
    %p361 = scmp.eq.s32.totalorder %s73, 3
    %p362 = por %p360, %p361
    %p363 = scmp.ne.s32.totalorder %s355, %s358
    %p364 = scmp.eq.s32.totalorder %s73, 0
    %p365 = por %p363, %p364
    %p366 = scmp.ne.s32.totalorder %s355, %s358
    %p367 = scmp.eq.s32.totalorder %s78, 3
    %p368 = por %p366, %p367
    %p369 = scmp.ne.s32.totalorder %s358, %s359
    %p370 = scmp.eq.s32.totalorder %s78, 0
    %p371 = por %p369, %p370
    %p372 = scmp.ne.s32.totalorder %s358, %s359
    %p373 = scmp.eq.s32.totalorder %s79, 3
    %p374 = por %p372, %p373
    %p376 = scmp.ne.s32.totalorder %s359, %s375
    %p377 = scmp.eq.s32.totalorder %s79, 0
    %p378 = por %p376, %p377
    %s379 = ssub.s32 %s81, %s88
    %p380 = scmp.eq.s32.totalorder %s379, 0
    %s382 = sadd.s32 %s381, 1
    %s383 = scalar_select %p380, %s381, %s382
    %p386 = pneg %p380
    %p387 = scmp.eq.s32.totalorder %s73, 3
    %p388 = por %p386, %p387
    %p389 = scmp.ne.s32.totalorder %s381, %s384
    %p390 = scmp.eq.s32.totalorder %s73, 0
    %p391 = por %p389, %p390
    %p392 = scmp.ne.s32.totalorder %s381, %s384
    %p393 = scmp.eq.s32.totalorder %s78, 3
    %p394 = por %p392, %p393
    %p395 = scmp.ne.s32.totalorder %s384, %s385
    %p396 = scmp.eq.s32.totalorder %s78, 0
    %p397 = por %p395, %p396
    %p398 = scmp.ne.s32.totalorder %s384, %s385
    %p399 = scmp.eq.s32.totalorder %s79, 3
    %p400 = por %p398, %p399
    %p402 = scmp.ne.s32.totalorder %s385, %s401
    %p403 = scmp.eq.s32.totalorder %s79, 0
    %p404 = por %p402, %p403
    %s405 = ssub.s32 %s81, %s88
    %p406 = scmp.eq.s32.totalorder %s405, 0
    %s408 = sadd.s32 %s407, 1
    %s409 = scalar_select %p406, %s407, %s408
    %p412 = pneg %p406
    %p413 = scmp.eq.s32.totalorder %s73, 3
    %p414 = por %p412, %p413
    %p415 = scmp.ne.s32.totalorder %s407, %s410
    %p416 = scmp.eq.s32.totalorder %s73, 0
    %p417 = por %p415, %p416
    %p418 = scmp.ne.s32.totalorder %s407, %s410
    %p419 = scmp.eq.s32.totalorder %s78, 3
    %p420 = por %p418, %p419
    %p421 = scmp.ne.s32.totalorder %s410, %s411
    %p422 = scmp.eq.s32.totalorder %s78, 0
    %p423 = por %p421, %p422
    %p424 = scmp.ne.s32.totalorder %s410, %s411
    %p425 = scmp.eq.s32.totalorder %s79, 3
    %p426 = por %p424, %p425
    %p428 = scmp.ne.s32.totalorder %s411, %s427
    %p429 = scmp.eq.s32.totalorder %s79, 0
    %p430 = por %p428, %p429
    %s431 = ssub.s32 %s81, %s88
    %p432 = scmp.eq.s32.totalorder %s431, 0
    %s434 = sadd.s32 %s433, 1
    %s435 = scalar_select %p432, %s433, %s434
    %p438 = pneg %p432
    %p439 = scmp.eq.s32.totalorder %s73, 3
    %p440 = por %p438, %p439
    %p441 = scmp.ne.s32.totalorder %s433, %s436
    %p442 = scmp.eq.s32.totalorder %s73, 0
    %p443 = por %p441, %p442
    %p444 = scmp.ne.s32.totalorder %s433, %s436
    %p445 = scmp.eq.s32.totalorder %s78, 3
    %p446 = por %p444, %p445
    %p447 = scmp.ne.s32.totalorder %s436, %s437
    %p448 = scmp.eq.s32.totalorder %s78, 0
    %p449 = por %p447, %p448
    %p450 = scmp.ne.s32.totalorder %s436, %s437
    %p451 = scmp.eq.s32.totalorder %s79, 3
    %p452 = por %p450, %p451
    %p454 = scmp.ne.s32.totalorder %s437, %s453
    %p455 = scmp.eq.s32.totalorder %s79, 0
    %p456 = por %p454, %p455
    %s457 = ssub.s32 %s81, %s88
    %p458 = scmp.eq.s32.totalorder %s457, 0
    %s460 = sadd.s32 %s459, 1
    %s461 = scalar_select %p458, %s459, %s460
    %p464 = pneg %p458
    %p465 = scmp.eq.s32.totalorder %s73, 3
    %p466 = por %p464, %p465
    %p467 = scmp.ne.s32.totalorder %s459, %s462
    %p468 = scmp.eq.s32.totalorder %s73, 0
    %p469 = por %p467, %p468
    %p470 = scmp.ne.s32.totalorder %s459, %s462
    %p471 = scmp.eq.s32.totalorder %s78, 3
    %p472 = por %p470, %p471
    %p473 = scmp.ne.s32.totalorder %s462, %s463
    %p474 = scmp.eq.s32.totalorder %s78, 0
    %p475 = por %p473, %p474
    %p476 = scmp.ne.s32.totalorder %s462, %s463
    %p477 = scmp.eq.s32.totalorder %s79, 3
    %p478 = por %p476, %p477
    %p480 = scmp.ne.s32.totalorder %s463, %s479
    %p481 = scmp.eq.s32.totalorder %s79, 0
    %p482 = por %p480, %p481
    %s483 = ssub.s32 %s81, %s88
    %p484 = scmp.eq.s32.totalorder %s483, 0
    %s486 = sadd.s32 %s485, 1
    %s487 = scalar_select %p484, %s485, %s486
    %p490 = pneg %p484
    %p491 = scmp.eq.s32.totalorder %s73, 3
    %p492 = por %p490, %p491
    %p493 = scmp.ne.s32.totalorder %s485, %s488
    %p494 = scmp.eq.s32.totalorder %s73, 0
    %p495 = por %p493, %p494
    %p496 = scmp.ne.s32.totalorder %s485, %s488
    %p497 = scmp.eq.s32.totalorder %s78, 3
    %p498 = por %p496, %p497
    %p499 = scmp.ne.s32.totalorder %s488, %s489
    %p500 = scmp.eq.s32.totalorder %s78, 0
    %p501 = por %p499, %p500
    %p502 = scmp.ne.s32.totalorder %s488, %s489
    %p503 = scmp.eq.s32.totalorder %s79, 3
    %p504 = por %p502, %p503
    %p506 = scmp.ne.s32.totalorder %s489, %s505
    %p507 = scmp.eq.s32.totalorder %s79, 0
    %p508 = por %p506, %p507
    %s509 = ssub.s32 %s81, %s88
    %p510 = scmp.eq.s32.totalorder %s509, 0
    %s512 = sadd.s32 %s511, 1
    %s513 = scalar_select %p510, %s511, %s512
    %p516 = pneg %p510
    %p517 = scmp.eq.s32.totalorder %s73, 3
    %p518 = por %p516, %p517
    %p519 = scmp.ne.s32.totalorder %s511, %s514
    %p520 = scmp.eq.s32.totalorder %s73, 0
    %p521 = por %p519, %p520
    %p522 = scmp.ne.s32.totalorder %s511, %s514
    %p523 = scmp.eq.s32.totalorder %s78, 3
    %p524 = por %p522, %p523
    %p525 = scmp.ne.s32.totalorder %s514, %s515
    %p526 = scmp.eq.s32.totalorder %s78, 0
    %p527 = por %p525, %p526
    %p528 = scmp.ne.s32.totalorder %s514, %s515
    %p529 = scmp.eq.s32.totalorder %s79, 3
    %p530 = por %p528, %p529
    %p532 = scmp.ne.s32.totalorder %s515, %s531
    %p533 = scmp.eq.s32.totalorder %s79, 0
    %p534 = por %p532, %p533
    %s535 = ssub.s32 %s81, %s88
    %p536 = scmp.eq.s32.totalorder %s535, 0
    %s538 = sadd.s32 %s537, 1
    %s539 = scalar_select %p536, %s537, %s538
    %p542 = pneg %p536
    %p543 = scmp.eq.s32.totalorder %s73, 3
    %p544 = por %p542, %p543
    %p545 = scmp.ne.s32.totalorder %s537, %s540
    %p546 = scmp.eq.s32.totalorder %s73, 0
    %p547 = por %p545, %p546
    %p548 = scmp.ne.s32.totalorder %s537, %s540
    %p549 = scmp.eq.s32.totalorder %s78, 3
    %p550 = por %p548, %p549
    %p551 = scmp.ne.s32.totalorder %s540, %s541
    %p552 = scmp.eq.s32.totalorder %s78, 0
    %p553 = por %p551, %p552
    %p554 = scmp.ne.s32.totalorder %s540, %s541
    %p555 = scmp.eq.s32.totalorder %s79, 3
    %p556 = por %p554, %p555
    %p558 = scmp.ne.s32.totalorder %s541, %s557
    %p559 = scmp.eq.s32.totalorder %s79, 0
    %p560 = por %p558, %p559
    %s561 = ssub.s32 %s81, %s88
    %p562 = scmp.eq.s32.totalorder %s561, 0
    %s564 = sadd.s32 %s563, 1
    %s565 = scalar_select %p562, %s563, %s564
    %p568 = pneg %p562
    %p569 = scmp.eq.s32.totalorder %s73, 3
    %p570 = por %p568, %p569
    %p571 = scmp.ne.s32.totalorder %s563, %s566
    %p572 = scmp.eq.s32.totalorder %s73, 0
    %p573 = por %p571, %p572
    %p574 = scmp.ne.s32.totalorder %s563, %s566
    %p575 = scmp.eq.s32.totalorder %s78, 3
    %p576 = por %p574, %p575
    %p577 = scmp.ne.s32.totalorder %s566, %s567
    %p578 = scmp.eq.s32.totalorder %s78, 0
    %p579 = por %p577, %p578
    %p580 = scmp.ne.s32.totalorder %s566, %s567
    %p581 = scmp.eq.s32.totalorder %s79, 3
    %p582 = por %p580, %p581
    %p584 = scmp.ne.s32.totalorder %s567, %s583
    %p585 = scmp.eq.s32.totalorder %s79, 0
    %p586 = por %p584, %p585
    %s587 = ssub.s32 %s81, %s88
    %p588 = scmp.eq.s32.totalorder %s587, 0
    %s590 = sadd.s32 %s589, 1
    %s591 = scalar_select %p588, %s589, %s590
    %p594 = pneg %p588
    %p595 = scmp.eq.s32.totalorder %s73, 3
    %p596 = por %p594, %p595
    %p597 = scmp.ne.s32.totalorder %s589, %s592
    %p598 = scmp.eq.s32.totalorder %s73, 0
    %p599 = por %p597, %p598
    %p600 = scmp.ne.s32.totalorder %s589, %s592
    %p601 = scmp.eq.s32.totalorder %s78, 3
    %p602 = por %p600, %p601
    %p603 = scmp.ne.s32.totalorder %s592, %s593
    %p604 = scmp.eq.s32.totalorder %s78, 0
    %p605 = por %p603, %p604
    %p606 = scmp.ne.s32.totalorder %s592, %s593
    %p607 = scmp.eq.s32.totalorder %s79, 3
    %p608 = por %p606, %p607
    %p610 = scmp.ne.s32.totalorder %s593, %s609
    %p611 = scmp.eq.s32.totalorder %s79, 0
    %p612 = por %p610, %p611
    %s613 = ssub.s32 %s81, %s88
    %p614 = scmp.eq.s32.totalorder %s613, 0
    %s616 = sadd.s32 %s615, 1
    %s617 = scalar_select %p614, %s615, %s616
    %p620 = pneg %p614
    %p621 = scmp.eq.s32.totalorder %s73, 3
    %p622 = por %p620, %p621
    %p623 = scmp.ne.s32.totalorder %s615, %s618
    %p624 = scmp.eq.s32.totalorder %s73, 0
    %p625 = por %p623, %p624
    %p626 = scmp.ne.s32.totalorder %s615, %s618
    %p627 = scmp.eq.s32.totalorder %s78, 3
    %p628 = por %p626, %p627
    %p629 = scmp.ne.s32.totalorder %s618, %s619
    %p630 = scmp.eq.s32.totalorder %s78, 0
    %p631 = por %p629, %p630
    %p632 = scmp.ne.s32.totalorder %s618, %s619
    %p633 = scmp.eq.s32.totalorder %s79, 3
    %p634 = por %p632, %p633
    %p636 = scmp.ne.s32.totalorder %s619, %s635
    %p637 = scmp.eq.s32.totalorder %s79, 0
    %p638 = por %p636, %p637
    %s639 = ssub.s32 %s81, %s88
    %p640 = scmp.eq.s32.totalorder %s639, 0
    %s642 = sadd.s32 %s641, 1
    %s643 = scalar_select %p640, %s641, %s642
    %p646 = pneg %p640
    %p647 = scmp.eq.s32.totalorder %s73, 3
    %p648 = por %p646, %p647
    %p649 = scmp.ne.s32.totalorder %s641, %s644
    %p650 = scmp.eq.s32.totalorder %s73, 0
    %p651 = por %p649, %p650
    %p652 = scmp.ne.s32.totalorder %s641, %s644
    %p653 = scmp.eq.s32.totalorder %s78, 3
    %p654 = por %p652, %p653
    %p655 = scmp.ne.s32.totalorder %s644, %s645
    %p656 = scmp.eq.s32.totalorder %s78, 0
    %p657 = por %p655, %p656
    %p658 = scmp.ne.s32.totalorder %s644, %s645
    %p659 = scmp.eq.s32.totalorder %s79, 3
    %p660 = por %p658, %p659
    %p662 = scmp.ne.s32.totalorder %s645, %s661
    %p663 = scmp.eq.s32.totalorder %s79, 0
    %p664 = por %p662, %p663
    %s665 = ssub.s32 %s81, %s88
    %p666 = scmp.eq.s32.totalorder %s665, 0
    %s668 = sadd.s32 %s667, 1
    %s669 = scalar_select %p666, %s667, %s668
    %p672 = pneg %p666
    %p673 = scmp.eq.s32.totalorder %s73, 3
    %p674 = por %p672, %p673
    %p675 = scmp.ne.s32.totalorder %s667, %s670
    %p676 = scmp.eq.s32.totalorder %s73, 0
    %p677 = por %p675, %p676
    %p678 = scmp.ne.s32.totalorder %s667, %s670
    %p679 = scmp.eq.s32.totalorder %s78, 3
    %p680 = por %p678, %p679
    %p681 = scmp.ne.s32.totalorder %s670, %s671
    %p682 = scmp.eq.s32.totalorder %s78, 0
    %p683 = por %p681, %p682
    %p684 = scmp.ne.s32.totalorder %s670, %s671
    %p685 = scmp.eq.s32.totalorder %s79, 3
    %p686 = por %p684, %p685
    %p688 = scmp.ne.s32.totalorder %s671, %s687
    %p689 = scmp.eq.s32.totalorder %s79, 0
    %p690 = por %p688, %p689
    %s691 = ssub.s32 %s81, %s88
    %p692 = scmp.eq.s32.totalorder %s691, 0
    %s694 = sadd.s32 %s693, 1
    %s695 = scalar_select %p692, %s693, %s694
    %p698 = pneg %p692
    %p699 = scmp.eq.s32.totalorder %s73, 3
    %p700 = por %p698, %p699
    %p701 = scmp.ne.s32.totalorder %s693, %s696
    %p702 = scmp.eq.s32.totalorder %s73, 0
    %p703 = por %p701, %p702
    %p704 = scmp.ne.s32.totalorder %s693, %s696
    %p705 = scmp.eq.s32.totalorder %s78, 3
    %p706 = por %p704, %p705
    %p707 = scmp.ne.s32.totalorder %s696, %s697
    %p708 = scmp.eq.s32.totalorder %s78, 0
    %p709 = por %p707, %p708
    %p710 = scmp.ne.s32.totalorder %s696, %s697
    %p711 = scmp.eq.s32.totalorder %s79, 3
    %p712 = por %p710, %p711
    %p714 = scmp.ne.s32.totalorder %s697, %s713
    %p715 = scmp.eq.s32.totalorder %s79, 0
    %p716 = por %p714, %p715
    %s717 = ssub.s32 %s81, %s88
    %p718 = scmp.eq.s32.totalorder %s717, 0
    %s720 = sadd.s32 %s719, 1
    %s721 = scalar_select %p718, %s719, %s720
    %p724 = pneg %p718
    %p725 = scmp.eq.s32.totalorder %s73, 3
    %p726 = por %p724, %p725
    %p727 = scmp.ne.s32.totalorder %s719, %s722
    %p728 = scmp.eq.s32.totalorder %s73, 0
    %p729 = por %p727, %p728
    %p730 = scmp.ne.s32.totalorder %s719, %s722
    %p731 = scmp.eq.s32.totalorder %s78, 3
    %p732 = por %p730, %p731
    %p733 = scmp.ne.s32.totalorder %s722, %s723
    %p734 = scmp.eq.s32.totalorder %s78, 0
    %p735 = por %p733, %p734
    %p736 = scmp.ne.s32.totalorder %s722, %s723
    %p737 = scmp.eq.s32.totalorder %s79, 3
    %p738 = por %p736, %p737
    %p740 = scmp.ne.s32.totalorder %s723, %s739
    %p741 = scmp.eq.s32.totalorder %s79, 0
    %p742 = por %p740, %p741
    %s743 = ssub.s32 %s81, %s88
    %p744 = scmp.eq.s32.totalorder %s743, 0
    %s746 = sadd.s32 %s745, 1
    %s747 = scalar_select %p744, %s745, %s746
    %p750 = pneg %p744
    %p751 = scmp.eq.s32.totalorder %s73, 3
    %p752 = por %p750, %p751
    %p753 = scmp.ne.s32.totalorder %s745, %s748
    %p754 = scmp.eq.s32.totalorder %s73, 0
    %p755 = por %p753, %p754
    %p756 = scmp.ne.s32.totalorder %s745, %s748
    %p757 = scmp.eq.s32.totalorder %s78, 3
    %p758 = por %p756, %p757
    %p759 = scmp.ne.s32.totalorder %s748, %s749
    %p760 = scmp.eq.s32.totalorder %s78, 0
    %p761 = por %p759, %p760
    %p762 = scmp.ne.s32.totalorder %s748, %s749
    %p763 = scmp.eq.s32.totalorder %s79, 3
    %p764 = por %p762, %p763
    %p766 = scmp.ne.s32.totalorder %s749, %s765
    %p767 = scmp.eq.s32.totalorder %s79, 0
    %p768 = por %p766, %p767
    %s769 = ssub.s32 %s81, %s88
    %p770 = scmp.eq.s32.totalorder %s769, 0
    %s772 = sadd.s32 %s771, 1
    %s773 = scalar_select %p770, %s771, %s772
    %p776 = pneg %p770
    %p777 = scmp.eq.s32.totalorder %s73, 3
    %p778 = por %p776, %p777
    %p779 = scmp.ne.s32.totalorder %s771, %s774
    %p780 = scmp.eq.s32.totalorder %s73, 0
    %p781 = por %p779, %p780
    %p782 = scmp.ne.s32.totalorder %s771, %s774
    %p783 = scmp.eq.s32.totalorder %s78, 3
    %p784 = por %p782, %p783
    %p785 = scmp.ne.s32.totalorder %s774, %s775
    %p786 = scmp.eq.s32.totalorder %s78, 0
    %p787 = por %p785, %p786
    %p788 = scmp.ne.s32.totalorder %s774, %s775
    %p789 = scmp.eq.s32.totalorder %s79, 3
    %p790 = por %p788, %p789
    %p792 = scmp.ne.s32.totalorder %s775, %s791
    %p793 = scmp.eq.s32.totalorder %s79, 0
    %p794 = por %p792, %p793
    %s795 = ssub.s32 %s81, %s88
    %p796 = scmp.eq.s32.totalorder %s795, 0
    %s798 = sadd.s32 %s797, 1
    %s799 = scalar_select %p796, %s797, %s798
    %p802 = pneg %p796
    %p803 = scmp.eq.s32.totalorder %s73, 3
    %p804 = por %p802, %p803
    %p805 = scmp.ne.s32.totalorder %s797, %s800
    %p806 = scmp.eq.s32.totalorder %s73, 0
    %p807 = por %p805, %p806
    %p808 = scmp.ne.s32.totalorder %s797, %s800
    %p809 = scmp.eq.s32.totalorder %s78, 3
    %p810 = por %p808, %p809
    %p811 = scmp.ne.s32.totalorder %s800, %s801
    %p812 = scmp.eq.s32.totalorder %s78, 0
    %p813 = por %p811, %p812
    %p814 = scmp.ne.s32.totalorder %s800, %s801
    %p815 = scmp.eq.s32.totalorder %s79, 3
    %p816 = por %p814, %p815
    %p818 = scmp.ne.s32.totalorder %s801, %s817
    %p819 = scmp.eq.s32.totalorder %s79, 0
    %p820 = por %p818, %p819
    %s821 = ssub.s32 %s81, %s88
    %p822 = scmp.eq.s32.totalorder %s821, 0
    %s824 = sadd.s32 %s823, 1
    %s825 = scalar_select %p822, %s823, %s824
    %p828 = pneg %p822
    %p829 = scmp.eq.s32.totalorder %s73, 3
    %p830 = por %p828, %p829
    %p831 = scmp.ne.s32.totalorder %s823, %s826
    %p832 = scmp.eq.s32.totalorder %s73, 0
    %p833 = por %p831, %p832
    %p834 = scmp.ne.s32.totalorder %s823, %s826
    %p835 = scmp.eq.s32.totalorder %s78, 3
    %p836 = por %p834, %p835
    %p837 = scmp.ne.s32.totalorder %s826, %s827
    %p838 = scmp.eq.s32.totalorder %s78, 0
    %p839 = por %p837, %p838
    %p840 = scmp.ne.s32.totalorder %s826, %s827
    %p841 = scmp.eq.s32.totalorder %s79, 3
    %p842 = por %p840, %p841
    %p844 = scmp.ne.s32.totalorder %s827, %s843
    %p845 = scmp.eq.s32.totalorder %s79, 0
    %p846 = por %p844, %p845
    %s847 = ssub.s32 %s81, %s88
    %p848 = scmp.eq.s32.totalorder %s847, 0
    %s850 = sadd.s32 %s849, 1
    %s851 = scalar_select %p848, %s849, %s850
    %p854 = pneg %p848
    %p855 = scmp.eq.s32.totalorder %s73, 3
    %p856 = por %p854, %p855
    %p857 = scmp.ne.s32.totalorder %s849, %s852
    %p858 = scmp.eq.s32.totalorder %s73, 0
    %p859 = por %p857, %p858
    %p860 = scmp.ne.s32.totalorder %s849, %s852
    %p861 = scmp.eq.s32.totalorder %s78, 3
    %p862 = por %p860, %p861
    %p863 = scmp.ne.s32.totalorder %s852, %s853
    %p864 = scmp.eq.s32.totalorder %s78, 0
    %p865 = por %p863, %p864
    %p866 = scmp.ne.s32.totalorder %s852, %s853
    %p867 = scmp.eq.s32.totalorder %s79, 3
    %p868 = por %p866, %p867
    %p870 = scmp.ne.s32.totalorder %s853, %s869
    %p871 = scmp.eq.s32.totalorder %s79, 0
    %p872 = por %p870, %p871
    %s873 = ssub.s32 %s81, %s88
    %p874 = scmp.eq.s32.totalorder %s873, 0
    %s876 = sadd.s32 %s875, 1
    %s877 = scalar_select %p874, %s875, %s876
    %p880 = pneg %p874
    %p881 = scmp.eq.s32.totalorder %s73, 3
    %p882 = por %p880, %p881
    %p883 = scmp.ne.s32.totalorder %s875, %s878
    %p884 = scmp.eq.s32.totalorder %s73, 0
    %p885 = por %p883, %p884
    %p886 = scmp.ne.s32.totalorder %s875, %s878
    %p887 = scmp.eq.s32.totalorder %s78, 3
    %p888 = por %p886, %p887
    %p889 = scmp.ne.s32.totalorder %s878, %s879
    %p890 = scmp.eq.s32.totalorder %s78, 0
    %p891 = por %p889, %p890
    %p892 = scmp.ne.s32.totalorder %s878, %s879
    %p893 = scmp.eq.s32.totalorder %s79, 3
    %p894 = por %p892, %p893
    %p896 = scmp.ne.s32.totalorder %s879, %s895
    %p897 = scmp.eq.s32.totalorder %s79, 0
    %p898 = por %p896, %p897
    %s899 = ssub.s32 %s81, %s88
    %p900 = scmp.eq.s32.totalorder %s899, 0
    %s902 = sadd.s32 %s901, 1
    %s903 = scalar_select %p900, %s901, %s902
    %p906 = pneg %p900
    %p907 = scmp.eq.s32.totalorder %s73, 3
    %p908 = por %p906, %p907
    %p909 = scmp.ne.s32.totalorder %s901, %s904
    %p910 = scmp.eq.s32.totalorder %s73, 0
    %p911 = por %p909, %p910
    %p912 = scmp.ne.s32.totalorder %s901, %s904
    %p913 = scmp.eq.s32.totalorder %s78, 3
    %p914 = por %p912, %p913
    %p915 = scmp.ne.s32.totalorder %s904, %s905
    %p916 = scmp.eq.s32.totalorder %s78, 0
    %p917 = por %p915, %p916
    %p918 = scmp.ne.s32.totalorder %s904, %s905
    %p919 = scmp.eq.s32.totalorder %s79, 3
    %p920 = por %p918, %p919
    %p922 = scmp.ne.s32.totalorder %s905, %s921
    %p923 = scmp.eq.s32.totalorder %s79, 0
    %p924 = por %p922, %p923
    %s925 = ssub.s32 %s81, %s88
    %p926 = scmp.eq.s32.totalorder %s925, 0
    %s928 = sadd.s32 %s927, 1
    %s929 = scalar_select %p926, %s927, %s928
    %p932 = pneg %p926
    %p933 = scmp.eq.s32.totalorder %s73, 3
    %p934 = por %p932, %p933
    %p935 = scmp.ne.s32.totalorder %s927, %s930
    %p936 = scmp.eq.s32.totalorder %s73, 0
    %p937 = por %p935, %p936
    %p938 = scmp.ne.s32.totalorder %s927, %s930
    %p939 = scmp.eq.s32.totalorder %s78, 3
    %p940 = por %p938, %p939
    %p941 = scmp.ne.s32.totalorder %s930, %s931
    %p942 = scmp.eq.s32.totalorder %s78, 0
    %p943 = por %p941, %p942
    %p944 = scmp.ne.s32.totalorder %s930, %s931
    %p945 = scmp.eq.s32.totalorder %s79, 3
    %p946 = por %p944, %p945
    %p948 = scmp.ne.s32.totalorder %s931, %s947
    %p949 = scmp.eq.s32.totalorder %s79, 0
    %p950 = por %p948, %p949
    %s951 = ssub.s32 %s81, %s88
    %s952 = ssub.s32 %s80, %s92
    %s953 = sor.u32 %s951, %s952
    %p954 = scmp.eq.s32.totalorder %s953, 0
    %s956 = sadd.s32 %s955, 1
    %s957 = scalar_select %p954, %s955, %s956
    %p960 = pneg %p954
    %p961 = scmp.eq.s32.totalorder %s73, 3
    %p962 = por %p960, %p961
    %p963 = scmp.ne.s32.totalorder %s955, %s958
    %p964 = scmp.eq.s32.totalorder %s73, 0
    %p965 = por %p963, %p964
    %p966 = scmp.ne.s32.totalorder %s955, %s958
    %p967 = scmp.eq.s32.totalorder %s78, 3
    %p968 = por %p966, %p967
    %p969 = scmp.ne.s32.totalorder %s958, %s959
    %p970 = scmp.eq.s32.totalorder %s78, 0
    %p971 = por %p969, %p970
    %p972 = scmp.ne.s32.totalorder %s958, %s959
    %p973 = scmp.eq.s32.totalorder %s79, 3
    %p974 = por %p972, %p973
    %p976 = scmp.ne.s32.totalorder %s959, %s975
    %p977 = scmp.eq.s32.totalorder %s79, 0
    %p978 = por %p976, %p977
    %p979 = scmp.le.s32.totalorder 1, %s73
    %p980 = scmp.lt.s32.totalorder %s73, 5
    %p981 = pnand %p979, %p980
    %p982 = pneg %p981
    // Predicated region
    $region9: #{run.1} parent=5 // pred_check
      _
    $region10: #{run.1} parent=5 // pred_check_branch
      %984 = sbr.rel (%p981) target = $region12
    $region11: #{run.1} parent=5 // pred_region
      %s985 = ssub.s32 %s73, 1
    $region12: #{run.1} parent=5 // pred_fallthru
      _
    %p986 = scmp.lt.s32.totalorder %s73, 4
    // Predicated region
    $region13: #{run.1} parent=5 // pred_check
      %p987 = pneg %p986
    $region14: #{run.1} parent=5 // pred_check_branch
      %989 = sbr.rel (%p987) target = $region16
    $region15: #{run.1} parent=5 // pred_region
      // Predicated region
      $region17: #{run.1} parent=15 // pred_check
        %p990 = pneg %p105
      $region18: #{run.1} parent=15 // pred_check_branch
        %992 = sbr.rel (%p990) target = $region20
      $region19: #{run.1} parent=15 // pred_region
        %p993 = scmp.lt.s32.totalorder %s80, 1
        %s994 = scalar_select %p993, %s80, 1
        %s995 = smul.addr %s994, 8
        %s996 = scalar_lea.vmem %s1, %s995
      $region20: #{run.1} parent=15 // pred_fallthru
        _
      // Predicated region
      $region21: #{run.1} parent=15 // pred_check
        %p997 = pneg %p131
      $region22: #{run.1} parent=15 // pred_check_branch
        %999 = sbr.rel (%p997) target = $region24
      $region23: #{run.1} parent=15 // pred_region
        %p1000 = scmp.lt.s32.totalorder %s80, 1
        %s1001 = scalar_select %p1000, %s80, 1
        %s1002 = smul.addr %s1001, 8
        %s1003 = scalar_lea.vmem %s3, %s1002
      $region24: #{run.1} parent=15 // pred_fallthru
        _
      // Predicated region
      $region25: #{run.1} parent=15 // pred_check
        %p1004 = pneg %p157
      $region26: #{run.1} parent=15 // pred_check_branch
        %1006 = sbr.rel (%p1004) target = $region28
      $region27: #{run.1} parent=15 // pred_region
        %p1007 = scmp.lt.s32.totalorder %s80, 1
        %s1008 = scalar_select %p1007, %s80, 1
        %s1009 = smul.addr %s1008, 3
        %s1010 = smul.addr %s1009, 4
        %s1011 = scalar_lea.vmem %s5, %s1010
      $region28: #{run.1} parent=15 // pred_fallthru
        _
      // Predicated region
      $region29: #{run.1} parent=15 // pred_check
        %p1012 = pneg %p183
      $region30: #{run.1} parent=15 // pred_check_branch
        %1014 = sbr.rel (%p1012) target = $region32
      $region31: #{run.1} parent=15 // pred_region
        %p1015 = scmp.lt.s32.totalorder %s80, 1
        %s1016 = scalar_select %p1015, %s80, 1
        %s1017 = smul.addr %s1016, 2
        %s1018 = smul.addr %s1017, 4
        %s1019 = scalar_lea.vmem %s7, %s1018
      $region32: #{run.1} parent=15 // pred_fallthru
        _
      // Predicated region
      $region33: #{run.1} parent=15 // pred_check
        %p1020 = pneg %p209
      $region34: #{run.1} parent=15 // pred_check_branch
        %1022 = sbr.rel (%p1020) target = $region36
      $region35: #{run.1} parent=15 // pred_region
        %p1023 = scmp.lt.s32.totalorder %s80, 1
        %s1024 = scalar_select %p1023, %s80, 1
        %s1025 = smul.addr %s1024, 3
        %s1026 = smul.addr %s1025, 8
        %s1027 = scalar_lea.vmem %s9, %s1026
      $region36: #{run.1} parent=15 // pred_fallthru
        _
      // Predicated region
      $region37: #{run.1} parent=15 // pred_check
        %p1028 = pneg %p235
      $region38: #{run.1} parent=15 // pred_check_branch
        %1030 = sbr.rel (%p1028) target = $region40
      $region39: #{run.1} parent=15 // pred_region
        %p1031 = scmp.lt.s32.totalorder %s80, 1
        %s1032 = scalar_select %p1031, %s80, 1
        %s1033 = smul.addr %s1032, 2
        %s1034 = smul.addr %s1033, 8
        %s1035 = scalar_lea.vmem %s11, %s1034
      $region40: #{run.1} parent=15 // pred_fallthru
        _
      // Predicated region
      $region41: #{run.1} parent=15 // pred_check
        %p1036 = pneg %p261
      $region42: #{run.1} parent=15 // pred_check_branch
        %1038 = sbr.rel (%p1036) target = $region44
      $region43: #{run.1} parent=15 // pred_region
        %p1039 = scmp.lt.s32.totalorder %s80, 1
        %s1040 = scalar_select %p1039, %s80, 1
        %s1041 = scalar_lea.vmem %s13, %s1040
      $region44: #{run.1} parent=15 // pred_fallthru
        _
      // Predicated region
      $region45: #{run.1} parent=15 // pred_check
        %p1042 = pneg %p287
      $region46: #{run.1} parent=15 // pred_check_branch
        %1044 = sbr.rel (%p1042) target = $region48
      $region47: #{run.1} parent=15 // pred_region
        %p1045 = scmp.lt.s32.totalorder %s80, 1
        %s1046 = scalar_select %p1045, %s80, 1
        %s1047 = smul.addr %s1046, 8
        %s1048 = scalar_lea.vmem %s15, %s1047
      $region48: #{run.1} parent=15 // pred_fallthru
        _
      // Predicated region
      $region49: #{run.1} parent=15 // pred_check
        %p1049 = pneg %p313
      $region50: #{run.1} parent=15 // pred_check_branch
        %1051 = sbr.rel (%p1049) target = $region52
      $region51: #{run.1} parent=15 // pred_region
        %p1052 = scmp.lt.s32.totalorder %s80, 1
        %s1053 = scalar_select %p1052, %s80, 1
        %s1054 = smul.addr %s1053, 8
        %s1055 = scalar_lea.vmem %s17, %s1054
      $region52: #{run.1} parent=15 // pred_fallthru
        _
      // Predicated region
      $region53: #{run.1} parent=15 // pred_check
        %p1056 = pneg %p339
      $region54: #{run.1} parent=15 // pred_check_branch
        %1058 = sbr.rel (%p1056) target = $region56
      $region55: #{run.1} parent=15 // pred_region
        %p1059 = scmp.lt.s32.totalorder %s81, 1
        %s1060 = scalar_select %p1059, %s81, 1
        %s1061 = smul.addr %s1060, 4
        %s1062 = smul.addr %s1061, 4
        %s1063 = scalar_lea.vmem %s19, %s1062
      $region56: #{run.1} parent=15 // pred_fallthru
        _
      // Predicated region
      $region57: #{run.1} parent=15 // pred_check
        %p1064 = pneg %p365
      $region58: #{run.1} parent=15 // pred_check_branch
        %1066 = sbr.rel (%p1064) target = $region60
      $region59: #{run.1} parent=15 // pred_region
        %p1067 = scmp.lt.s32.totalorder %s81, 1
        %s1068 = scalar_select %p1067, %s81, 1
        %s1069 = scalar_lea.vmem %s21, %s1068
      $region60: #{run.1} parent=15 // pred_fallthru
        _
      // Predicated region
      $region61: #{run.1} parent=15 // pred_check
        %p1070 = pneg %p391
      $region62: #{run.1} parent=15 // pred_check_branch
        %1072 = sbr.rel (%p1070) target = $region64
      $region63: #{run.1} parent=15 // pred_region
        %p1073 = scmp.lt.s32.totalorder %s81, 1
        %s1074 = scalar_select %p1073, %s81, 1
        %s1075 = smul.addr %s1074, 4
        %s1076 = smul.addr %s1075, 4
        %s1077 = scalar_lea.vmem %s23, %s1076
      $region64: #{run.1} parent=15 // pred_fallthru
        _
      // Predicated region
      $region65: #{run.1} parent=15 // pred_check
        %p1078 = pneg %p417
      $region66: #{run.1} parent=15 // pred_check_branch
        %1080 = sbr.rel (%p1078) target = $region68
      $region67: #{run.1} parent=15 // pred_region
        %p1081 = scmp.lt.s32.totalorder %s81, 1
        %s1082 = scalar_select %p1081, %s81, 1
        %s1083 = scalar_lea.vmem %s25, %s1082
      $region68: #{run.1} parent=15 // pred_fallthru
        _
      // Predicated region
      $region69: #{run.1} parent=15 // pred_check
        %p1084 = pneg %p443
      $region70: #{run.1} parent=15 // pred_check_branch
        %1086 = sbr.rel (%p1084) target = $region72
      $region71: #{run.1} parent=15 // pred_region
        %p1087 = scmp.lt.s32.totalorder %s81, 1
        %s1088 = scalar_select %p1087, %s81, 1
        %s1089 = smul.addr %s1088, 4
        %s1090 = smul.addr %s1089, 4
        %s1091 = scalar_lea.vmem %s27, %s1090
      $region72: #{run.1} parent=15 // pred_fallthru
        _
      // Predicated region
      $region73: #{run.1} parent=15 // pred_check
        %p1092 = pneg %p469
      $region74: #{run.1} parent=15 // pred_check_branch
        %1094 = sbr.rel (%p1092) target = $region76
      $region75: #{run.1} parent=15 // pred_region
        %p1095 = scmp.lt.s32.totalorder %s81, 1
        %s1096 = scalar_select %p1095, %s81, 1
        %s1097 = scalar_lea.vmem %s29, %s1096
      $region76: #{run.1} parent=15 // pred_fallthru
        _
      // Predicated region
      $region77: #{run.1} parent=15 // pred_check
        %p1098 = pneg %p495
      $region78: #{run.1} parent=15 // pred_check_branch
        %1100 = sbr.rel (%p1098) target = $region80
      $region79: #{run.1} parent=15 // pred_region
        %p1101 = scmp.lt.s32.totalorder %s81, 1
        %s1102 = scalar_select %p1101, %s81, 1
        %s1103 = smul.addr %s1102, 4
        %s1104 = smul.addr %s1103, 4
        %s1105 = scalar_lea.vmem %s31, %s1104
      $region80: #{run.1} parent=15 // pred_fallthru
        _
      // Predicated region
      $region81: #{run.1} parent=15 // pred_check
        %p1106 = pneg %p521
      $region82: #{run.1} parent=15 // pred_check_branch
        %1108 = sbr.rel (%p1106) target = $region84
      $region83: #{run.1} parent=15 // pred_region
        %p1109 = scmp.lt.s32.totalorder %s81, 1
        %s1110 = scalar_select %p1109, %s81, 1
        %s1111 = scalar_lea.vmem %s33, %s1110
      $region84: #{run.1} parent=15 // pred_fallthru
        _
      // Predicated region
      $region85: #{run.1} parent=15 // pred_check
        %p1112 = pneg %p547
      $region86: #{run.1} parent=15 // pred_check_branch
        %1114 = sbr.rel (%p1112) target = $region88
      $region87: #{run.1} parent=15 // pred_region
        %p1115 = scmp.lt.s32.totalorder %s81, 1
        %s1116 = scalar_select %p1115, %s81, 1
        %s1117 = smul.addr %s1116, 4
        %s1118 = smul.addr %s1117, 4
        %s1119 = scalar_lea.vmem %s35, %s1118
      $region88: #{run.1} parent=15 // pred_fallthru
        _
      // Predicated region
      $region89: #{run.1} parent=15 // pred_check
        %p1120 = pneg %p573
      $region90: #{run.1} parent=15 // pred_check_branch
        %1122 = sbr.rel (%p1120) target = $region92
      $region91: #{run.1} parent=15 // pred_region
        %p1123 = scmp.lt.s32.totalorder %s81, 1
        %s1124 = scalar_select %p1123, %s81, 1
        %s1125 = scalar_lea.vmem %s37, %s1124
      $region92: #{run.1} parent=15 // pred_fallthru
        _
      // Predicated region
      $region93: #{run.1} parent=15 // pred_check
        %p1126 = pneg %p599
      $region94: #{run.1} parent=15 // pred_check_branch
        %1128 = sbr.rel (%p1126) target = $region96
      $region95: #{run.1} parent=15 // pred_region
        %p1129 = scmp.lt.s32.totalorder %s81, 1
        %s1130 = scalar_select %p1129, %s81, 1
        %s1131 = smul.addr %s1130, 4
        %s1132 = smul.addr %s1131, 4
        %s1133 = scalar_lea.vmem %s39, %s1132
      $region96: #{run.1} parent=15 // pred_fallthru
        _
      // Predicated region
      $region97: #{run.1} parent=15 // pred_check
        %p1134 = pneg %p625
      $region98: #{run.1} parent=15 // pred_check_branch
        %1136 = sbr.rel (%p1134) target = $region100
      $region99: #{run.1} parent=15 // pred_region
        %p1137 = scmp.lt.s32.totalorder %s81, 1
        %s1138 = scalar_select %p1137, %s81, 1
        %s1139 = scalar_lea.vmem %s41, %s1138
      $region100: #{run.1} parent=15 // pred_fallthru
        _
      // Predicated region
      $region101: #{run.1} parent=15 // pred_check
        %p1140 = pneg %p651
      $region102: #{run.1} parent=15 // pred_check_branch
        %1142 = sbr.rel (%p1140) target = $region104
      $region103: #{run.1} parent=15 // pred_region
        %p1143 = scmp.lt.s32.totalorder %s81, 1
        %s1144 = scalar_select %p1143, %s81, 1
        %s1145 = smul.addr %s1144, 4
        %s1146 = smul.addr %s1145, 4
        %s1147 = scalar_lea.vmem %s43, %s1146
      $region104: #{run.1} parent=15 // pred_fallthru
        _
      // Predicated region
      $region105: #{run.1} parent=15 // pred_check
        %p1148 = pneg %p677
      $region106: #{run.1} parent=15 // pred_check_branch
        %1150 = sbr.rel (%p1148) target = $region108
      $region107: #{run.1} parent=15 // pred_region
        %p1151 = scmp.lt.s32.totalorder %s81, 1
        %s1152 = scalar_select %p1151, %s81, 1
        %s1153 = scalar_lea.vmem %s45, %s1152
      $region108: #{run.1} parent=15 // pred_fallthru
        _
      // Predicated region
      $region109: #{run.1} parent=15 // pred_check
        %p1154 = pneg %p703
      $region110: #{run.1} parent=15 // pred_check_branch
        %1156 = sbr.rel (%p1154) target = $region112
      $region111: #{run.1} parent=15 // pred_region
        %p1157 = scmp.lt.s32.totalorder %s81, 1
        %s1158 = scalar_select %p1157, %s81, 1
        %s1159 = smul.addr %s1158, 4
        %s1160 = smul.addr %s1159, 4
        %s1161 = scalar_lea.vmem %s47, %s1160
      $region112: #{run.1} parent=15 // pred_fallthru
        _
      // Predicated region
      $region113: #{run.1} parent=15 // pred_check
        %p1162 = pneg %p729
      $region114: #{run.1} parent=15 // pred_check_branch
        %1164 = sbr.rel (%p1162) target = $region116
      $region115: #{run.1} parent=15 // pred_region
        %p1165 = scmp.lt.s32.totalorder %s81, 1
        %s1166 = scalar_select %p1165, %s81, 1
        %s1167 = scalar_lea.vmem %s49, %s1166
      $region116: #{run.1} parent=15 // pred_fallthru
        _
      // Predicated region
      $region117: #{run.1} parent=15 // pred_check
        %p1168 = pneg %p755
      $region118: #{run.1} parent=15 // pred_check_branch
        %1170 = sbr.rel (%p1168) target = $region120
      $region119: #{run.1} parent=15 // pred_region
        %p1171 = scmp.lt.s32.totalorder %s81, 1
        %s1172 = scalar_select %p1171, %s81, 1
        %s1173 = smul.addr %s1172, 4
        %s1174 = smul.addr %s1173, 4
        %s1175 = scalar_lea.vmem %s51, %s1174
      $region120: #{run.1} parent=15 // pred_fallthru
        _
      // Predicated region
      $region121: #{run.1} parent=15 // pred_check
        %p1176 = pneg %p781
      $region122: #{run.1} parent=15 // pred_check_branch
        %1178 = sbr.rel (%p1176) target = $region124
      $region123: #{run.1} parent=15 // pred_region
        %p1179 = scmp.lt.s32.totalorder %s81, 1
        %s1180 = scalar_select %p1179, %s81, 1
        %s1181 = scalar_lea.vmem %s53, %s1180
      $region124: #{run.1} parent=15 // pred_fallthru
        _
      // Predicated region
      $region125: #{run.1} parent=15 // pred_check
        %p1182 = pneg %p807
      $region126: #{run.1} parent=15 // pred_check_branch
        %1184 = sbr.rel (%p1182) target = $region128
      $region127: #{run.1} parent=15 // pred_region
        %p1185 = scmp.lt.s32.totalorder %s81, 1
        %s1186 = scalar_select %p1185, %s81, 1
        %s1187 = smul.addr %s1186, 4
        %s1188 = smul.addr %s1187, 4
        %s1189 = scalar_lea.vmem %s55, %s1188
      $region128: #{run.1} parent=15 // pred_fallthru
        _
      // Predicated region
      $region129: #{run.1} parent=15 // pred_check
        %p1190 = pneg %p833
      $region130: #{run.1} parent=15 // pred_check_branch
        %1192 = sbr.rel (%p1190) target = $region132
      $region131: #{run.1} parent=15 // pred_region
        %p1193 = scmp.lt.s32.totalorder %s81, 1
        %s1194 = scalar_select %p1193, %s81, 1
        %s1195 = scalar_lea.vmem %s57, %s1194
      $region132: #{run.1} parent=15 // pred_fallthru
        _
      // Predicated region
      $region133: #{run.1} parent=15 // pred_check
        %p1196 = pneg %p859
      $region134: #{run.1} parent=15 // pred_check_branch
        %1198 = sbr.rel (%p1196) target = $region136
      $region135: #{run.1} parent=15 // pred_region
        %p1199 = scmp.lt.s32.totalorder %s81, 1
        %s1200 = scalar_select %p1199, %s81, 1
        %s1201 = smul.addr %s1200, 8
        %s1202 = smul.addr %s1201, 4
        %s1203 = scalar_lea.vmem %s59, %s1202
      $region136: #{run.1} parent=15 // pred_fallthru
        _
      // Predicated region
      $region137: #{run.1} parent=15 // pred_check
        %p1204 = pneg %p885
      $region138: #{run.1} parent=15 // pred_check_branch
        %1206 = sbr.rel (%p1204) target = $region140
      $region139: #{run.1} parent=15 // pred_region
        %p1207 = scmp.lt.s32.totalorder %s81, 1
        %s1208 = scalar_select %p1207, %s81, 1
        %s1209 = scalar_lea.vmem %s61, %s1208
      $region140: #{run.1} parent=15 // pred_fallthru
        _
      // Predicated region
      $region141: #{run.1} parent=15 // pred_check
        %p1210 = pneg %p911
      $region142: #{run.1} parent=15 // pred_check_branch
        %1212 = sbr.rel (%p1210) target = $region144
      $region143: #{run.1} parent=15 // pred_region
        %p1213 = scmp.lt.s32.totalorder %s81, 1
        %s1214 = scalar_select %p1213, %s81, 1
        %s1215 = smul.addr %s1214, 4
        %s1216 = scalar_lea.vmem %s63, %s1215
      $region144: #{run.1} parent=15 // pred_fallthru
        _
      // Predicated region
      $region145: #{run.1} parent=15 // pred_check
        %p1217 = pneg %p937
      $region146: #{run.1} parent=15 // pred_check_branch
        %1219 = sbr.rel (%p1217) target = $region148
      $region147: #{run.1} parent=15 // pred_region
        %p1220 = scmp.lt.s32.totalorder %s81, 1
        %s1221 = scalar_select %p1220, %s81, 1
        %s1222 = smul.addr %s1221, 4
        %s1223 = scalar_lea.vmem %s65, %s1222
      $region148: #{run.1} parent=15 // pred_fallthru
        _
    $region16: #{run.1} parent=5 // pred_fallthru
      _
    %p1224 = scmp.le.s32.totalorder 1, %s73
    %p1225 = scmp.lt.s32.totalorder %s73, 5
    %p1226 = pnand %p1224, %p1225
    %p1227 = pneg %p1226
    // Predicated region
    $region149: #{run.1} parent=5 // pred_check
      _
    $region150: #{run.1} parent=5 // pred_check_branch
      %1229 = sbr.rel (%p1226) target = $region152
    $region151: #{run.1} parent=5 // pred_region
      %s1230 = ssub.s32 %s73, 1
      %p1231 = scmp.lt.s32.totalorder %s82, 1
      %s1232 = scalar_select %p1231, %s82, 1
      %s1233 = smul.addr %s1232, 8
      %s1234 = scalar_lea.vmem %s1, %s1233
      %p1235 = pneg %p111
      %p1236 = pneg %p108
      %p1237 = scmp.lt.s32.totalorder %s82, 1
      %s1238 = scalar_select %p1237, %s82, 1
      %s1239 = smul.addr %s1238, 8
      %s1240 = scalar_lea.vmem %s3, %s1239
      %p1241 = pneg %p137
      %p1242 = pneg %p134
      %p1243 = scmp.lt.s32.totalorder %s82, 1
      %s1244 = scalar_select %p1243, %s82, 1
      %s1245 = smul.addr %s1244, 3
      %s1246 = smul.addr %s1245, 4
      %s1247 = scalar_lea.vmem %s5, %s1246
      %p1248 = pneg %p163
      %p1249 = pneg %p160
      %p1250 = scmp.lt.s32.totalorder %s82, 1
      %s1251 = scalar_select %p1250, %s82, 1
      %s1252 = smul.addr %s1251, 2
      %s1253 = smul.addr %s1252, 4
      %s1254 = scalar_lea.vmem %s7, %s1253
      %p1255 = pneg %p189
      %p1256 = pneg %p186
      %p1257 = scmp.lt.s32.totalorder %s82, 1
      %s1258 = scalar_select %p1257, %s82, 1
      %s1259 = smul.addr %s1258, 3
      %s1260 = smul.addr %s1259, 8
      %s1261 = scalar_lea.vmem %s9, %s1260
      %p1262 = pneg %p215
      %p1263 = pneg %p212
      %p1264 = scmp.lt.s32.totalorder %s82, 1
      %s1265 = scalar_select %p1264, %s82, 1
      %s1266 = smul.addr %s1265, 2
      %s1267 = smul.addr %s1266, 8
      %s1268 = scalar_lea.vmem %s11, %s1267
      %p1269 = pneg %p241
      %p1270 = pneg %p238
      %p1271 = scmp.lt.s32.totalorder %s82, 1
      %s1272 = scalar_select %p1271, %s82, 1
      %s1273 = scalar_lea.vmem %s13, %s1272
      %p1274 = pneg %p267
      %p1275 = pneg %p264
      %p1276 = scmp.lt.s32.totalorder %s82, 1
      %s1277 = scalar_select %p1276, %s82, 1
      %s1278 = smul.addr %s1277, 8
      %s1279 = scalar_lea.vmem %s15, %s1278
      %p1280 = pneg %p293
      %p1281 = pneg %p290
      %p1282 = scmp.lt.s32.totalorder %s82, 1
      %s1283 = scalar_select %p1282, %s82, 1
      %s1284 = smul.addr %s1283, 8
      %s1285 = scalar_lea.vmem %s17, %s1284
      %p1286 = pneg %p319
      %p1287 = pneg %p316
      %p1288 = scmp.lt.s32.totalorder %s83, 1
      %s1289 = scalar_select %p1288, %s83, 1
      %s1290 = smul.addr %s1289, 4
      %s1291 = smul.addr %s1290, 4
      %s1292 = scalar_lea.vmem %s19, %s1291
      %p1293 = pneg %p345
      %p1294 = pneg %p342
      %p1295 = scmp.lt.s32.totalorder %s83, 1
      %s1296 = scalar_select %p1295, %s83, 1
      %s1297 = scalar_lea.vmem %s21, %s1296
      %p1298 = pneg %p371
      %p1299 = pneg %p368
      %p1300 = scmp.lt.s32.totalorder %s83, 1
      %s1301 = scalar_select %p1300, %s83, 1
      %s1302 = smul.addr %s1301, 4
      %s1303 = smul.addr %s1302, 4
      %s1304 = scalar_lea.vmem %s23, %s1303
      %p1305 = pneg %p397
      %p1306 = pneg %p394
      %p1307 = scmp.lt.s32.totalorder %s83, 1
      %s1308 = scalar_select %p1307, %s83, 1
      %s1309 = scalar_lea.vmem %s25, %s1308
      %p1310 = pneg %p423
      %p1311 = pneg %p420
      %p1312 = scmp.lt.s32.totalorder %s83, 1
      %s1313 = scalar_select %p1312, %s83, 1
      %s1314 = smul.addr %s1313, 4
      %s1315 = smul.addr %s1314, 4
      %s1316 = scalar_lea.vmem %s27, %s1315
      %p1317 = pneg %p449
      %p1318 = pneg %p446
      %p1319 = scmp.lt.s32.totalorder %s83, 1
      %s1320 = scalar_select %p1319, %s83, 1
      %s1321 = scalar_lea.vmem %s29, %s1320
      %p1322 = pneg %p475
      %p1323 = pneg %p472
      %p1324 = scmp.lt.s32.totalorder %s83, 1
      %s1325 = scalar_select %p1324, %s83, 1
      %s1326 = smul.addr %s1325, 4
      %s1327 = smul.addr %s1326, 4
      %s1328 = scalar_lea.vmem %s31, %s1327
      %p1329 = pneg %p501
      %p1330 = pneg %p498
      %p1331 = scmp.lt.s32.totalorder %s83, 1
      %s1332 = scalar_select %p1331, %s83, 1
      %s1333 = scalar_lea.vmem %s33, %s1332
      %p1334 = pneg %p527
      %p1335 = pneg %p524
      %p1336 = scmp.lt.s32.totalorder %s83, 1
      %s1337 = scalar_select %p1336, %s83, 1
      %s1338 = smul.addr %s1337, 4
      %s1339 = smul.addr %s1338, 4
      %s1340 = scalar_lea.vmem %s35, %s1339
      %p1341 = pneg %p553
      %p1342 = pneg %p550
      %p1343 = scmp.lt.s32.totalorder %s83, 1
      %s1344 = scalar_select %p1343, %s83, 1
      %s1345 = scalar_lea.vmem %s37, %s1344
      %p1346 = pneg %p579
      %p1347 = pneg %p576
      %p1348 = scmp.lt.s32.totalorder %s83, 1
      %s1349 = scalar_select %p1348, %s83, 1
      %s1350 = smul.addr %s1349, 4
      %s1351 = smul.addr %s1350, 4
      %s1352 = scalar_lea.vmem %s39, %s1351
      %p1353 = pneg %p605
      %p1354 = pneg %p602
      %p1355 = scmp.lt.s32.totalorder %s83, 1
      %s1356 = scalar_select %p1355, %s83, 1
      %s1357 = scalar_lea.vmem %s41, %s1356
      %p1358 = pneg %p631
      %p1359 = pneg %p628
      %p1360 = scmp.lt.s32.totalorder %s83, 1
      %s1361 = scalar_select %p1360, %s83, 1
      %s1362 = smul.addr %s1361, 4
      %s1363 = smul.addr %s1362, 4
      %s1364 = scalar_lea.vmem %s43, %s1363
      %p1365 = pneg %p657
      %p1366 = pneg %p654
      %p1367 = scmp.lt.s32.totalorder %s83, 1
      %s1368 = scalar_select %p1367, %s83, 1
      %s1369 = scalar_lea.vmem %s45, %s1368
      %p1370 = pneg %p683
      %p1371 = pneg %p680
      %p1372 = scmp.lt.s32.totalorder %s83, 1
      %s1373 = scalar_select %p1372, %s83, 1
      %s1374 = smul.addr %s1373, 4
      %s1375 = smul.addr %s1374, 4
      %s1376 = scalar_lea.vmem %s47, %s1375
      %p1377 = pneg %p709
      %p1378 = pneg %p706
      %p1379 = scmp.lt.s32.totalorder %s83, 1
      %s1380 = scalar_select %p1379, %s83, 1
      %s1381 = scalar_lea.vmem %s49, %s1380
      %p1382 = pneg %p735
      %p1383 = pneg %p732
      %p1384 = scmp.lt.s32.totalorder %s83, 1
      %s1385 = scalar_select %p1384, %s83, 1
      %s1386 = smul.addr %s1385, 4
      %s1387 = smul.addr %s1386, 4
      %s1388 = scalar_lea.vmem %s51, %s1387
      %p1389 = pneg %p761
      %p1390 = pneg %p758
      %p1391 = scmp.lt.s32.totalorder %s83, 1
      %s1392 = scalar_select %p1391, %s83, 1
      %s1393 = scalar_lea.vmem %s53, %s1392
      %p1394 = pneg %p787
      %p1395 = pneg %p784
      %p1396 = scmp.lt.s32.totalorder %s83, 1
      %s1397 = scalar_select %p1396, %s83, 1
      %s1398 = smul.addr %s1397, 4
      %s1399 = smul.addr %s1398, 4
      %s1400 = scalar_lea.vmem %s55, %s1399
      %p1401 = pneg %p813
      %p1402 = pneg %p810
      %p1403 = scmp.lt.s32.totalorder %s83, 1
      %s1404 = scalar_select %p1403, %s83, 1
      %s1405 = scalar_lea.vmem %s57, %s1404
      %p1406 = pneg %p839
      %p1407 = pneg %p836
      %p1408 = scmp.lt.s32.totalorder %s83, 1
      %s1409 = scalar_select %p1408, %s83, 1
      %s1410 = smul.addr %s1409, 8
      %s1411 = smul.addr %s1410, 4
      %s1412 = scalar_lea.vmem %s59, %s1411
      %p1413 = pneg %p865
      %p1414 = pneg %p862
      %p1415 = scmp.lt.s32.totalorder %s83, 1
      %s1416 = scalar_select %p1415, %s83, 1
      %s1417 = scalar_lea.vmem %s61, %s1416
      %p1418 = pneg %p891
      %p1419 = pneg %p888
      %p1420 = scmp.lt.s32.totalorder %s83, 1
      %s1421 = scalar_select %p1420, %s83, 1
      %s1422 = smul.addr %s1421, 4
      %s1423 = scalar_lea.vmem %s63, %s1422
      %p1424 = pneg %p917
      %p1425 = pneg %p914
      %p1426 = scmp.lt.s32.totalorder %s83, 1
      %s1427 = scalar_select %p1426, %s83, 1
      %s1428 = smul.addr %s1427, 4
      %s1429 = scalar_lea.vmem %s65, %s1428
      %p1430 = pneg %p943
      %p1431 = pneg %p940
      %p1432 = pneg %p971
      %p1433 = pneg %p968
      %p1434 = scmp.lt.s32.totalorder %s83, 1
      %s1435 = scalar_select %p1434, %s83, 1
      %p1436 = scmp.lt.s32.totalorder %s82, 1
      %s1437 = scalar_select %p1436, %s82, 1
      %s1438 = smul.addr %s1435, 2
      %s1439 = sadd.s32 %s1437, %s1438
      %s1440 = smul.addr %s1439, 8
      %s1441 = scalar_lea.vmem %s67, %s1440
      %p1442 = scmp.lt.s32.totalorder %s82, 1
      %s1443 = scalar_select %p1442, %s82, 1
      %s1444 = smul.addr %s1443, 8
      %s1445 = scalar_lea.vmem %s1, %s1444
      %p1446 = scmp.lt.s32.totalorder %s82, 1
      %s1447 = scalar_select %p1446, %s82, 1
      %s1448 = smul.addr %s1447, 8
      %s1449 = scalar_lea.vmem %s3, %s1448
      %p1450 = scmp.lt.s32.totalorder %s82, 1
      %s1451 = scalar_select %p1450, %s82, 1
      %s1452 = smul.addr %s1451, 3
      %s1453 = smul.addr %s1452, 4
      %s1454 = scalar_lea.vmem %s5, %s1453
      %p1455 = scmp.lt.s32.totalorder %s82, 1
      %s1456 = scalar_select %p1455, %s82, 1
      %s1457 = smul.addr %s1456, 2
      %s1458 = smul.addr %s1457, 4
      %s1459 = scalar_lea.vmem %s7, %s1458
      %p1460 = scmp.lt.s32.totalorder %s82, 1
      %s1461 = scalar_select %p1460, %s82, 1
      %s1462 = smul.addr %s1461, 3
      %s1463 = smul.addr %s1462, 8
      %s1464 = scalar_lea.vmem %s9, %s1463
      %p1465 = scmp.lt.s32.totalorder %s82, 1
      %s1466 = scalar_select %p1465, %s82, 1
      %s1467 = smul.addr %s1466, 2
      %s1468 = smul.addr %s1467, 8
      %s1469 = scalar_lea.vmem %s11, %s1468
      %p1470 = scmp.lt.s32.totalorder %s82, 1
      %s1471 = scalar_select %p1470, %s82, 1
      %s1472 = scalar_lea.vmem %s13, %s1471
      %p1473 = scmp.lt.s32.totalorder %s82, 1
      %s1474 = scalar_select %p1473, %s82, 1
      %s1475 = smul.addr %s1474, 8
      %s1476 = scalar_lea.vmem %s15, %s1475
      %p1477 = scmp.lt.s32.totalorder %s82, 1
      %s1478 = scalar_select %p1477, %s82, 1
      %s1479 = smul.addr %s1478, 8
      %s1480 = scalar_lea.vmem %s17, %s1479
      %p1481 = scmp.lt.s32.totalorder %s83, 1
      %s1482 = scalar_select %p1481, %s83, 1
      %s1483 = smul.addr %s1482, 4
      %s1484 = smul.addr %s1483, 4
      %s1485 = scalar_lea.vmem %s19, %s1484
      %p1486 = scmp.lt.s32.totalorder %s83, 1
      %s1487 = scalar_select %p1486, %s83, 1
      %s1488 = scalar_lea.vmem %s21, %s1487
      %p1489 = scmp.lt.s32.totalorder %s83, 1
      %s1490 = scalar_select %p1489, %s83, 1
      %s1491 = smul.addr %s1490, 4
      %s1492 = smul.addr %s1491, 4
      %s1493 = scalar_lea.vmem %s23, %s1492
      %p1494 = scmp.lt.s32.totalorder %s83, 1
      %s1495 = scalar_select %p1494, %s83, 1
      %s1496 = scalar_lea.vmem %s25, %s1495
      %p1497 = scmp.lt.s32.totalorder %s83, 1
      %s1498 = scalar_select %p1497, %s83, 1
      %s1499 = smul.addr %s1498, 4
      %s1500 = smul.addr %s1499, 4
      %s1501 = scalar_lea.vmem %s27, %s1500
      %p1502 = scmp.lt.s32.totalorder %s83, 1
      %s1503 = scalar_select %p1502, %s83, 1
      %s1504 = scalar_lea.vmem %s29, %s1503
      %p1505 = scmp.lt.s32.totalorder %s83, 1
      %s1506 = scalar_select %p1505, %s83, 1
      %s1507 = smul.addr %s1506, 4
      %s1508 = smul.addr %s1507, 4
      %s1509 = scalar_lea.vmem %s31, %s1508
      %p1510 = scmp.lt.s32.totalorder %s83, 1
      %s1511 = scalar_select %p1510, %s83, 1
      %s1512 = scalar_lea.vmem %s33, %s1511
      %p1513 = scmp.lt.s32.totalorder %s83, 1
      %s1514 = scalar_select %p1513, %s83, 1
      %s1515 = smul.addr %s1514, 4
      %s1516 = smul.addr %s1515, 4
      %s1517 = scalar_lea.vmem %s35, %s1516
      %p1518 = scmp.lt.s32.totalorder %s83, 1
      %s1519 = scalar_select %p1518, %s83, 1
      %s1520 = scalar_lea.vmem %s37, %s1519
      %p1521 = scmp.lt.s32.totalorder %s83, 1
      %s1522 = scalar_select %p1521, %s83, 1
      %s1523 = smul.addr %s1522, 4
      %s1524 = smul.addr %s1523, 4
      %s1525 = scalar_lea.vmem %s39, %s1524
      %p1526 = scmp.lt.s32.totalorder %s83, 1
      %s1527 = scalar_select %p1526, %s83, 1
      %s1528 = scalar_lea.vmem %s41, %s1527
      %p1529 = scmp.lt.s32.totalorder %s83, 1
      %s1530 = scalar_select %p1529, %s83, 1
      %s1531 = smul.addr %s1530, 4
      %s1532 = smul.addr %s1531, 4
      %s1533 = scalar_lea.vmem %s43, %s1532
      %p1534 = scmp.lt.s32.totalorder %s83, 1
      %s1535 = scalar_select %p1534, %s83, 1
      %s1536 = scalar_lea.vmem %s45, %s1535
      %p1537 = scmp.lt.s32.totalorder %s83, 1
      %s1538 = scalar_select %p1537, %s83, 1
      %s1539 = smul.addr %s1538, 4
      %s1540 = smul.addr %s1539, 4
      %s1541 = scalar_lea.vmem %s47, %s1540
      %p1542 = scmp.lt.s32.totalorder %s83, 1
      %s1543 = scalar_select %p1542, %s83, 1
      %s1544 = scalar_lea.vmem %s49, %s1543
      %p1545 = scmp.lt.s32.totalorder %s83, 1
      %s1546 = scalar_select %p1545, %s83, 1
      %s1547 = smul.addr %s1546, 4
      %s1548 = smul.addr %s1547, 4
      %s1549 = scalar_lea.vmem %s51, %s1548
      %p1550 = scmp.lt.s32.totalorder %s83, 1
      %s1551 = scalar_select %p1550, %s83, 1
      %s1552 = scalar_lea.vmem %s53, %s1551
      %p1553 = scmp.lt.s32.totalorder %s83, 1
      %s1554 = scalar_select %p1553, %s83, 1
      %s1555 = smul.addr %s1554, 4
      %s1556 = smul.addr %s1555, 4
      %s1557 = scalar_lea.vmem %s55, %s1556
      %p1558 = scmp.lt.s32.totalorder %s83, 1
      %s1559 = scalar_select %p1558, %s83, 1
      %s1560 = scalar_lea.vmem %s57, %s1559
      %p1561 = scmp.lt.s32.totalorder %s83, 1
      %s1562 = scalar_select %p1561, %s83, 1
      %s1563 = smul.addr %s1562, 8
      %s1564 = smul.addr %s1563, 4
      %s1565 = scalar_lea.vmem %s59, %s1564
      %p1566 = scmp.lt.s32.totalorder %s83, 1
      %s1567 = scalar_select %p1566, %s83, 1
      %s1568 = scalar_lea.vmem %s61, %s1567
      %p1569 = scmp.lt.s32.totalorder %s83, 1
      %s1570 = scalar_select %p1569, %s83, 1
      %s1571 = smul.addr %s1570, 4
      %s1572 = scalar_lea.vmem %s63, %s1571
      %p1573 = scmp.lt.s32.totalorder %s83, 1
      %s1574 = scalar_select %p1573, %s83, 1
      %s1575 = smul.addr %s1574, 4
      %s1576 = scalar_lea.vmem %s65, %s1575
      %p1577 = scmp.lt.s32.totalorder %s83, 1
      %s1578 = scalar_select %p1577, %s83, 1
      %p1579 = scmp.lt.s32.totalorder %s82, 1
      %s1580 = scalar_select %p1579, %s82, 1
      %s1581 = smul.addr %s1578, 2
      %s1582 = sadd.s32 %s1580, %s1581
      %s1583 = smul.addr %s1582, 8
      %s1584 = scalar_lea.vmem %s67, %s1583
      %p1586 = scmp.eq.s32.totalorder %s83, 0
      // Predicated region
      $region153: #{run.1} parent=151 // pred_check
        %p1587 = pneg %p1586
      $region154: #{run.1} parent=151 // pred_check_branch
        %1589 = sbr.rel (%p1587) target = $region156
      $region155: #{run.1} parent=151 // pred_region
        %v1590 = vld [vmem:[%s1445] sm:$0xff]
        %vm1591 = vcmask 261120
        %1592 = vst.msk [vmem:[#allocation2] sm:$0xff] %vm1591, %v1590
      $region156: #{run.1} parent=151 // pred_fallthru
        _
      %v1593 = vld [vmem:[#allocation2] sm:$0xff]
      %v1594 = vld [vmem:[%s1449] sm:$0xff]
      %v1595 = vadd.f32 %v1593, %v1594
      %v1596 = vld [vmem:[%s1485] sm:$0xf]
      %v1597 = vld [vmem:[%s1485 + $0x4] sm:$0xf]
      %v1598 = vld [vmem:[%s1485 + $0x8] sm:$0xf]
      %v1599 = vld [vmem:[%s1485 + $0xc] sm:$0xf]
      %v1600 = vpack.c.bf16 %v1595, %v1595
      %v1601 = vld [vmem:[%s1488] sm:$0x1]
      %v1603 = vlaneseq
      %v1604 = vshrl.u32 %v1603, 7
      %v1605 = vsub.s32 0, %v1604
      %v1606 = vrot.slane %v1601, %v1605
      %v1612 = vunpack.c.l.b16 %v1596
      %v1613 = vunpack.c.l.b16 %v1597
      %v1614 = vunpack.c.l.b16 %v1598
      %v1615 = vunpack.c.l.b16 %v1599
      %v1616 = vpack.c.b16 %v1613, %v1612
      %v1617 = vpack.c.b16 %v1615, %v1614
      %vm1620 = vcmask 261120
      %v1622 = vsel %vm1620, %v1600, 0
      %1624 = vmatprep.subr.bf16.mxu0 0
      %1625 = vmatpush1.bf16.msra.mxu0 %v1616
      %1626 = vmatprep.subr.bf16.mxu0 0
      %1627 = vmatpush1.bf16.msra.mxu0 %v1617
      %1628 = vmatprep.subr.bf16.mxu0 0
      %1629 = vmatpush1.bf16.msra.mxu0 0
      %1630 = vmatprep.subr.bf16.mxu0 0
      %1631 = vmatpush1.bf16.msra.mxu0 0
      %1632 = vmatprep.subr.bf16.mxu0 0
      %1633 = vmatpush1.bf16.msra.mxu0 0
      %1634 = vmatprep.subr.bf16.mxu0 0
      %1635 = vmatpush1.bf16.msra.mxu0 0
      %1636 = vmatprep.subr.bf16.mxu0 0
      %1637 = vmatpush1.bf16.msra.mxu0 0
      %1638 = vmatprep.subr.bf16.mxu0 0
      %1639 = vmatpush1.bf16.msra.mxu0 0
      %1640 = vmatprep.subr.bf16.mxu0 0
      %1641 = vmatpush1.bf16.msra.mxu0 0
      %1642 = vmatprep.subr.bf16.mxu0 0
      %1643 = vmatpush1.bf16.msra.mxu0 0
      %1644 = vmatprep.subr.bf16.mxu0 0
      %1645 = vmatpush1.bf16.msra.mxu0 0
      %1646 = vmatprep.subr.bf16.mxu0 0
      %1647 = vmatpush1.bf16.msra.mxu0 0
      %1648 = vmatprep.subr.bf16.mxu0 0
      %1649 = vmatpush1.bf16.msra.mxu0 0
      %1650 = vmatprep.subr.bf16.mxu0 0
      %1651 = vmatpush1.bf16.msra.mxu0 0
      %1652 = vmatprep.subr.bf16.mxu0 0
      %1653 = vmatpush1.bf16.msra.mxu0 0
      %1654 = vmatprep.subr.bf16.mxu0 0
      %1655 = vmatpush1.bf16.msra.mxu0 0
      %1656 = vmatprep.mubr.bf16.mxu0 0
      %1657 = vmatmul.mubr.bf16.gmra.mrb[0].mxu0 %v1622
      %v1658 = vpop.f32.mrb[0].mxu0
      %v1659 = vadd.f32 %v1606, %v1658
      %v1660 = vpop.f32.mrb[0].mxu0
      %v1661 = vpop.f32.mrb[0].mxu0
      %v1662 = vpop.f32.mrb[0].mxu0
      %1663 = vdwg.mxu0
      %1665 = vrot.lane.b32.xlu0 %v1659, 120
      %v1666 = vpop.permute.xlu0 %1665
      %1668 = vrot.lane.b32.xlu0 %v1659, 112
      %v1669 = vpop.permute.xlu0 %1668
      %1671 = vrot.lane.b32.xlu0 %v1659, 104
      %v1672 = vpop.permute.xlu0 %1671
      %v1674 = vcombine.low %v1659, %v1669
      %v1675 = vcombine.high %v1659, %v1669
      %v1677 = vunpack.c.l.s4 1983009808
      %v1678 = vunpack.c.0.s8 %v1677
      %v1679 = vlaneseq
      %v1680 = vshrl.u32 %v1679, 7
      %v1681 = vsub.s32 %v1678, %v1680
      %v1682 = vrot.slane %v1674, %v1681
      %v1684 = vunpack.c.l.s4 1983009808
      %v1685 = vunpack.c.0.s8 %v1684
      %v1686 = vlaneseq
      %v1687 = vshrl.u32 %v1686, 7
      %v1688 = vsub.s32 %v1685, %v1687
      %v1689 = vrot.slane %v1675, %v1688
      %v1690 = vcombine.low %v1666, %v1672
      %v1691 = vcombine.high %v1666, %v1672
      %v1693 = vunpack.c.l.s4 1983009808
      %v1694 = vunpack.c.0.s8 %v1693
      %v1695 = vlaneseq
      %v1696 = vshrl.u32 %v1695, 7
      %v1697 = vsub.s32 %v1694, %v1696
      %v1698 = vrot.slane %v1690, %v1697
      %v1700 = vunpack.c.l.s4 1983009808
      %v1701 = vunpack.c.0.s8 %v1700
      %v1702 = vlaneseq
      %v1703 = vshrl.u32 %v1702, 7
      %v1704 = vsub.s32 %v1701, %v1703
      %v1705 = vrot.slane %v1691, %v1704
      %v1706 = vcombine.low %v1682, %v1698
      %v1707 = vcombine.high %v1682, %v1698
      %v1709 = vunpack.c.l.s4 1934713408
      %v1710 = vunpack.c.0.s8 %v1709
      %v1711 = vlaneseq
      %v1712 = vshrl.u32 %v1711, 7
      %v1713 = vsub.s32 %v1710, %v1712
      %v1714 = vrot.slane %v1706, %v1713
      %v1716 = vunpack.c.l.s4 1934713408
      %v1717 = vunpack.c.0.s8 %v1716
      %v1718 = vlaneseq
      %v1719 = vshrl.u32 %v1718, 7
      %v1720 = vsub.s32 %v1717, %v1719
      %v1721 = vrot.slane %v1707, %v1720
      %v1722 = vcombine.low %v1689, %v1705
      %v1723 = vcombine.high %v1689, %v1705
      %v1725 = vunpack.c.l.s4 1934713408
      %v1726 = vunpack.c.0.s8 %v1725
      %v1727 = vlaneseq
      %v1728 = vshrl.u32 %v1727, 7
      %v1729 = vsub.s32 %v1726, %v1728
      %v1730 = vrot.slane %v1722, %v1729
      %v1732 = vunpack.c.l.s4 1934713408
      %v1733 = vunpack.c.0.s8 %v1732
      %v1734 = vlaneseq
      %v1735 = vshrl.u32 %v1734, 7
      %v1736 = vsub.s32 %v1733, %v1735
      %v1737 = vrot.slane %v1723, %v1736
      %v1738 = vcombine.high %v1714, 0.0
      %v1739 = vcombine.high %v1721, 0.0
      %v1740 = vcombine.high %v1730, 0.0
      %v1741 = vcombine.high %v1737, 0.0
      %1742 = vrot.lane.b32.xlu0 %v1659, 96
      %v1743 = vpop.permute.xlu0 %1742
      %1744 = vrot.lane.b32.xlu0 %v1666, 96
      %v1745 = vpop.permute.xlu0 %1744
      %1746 = vrot.lane.b32.xlu0 %v1669, 96
      %v1747 = vpop.permute.xlu0 %1746
      %1748 = vrot.lane.b32.xlu0 %v1672, 96
      %v1749 = vpop.permute.xlu0 %1748
      %v1754 = vcombine.low %v1743, %v1747
      %v1755 = vcombine.high %v1743, %v1747
      %v1757 = vunpack.c.l.s4 1983009808
      %v1758 = vunpack.c.0.s8 %v1757
      %v1759 = vlaneseq
      %v1760 = vshrl.u32 %v1759, 7
      %v1761 = vsub.s32 %v1758, %v1760
      %v1762 = vrot.slane %v1754, %v1761
      %v1764 = vunpack.c.l.s4 1983009808
      %v1765 = vunpack.c.0.s8 %v1764
      %v1766 = vlaneseq
      %v1767 = vshrl.u32 %v1766, 7
      %v1768 = vsub.s32 %v1765, %v1767
      %v1769 = vrot.slane %v1755, %v1768
      %v1770 = vcombine.low %v1745, %v1749
      %v1771 = vcombine.high %v1745, %v1749
      %v1773 = vunpack.c.l.s4 1983009808
      %v1774 = vunpack.c.0.s8 %v1773
      %v1775 = vlaneseq
      %v1776 = vshrl.u32 %v1775, 7
      %v1777 = vsub.s32 %v1774, %v1776
      %v1778 = vrot.slane %v1770, %v1777
      %v1780 = vunpack.c.l.s4 1983009808
      %v1781 = vunpack.c.0.s8 %v1780
      %v1782 = vlaneseq
      %v1783 = vshrl.u32 %v1782, 7
      %v1784 = vsub.s32 %v1781, %v1783
      %v1785 = vrot.slane %v1771, %v1784
      %v1786 = vcombine.low %v1762, %v1778
      %v1787 = vcombine.high %v1762, %v1778
      %v1789 = vunpack.c.l.s4 1934713408
      %v1790 = vunpack.c.0.s8 %v1789
      %v1791 = vlaneseq
      %v1792 = vshrl.u32 %v1791, 7
      %v1793 = vsub.s32 %v1790, %v1792
      %v1794 = vrot.slane %v1786, %v1793
      %v1796 = vunpack.c.l.s4 1934713408
      %v1797 = vunpack.c.0.s8 %v1796
      %v1798 = vlaneseq
      %v1799 = vshrl.u32 %v1798, 7
      %v1800 = vsub.s32 %v1797, %v1799
      %v1801 = vrot.slane %v1787, %v1800
      %v1802 = vcombine.low %v1769, %v1785
      %v1803 = vcombine.high %v1769, %v1785
      %v1805 = vunpack.c.l.s4 1934713408
      %v1806 = vunpack.c.0.s8 %v1805
      %v1807 = vlaneseq
      %v1808 = vshrl.u32 %v1807, 7
      %v1809 = vsub.s32 %v1806, %v1808
      %v1810 = vrot.slane %v1802, %v1809
      %v1812 = vunpack.c.l.s4 1934713408
      %v1813 = vunpack.c.0.s8 %v1812
      %v1814 = vlaneseq
      %v1815 = vshrl.u32 %v1814, 7
      %v1816 = vsub.s32 %v1813, %v1815
      %v1817 = vrot.slane %v1803, %v1816
      %v1818 = vcombine.high %v1794, 0.0
      %v1819 = vcombine.high %v1801, 0.0
      %v1820 = vcombine.high %v1810, 0.0
      %v1821 = vcombine.high %v1817, 0.0
      %v1822 = vld [vmem:[%s1493] sm:$0xf]
      %v1823 = vld [vmem:[%s1493 + $0x4] sm:$0xf]
      %v1824 = vld [vmem:[%s1493 + $0x8] sm:$0xf]
      %v1825 = vld [vmem:[%s1493 + $0xc] sm:$0xf]
      %v1826 = vpack.c.bf16 %v1593, %v1593
      %v1827 = vld [vmem:[%s1496] sm:$0x1]
      %v1829 = vlaneseq
      %v1830 = vshrl.u32 %v1829, 7
      %v1831 = vsub.s32 0, %v1830
      %v1832 = vrot.slane %v1827, %v1831
      %v1838 = vunpack.c.l.b16 %v1822
      %v1839 = vunpack.c.l.b16 %v1823
      %v1840 = vunpack.c.l.b16 %v1824
      %v1841 = vunpack.c.l.b16 %v1825
      %v1842 = vpack.c.b16 %v1839, %v1838
      %v1843 = vpack.c.b16 %v1841, %v1840
      %v1847 = vsel %vm1620, %v1826, 0
      %1849 = vmatprep.subr.bf16.mxu0 0
      %1850 = vmatpush1.bf16.msra.mxu0 %v1842
      %1851 = vmatprep.subr.bf16.mxu0 0
      %1852 = vmatpush1.bf16.msra.mxu0 %v1843
      %1853 = vmatprep.subr.bf16.mxu0 0
      %1854 = vmatpush1.bf16.msra.mxu0 0
      %1855 = vmatprep.subr.bf16.mxu0 0
      %1856 = vmatpush1.bf16.msra.mxu0 0
      %1857 = vmatprep.subr.bf16.mxu0 0
      %1858 = vmatpush1.bf16.msra.mxu0 0
      %1859 = vmatprep.subr.bf16.mxu0 0
      %1860 = vmatpush1.bf16.msra.mxu0 0
      %1861 = vmatprep.subr.bf16.mxu0 0
      %1862 = vmatpush1.bf16.msra.mxu0 0
      %1863 = vmatprep.subr.bf16.mxu0 0
      %1864 = vmatpush1.bf16.msra.mxu0 0
      %1865 = vmatprep.subr.bf16.mxu0 0
      %1866 = vmatpush1.bf16.msra.mxu0 0
      %1867 = vmatprep.subr.bf16.mxu0 0
      %1868 = vmatpush1.bf16.msra.mxu0 0
      %1869 = vmatprep.subr.bf16.mxu0 0
      %1870 = vmatpush1.bf16.msra.mxu0 0
      %1871 = vmatprep.subr.bf16.mxu0 0
      %1872 = vmatpush1.bf16.msra.mxu0 0
      %1873 = vmatprep.subr.bf16.mxu0 0
      %1874 = vmatpush1.bf16.msra.mxu0 0
      %1875 = vmatprep.subr.bf16.mxu0 0
      %1876 = vmatpush1.bf16.msra.mxu0 0
      %1877 = vmatprep.subr.bf16.mxu0 0
      %1878 = vmatpush1.bf16.msra.mxu0 0
      %1879 = vmatprep.subr.bf16.mxu0 0
      %1880 = vmatpush1.bf16.msra.mxu0 0
      %1881 = vmatprep.mubr.bf16.mxu0 0
      %1882 = vmatmul.mubr.bf16.gmra.mrb[0].mxu0 %v1847
      %v1883 = vpop.f32.mrb[0].mxu0
      %v1884 = vadd.f32 %v1832, %v1883
      %v1885 = vpop.f32.mrb[0].mxu0
      %v1886 = vpop.f32.mrb[0].mxu0
      %v1887 = vpop.f32.mrb[0].mxu0
      %1888 = vdwg.mxu0
      %1890 = vrot.lane.b32.xlu0 %v1884, 120
      %v1891 = vpop.permute.xlu0 %1890
      %1893 = vrot.lane.b32.xlu0 %v1884, 112
      %v1894 = vpop.permute.xlu0 %1893
      %1896 = vrot.lane.b32.xlu0 %v1884, 104
      %v1897 = vpop.permute.xlu0 %1896
      %v1899 = vcombine.low %v1884, %v1894
      %v1900 = vcombine.high %v1884, %v1894
      %v1902 = vunpack.c.l.s4 1983009808
      %v1903 = vunpack.c.0.s8 %v1902
      %v1904 = vlaneseq
      %v1905 = vshrl.u32 %v1904, 7
      %v1906 = vsub.s32 %v1903, %v1905
      %v1907 = vrot.slane %v1899, %v1906
      %v1909 = vunpack.c.l.s4 1983009808
      %v1910 = vunpack.c.0.s8 %v1909
      %v1911 = vlaneseq
      %v1912 = vshrl.u32 %v1911, 7
      %v1913 = vsub.s32 %v1910, %v1912
      %v1914 = vrot.slane %v1900, %v1913
      %v1915 = vcombine.low %v1891, %v1897
      %v1916 = vcombine.high %v1891, %v1897
      %v1918 = vunpack.c.l.s4 1983009808
      %v1919 = vunpack.c.0.s8 %v1918
      %v1920 = vlaneseq
      %v1921 = vshrl.u32 %v1920, 7
      %v1922 = vsub.s32 %v1919, %v1921
      %v1923 = vrot.slane %v1915, %v1922
      %v1925 = vunpack.c.l.s4 1983009808
      %v1926 = vunpack.c.0.s8 %v1925
      %v1927 = vlaneseq
      %v1928 = vshrl.u32 %v1927, 7
      %v1929 = vsub.s32 %v1926, %v1928
      %v1930 = vrot.slane %v1916, %v1929
      %v1931 = vcombine.low %v1907, %v1923
      %v1932 = vcombine.high %v1907, %v1923
      %v1934 = vunpack.c.l.s4 1934713408
      %v1935 = vunpack.c.0.s8 %v1934
      %v1936 = vlaneseq
      %v1937 = vshrl.u32 %v1936, 7
      %v1938 = vsub.s32 %v1935, %v1937
      %v1939 = vrot.slane %v1931, %v1938
      %v1941 = vunpack.c.l.s4 1934713408
      %v1942 = vunpack.c.0.s8 %v1941
      %v1943 = vlaneseq
      %v1944 = vshrl.u32 %v1943, 7
      %v1945 = vsub.s32 %v1942, %v1944
      %v1946 = vrot.slane %v1932, %v1945
      %v1947 = vcombine.low %v1914, %v1930
      %v1948 = vcombine.high %v1914, %v1930
      %v1950 = vunpack.c.l.s4 1934713408
      %v1951 = vunpack.c.0.s8 %v1950
      %v1952 = vlaneseq
      %v1953 = vshrl.u32 %v1952, 7
      %v1954 = vsub.s32 %v1951, %v1953
      %v1955 = vrot.slane %v1947, %v1954
      %v1957 = vunpack.c.l.s4 1934713408
      %v1958 = vunpack.c.0.s8 %v1957
      %v1959 = vlaneseq
      %v1960 = vshrl.u32 %v1959, 7
      %v1961 = vsub.s32 %v1958, %v1960
      %v1962 = vrot.slane %v1948, %v1961
      %v1963 = vcombine.high %v1939, 0.0
      %v1964 = vcombine.high %v1946, 0.0
      %v1965 = vcombine.high %v1955, 0.0
      %v1966 = vcombine.high %v1962, 0.0
      %v1967 = vpack.c.bf16 %v1714, %v1714
      %v1968 = vpack.c.bf16 %v1738, %v1738
      %v1969 = vpack.c.bf16 %v1721, %v1721
      %v1970 = vpack.c.bf16 %v1739, %v1739
      %v1971 = vpack.c.bf16 %v1730, %v1730
      %v1972 = vpack.c.bf16 %v1740, %v1740
      %v1973 = vpack.c.bf16 %v1737, %v1737
      %v1974 = vpack.c.bf16 %v1741, %v1741
      %v1975 = vpack.c.bf16 %v1794, %v1794
      %v1976 = vpack.c.bf16 %v1818, %v1818
      %v1977 = vpack.c.bf16 %v1801, %v1801
      %v1978 = vpack.c.bf16 %v1819, %v1819
      %v1979 = vpack.c.bf16 %v1810, %v1810
      %v1980 = vpack.c.bf16 %v1820, %v1820
      %v1981 = vpack.c.bf16 %v1817, %v1817
      %v1982 = vpack.c.bf16 %v1821, %v1821
      %v1983 = vcombine.low %v1967, %v1971
      %v1985 = vunpack.c.l.s4 1983009808
      %v1986 = vunpack.c.0.s8 %v1985
      %v1987 = vlaneseq
      %v1988 = vshrl.u32 %v1987, 7
      %v1989 = vsub.s32 %v1986, %v1988
      %v1990 = vrot.slane %v1983, %v1989
      %v1991 = vcombine.low %v1969, %v1973
      %v1993 = vunpack.c.l.s4 1983009808
      %v1994 = vunpack.c.0.s8 %v1993
      %v1995 = vlaneseq
      %v1996 = vshrl.u32 %v1995, 7
      %v1997 = vsub.s32 %v1994, %v1996
      %v1998 = vrot.slane %v1991, %v1997
      %v1999 = vcombine.low %v1990, %v1998
      %v2001 = vunpack.c.l.s4 1934713408
      %v2002 = vunpack.c.0.s8 %v2001
      %v2003 = vlaneseq
      %v2004 = vshrl.u32 %v2003, 7
      %v2005 = vsub.s32 %v2002, %v2004
      %v2006 = vrot.slane %v1999, %v2005
      %v2007 = vcombine.high %v2006, 0
      %v2008 = vcombine.low %v1968, %v1972
      %v2010 = vunpack.c.l.s4 1983009808
      %v2011 = vunpack.c.0.s8 %v2010
      %v2012 = vlaneseq
      %v2013 = vshrl.u32 %v2012, 7
      %v2014 = vsub.s32 %v2011, %v2013
      %v2015 = vrot.slane %v2008, %v2014
      %v2016 = vcombine.low %v1970, %v1974
      %v2018 = vunpack.c.l.s4 1983009808
      %v2019 = vunpack.c.0.s8 %v2018
      %v2020 = vlaneseq
      %v2021 = vshrl.u32 %v2020, 7
      %v2022 = vsub.s32 %v2019, %v2021
      %v2023 = vrot.slane %v2016, %v2022
      %v2024 = vcombine.low %v2015, %v2023
      %v2026 = vunpack.c.l.s4 1934713408
      %v2027 = vunpack.c.0.s8 %v2026
      %v2028 = vlaneseq
      %v2029 = vshrl.u32 %v2028, 7
      %v2030 = vsub.s32 %v2027, %v2029
      %v2031 = vrot.slane %v2024, %v2030
      %v2032 = vcombine.high %v2031, 0
      %v2035 = vpack.i.b16 %v2031, %v2006
      %v2036 = vshrl.u32 %v2006, 16
      %v2037 = vshrl.u32 %v2031, 16
      %v2038 = vpack.i.b16 %v2037, %v2036
      %v2041 = vpack.i.b16 %v2032, %v2007
      %v2042 = vshrl.u32 %v2007, 16
      %v2043 = vshrl.u32 %v2032, 16
      %v2044 = vpack.i.b16 %v2043, %v2042
      %2045 = vxpose.xlu0.c.b16.start [1/8] %v1975, 128
      %2046 = vxpose.xlu0.c.b16.cont [2/8] 0, 128
      %2047 = vxpose.xlu0.c.b16.cont [3/8] 0, 128
      %2048 = vxpose.xlu0.c.b16.cont [4/8] 0, 128
      %2049 = vxpose.xlu0.c.b16.cont [5/8] 0, 128
      %2050 = vxpose.xlu0.c.b16.cont [6/8] 0, 128
      %2051 = vxpose.xlu0.c.b16.cont [7/8] 0, 128
      %2052 = vxpose.xlu0.c.b16.end [8/8] 0, 128
      %v2053 = vpop.trf.xlu0
      %v2054 = vpop.trf.xlu0
      %v2055 = vpop.trf.xlu0
      %v2056 = vpop.trf.xlu0
      %v2057 = vpop.trf.xlu0
      %v2058 = vpop.trf.xlu0
      %v2059 = vpop.trf.xlu0
      %v2060 = vpop.trf.xlu0
      %2061 = vxpose.xlu0.c.b16.start [1/8] %v1976, 128
      %2062 = vxpose.xlu0.c.b16.cont [2/8] 0, 128
      %2063 = vxpose.xlu0.c.b16.cont [3/8] 0, 128
      %2064 = vxpose.xlu0.c.b16.cont [4/8] 0, 128
      %2065 = vxpose.xlu0.c.b16.cont [5/8] 0, 128
      %2066 = vxpose.xlu0.c.b16.cont [6/8] 0, 128
      %2067 = vxpose.xlu0.c.b16.cont [7/8] 0, 128
      %2068 = vxpose.xlu0.c.b16.end [8/8] 0, 128
      %v2069 = vpop.trf.xlu0
      %v2070 = vpop.trf.xlu0
      %v2071 = vpop.trf.xlu0
      %v2072 = vpop.trf.xlu0
      %v2073 = vpop.trf.xlu0
      %v2074 = vpop.trf.xlu0
      %v2075 = vpop.trf.xlu0
      %v2076 = vpop.trf.xlu0
      %2077 = vxpose.xlu0.c.b16.start [1/8] %v1977, 128
      %2078 = vxpose.xlu0.c.b16.cont [2/8] 0, 128
      %2079 = vxpose.xlu0.c.b16.cont [3/8] 0, 128
      %2080 = vxpose.xlu0.c.b16.cont [4/8] 0, 128
      %2081 = vxpose.xlu0.c.b16.cont [5/8] 0, 128
      %2082 = vxpose.xlu0.c.b16.cont [6/8] 0, 128
      %2083 = vxpose.xlu0.c.b16.cont [7/8] 0, 128
      %2084 = vxpose.xlu0.c.b16.end [8/8] 0, 128
      %v2085 = vpop.trf.xlu0
      %v2086 = vpop.trf.xlu0
      %v2087 = vpop.trf.xlu0
      %v2088 = vpop.trf.xlu0
      %v2089 = vpop.trf.xlu0
      %v2090 = vpop.trf.xlu0
      %v2091 = vpop.trf.xlu0
      %v2092 = vpop.trf.xlu0
      %2093 = vxpose.xlu0.c.b16.start [1/8] %v1978, 128
      %2094 = vxpose.xlu0.c.b16.cont [2/8] 0, 128
      %2095 = vxpose.xlu0.c.b16.cont [3/8] 0, 128
      %2096 = vxpose.xlu0.c.b16.cont [4/8] 0, 128
      %2097 = vxpose.xlu0.c.b16.cont [5/8] 0, 128
      %2098 = vxpose.xlu0.c.b16.cont [6/8] 0, 128
      %2099 = vxpose.xlu0.c.b16.cont [7/8] 0, 128
      %2100 = vxpose.xlu0.c.b16.end [8/8] 0, 128
      %v2101 = vpop.trf.xlu0
      %v2102 = vpop.trf.xlu0
      %v2103 = vpop.trf.xlu0
      %v2104 = vpop.trf.xlu0
      %v2105 = vpop.trf.xlu0
      %v2106 = vpop.trf.xlu0
      %v2107 = vpop.trf.xlu0
      %v2108 = vpop.trf.xlu0
      %2109 = vxpose.xlu0.c.b16.start [1/8] %v1979, 128
      %2110 = vxpose.xlu0.c.b16.cont [2/8] 0, 128
      %2111 = vxpose.xlu0.c.b16.cont [3/8] 0, 128
      %2112 = vxpose.xlu0.c.b16.cont [4/8] 0, 128
      %2113 = vxpose.xlu0.c.b16.cont [5/8] 0, 128
      %2114 = vxpose.xlu0.c.b16.cont [6/8] 0, 128
      %2115 = vxpose.xlu0.c.b16.cont [7/8] 0, 128
      %2116 = vxpose.xlu0.c.b16.end [8/8] 0, 128
      %v2117 = vpop.trf.xlu0
      %v2118 = vpop.trf.xlu0
      %v2119 = vpop.trf.xlu0
      %v2120 = vpop.trf.xlu0
      %v2121 = vpop.trf.xlu0
      %v2122 = vpop.trf.xlu0
      %v2123 = vpop.trf.xlu0
      %v2124 = vpop.trf.xlu0
      %2125 = vxpose.xlu0.c.b16.start [1/8] %v1980, 128
      %2126 = vxpose.xlu0.c.b16.cont [2/8] 0, 128
      %2127 = vxpose.xlu0.c.b16.cont [3/8] 0, 128
      %2128 = vxpose.xlu0.c.b16.cont [4/8] 0, 128
      %2129 = vxpose.xlu0.c.b16.cont [5/8] 0, 128
      %2130 = vxpose.xlu0.c.b16.cont [6/8] 0, 128
      %2131 = vxpose.xlu0.c.b16.cont [7/8] 0, 128
      %2132 = vxpose.xlu0.c.b16.end [8/8] 0, 128
      %v2133 = vpop.trf.xlu0
      %v2134 = vpop.trf.xlu0
      %v2135 = vpop.trf.xlu0
      %v2136 = vpop.trf.xlu0
      %v2137 = vpop.trf.xlu0
      %v2138 = vpop.trf.xlu0
      %v2139 = vpop.trf.xlu0
      %v2140 = vpop.trf.xlu0
      %2141 = vxpose.xlu0.c.b16.start [1/8] %v1981, 128
      %2142 = vxpose.xlu0.c.b16.cont [2/8] 0, 128
      %2143 = vxpose.xlu0.c.b16.cont [3/8] 0, 128
      %2144 = vxpose.xlu0.c.b16.cont [4/8] 0, 128
      %2145 = vxpose.xlu0.c.b16.cont [5/8] 0, 128
      %2146 = vxpose.xlu0.c.b16.cont [6/8] 0, 128
      %2147 = vxpose.xlu0.c.b16.cont [7/8] 0, 128
      %2148 = vxpose.xlu0.c.b16.end [8/8] 0, 128
      %v2149 = vpop.trf.xlu0
      %v2150 = vpop.trf.xlu0
      %v2151 = vpop.trf.xlu0
      %v2152 = vpop.trf.xlu0
      %v2153 = vpop.trf.xlu0
      %v2154 = vpop.trf.xlu0
      %v2155 = vpop.trf.xlu0
      %v2156 = vpop.trf.xlu0
      %2157 = vxpose.xlu0.c.b16.start [1/8] %v1982, 128
      %2158 = vxpose.xlu0.c.b16.cont [2/8] 0, 128
      %2159 = vxpose.xlu0.c.b16.cont [3/8] 0, 128
      %2160 = vxpose.xlu0.c.b16.cont [4/8] 0, 128
      %2161 = vxpose.xlu0.c.b16.cont [5/8] 0, 128
      %2162 = vxpose.xlu0.c.b16.cont [6/8] 0, 128
      %2163 = vxpose.xlu0.c.b16.cont [7/8] 0, 128
      %2164 = vxpose.xlu0.c.b16.end [8/8] 0, 128
      %v2165 = vpop.trf.xlu0
      %v2166 = vpop.trf.xlu0
      %v2167 = vpop.trf.xlu0
      %v2168 = vpop.trf.xlu0
      %v2169 = vpop.trf.xlu0
      %v2170 = vpop.trf.xlu0
      %v2171 = vpop.trf.xlu0
      %v2172 = vpop.trf.xlu0
      %v2173 = vcombine.low %v2053, %v2117
      %v2175 = vunpack.c.l.s4 1983009808
      %v2176 = vunpack.c.0.s8 %v2175
      %v2177 = vlaneseq
      %v2178 = vshrl.u32 %v2177, 7
      %v2179 = vsub.s32 %v2176, %v2178
      %v2180 = vrot.slane %v2173, %v2179
      %v2181 = vcombine.low %v2085, %v2149
      %v2183 = vunpack.c.l.s4 1983009808
      %v2184 = vunpack.c.0.s8 %v2183
      %v2185 = vlaneseq
      %v2186 = vshrl.u32 %v2185, 7
      %v2187 = vsub.s32 %v2184, %v2186
      %v2188 = vrot.slane %v2181, %v2187
      %v2189 = vcombine.low %v2180, %v2188
      %v2190 = vcombine.high %v2180, %v2188
      %v2192 = vunpack.c.l.s4 1934713408
      %v2193 = vunpack.c.0.s8 %v2192
      %v2194 = vlaneseq
      %v2195 = vshrl.u32 %v2194, 7
      %v2196 = vsub.s32 %v2193, %v2195
      %v2197 = vrot.slane %v2189, %v2196
      %v2199 = vunpack.c.l.s4 1934713408
      %v2200 = vunpack.c.0.s8 %v2199
      %v2201 = vlaneseq
      %v2202 = vshrl.u32 %v2201, 7
      %v2203 = vsub.s32 %v2200, %v2202
      %v2204 = vrot.slane %v2190, %v2203
      %v2205 = vcombine.high %v2197, 0
      %v2206 = vcombine.high %v2204, 0
      %v2207 = vcombine.low %v2069, %v2133
      %v2209 = vunpack.c.l.s4 1983009808
      %v2210 = vunpack.c.0.s8 %v2209
      %v2211 = vlaneseq
      %v2212 = vshrl.u32 %v2211, 7
      %v2213 = vsub.s32 %v2210, %v2212
      %v2214 = vrot.slane %v2207, %v2213
      %v2215 = vcombine.low %v2101, %v2165
      %v2217 = vunpack.c.l.s4 1983009808
      %v2218 = vunpack.c.0.s8 %v2217
      %v2219 = vlaneseq
      %v2220 = vshrl.u32 %v2219, 7
      %v2221 = vsub.s32 %v2218, %v2220
      %v2222 = vrot.slane %v2215, %v2221
      %v2223 = vcombine.low %v2214, %v2222
      %v2224 = vcombine.high %v2214, %v2222
      %v2226 = vunpack.c.l.s4 1934713408
      %v2227 = vunpack.c.0.s8 %v2226
      %v2228 = vlaneseq
      %v2229 = vshrl.u32 %v2228, 7
      %v2230 = vsub.s32 %v2227, %v2229
      %v2231 = vrot.slane %v2223, %v2230
      %v2233 = vunpack.c.l.s4 1934713408
      %v2234 = vunpack.c.0.s8 %v2233
      %v2235 = vlaneseq
      %v2236 = vshrl.u32 %v2235, 7
      %v2237 = vsub.s32 %v2234, %v2236
      %v2238 = vrot.slane %v2224, %v2237
      %v2239 = vcombine.high %v2231, 0
      %v2240 = vcombine.high %v2238, 0
      %v2243 = vpack.i.b16 %v2231, %v2197
      %v2245 = vshrl.u32 %v2197, 16
      %v2246 = vshrl.u32 %v2231, 16
      %v2247 = vpack.i.b16 %v2246, %v2245
      %v2251 = vpack.i.b16 %v2239, %v2205
      %v2253 = vshrl.u32 %v2205, 16
      %v2254 = vshrl.u32 %v2239, 16
      %v2255 = vpack.i.b16 %v2254, %v2253
      %v2259 = vpack.i.b16 %v2238, %v2204
      %v2261 = vshrl.u32 %v2204, 16
      %v2262 = vshrl.u32 %v2238, 16
      %v2263 = vpack.i.b16 %v2262, %v2261
      %v2267 = vpack.i.b16 %v2240, %v2206
      %v2269 = vshrl.u32 %v2206, 16
      %v2270 = vshrl.u32 %v2240, 16
      %v2271 = vpack.i.b16 %v2270, %v2269
      %2273 = vxpose.xlu0.c.b16.start [1/8] %v2243, 128
      %2274 = vxpose.xlu0.c.b16.cont [2/8] 0, 128
      %2275 = vxpose.xlu0.c.b16.cont [3/8] 0, 128
      %2276 = vxpose.xlu0.c.b16.cont [4/8] 0, 128
      %2277 = vxpose.xlu0.c.b16.cont [5/8] 0, 128
      %2278 = vxpose.xlu0.c.b16.cont [6/8] 0, 128
      %2279 = vxpose.xlu0.c.b16.cont [7/8] 0, 128
      %2280 = vxpose.xlu0.c.b16.end [8/8] 0, 128
      %v2281 = vpop.trf.xlu0
      %v2282 = vpop.trf.xlu0
      %v2283 = vpop.trf.xlu0
      %v2284 = vpop.trf.xlu0
      %v2285 = vpop.trf.xlu0
      %v2286 = vpop.trf.xlu0
      %v2287 = vpop.trf.xlu0
      %v2288 = vpop.trf.xlu0
      %2289 = vxpose.xlu0.c.b16.start [1/8] %v2247, 128
      %2290 = vxpose.xlu0.c.b16.cont [2/8] 0, 128
      %2291 = vxpose.xlu0.c.b16.cont [3/8] 0, 128
      %2292 = vxpose.xlu0.c.b16.cont [4/8] 0, 128
      %2293 = vxpose.xlu0.c.b16.cont [5/8] 0, 128
      %2294 = vxpose.xlu0.c.b16.cont [6/8] 0, 128
      %2295 = vxpose.xlu0.c.b16.cont [7/8] 0, 128
      %2296 = vxpose.xlu0.c.b16.end [8/8] 0, 128
      %v2297 = vpop.trf.xlu0
      %v2298 = vpop.trf.xlu0
      %v2299 = vpop.trf.xlu0
      %v2300 = vpop.trf.xlu0
      %v2301 = vpop.trf.xlu0
      %v2302 = vpop.trf.xlu0
      %v2303 = vpop.trf.xlu0
      %v2304 = vpop.trf.xlu0
      %2305 = vxpose.xlu0.c.b16.start [1/8] %v2251, 128
      %2306 = vxpose.xlu0.c.b16.cont [2/8] 0, 128
      %2307 = vxpose.xlu0.c.b16.cont [3/8] 0, 128
      %2308 = vxpose.xlu0.c.b16.cont [4/8] 0, 128
      %2309 = vxpose.xlu0.c.b16.cont [5/8] 0, 128
      %2310 = vxpose.xlu0.c.b16.cont [6/8] 0, 128
      %2311 = vxpose.xlu0.c.b16.cont [7/8] 0, 128
      %2312 = vxpose.xlu0.c.b16.end [8/8] 0, 128
      %v2313 = vpop.trf.xlu0
      %v2314 = vpop.trf.xlu0
      %v2315 = vpop.trf.xlu0
      %v2316 = vpop.trf.xlu0
      %v2317 = vpop.trf.xlu0
      %v2318 = vpop.trf.xlu0
      %v2319 = vpop.trf.xlu0
      %v2320 = vpop.trf.xlu0
      %2321 = vxpose.xlu0.c.b16.start [1/8] %v2255, 128
      %2322 = vxpose.xlu0.c.b16.cont [2/8] 0, 128
      %2323 = vxpose.xlu0.c.b16.cont [3/8] 0, 128
      %2324 = vxpose.xlu0.c.b16.cont [4/8] 0, 128
      %2325 = vxpose.xlu0.c.b16.cont [5/8] 0, 128
      %2326 = vxpose.xlu0.c.b16.cont [6/8] 0, 128
      %2327 = vxpose.xlu0.c.b16.cont [7/8] 0, 128
      %2328 = vxpose.xlu0.c.b16.end [8/8] 0, 128
      %v2329 = vpop.trf.xlu0
      %v2330 = vpop.trf.xlu0
      %v2331 = vpop.trf.xlu0
      %v2332 = vpop.trf.xlu0
      %v2333 = vpop.trf.xlu0
      %v2334 = vpop.trf.xlu0
      %v2335 = vpop.trf.xlu0
      %v2336 = vpop.trf.xlu0
      %2337 = vxpose.xlu0.c.b16.start [1/8] %v2259, 128
      %2338 = vxpose.xlu0.c.b16.cont [2/8] 0, 128
      %2339 = vxpose.xlu0.c.b16.cont [3/8] 0, 128
      %2340 = vxpose.xlu0.c.b16.cont [4/8] 0, 128
      %2341 = vxpose.xlu0.c.b16.cont [5/8] 0, 128
      %2342 = vxpose.xlu0.c.b16.cont [6/8] 0, 128
      %2343 = vxpose.xlu0.c.b16.cont [7/8] 0, 128
      %2344 = vxpose.xlu0.c.b16.end [8/8] 0, 128
      %v2345 = vpop.trf.xlu0
      %v2346 = vpop.trf.xlu0
      %v2347 = vpop.trf.xlu0
      %v2348 = vpop.trf.xlu0
      %v2349 = vpop.trf.xlu0
      %v2350 = vpop.trf.xlu0
      %v2351 = vpop.trf.xlu0
      %v2352 = vpop.trf.xlu0
      %2353 = vxpose.xlu0.c.b16.start [1/8] %v2263, 128
      %2354 = vxpose.xlu0.c.b16.cont [2/8] 0, 128
      %2355 = vxpose.xlu0.c.b16.cont [3/8] 0, 128
      %2356 = vxpose.xlu0.c.b16.cont [4/8] 0, 128
      %2357 = vxpose.xlu0.c.b16.cont [5/8] 0, 128
      %2358 = vxpose.xlu0.c.b16.cont [6/8] 0, 128
      %2359 = vxpose.xlu0.c.b16.cont [7/8] 0, 128
      %2360 = vxpose.xlu0.c.b16.end [8/8] 0, 128
      %v2361 = vpop.trf.xlu0
      %v2362 = vpop.trf.xlu0
      %v2363 = vpop.trf.xlu0
      %v2364 = vpop.trf.xlu0
      %v2365 = vpop.trf.xlu0
      %v2366 = vpop.trf.xlu0
      %v2367 = vpop.trf.xlu0
      %v2368 = vpop.trf.xlu0
      %2369 = vxpose.xlu0.c.b16.start [1/8] %v2267, 128
      %2370 = vxpose.xlu0.c.b16.cont [2/8] 0, 128
      %2371 = vxpose.xlu0.c.b16.cont [3/8] 0, 128
      %2372 = vxpose.xlu0.c.b16.cont [4/8] 0, 128
      %2373 = vxpose.xlu0.c.b16.cont [5/8] 0, 128
      %2374 = vxpose.xlu0.c.b16.cont [6/8] 0, 128
      %2375 = vxpose.xlu0.c.b16.cont [7/8] 0, 128
      %2376 = vxpose.xlu0.c.b16.end [8/8] 0, 128
      %v2377 = vpop.trf.xlu0
      %v2378 = vpop.trf.xlu0
      %v2379 = vpop.trf.xlu0
      %v2380 = vpop.trf.xlu0
      %v2381 = vpop.trf.xlu0
      %v2382 = vpop.trf.xlu0
      %v2383 = vpop.trf.xlu0
      %v2384 = vpop.trf.xlu0
      %2385 = vxpose.xlu0.c.b16.start [1/8] %v2271, 128
      %2386 = vxpose.xlu0.c.b16.cont [2/8] 0, 128
      %2387 = vxpose.xlu0.c.b16.cont [3/8] 0, 128
      %2388 = vxpose.xlu0.c.b16.cont [4/8] 0, 128
      %2389 = vxpose.xlu0.c.b16.cont [5/8] 0, 128
      %2390 = vxpose.xlu0.c.b16.cont [6/8] 0, 128
      %2391 = vxpose.xlu0.c.b16.cont [7/8] 0, 128
      %2392 = vxpose.xlu0.c.b16.end [8/8] 0, 128
      %v2393 = vpop.trf.xlu0
      %v2394 = vpop.trf.xlu0
      %v2395 = vpop.trf.xlu0
      %v2396 = vpop.trf.xlu0
      %v2397 = vpop.trf.xlu0
      %v2398 = vpop.trf.xlu0
      %v2399 = vpop.trf.xlu0
      %v2400 = vpop.trf.xlu0
      %v2401 = vcombine.low %v2281, %v2345
      %v2403 = vunpack.c.l.s4 1983009808
      %v2404 = vunpack.c.0.s8 %v2403
      %v2405 = vlaneseq
      %v2406 = vshrl.u32 %v2405, 7
      %v2407 = vsub.s32 %v2404, %v2406
      %v2408 = vrot.slane %v2401, %v2407
      %v2409 = vcombine.low %v2313, %v2377
      %v2411 = vunpack.c.l.s4 1983009808
      %v2412 = vunpack.c.0.s8 %v2411
      %v2413 = vlaneseq
      %v2414 = vshrl.u32 %v2413, 7
      %v2415 = vsub.s32 %v2412, %v2414
      %v2416 = vrot.slane %v2409, %v2415
      %v2417 = vcombine.low %v2408, %v2416
      %v2419 = vunpack.c.l.s4 1934713408
      %v2420 = vunpack.c.0.s8 %v2419
      %v2421 = vlaneseq
      %v2422 = vshrl.u32 %v2421, 7
      %v2423 = vsub.s32 %v2420, %v2422
      %v2424 = vrot.slane %v2417, %v2423
      %v2425 = vcombine.high %v2424, 0
      %v2426 = vcombine.low %v2297, %v2361
      %v2428 = vunpack.c.l.s4 1983009808
      %v2429 = vunpack.c.0.s8 %v2428
      %v2430 = vlaneseq
      %v2431 = vshrl.u32 %v2430, 7
      %v2432 = vsub.s32 %v2429, %v2431
      %v2433 = vrot.slane %v2426, %v2432
      %v2434 = vcombine.low %v2329, %v2393
      %v2436 = vunpack.c.l.s4 1983009808
      %v2437 = vunpack.c.0.s8 %v2436
      %v2438 = vlaneseq
      %v2439 = vshrl.u32 %v2438, 7
      %v2440 = vsub.s32 %v2437, %v2439
      %v2441 = vrot.slane %v2434, %v2440
      %v2442 = vcombine.low %v2433, %v2441
      %v2444 = vunpack.c.l.s4 1934713408
      %v2445 = vunpack.c.0.s8 %v2444
      %v2446 = vlaneseq
      %v2447 = vshrl.u32 %v2446, 7
      %v2448 = vsub.s32 %v2445, %v2447
      %v2449 = vrot.slane %v2442, %v2448
      %v2450 = vcombine.high %v2449, 0
      %v2453 = vpack.i.b16 %v2449, %v2424
      %v2454 = vshrl.u32 %v2424, 16
      %v2455 = vshrl.u32 %v2449, 16
      %v2456 = vpack.i.b16 %v2455, %v2454
      %v2459 = vpack.i.b16 %v2450, %v2425
      %v2460 = vshrl.u32 %v2425, 16
      %v2461 = vshrl.u32 %v2450, 16
      %v2462 = vpack.i.b16 %v2461, %v2460
      %vm2463 = vcmask 64512
      %v2465 = vsel %vm2463, %v2035, 0
      %vm2467 = vcmask 1043456
      %v2469 = vsel %vm2467, %v2453, 0
      %2471 = vmatprep.subr.bf16.mxu0 0
      %2472 = vmatpush1.bf16.msra.mxu0 %v2469
      %2473 = vmatprep.subr.bf16.mxu0 0
      %2474 = vmatpush1.bf16.msra.mxu0 0
      %2475 = vmatprep.subr.bf16.mxu0 0
      %2476 = vmatpush1.bf16.msra.mxu0 0
      %2477 = vmatprep.subr.bf16.mxu0 0
      %2478 = vmatpush1.bf16.msra.mxu0 0
      %2479 = vmatprep.subr.bf16.mxu0 0
      %2480 = vmatpush1.bf16.msra.mxu0 0
      %2481 = vmatprep.subr.bf16.mxu0 0
      %2482 = vmatpush1.bf16.msra.mxu0 0
      %2483 = vmatprep.subr.bf16.mxu0 0
      %2484 = vmatpush1.bf16.msra.mxu0 0
      %2485 = vmatprep.subr.bf16.mxu0 0
      %2486 = vmatpush1.bf16.msra.mxu0 0
      %2487 = vmatprep.subr.bf16.mxu0 0
      %2488 = vmatpush1.bf16.msra.mxu0 0
      %2489 = vmatprep.subr.bf16.mxu0 0
      %2490 = vmatpush1.bf16.msra.mxu0 0
      %2491 = vmatprep.subr.bf16.mxu0 0
      %2492 = vmatpush1.bf16.msra.mxu0 0
      %2493 = vmatprep.subr.bf16.mxu0 0
      %2494 = vmatpush1.bf16.msra.mxu0 0
      %2495 = vmatprep.subr.bf16.mxu0 0
      %2496 = vmatpush1.bf16.msra.mxu0 0
      %2497 = vmatprep.subr.bf16.mxu0 0
      %2498 = vmatpush1.bf16.msra.mxu0 0
      %2499 = vmatprep.subr.bf16.mxu0 0
      %2500 = vmatpush1.bf16.msra.mxu0 0
      %2501 = vmatprep.subr.bf16.mxu0 0
      %2502 = vmatpush1.bf16.msra.mxu0 0
      %2503 = vmatprep.mubr.bf16.mxu0 0
      %2504 = vmatmul.mubr.bf16.gmra.mrb[0].mxu0 %v2465
      %v2505 = vpop.f32.mrb[0].mxu0
      %v2506 = vadd.f32 0.0, %v2505
      %v2507 = vpop.f32.mrb[0].mxu0
      %v2508 = vpop.f32.mrb[0].mxu0
      %v2509 = vpop.f32.mrb[0].mxu0
      %2510 = vdwg.mxu0
      %v2512 = vsel %vm2463, %v2038, 0
      %v2515 = vsel %vm2467, %v2456, 0
      %2517 = vmatprep.subr.bf16.mxu0 0
      %2518 = vmatpush1.bf16.msra.mxu0 %v2515
      %2519 = vmatprep.subr.bf16.mxu0 0
      %2520 = vmatpush1.bf16.msra.mxu0 0
      %2521 = vmatprep.subr.bf16.mxu0 0
      %2522 = vmatpush1.bf16.msra.mxu0 0
      %2523 = vmatprep.subr.bf16.mxu0 0
      %2524 = vmatpush1.bf16.msra.mxu0 0
      %2525 = vmatprep.subr.bf16.mxu0 0
      %2526 = vmatpush1.bf16.msra.mxu0 0
      %2527 = vmatprep.subr.bf16.mxu0 0
      %2528 = vmatpush1.bf16.msra.mxu0 0
      %2529 = vmatprep.subr.bf16.mxu0 0
      %2530 = vmatpush1.bf16.msra.mxu0 0
      %2531 = vmatprep.subr.bf16.mxu0 0
      %2532 = vmatpush1.bf16.msra.mxu0 0
      %2533 = vmatprep.subr.bf16.mxu0 0
      %2534 = vmatpush1.bf16.msra.mxu0 0
      %2535 = vmatprep.subr.bf16.mxu0 0
      %2536 = vmatpush1.bf16.msra.mxu0 0
      %2537 = vmatprep.subr.bf16.mxu0 0
      %2538 = vmatpush1.bf16.msra.mxu0 0
      %2539 = vmatprep.subr.bf16.mxu0 0
      %2540 = vmatpush1.bf16.msra.mxu0 0
      %2541 = vmatprep.subr.bf16.mxu0 0
      %2542 = vmatpush1.bf16.msra.mxu0 0
      %2543 = vmatprep.subr.bf16.mxu0 0
      %2544 = vmatpush1.bf16.msra.mxu0 0
      %2545 = vmatprep.subr.bf16.mxu0 0
      %2546 = vmatpush1.bf16.msra.mxu0 0
      %2547 = vmatprep.subr.bf16.mxu0 0
      %2548 = vmatpush1.bf16.msra.mxu0 0
      %2549 = vmatprep.mubr.bf16.mxu0 0
      %2550 = vmatmul.mubr.bf16.gmra.mrb[0].mxu0 %v2512
      %v2551 = vpop.f32.mrb[0].mxu0
      %v2552 = vadd.f32 0.0, %v2551
      %v2553 = vpop.f32.mrb[0].mxu0
      %v2554 = vpop.f32.mrb[0].mxu0
      %v2555 = vpop.f32.mrb[0].mxu0
      %2556 = vdwg.mxu0
      %v2558 = vsel %vm2463, %v2041, 0
      %v2561 = vsel %vm2467, %v2459, 0
      %2563 = vmatprep.subr.bf16.mxu0 0
      %2564 = vmatpush1.bf16.msra.mxu0 %v2561
      %2565 = vmatprep.subr.bf16.mxu0 0
      %2566 = vmatpush1.bf16.msra.mxu0 0
      %2567 = vmatprep.subr.bf16.mxu0 0
      %2568 = vmatpush1.bf16.msra.mxu0 0
      %2569 = vmatprep.subr.bf16.mxu0 0
      %2570 = vmatpush1.bf16.msra.mxu0 0
      %2571 = vmatprep.subr.bf16.mxu0 0
      %2572 = vmatpush1.bf16.msra.mxu0 0
      %2573 = vmatprep.subr.bf16.mxu0 0
      %2574 = vmatpush1.bf16.msra.mxu0 0
      %2575 = vmatprep.subr.bf16.mxu0 0
      %2576 = vmatpush1.bf16.msra.mxu0 0
      %2577 = vmatprep.subr.bf16.mxu0 0
      %2578 = vmatpush1.bf16.msra.mxu0 0
      %2579 = vmatprep.subr.bf16.mxu0 0
      %2580 = vmatpush1.bf16.msra.mxu0 0
      %2581 = vmatprep.subr.bf16.mxu0 0
      %2582 = vmatpush1.bf16.msra.mxu0 0
      %2583 = vmatprep.subr.bf16.mxu0 0
      %2584 = vmatpush1.bf16.msra.mxu0 0
      %2585 = vmatprep.subr.bf16.mxu0 0
      %2586 = vmatpush1.bf16.msra.mxu0 0
      %2587 = vmatprep.subr.bf16.mxu0 0
      %2588 = vmatpush1.bf16.msra.mxu0 0
      %2589 = vmatprep.subr.bf16.mxu0 0
      %2590 = vmatpush1.bf16.msra.mxu0 0
      %2591 = vmatprep.subr.bf16.mxu0 0
      %2592 = vmatpush1.bf16.msra.mxu0 0
      %2593 = vmatprep.subr.bf16.mxu0 0
      %2594 = vmatpush1.bf16.msra.mxu0 0
      %2595 = vmatprep.mubr.bf16.mxu0 0
      %2596 = vmatmul.mubr.bf16.gmra.mrb[0].mxu0 %v2558
      %v2597 = vpop.f32.mrb[0].mxu0
      %v2598 = vadd.f32 0.0, %v2597
      %v2599 = vpop.f32.mrb[0].mxu0
      %v2600 = vpop.f32.mrb[0].mxu0
      %v2601 = vpop.f32.mrb[0].mxu0
      %2602 = vdwg.mxu0
      %v2604 = vsel %vm2463, %v2044, 0
      %v2607 = vsel %vm2467, %v2462, 0
      %2609 = vmatprep.subr.bf16.mxu0 0
      %2610 = vmatpush1.bf16.msra.mxu0 %v2607
      %2611 = vmatprep.subr.bf16.mxu0 0
      %2612 = vmatpush1.bf16.msra.mxu0 0
      %2613 = vmatprep.subr.bf16.mxu0 0
      %2614 = vmatpush1.bf16.msra.mxu0 0
      %2615 = vmatprep.subr.bf16.mxu0 0
      %2616 = vmatpush1.bf16.msra.mxu0 0
      %2617 = vmatprep.subr.bf16.mxu0 0
      %2618 = vmatpush1.bf16.msra.mxu0 0
      %2619 = vmatprep.subr.bf16.mxu0 0
      %2620 = vmatpush1.bf16.msra.mxu0 0
      %2621 = vmatprep.subr.bf16.mxu0 0
      %2622 = vmatpush1.bf16.msra.mxu0 0
      %2623 = vmatprep.subr.bf16.mxu0 0
      %2624 = vmatpush1.bf16.msra.mxu0 0
      %2625 = vmatprep.subr.bf16.mxu0 0
      %2626 = vmatpush1.bf16.msra.mxu0 0
      %2627 = vmatprep.subr.bf16.mxu0 0
      %2628 = vmatpush1.bf16.msra.mxu0 0
      %2629 = vmatprep.subr.bf16.mxu0 0
      %2630 = vmatpush1.bf16.msra.mxu0 0
      %2631 = vmatprep.subr.bf16.mxu0 0
      %2632 = vmatpush1.bf16.msra.mxu0 0
      %2633 = vmatprep.subr.bf16.mxu0 0
      %2634 = vmatpush1.bf16.msra.mxu0 0
      %2635 = vmatprep.subr.bf16.mxu0 0
      %2636 = vmatpush1.bf16.msra.mxu0 0
      %2637 = vmatprep.subr.bf16.mxu0 0
      %2638 = vmatpush1.bf16.msra.mxu0 0
      %2639 = vmatprep.subr.bf16.mxu0 0
      %2640 = vmatpush1.bf16.msra.mxu0 0
      %2641 = vmatprep.mubr.bf16.mxu0 0
      %2642 = vmatmul.mubr.bf16.gmra.mrb[0].mxu0 %v2604
      %v2643 = vpop.f32.mrb[0].mxu0
      %v2644 = vadd.f32 0.0, %v2643
      %v2645 = vpop.f32.mrb[0].mxu0
      %v2646 = vpop.f32.mrb[0].mxu0
      %v2647 = vpop.f32.mrb[0].mxu0
      %2648 = vdwg.mxu0
      %v2649 = vmul.f32 %v2506, 0.35355338
      %v2650 = vmul.f32 %v2552, 0.35355338
      %v2651 = vmul.f32 %v2598, 0.35355338
      %v2652 = vmul.f32 %v2644, 0.35355338
      %v2653 = vld [vmem:[%s1472] sm:$0x1]
      %v2655 = vlaneseq
      %v2656 = vshrl.u32 %v2655, 7
      %v2657 = vsub.s32 0, %v2656
      %v2658 = vrot.slane %v2653, %v2657
      %v2660 = vadd.f32 %v2649, %v2658
      %v2661 = vadd.f32 %v2650, %v2658
      %v2662 = vadd.f32 %v2651, %v2658
      %v2663 = vadd.f32 %v2652, %v2658
      %v2664 = vsel %vm2463, %v2660, -inf
      %2665 = vmax.xlane.f32.xlu0 %v2664
      %v2666 = vpop.xlane.xlu0 %2665
      %v2667 = vsel %vm2463, %v2661, -inf
      %2668 = vmax.xlane.f32.xlu0 %v2667
      %v2669 = vpop.xlane.xlu0 %2668
      %v2670 = vsel %vm2463, %v2662, -inf
      %2671 = vmax.xlane.f32.xlu0 %v2670
      %v2672 = vpop.xlane.xlu0 %2671
      %v2673 = vsel %vm2463, %v2663, -inf
      %2674 = vmax.xlane.f32.xlu0 %v2673
      %v2675 = vpop.xlane.xlu0 %2674
      %v2676 = vsub.f32 %v2660, %v2666
      %v2677 = vsub.f32 %v2661, %v2669
      %v2678 = vsub.f32 %v2662, %v2672
      %v2679 = vsub.f32 %v2663, %v2675
      %v2680 = vmul.f32 %v2676, 1.442695
      %v2681 = vpow.pop %v2680
      %v2682 = vmul.f32 %v2677, 1.442695
      %v2683 = vpow.pop %v2682
      %v2684 = vmul.f32 %v2678, 1.442695
      %v2685 = vpow.pop %v2684
      %v2686 = vmul.f32 %v2679, 1.442695
      %v2687 = vpow.pop %v2686
      %v2688 = vsel %vm2463, %v2681, 0.0
      %2689 = vadd.xlane.f32.xlu0 %v2688
      %v2690 = vpop.xlane.xlu0 %2689
      %v2691 = vsel %vm2463, %v2683, 0.0
      %2692 = vadd.xlane.f32.xlu0 %v2691
      %v2693 = vpop.xlane.xlu0 %2692
      %v2694 = vsel %vm2463, %v2685, 0.0
      %2695 = vadd.xlane.f32.xlu0 %v2694
      %v2696 = vpop.xlane.xlu0 %2695
      %v2697 = vsel %vm2463, %v2687, 0.0
      %2698 = vadd.xlane.f32.xlu0 %v2697
      %v2699 = vpop.xlane.xlu0 %2698
      %v2700 = vrcp.pop %v2690
      %v2701 = vrcp.pop %v2693
      %v2702 = vrcp.pop %v2696
      %v2703 = vrcp.pop %v2699
      %v2704 = vmul.f32 %v2681, %v2700
      %v2705 = vmul.f32 %v2683, %v2701
      %v2706 = vmul.f32 %v2685, %v2702
      %v2707 = vmul.f32 %v2687, %v2703
      %v2708 = vpack.c.bf16 %v2704, %v2704
      %v2709 = vpack.c.bf16 %v2705, %v2705
      %v2710 = vpack.c.bf16 %v2706, %v2706
      %v2711 = vpack.c.bf16 %v2707, %v2707
      %v2712 = vpack.c.bf16 %v1939, %v1939
      %v2713 = vpack.c.bf16 %v1963, %v1963
      %v2714 = vpack.c.bf16 %v1946, %v1946
      %v2715 = vpack.c.bf16 %v1964, %v1964
      %v2716 = vpack.c.bf16 %v1955, %v1955
      %v2717 = vpack.c.bf16 %v1965, %v1965
      %v2718 = vpack.c.bf16 %v1962, %v1962
      %v2719 = vpack.c.bf16 %v1966, %v1966
      %v2720 = vcombine.low %v2712, %v2716
      %v2722 = vunpack.c.l.s4 1983009808
      %v2723 = vunpack.c.0.s8 %v2722
      %v2724 = vlaneseq
      %v2725 = vshrl.u32 %v2724, 7
      %v2726 = vsub.s32 %v2723, %v2725
      %v2727 = vrot.slane %v2720, %v2726
      %v2728 = vcombine.low %v2714, %v2718
      %v2730 = vunpack.c.l.s4 1983009808
      %v2731 = vunpack.c.0.s8 %v2730
      %v2732 = vlaneseq
      %v2733 = vshrl.u32 %v2732, 7
      %v2734 = vsub.s32 %v2731, %v2733
      %v2735 = vrot.slane %v2728, %v2734
      %v2736 = vcombine.low %v2727, %v2735
      %v2738 = vunpack.c.l.s4 1934713408
      %v2739 = vunpack.c.0.s8 %v2738
      %v2740 = vlaneseq
      %v2741 = vshrl.u32 %v2740, 7
      %v2742 = vsub.s32 %v2739, %v2741
      %v2743 = vrot.slane %v2736, %v2742
      %v2744 = vcombine.high %v2743, 0
      %v2745 = vcombine.low %v2713, %v2717
      %v2747 = vunpack.c.l.s4 1983009808
      %v2748 = vunpack.c.0.s8 %v2747
      %v2749 = vlaneseq
      %v2750 = vshrl.u32 %v2749, 7
      %v2751 = vsub.s32 %v2748, %v2750
      %v2752 = vrot.slane %v2745, %v2751
      %v2753 = vcombine.low %v2715, %v2719
      %v2755 = vunpack.c.l.s4 1983009808
      %v2756 = vunpack.c.0.s8 %v2755
      %v2757 = vlaneseq
      %v2758 = vshrl.u32 %v2757, 7
      %v2759 = vsub.s32 %v2756, %v2758
      %v2760 = vrot.slane %v2753, %v2759
      %v2761 = vcombine.low %v2752, %v2760
      %v2763 = vunpack.c.l.s4 1934713408
      %v2764 = vunpack.c.0.s8 %v2763
      %v2765 = vlaneseq
      %v2766 = vshrl.u32 %v2765, 7
      %v2767 = vsub.s32 %v2764, %v2766
      %v2768 = vrot.slane %v2761, %v2767
      %v2769 = vcombine.high %v2768, 0
      %v2772 = vpack.i.b16 %v2768, %v2743
      %v2773 = vshrl.u32 %v2743, 16
      %v2774 = vshrl.u32 %v2768, 16
      %v2775 = vpack.i.b16 %v2774, %v2773
      %v2778 = vpack.i.b16 %v2769, %v2744
      %v2779 = vshrl.u32 %v2744, 16
      %v2780 = vshrl.u32 %v2769, 16
      %v2781 = vpack.i.b16 %v2780, %v2779
      %v2783 = vsel %vm2463, %v2708, 0
      %v2786 = vsel %vm2467, %v2772, 0
      %2788 = vmatprep.subr.bf16.mxu0 0
      %2789 = vmatpush1.bf16.msra.mxu0 %v2786
      %2790 = vmatprep.subr.bf16.mxu0 0
      %2791 = vmatpush1.bf16.msra.mxu0 0
      %2792 = vmatprep.subr.bf16.mxu0 0
      %2793 = vmatpush1.bf16.msra.mxu0 0
      %2794 = vmatprep.subr.bf16.mxu0 0
      %2795 = vmatpush1.bf16.msra.mxu0 0
      %2796 = vmatprep.subr.bf16.mxu0 0
      %2797 = vmatpush1.bf16.msra.mxu0 0
      %2798 = vmatprep.subr.bf16.mxu0 0
      %2799 = vmatpush1.bf16.msra.mxu0 0
      %2800 = vmatprep.subr.bf16.mxu0 0
      %2801 = vmatpush1.bf16.msra.mxu0 0
      %2802 = vmatprep.subr.bf16.mxu0 0
      %2803 = vmatpush1.bf16.msra.mxu0 0
      %2804 = vmatprep.subr.bf16.mxu0 0
      %2805 = vmatpush1.bf16.msra.mxu0 0
      %2806 = vmatprep.subr.bf16.mxu0 0
      %2807 = vmatpush1.bf16.msra.mxu0 0
      %2808 = vmatprep.subr.bf16.mxu0 0
      %2809 = vmatpush1.bf16.msra.mxu0 0
      %2810 = vmatprep.subr.bf16.mxu0 0
      %2811 = vmatpush1.bf16.msra.mxu0 0
      %2812 = vmatprep.subr.bf16.mxu0 0
      %2813 = vmatpush1.bf16.msra.mxu0 0
      %2814 = vmatprep.subr.bf16.mxu0 0
      %2815 = vmatpush1.bf16.msra.mxu0 0
      %2816 = vmatprep.subr.bf16.mxu0 0
      %2817 = vmatpush1.bf16.msra.mxu0 0
      %2818 = vmatprep.subr.bf16.mxu0 0
      %2819 = vmatpush1.bf16.msra.mxu0 0
      %2820 = vmatprep.mubr.bf16.mxu0 0
      %2821 = vmatmul.mubr.bf16.gmra.mrb[0].mxu0 %v2783
      %v2822 = vpop.f32.mrb[0].mxu0
      %v2823 = vadd.f32 0.0, %v2822
      %v2824 = vpop.f32.mrb[0].mxu0
      %v2825 = vpop.f32.mrb[0].mxu0
      %v2826 = vpop.f32.mrb[0].mxu0
      %2827 = vdwg.mxu0
      %v2829 = vsel %vm2463, %v2709, 0
      %v2832 = vsel %vm2467, %v2775, 0
      %2834 = vmatprep.subr.bf16.mxu0 0
      %2835 = vmatpush1.bf16.msra.mxu0 %v2832
      %2836 = vmatprep.subr.bf16.mxu0 0
      %2837 = vmatpush1.bf16.msra.mxu0 0
      %2838 = vmatprep.subr.bf16.mxu0 0
      %2839 = vmatpush1.bf16.msra.mxu0 0
      %2840 = vmatprep.subr.bf16.mxu0 0
      %2841 = vmatpush1.bf16.msra.mxu0 0
      %2842 = vmatprep.subr.bf16.mxu0 0
      %2843 = vmatpush1.bf16.msra.mxu0 0
      %2844 = vmatprep.subr.bf16.mxu0 0
      %2845 = vmatpush1.bf16.msra.mxu0 0
      %2846 = vmatprep.subr.bf16.mxu0 0
      %2847 = vmatpush1.bf16.msra.mxu0 0
      %2848 = vmatprep.subr.bf16.mxu0 0
      %2849 = vmatpush1.bf16.msra.mxu0 0
      %2850 = vmatprep.subr.bf16.mxu0 0
      %2851 = vmatpush1.bf16.msra.mxu0 0
      %2852 = vmatprep.subr.bf16.mxu0 0
      %2853 = vmatpush1.bf16.msra.mxu0 0
      %2854 = vmatprep.subr.bf16.mxu0 0
      %2855 = vmatpush1.bf16.msra.mxu0 0
      %2856 = vmatprep.subr.bf16.mxu0 0
      %2857 = vmatpush1.bf16.msra.mxu0 0
      %2858 = vmatprep.subr.bf16.mxu0 0
      %2859 = vmatpush1.bf16.msra.mxu0 0
      %2860 = vmatprep.subr.bf16.mxu0 0
      %2861 = vmatpush1.bf16.msra.mxu0 0
      %2862 = vmatprep.subr.bf16.mxu0 0
      %2863 = vmatpush1.bf16.msra.mxu0 0
      %2864 = vmatprep.subr.bf16.mxu0 0
      %2865 = vmatpush1.bf16.msra.mxu0 0
      %2866 = vmatprep.mubr.bf16.mxu0 0
      %2867 = vmatmul.mubr.bf16.gmra.mrb[0].mxu0 %v2829
      %v2868 = vpop.f32.mrb[0].mxu0
      %v2869 = vadd.f32 0.0, %v2868
      %v2870 = vpop.f32.mrb[0].mxu0
      %v2871 = vpop.f32.mrb[0].mxu0
      %v2872 = vpop.f32.mrb[0].mxu0
      %2873 = vdwg.mxu0
      %v2875 = vsel %vm2463, %v2710, 0
      %v2878 = vsel %vm2467, %v2778, 0
      %2880 = vmatprep.subr.bf16.mxu0 0
      %2881 = vmatpush1.bf16.msra.mxu0 %v2878
      %2882 = vmatprep.subr.bf16.mxu0 0
      %2883 = vmatpush1.bf16.msra.mxu0 0
      %2884 = vmatprep.subr.bf16.mxu0 0
      %2885 = vmatpush1.bf16.msra.mxu0 0
      %2886 = vmatprep.subr.bf16.mxu0 0
      %2887 = vmatpush1.bf16.msra.mxu0 0
      %2888 = vmatprep.subr.bf16.mxu0 0
      %2889 = vmatpush1.bf16.msra.mxu0 0
      %2890 = vmatprep.subr.bf16.mxu0 0
      %2891 = vmatpush1.bf16.msra.mxu0 0
      %2892 = vmatprep.subr.bf16.mxu0 0
      %2893 = vmatpush1.bf16.msra.mxu0 0
      %2894 = vmatprep.subr.bf16.mxu0 0
      %2895 = vmatpush1.bf16.msra.mxu0 0
      %2896 = vmatprep.subr.bf16.mxu0 0
      %2897 = vmatpush1.bf16.msra.mxu0 0
      %2898 = vmatprep.subr.bf16.mxu0 0
      %2899 = vmatpush1.bf16.msra.mxu0 0
      %2900 = vmatprep.subr.bf16.mxu0 0
      %2901 = vmatpush1.bf16.msra.mxu0 0
      %2902 = vmatprep.subr.bf16.mxu0 0
      %2903 = vmatpush1.bf16.msra.mxu0 0
      %2904 = vmatprep.subr.bf16.mxu0 0
      %2905 = vmatpush1.bf16.msra.mxu0 0
      %2906 = vmatprep.subr.bf16.mxu0 0
      %2907 = vmatpush1.bf16.msra.mxu0 0
      %2908 = vmatprep.subr.bf16.mxu0 0
      %2909 = vmatpush1.bf16.msra.mxu0 0
      %2910 = vmatprep.subr.bf16.mxu0 0
      %2911 = vmatpush1.bf16.msra.mxu0 0
      %2912 = vmatprep.mubr.bf16.mxu0 0
      %2913 = vmatmul.mubr.bf16.gmra.mrb[0].mxu0 %v2875
      %v2914 = vpop.f32.mrb[0].mxu0
      %v2915 = vadd.f32 0.0, %v2914
      %v2916 = vpop.f32.mrb[0].mxu0
      %v2917 = vpop.f32.mrb[0].mxu0
      %v2918 = vpop.f32.mrb[0].mxu0
      %2919 = vdwg.mxu0
      %v2921 = vsel %vm2463, %v2711, 0
      %v2924 = vsel %vm2467, %v2781, 0
      %2926 = vmatprep.subr.bf16.mxu0 0
      %2927 = vmatpush1.bf16.msra.mxu0 %v2924
      %2928 = vmatprep.subr.bf16.mxu0 0
      %2929 = vmatpush1.bf16.msra.mxu0 0
      %2930 = vmatprep.subr.bf16.mxu0 0
      %2931 = vmatpush1.bf16.msra.mxu0 0
      %2932 = vmatprep.subr.bf16.mxu0 0
      %2933 = vmatpush1.bf16.msra.mxu0 0
      %2934 = vmatprep.subr.bf16.mxu0 0
      %2935 = vmatpush1.bf16.msra.mxu0 0
      %2936 = vmatprep.subr.bf16.mxu0 0
      %2937 = vmatpush1.bf16.msra.mxu0 0
      %2938 = vmatprep.subr.bf16.mxu0 0
      %2939 = vmatpush1.bf16.msra.mxu0 0
      %2940 = vmatprep.subr.bf16.mxu0 0
      %2941 = vmatpush1.bf16.msra.mxu0 0
      %2942 = vmatprep.subr.bf16.mxu0 0
      %2943 = vmatpush1.bf16.msra.mxu0 0
      %2944 = vmatprep.subr.bf16.mxu0 0
      %2945 = vmatpush1.bf16.msra.mxu0 0
      %2946 = vmatprep.subr.bf16.mxu0 0
      %2947 = vmatpush1.bf16.msra.mxu0 0
      %2948 = vmatprep.subr.bf16.mxu0 0
      %2949 = vmatpush1.bf16.msra.mxu0 0
      %2950 = vmatprep.subr.bf16.mxu0 0
      %2951 = vmatpush1.bf16.msra.mxu0 0
      %2952 = vmatprep.subr.bf16.mxu0 0
      %2953 = vmatpush1.bf16.msra.mxu0 0
      %2954 = vmatprep.subr.bf16.mxu0 0
      %2955 = vmatpush1.bf16.msra.mxu0 0
      %2956 = vmatprep.subr.bf16.mxu0 0
      %2957 = vmatpush1.bf16.msra.mxu0 0
      %2958 = vmatprep.mubr.bf16.mxu0 0
      %2959 = vmatmul.mubr.bf16.gmra.mrb[0].mxu0 %v2921
      %v2960 = vpop.f32.mrb[0].mxu0
      %v2961 = vadd.f32 0.0, %v2960
      %v2962 = vpop.f32.mrb[0].mxu0
      %v2963 = vpop.f32.mrb[0].mxu0
      %v2964 = vpop.f32.mrb[0].mxu0
      %2965 = vdwg.mxu0
      %v2966 = vcombine.low %v2823, %v2915
      %v2967 = vcombine.high %v2823, %v2915
      %v2969 = vunpack.c.l.s4 1983009808
      %v2970 = vunpack.c.0.s8 %v2969
      %v2971 = vlaneseq
      %v2972 = vshrl.u32 %v2971, 7
      %v2973 = vsub.s32 %v2970, %v2972
      %v2974 = vrot.slane %v2966, %v2973
      %v2976 = vunpack.c.l.s4 1983009808
      %v2977 = vunpack.c.0.s8 %v2976
      %v2978 = vlaneseq
      %v2979 = vshrl.u32 %v2978, 7
      %v2980 = vsub.s32 %v2977, %v2979
      %v2981 = vrot.slane %v2967, %v2980
      %v2982 = vcombine.low %v2869, %v2961
      %v2983 = vcombine.high %v2869, %v2961
      %v2985 = vunpack.c.l.s4 1983009808
      %v2986 = vunpack.c.0.s8 %v2985
      %v2987 = vlaneseq
      %v2988 = vshrl.u32 %v2987, 7
      %v2989 = vsub.s32 %v2986, %v2988
      %v2990 = vrot.slane %v2982, %v2989
      %v2992 = vunpack.c.l.s4 1983009808
      %v2993 = vunpack.c.0.s8 %v2992
      %v2994 = vlaneseq
      %v2995 = vshrl.u32 %v2994, 7
      %v2996 = vsub.s32 %v2993, %v2995
      %v2997 = vrot.slane %v2983, %v2996
      %v2998 = vcombine.low %v2974, %v2990
      %v2999 = vcombine.high %v2974, %v2990
      %v3001 = vunpack.c.l.s4 1934713408
      %v3002 = vunpack.c.0.s8 %v3001
      %v3003 = vlaneseq
      %v3004 = vshrl.u32 %v3003, 7
      %v3005 = vsub.s32 %v3002, %v3004
      %v3006 = vrot.slane %v2998, %v3005
      %v3008 = vunpack.c.l.s4 1934713408
      %v3009 = vunpack.c.0.s8 %v3008
      %v3010 = vlaneseq
      %v3011 = vshrl.u32 %v3010, 7
      %v3012 = vsub.s32 %v3009, %v3011
      %v3013 = vrot.slane %v2999, %v3012
      %v3014 = vcombine.low %v2981, %v2997
      %v3015 = vcombine.high %v2981, %v2997
      %v3017 = vunpack.c.l.s4 1934713408
      %v3018 = vunpack.c.0.s8 %v3017
      %v3019 = vlaneseq
      %v3020 = vshrl.u32 %v3019, 7
      %v3021 = vsub.s32 %v3018, %v3020
      %v3022 = vrot.slane %v3014, %v3021
      %v3024 = vunpack.c.l.s4 1934713408
      %v3025 = vunpack.c.0.s8 %v3024
      %v3026 = vlaneseq
      %v3027 = vshrl.u32 %v3026, 7
      %v3028 = vsub.s32 %v3025, %v3027
      %v3029 = vrot.slane %v3015, %v3028
      %v3030 = vcombine.high %v3006, 0.0
      %v3031 = vcombine.high %v3013, 0.0
      %v3032 = vcombine.high %v3022, 0.0
      %v3033 = vcombine.high %v3029, 0.0
      %v3034 = vcombine.low %v3006, %v3013
      %v3036 = vunpack.c.l.s4 1983009808
      %v3037 = vunpack.c.0.s8 %v3036
      %v3038 = vlaneseq
      %v3039 = vshrl.u32 %v3038, 7
      %v3040 = vsub.s32 %v3037, %v3039
      %v3041 = vrot.slane %v3034, %v3040
      %v3042 = vcombine.low %v3030, %v3031
      %v3044 = vunpack.c.l.s4 1983009808
      %v3045 = vunpack.c.0.s8 %v3044
      %v3046 = vlaneseq
      %v3047 = vshrl.u32 %v3046, 7
      %v3048 = vsub.s32 %v3045, %v3047
      %v3049 = vrot.slane %v3042, %v3048
      %v3050 = vcombine.low %v3022, %v3029
      %v3052 = vunpack.c.l.s4 1983009808
      %v3053 = vunpack.c.0.s8 %v3052
      %v3054 = vlaneseq
      %v3055 = vshrl.u32 %v3054, 7
      %v3056 = vsub.s32 %v3053, %v3055
      %v3057 = vrot.slane %v3050, %v3056
      %v3058 = vcombine.low %v3032, %v3033
      %v3060 = vunpack.c.l.s4 1983009808
      %v3061 = vunpack.c.0.s8 %v3060
      %v3062 = vlaneseq
      %v3063 = vshrl.u32 %v3062, 7
      %v3064 = vsub.s32 %v3061, %v3063
      %v3065 = vrot.slane %v3058, %v3064
      %v3066 = vcombine.low %v3041, %v3049
      %v3067 = vcombine.high %v3041, %v3049
      %v3069 = vunpack.c.l.s4 1934713408
      %v3070 = vunpack.c.0.s8 %v3069
      %v3071 = vlaneseq
      %v3072 = vshrl.u32 %v3071, 7
      %v3073 = vsub.s32 %v3070, %v3072
      %v3074 = vrot.slane %v3066, %v3073
      %v3076 = vunpack.c.l.s4 1934713408
      %v3077 = vunpack.c.0.s8 %v3076
      %v3078 = vlaneseq
      %v3079 = vshrl.u32 %v3078, 7
      %v3080 = vsub.s32 %v3077, %v3079
      %v3081 = vrot.slane %v3067, %v3080
      %v3082 = vcombine.low %v3057, %v3065
      %v3083 = vcombine.high %v3057, %v3065
      %v3085 = vunpack.c.l.s4 1934713408
      %v3086 = vunpack.c.0.s8 %v3085
      %v3087 = vlaneseq
      %v3088 = vshrl.u32 %v3087, 7
      %v3089 = vsub.s32 %v3086, %v3088
      %v3090 = vrot.slane %v3082, %v3089
      %v3092 = vunpack.c.l.s4 1934713408
      %v3093 = vunpack.c.0.s8 %v3092
      %v3094 = vlaneseq
      %v3095 = vshrl.u32 %v3094, 7
      %v3096 = vsub.s32 %v3093, %v3095
      %v3097 = vrot.slane %v3083, %v3096
      %v3098 = vcombine.low %v3074, %v3090
      %v3099 = vcombine.high %v3074, %v3090
      %v3100 = vcombine.low %v3081, %v3097
      %v3101 = vcombine.high %v3081, %v3097
      %3103 = vrot.lane.b32.xlu0 %v3099, 8
      %v3104 = vpop.permute.xlu0 %3103
      %3107 = vrot.lane.b32.xlu0 %v3100, 16
      %v3108 = vpop.permute.xlu0 %3107
      %3111 = vrot.lane.b32.xlu0 %v3101, 24
      %v3112 = vpop.permute.xlu0 %3111
      %v3114 = vsel %vm2463, %v3098, %v3104
      %vm3115 = vcmask 130048
      %v3116 = vsel %vm3115, %v3114, %v3108
      %vm3117 = vcmask 195584
      %v3118 = vsel %vm3117, %v3116, %v3112
      %v3119 = vld [vmem:[%s1501] sm:$0xf]
      %v3120 = vld [vmem:[%s1501 + $0x4] sm:$0xf]
      %v3121 = vld [vmem:[%s1501 + $0x8] sm:$0xf]
      %v3122 = vld [vmem:[%s1501 + $0xc] sm:$0xf]
      %v3123 = vpack.c.bf16 %v3118, %v3118
      %v3124 = vld [vmem:[%s1504] sm:$0x1]
      %v3126 = vlaneseq
      %v3127 = vshrl.u32 %v3126, 7
      %v3128 = vsub.s32 0, %v3127
      %v3129 = vrot.slane %v3124, %v3128
      %v3135 = vunpack.c.l.b16 %v3119
      %v3136 = vunpack.c.l.b16 %v3120
      %v3137 = vunpack.c.l.b16 %v3121
      %v3138 = vunpack.c.l.b16 %v3122
      %v3139 = vpack.c.b16 %v3136, %v3135
      %v3140 = vpack.c.b16 %v3138, %v3137
      %v3144 = vsel %vm1620, %v3123, 0
      %3146 = vmatprep.subr.bf16.mxu0 0
      %3147 = vmatpush1.bf16.msra.mxu0 %v3139
      %3148 = vmatprep.subr.bf16.mxu0 0
      %3149 = vmatpush1.bf16.msra.mxu0 %v3140
      %3150 = vmatprep.subr.bf16.mxu0 0
      %3151 = vmatpush1.bf16.msra.mxu0 0
      %3152 = vmatprep.subr.bf16.mxu0 0
      %3153 = vmatpush1.bf16.msra.mxu0 0
      %3154 = vmatprep.subr.bf16.mxu0 0
      %3155 = vmatpush1.bf16.msra.mxu0 0
      %3156 = vmatprep.subr.bf16.mxu0 0
      %3157 = vmatpush1.bf16.msra.mxu0 0
      %3158 = vmatprep.subr.bf16.mxu0 0
      %3159 = vmatpush1.bf16.msra.mxu0 0
      %3160 = vmatprep.subr.bf16.mxu0 0
      %3161 = vmatpush1.bf16.msra.mxu0 0
      %3162 = vmatprep.subr.bf16.mxu0 0
      %3163 = vmatpush1.bf16.msra.mxu0 0
      %3164 = vmatprep.subr.bf16.mxu0 0
      %3165 = vmatpush1.bf16.msra.mxu0 0
      %3166 = vmatprep.subr.bf16.mxu0 0
      %3167 = vmatpush1.bf16.msra.mxu0 0
      %3168 = vmatprep.subr.bf16.mxu0 0
      %3169 = vmatpush1.bf16.msra.mxu0 0
      %3170 = vmatprep.subr.bf16.mxu0 0
      %3171 = vmatpush1.bf16.msra.mxu0 0
      %3172 = vmatprep.subr.bf16.mxu0 0
      %3173 = vmatpush1.bf16.msra.mxu0 0
      %3174 = vmatprep.subr.bf16.mxu0 0
      %3175 = vmatpush1.bf16.msra.mxu0 0
      %3176 = vmatprep.subr.bf16.mxu0 0
      %3177 = vmatpush1.bf16.msra.mxu0 0
      %3178 = vmatprep.mubr.bf16.mxu0 0
      %3179 = vmatmul.mubr.bf16.gmra.mrb[0].mxu0 %v3144
      %v3180 = vpop.f32.mrb[0].mxu0
      %v3181 = vadd.f32 %v3129, %v3180
      %v3182 = vpop.f32.mrb[0].mxu0
      %v3183 = vpop.f32.mrb[0].mxu0
      %v3184 = vpop.f32.mrb[0].mxu0
      %3185 = vdwg.mxu0
      %v3186 = vadd.f32 %v1593, %v3181
      %v3187 = vld [vmem:[%s1572] sm:$0xf]
      %v3188 = vld [vmem:[%s1576] sm:$0xf]
      %v3189 = vsel %vm1620, %v3186, 0.0
      %3190 = vadd.xlane.f32.xlu0 %v3189
      %v3191 = vpop.xlane.xlu0 %3190
      %v3192 = vrcp.pop 32.0
      %v3193 = vmul.f32 %v3191, %v3192
      %v3194 = vsub.f32 %v3186, %v3193
      %v3195 = vmul.f32 %v3194, %v3194
      %v3196 = vsel %vm1620, %v3195, 0.0
      %3197 = vadd.xlane.f32.xlu0 %v3196
      %v3198 = vpop.xlane.xlu0 %3197
      %v3199 = vmul.f32 %v3198, %v3192
      %v3200 = vadd.f32 %v3199, 1e-05
      %v3201 = vrsqrt.pop %v3200
      %v3202 = vmul.f32 %v3194, %v3201
      %v3203 = vlaneseq
      %v3204 = vshrl.u32 %v3203, 7
      %v3205 = vsub.s32 0, %v3204
      %v3206 = vrot.slane %v3187, %v3205
      %v3207 = vmul.f32 %v3202, %v3206
      %v3208 = vlaneseq
      %v3209 = vshrl.u32 %v3208, 7
      %v3210 = vsub.s32 0, %v3209
      %v3211 = vrot.slane %v3188, %v3210
      %v3212 = vadd.f32 %v3207, %v3211
      %v3213 = vadd.f32 %v3212, %v1594
      %v3214 = vld [vmem:[%s1454] sm:$0xf]
      %v3215 = vld [vmem:[%s1454 + $0x4] sm:$0xf]
      %v3216 = vld [vmem:[%s1454 + $0x8] sm:$0xf]
      %v3217 = vld [vmem:[%s1509] sm:$0xf]
      %v3218 = vld [vmem:[%s1509 + $0x4] sm:$0xf]
      %v3219 = vld [vmem:[%s1509 + $0x8] sm:$0xf]
      %v3220 = vld [vmem:[%s1509 + $0xc] sm:$0xf]
      %v3221 = vld [vmem:[%s1512] sm:$0x1]
      %v3223 = vlaneseq
      %v3224 = vshrl.u32 %v3223, 7
      %v3225 = vsub.s32 0, %v3224
      %v3226 = vrot.slane %v3221, %v3225
      %v3231 = vunpack.c.l.b16 %v3214
      %v3232 = vunpack.c.l.b16 %v3215
      %v3233 = vunpack.c.l.b16 %v3216
      %v3234 = vpack.c.b16 %v3232, %v3231
      %v3235 = vpack.c.b16 %v3233, %v3233
      %v3240 = vunpack.c.l.b16 %v3217
      %v3241 = vunpack.c.l.b16 %v3218
      %v3242 = vunpack.c.l.b16 %v3219
      %v3243 = vunpack.c.l.b16 %v3220
      %v3244 = vpack.c.b16 %v3241, %v3240
      %v3245 = vpack.c.b16 %v3243, %v3242
      %v3249 = vsel %vm1620, %v3234, 0
      %v3252 = vsel %vm1620, %v3235, 0
      %3254 = vmatprep.subr.bf16.mxu0 0
      %3255 = vmatpush1.bf16.msra.mxu0 %v3244
      %3256 = vmatprep.subr.bf16.mxu0 0
      %3257 = vmatpush1.bf16.msra.mxu0 %v3245
      %3258 = vmatprep.subr.bf16.mxu0 0
      %3259 = vmatpush1.bf16.msra.mxu0 0
      %3260 = vmatprep.subr.bf16.mxu0 0
      %3261 = vmatpush1.bf16.msra.mxu0 0
      %3262 = vmatprep.subr.bf16.mxu0 0
      %3263 = vmatpush1.bf16.msra.mxu0 0
      %3264 = vmatprep.subr.bf16.mxu0 0
      %3265 = vmatpush1.bf16.msra.mxu0 0
      %3266 = vmatprep.subr.bf16.mxu0 0
      %3267 = vmatpush1.bf16.msra.mxu0 0
      %3268 = vmatprep.subr.bf16.mxu0 0
      %3269 = vmatpush1.bf16.msra.mxu0 0
      %3270 = vmatprep.subr.bf16.mxu0 0
      %3271 = vmatpush1.bf16.msra.mxu0 0
      %3272 = vmatprep.subr.bf16.mxu0 0
      %3273 = vmatpush1.bf16.msra.mxu0 0
      %3274 = vmatprep.subr.bf16.mxu0 0
      %3275 = vmatpush1.bf16.msra.mxu0 0
      %3276 = vmatprep.subr.bf16.mxu0 0
      %3277 = vmatpush1.bf16.msra.mxu0 0
      %3278 = vmatprep.subr.bf16.mxu0 0
      %3279 = vmatpush1.bf16.msra.mxu0 0
      %3280 = vmatprep.subr.bf16.mxu0 0
      %3281 = vmatpush1.bf16.msra.mxu0 0
      %3282 = vmatprep.subr.bf16.mxu0 0
      %3283 = vmatpush1.bf16.msra.mxu0 0
      %3284 = vmatprep.subr.bf16.mxu0 0
      %3285 = vmatpush1.bf16.msra.mxu0 0
      %3286 = vmatprep.mubr.bf16.mxu0 0
      %3287 = vmatmul.mubr.bf16.gmra.mrb[0].mxu0 %v3249
      %v3288 = vpop.f32.mrb[0].mxu0
      %v3289 = vadd.f32 %v3226, %v3288
      %v3290 = vpop.f32.mrb[0].mxu0
      %v3291 = vpop.f32.mrb[0].mxu0
      %v3292 = vadd.f32 %v3226, %v3291
      %v3293 = vpop.f32.mrb[0].mxu0
      %3294 = vmatprep.mubr.bf16.mxu0 0
      %3295 = vmatmul.mubr.bf16.gmra.mrb[0].mxu0 %v3252
      %v3296 = vpop.f32.mrb[0].mxu0
      %v3297 = vadd.f32 %v3226, %v3296
      %v3298 = vpop.f32.mrb[0].mxu0
      %v3299 = vpop.f32.mrb[0].mxu0
      %v3300 = vpop.f32.mrb[0].mxu0
      %3301 = vdwg.mxu0
      %v3302 = vld [vmem:[%s1464] sm:$0xff]
      %v3303 = vld [vmem:[%s1464 + $0x8] sm:$0xff]
      %v3304 = vld [vmem:[%s1464 + $0x10] sm:$0xff]
      %3306 = vset.pattern.permute.xlu0 0
      %3307 = vperm.xlu0 %3306, %v3302
      %v3308 = vpop.permute.xlu0 %3307
      %3311 = vset.pattern.permute.xlu0 0
      %3312 = vperm.xlu0 %3311, %v3303
      %v3313 = vpop.permute.xlu0 %3312
      %3316 = vset.pattern.permute.xlu0 0
      %3317 = vperm.xlu0 %3316, %v3304
      %v3318 = vpop.permute.xlu0 %3317
      %v3320 = vmul.f32 %v3289, %v3308
      %v3321 = vmul.f32 %v3292, %v3313
      %v3322 = vmul.f32 %v3297, %v3318
      %3326 = vrot.lane.b32.xlu0 %v3320, 120
      %v3327 = vpop.permute.xlu0 %3326
      %3328 = vrot.lane.b32.xlu0 %v3321, 120
      %v3329 = vpop.permute.xlu0 %3328
      %3330 = vrot.lane.b32.xlu0 %v3322, 120
      %v3331 = vpop.permute.xlu0 %3330
      %3335 = vrot.lane.b32.xlu0 %v3320, 112
      %v3336 = vpop.permute.xlu0 %3335
      %3337 = vrot.lane.b32.xlu0 %v3321, 112
      %v3338 = vpop.permute.xlu0 %3337
      %3339 = vrot.lane.b32.xlu0 %v3322, 112
      %v3340 = vpop.permute.xlu0 %3339
      %3344 = vrot.lane.b32.xlu0 %v3320, 104
      %v3345 = vpop.permute.xlu0 %3344
      %3346 = vrot.lane.b32.xlu0 %v3321, 104
      %v3347 = vpop.permute.xlu0 %3346
      %3348 = vrot.lane.b32.xlu0 %v3322, 104
      %v3349 = vpop.permute.xlu0 %3348
      %v3353 = vcombine.low %v3320, %v3336
      %v3354 = vcombine.high %v3320, %v3336
      %v3356 = vunpack.c.l.s4 1983009808
      %v3357 = vunpack.c.0.s8 %v3356
      %v3358 = vlaneseq
      %v3359 = vshrl.u32 %v3358, 7
      %v3360 = vsub.s32 %v3357, %v3359
      %v3361 = vrot.slane %v3353, %v3360
      %v3363 = vunpack.c.l.s4 1983009808
      %v3364 = vunpack.c.0.s8 %v3363
      %v3365 = vlaneseq
      %v3366 = vshrl.u32 %v3365, 7
      %v3367 = vsub.s32 %v3364, %v3366
      %v3368 = vrot.slane %v3354, %v3367
      %v3369 = vcombine.low %v3327, %v3345
      %v3370 = vcombine.high %v3327, %v3345
      %v3372 = vunpack.c.l.s4 1983009808
      %v3373 = vunpack.c.0.s8 %v3372
      %v3374 = vlaneseq
      %v3375 = vshrl.u32 %v3374, 7
      %v3376 = vsub.s32 %v3373, %v3375
      %v3377 = vrot.slane %v3369, %v3376
      %v3379 = vunpack.c.l.s4 1983009808
      %v3380 = vunpack.c.0.s8 %v3379
      %v3381 = vlaneseq
      %v3382 = vshrl.u32 %v3381, 7
      %v3383 = vsub.s32 %v3380, %v3382
      %v3384 = vrot.slane %v3370, %v3383
      %v3385 = vcombine.low %v3361, %v3377
      %v3386 = vcombine.high %v3361, %v3377
      %v3388 = vunpack.c.l.s4 1934713408
      %v3389 = vunpack.c.0.s8 %v3388
      %v3390 = vlaneseq
      %v3391 = vshrl.u32 %v3390, 7
      %v3392 = vsub.s32 %v3389, %v3391
      %v3393 = vrot.slane %v3385, %v3392
      %v3395 = vunpack.c.l.s4 1934713408
      %v3396 = vunpack.c.0.s8 %v3395
      %v3397 = vlaneseq
      %v3398 = vshrl.u32 %v3397, 7
      %v3399 = vsub.s32 %v3396, %v3398
      %v3400 = vrot.slane %v3386, %v3399
      %v3401 = vcombine.low %v3368, %v3384
      %v3402 = vcombine.high %v3368, %v3384
      %v3404 = vunpack.c.l.s4 1934713408
      %v3405 = vunpack.c.0.s8 %v3404
      %v3406 = vlaneseq
      %v3407 = vshrl.u32 %v3406, 7
      %v3408 = vsub.s32 %v3405, %v3407
      %v3409 = vrot.slane %v3401, %v3408
      %v3411 = vunpack.c.l.s4 1934713408
      %v3412 = vunpack.c.0.s8 %v3411
      %v3413 = vlaneseq
      %v3414 = vshrl.u32 %v3413, 7
      %v3415 = vsub.s32 %v3412, %v3414
      %v3416 = vrot.slane %v3402, %v3415
      %v3417 = vcombine.high %v3393, 0.0
      %v3418 = vcombine.high %v3400, 0.0
      %v3419 = vcombine.high %v3409, 0.0
      %v3420 = vcombine.high %v3416, 0.0
      %v3421 = vcombine.low %v3321, %v3338
      %v3422 = vcombine.high %v3321, %v3338
      %v3424 = vunpack.c.l.s4 1983009808
      %v3425 = vunpack.c.0.s8 %v3424
      %v3426 = vlaneseq
      %v3427 = vshrl.u32 %v3426, 7
      %v3428 = vsub.s32 %v3425, %v3427
      %v3429 = vrot.slane %v3421, %v3428
      %v3431 = vunpack.c.l.s4 1983009808
      %v3432 = vunpack.c.0.s8 %v3431
      %v3433 = vlaneseq
      %v3434 = vshrl.u32 %v3433, 7
      %v3435 = vsub.s32 %v3432, %v3434
      %v3436 = vrot.slane %v3422, %v3435
      %v3437 = vcombine.low %v3329, %v3347
      %v3438 = vcombine.high %v3329, %v3347
      %v3440 = vunpack.c.l.s4 1983009808
      %v3441 = vunpack.c.0.s8 %v3440
      %v3442 = vlaneseq
      %v3443 = vshrl.u32 %v3442, 7
      %v3444 = vsub.s32 %v3441, %v3443
      %v3445 = vrot.slane %v3437, %v3444
      %v3447 = vunpack.c.l.s4 1983009808
      %v3448 = vunpack.c.0.s8 %v3447
      %v3449 = vlaneseq
      %v3450 = vshrl.u32 %v3449, 7
      %v3451 = vsub.s32 %v3448, %v3450
      %v3452 = vrot.slane %v3438, %v3451
      %v3453 = vcombine.low %v3429, %v3445
      %v3454 = vcombine.high %v3429, %v3445
      %v3456 = vunpack.c.l.s4 1934713408
      %v3457 = vunpack.c.0.s8 %v3456
      %v3458 = vlaneseq
      %v3459 = vshrl.u32 %v3458, 7
      %v3460 = vsub.s32 %v3457, %v3459
      %v3461 = vrot.slane %v3453, %v3460
      %v3463 = vunpack.c.l.s4 1934713408
      %v3464 = vunpack.c.0.s8 %v3463
      %v3465 = vlaneseq
      %v3466 = vshrl.u32 %v3465, 7
      %v3467 = vsub.s32 %v3464, %v3466
      %v3468 = vrot.slane %v3454, %v3467
      %v3469 = vcombine.low %v3436, %v3452
      %v3470 = vcombine.high %v3436, %v3452
      %v3472 = vunpack.c.l.s4 1934713408
      %v3473 = vunpack.c.0.s8 %v3472
      %v3474 = vlaneseq
      %v3475 = vshrl.u32 %v3474, 7
      %v3476 = vsub.s32 %v3473, %v3475
      %v3477 = vrot.slane %v3469, %v3476
      %v3479 = vunpack.c.l.s4 1934713408
      %v3480 = vunpack.c.0.s8 %v3479
      %v3481 = vlaneseq
      %v3482 = vshrl.u32 %v3481, 7
      %v3483 = vsub.s32 %v3480, %v3482
      %v3484 = vrot.slane %v3470, %v3483
      %v3485 = vcombine.high %v3461, 0.0
      %v3486 = vcombine.high %v3468, 0.0
      %v3487 = vcombine.high %v3477, 0.0
      %v3488 = vcombine.high %v3484, 0.0
      %v3489 = vcombine.low %v3322, %v3340
      %v3490 = vcombine.high %v3322, %v3340
      %v3492 = vunpack.c.l.s4 1983009808
      %v3493 = vunpack.c.0.s8 %v3492
      %v3494 = vlaneseq
      %v3495 = vshrl.u32 %v3494, 7
      %v3496 = vsub.s32 %v3493, %v3495
      %v3497 = vrot.slane %v3489, %v3496
      %v3499 = vunpack.c.l.s4 1983009808
      %v3500 = vunpack.c.0.s8 %v3499
      %v3501 = vlaneseq
      %v3502 = vshrl.u32 %v3501, 7
      %v3503 = vsub.s32 %v3500, %v3502
      %v3504 = vrot.slane %v3490, %v3503
      %v3505 = vcombine.low %v3331, %v3349
      %v3506 = vcombine.high %v3331, %v3349
      %v3508 = vunpack.c.l.s4 1983009808
      %v3509 = vunpack.c.0.s8 %v3508
      %v3510 = vlaneseq
      %v3511 = vshrl.u32 %v3510, 7
      %v3512 = vsub.s32 %v3509, %v3511
      %v3513 = vrot.slane %v3505, %v3512
      %v3515 = vunpack.c.l.s4 1983009808
      %v3516 = vunpack.c.0.s8 %v3515
      %v3517 = vlaneseq
      %v3518 = vshrl.u32 %v3517, 7
      %v3519 = vsub.s32 %v3516, %v3518
      %v3520 = vrot.slane %v3506, %v3519
      %v3521 = vcombine.low %v3497, %v3513
      %v3522 = vcombine.high %v3497, %v3513
      %v3524 = vunpack.c.l.s4 1934713408
      %v3525 = vunpack.c.0.s8 %v3524
      %v3526 = vlaneseq
      %v3527 = vshrl.u32 %v3526, 7
      %v3528 = vsub.s32 %v3525, %v3527
      %v3529 = vrot.slane %v3521, %v3528
      %v3531 = vunpack.c.l.s4 1934713408
      %v3532 = vunpack.c.0.s8 %v3531
      %v3533 = vlaneseq
      %v3534 = vshrl.u32 %v3533, 7
      %v3535 = vsub.s32 %v3532, %v3534
      %v3536 = vrot.slane %v3522, %v3535
      %v3537 = vcombine.low %v3504, %v3520
      %v3538 = vcombine.high %v3504, %v3520
      %v3540 = vunpack.c.l.s4 1934713408
      %v3541 = vunpack.c.0.s8 %v3540
      %v3542 = vlaneseq
      %v3543 = vshrl.u32 %v3542, 7
      %v3544 = vsub.s32 %v3541, %v3543
      %v3545 = vrot.slane %v3537, %v3544
      %v3547 = vunpack.c.l.s4 1934713408
      %v3548 = vunpack.c.0.s8 %v3547
      %v3549 = vlaneseq
      %v3550 = vshrl.u32 %v3549, 7
      %v3551 = vsub.s32 %v3548, %v3550
      %v3552 = vrot.slane %v3538, %v3551
      %v3553 = vcombine.high %v3529, 0.0
      %v3554 = vcombine.high %v3536, 0.0
      %v3555 = vcombine.high %v3545, 0.0
      %v3556 = vcombine.high %v3552, 0.0
      %v3557 = vld [vmem:[%s1517] sm:$0xf]
      %v3558 = vld [vmem:[%s1517 + $0x4] sm:$0xf]
      %v3559 = vld [vmem:[%s1517 + $0x8] sm:$0xf]
      %v3560 = vld [vmem:[%s1517 + $0xc] sm:$0xf]
      %v3561 = vpack.c.bf16 %v3213, %v3213
      %v3562 = vld [vmem:[%s1520] sm:$0x1]
      %v3564 = vlaneseq
      %v3565 = vshrl.u32 %v3564, 7
      %v3566 = vsub.s32 0, %v3565
      %v3567 = vrot.slane %v3562, %v3566
      %v3573 = vunpack.c.l.b16 %v3557
      %v3574 = vunpack.c.l.b16 %v3558
      %v3575 = vunpack.c.l.b16 %v3559
      %v3576 = vunpack.c.l.b16 %v3560
      %v3577 = vpack.c.b16 %v3574, %v3573
      %v3578 = vpack.c.b16 %v3576, %v3575
      %v3582 = vsel %vm1620, %v3561, 0
      %3584 = vmatprep.subr.bf16.mxu0 0
      %3585 = vmatpush1.bf16.msra.mxu0 %v3577
      %3586 = vmatprep.subr.bf16.mxu0 0
      %3587 = vmatpush1.bf16.msra.mxu0 %v3578
      %3588 = vmatprep.subr.bf16.mxu0 0
      %3589 = vmatpush1.bf16.msra.mxu0 0
      %3590 = vmatprep.subr.bf16.mxu0 0
      %3591 = vmatpush1.bf16.msra.mxu0 0
      %3592 = vmatprep.subr.bf16.mxu0 0
      %3593 = vmatpush1.bf16.msra.mxu0 0
      %3594 = vmatprep.subr.bf16.mxu0 0
      %3595 = vmatpush1.bf16.msra.mxu0 0
      %3596 = vmatprep.subr.bf16.mxu0 0
      %3597 = vmatpush1.bf16.msra.mxu0 0
      %3598 = vmatprep.subr.bf16.mxu0 0
      %3599 = vmatpush1.bf16.msra.mxu0 0
      %3600 = vmatprep.subr.bf16.mxu0 0
      %3601 = vmatpush1.bf16.msra.mxu0 0
      %3602 = vmatprep.subr.bf16.mxu0 0
      %3603 = vmatpush1.bf16.msra.mxu0 0
      %3604 = vmatprep.subr.bf16.mxu0 0
      %3605 = vmatpush1.bf16.msra.mxu0 0
      %3606 = vmatprep.subr.bf16.mxu0 0
      %3607 = vmatpush1.bf16.msra.mxu0 0
      %3608 = vmatprep.subr.bf16.mxu0 0
      %3609 = vmatpush1.bf16.msra.mxu0 0
      %3610 = vmatprep.subr.bf16.mxu0 0
      %3611 = vmatpush1.bf16.msra.mxu0 0
      %3612 = vmatprep.subr.bf16.mxu0 0
      %3613 = vmatpush1.bf16.msra.mxu0 0
      %3614 = vmatprep.subr.bf16.mxu0 0
      %3615 = vmatpush1.bf16.msra.mxu0 0
      %3616 = vmatprep.mubr.bf16.mxu0 0
      %3617 = vmatmul.mubr.bf16.gmra.mrb[0].mxu0 %v3582
      %v3618 = vpop.f32.mrb[0].mxu0
      %v3619 = vadd.f32 %v3567, %v3618
      %v3620 = vpop.f32.mrb[0].mxu0
      %v3621 = vpop.f32.mrb[0].mxu0
      %v3622 = vpop.f32.mrb[0].mxu0
      %3623 = vdwg.mxu0
      %3625 = vrot.lane.b32.xlu0 %v3619, 124
      %v3626 = vpop.permute.xlu0 %3625
      %3628 = vrot.lane.b32.xlu0 %v3619, 120
      %v3629 = vpop.permute.xlu0 %3628
      %3631 = vrot.lane.b32.xlu0 %v3619, 116
      %v3632 = vpop.permute.xlu0 %3631
      %v3634 = vcombine.low %v3619, %v3629
      %v3635 = vcombine.high %v3619, %v3629
      %v3637 = vunpack.c.l.s4 1983009808
      %v3638 = vunpack.c.0.s8 %v3637
      %v3639 = vlaneseq
      %v3640 = vshrl.u32 %v3639, 7
      %v3641 = vsub.s32 %v3638, %v3640
      %v3642 = vrot.slane %v3634, %v3641
      %v3644 = vunpack.c.l.s4 1983009808
      %v3645 = vunpack.c.0.s8 %v3644
      %v3646 = vlaneseq
      %v3647 = vshrl.u32 %v3646, 7
      %v3648 = vsub.s32 %v3645, %v3647
      %v3649 = vrot.slane %v3635, %v3648
      %v3650 = vcombine.low %v3626, %v3632
      %v3651 = vcombine.high %v3626, %v3632
      %v3653 = vunpack.c.l.s4 1983009808
      %v3654 = vunpack.c.0.s8 %v3653
      %v3655 = vlaneseq
      %v3656 = vshrl.u32 %v3655, 7
      %v3657 = vsub.s32 %v3654, %v3656
      %v3658 = vrot.slane %v3650, %v3657
      %v3660 = vunpack.c.l.s4 1983009808
      %v3661 = vunpack.c.0.s8 %v3660
      %v3662 = vlaneseq
      %v3663 = vshrl.u32 %v3662, 7
      %v3664 = vsub.s32 %v3661, %v3663
      %v3665 = vrot.slane %v3651, %v3664
      %v3666 = vcombine.low %v3642, %v3658
      %v3667 = vcombine.high %v3642, %v3658
      %v3669 = vunpack.c.l.s4 1934713408
      %v3670 = vunpack.c.0.s8 %v3669
      %v3671 = vlaneseq
      %v3672 = vshrl.u32 %v3671, 7
      %v3673 = vsub.s32 %v3670, %v3672
      %v3674 = vrot.slane %v3666, %v3673
      %v3676 = vunpack.c.l.s4 1934713408
      %v3677 = vunpack.c.0.s8 %v3676
      %v3678 = vlaneseq
      %v3679 = vshrl.u32 %v3678, 7
      %v3680 = vsub.s32 %v3677, %v3679
      %v3681 = vrot.slane %v3667, %v3680
      %v3682 = vcombine.low %v3649, %v3665
      %v3683 = vcombine.high %v3649, %v3665
      %v3685 = vunpack.c.l.s4 1934713408
      %v3686 = vunpack.c.0.s8 %v3685
      %v3687 = vlaneseq
      %v3688 = vshrl.u32 %v3687, 7
      %v3689 = vsub.s32 %v3686, %v3688
      %v3690 = vrot.slane %v3682, %v3689
      %v3692 = vunpack.c.l.s4 1934713408
      %v3693 = vunpack.c.0.s8 %v3692
      %v3694 = vlaneseq
      %v3695 = vshrl.u32 %v3694, 7
      %v3696 = vsub.s32 %v3693, %v3695
      %v3697 = vrot.slane %v3683, %v3696
      %v3698 = vcombine.high %v3674, 0.0
      %v3699 = vcombine.high %v3681, 0.0
      %v3700 = vcombine.high %v3690, 0.0
      %v3701 = vcombine.high %v3697, 0.0
      %3702 = vrot.lane.b32.xlu0 %v3619, 112
      %v3703 = vpop.permute.xlu0 %3702
      %3704 = vrot.lane.b32.xlu0 %v3626, 112
      %v3705 = vpop.permute.xlu0 %3704
      %3706 = vrot.lane.b32.xlu0 %v3629, 112
      %v3707 = vpop.permute.xlu0 %3706
      %3708 = vrot.lane.b32.xlu0 %v3632, 112
      %v3709 = vpop.permute.xlu0 %3708
      %v3714 = vcombine.low %v3703, %v3707
      %v3715 = vcombine.high %v3703, %v3707
      %v3717 = vunpack.c.l.s4 1983009808
      %v3718 = vunpack.c.0.s8 %v3717
      %v3719 = vlaneseq
      %v3720 = vshrl.u32 %v3719, 7
      %v3721 = vsub.s32 %v3718, %v3720
      %v3722 = vrot.slane %v3714, %v3721
      %v3724 = vunpack.c.l.s4 1983009808
      %v3725 = vunpack.c.0.s8 %v3724
      %v3726 = vlaneseq
      %v3727 = vshrl.u32 %v3726, 7
      %v3728 = vsub.s32 %v3725, %v3727
      %v3729 = vrot.slane %v3715, %v3728
      %v3730 = vcombine.low %v3705, %v3709
      %v3731 = vcombine.high %v3705, %v3709
      %v3733 = vunpack.c.l.s4 1983009808
      %v3734 = vunpack.c.0.s8 %v3733
      %v3735 = vlaneseq
      %v3736 = vshrl.u32 %v3735, 7
      %v3737 = vsub.s32 %v3734, %v3736
      %v3738 = vrot.slane %v3730, %v3737
      %v3740 = vunpack.c.l.s4 1983009808
      %v3741 = vunpack.c.0.s8 %v3740
      %v3742 = vlaneseq
      %v3743 = vshrl.u32 %v3742, 7
      %v3744 = vsub.s32 %v3741, %v3743
      %v3745 = vrot.slane %v3731, %v3744
      %v3746 = vcombine.low %v3722, %v3738
      %v3747 = vcombine.high %v3722, %v3738
      %v3749 = vunpack.c.l.s4 1934713408
      %v3750 = vunpack.c.0.s8 %v3749
      %v3751 = vlaneseq
      %v3752 = vshrl.u32 %v3751, 7
      %v3753 = vsub.s32 %v3750, %v3752
      %v3754 = vrot.slane %v3746, %v3753
      %v3756 = vunpack.c.l.s4 1934713408
      %v3757 = vunpack.c.0.s8 %v3756
      %v3758 = vlaneseq
      %v3759 = vshrl.u32 %v3758, 7
      %v3760 = vsub.s32 %v3757, %v3759
      %v3761 = vrot.slane %v3747, %v3760
      %v3762 = vcombine.low %v3729, %v3745
      %v3763 = vcombine.high %v3729, %v3745
      %v3765 = vunpack.c.l.s4 1934713408
      %v3766 = vunpack.c.0.s8 %v3765
      %v3767 = vlaneseq
      %v3768 = vshrl.u32 %v3767, 7
      %v3769 = vsub.s32 %v3766, %v3768
      %v3770 = vrot.slane %v3762, %v3769
      %v3772 = vunpack.c.l.s4 1934713408
      %v3773 = vunpack.c.0.s8 %v3772
      %v3774 = vlaneseq
      %v3775 = vshrl.u32 %v3774, 7
      %v3776 = vsub.s32 %v3773, %v3775
      %v3777 = vrot.slane %v3763, %v3776
      %v3778 = vcombine.high %v3754, 0.0
      %v3779 = vcombine.high %v3761, 0.0
      %v3780 = vcombine.high %v3770, 0.0
      %v3781 = vcombine.high %v3777, 0.0
      %vm3782 = vcmask 27648
      %v3783 = vsel %vm3782, %v3754, -inf
      %3784 = vmax.xlane.f32.xlu0 %v3783
      %v3785 = vpop.xlane.xlu0 %3784
      %v3786 = vsel %vm3782, %v3778, -inf
      %3787 = vmax.xlane.f32.xlu0 %v3786
      %v3788 = vpop.xlane.xlu0 %3787
      %v3789 = vsel %vm3782, %v3761, -inf
      %3790 = vmax.xlane.f32.xlu0 %v3789
      %v3791 = vpop.xlane.xlu0 %3790
      %v3792 = vsel %vm3782, %v3779, -inf
      %3793 = vmax.xlane.f32.xlu0 %v3792
      %v3794 = vpop.xlane.xlu0 %3793
      %v3795 = vsel %vm3782, %v3770, -inf
      %3796 = vmax.xlane.f32.xlu0 %v3795
      %v3797 = vpop.xlane.xlu0 %3796
      %v3798 = vsel %vm3782, %v3780, -inf
      %3799 = vmax.xlane.f32.xlu0 %v3798
      %v3800 = vpop.xlane.xlu0 %3799
      %v3801 = vsel %vm3782, %v3777, -inf
      %3802 = vmax.xlane.f32.xlu0 %v3801
      %v3803 = vpop.xlane.xlu0 %3802
      %v3804 = vsel %vm3782, %v3781, -inf
      %3805 = vmax.xlane.f32.xlu0 %v3804
      %v3806 = vpop.xlane.xlu0 %3805
      %v3807 = vsub.f32 %v3754, %v3785
      %v3808 = vsub.f32 %v3778, %v3788
      %v3809 = vsub.f32 %v3761, %v3791
      %v3810 = vsub.f32 %v3779, %v3794
      %v3811 = vsub.f32 %v3770, %v3797
      %v3812 = vsub.f32 %v3780, %v3800
      %v3813 = vsub.f32 %v3777, %v3803
      %v3814 = vsub.f32 %v3781, %v3806
      %v3815 = vmul.f32 %v3807, 1.442695
      %v3816 = vpow.pop %v3815
      %v3817 = vmul.f32 %v3808, 1.442695
      %v3818 = vpow.pop %v3817
      %v3819 = vmul.f32 %v3809, 1.442695
      %v3820 = vpow.pop %v3819
      %v3821 = vmul.f32 %v3810, 1.442695
      %v3822 = vpow.pop %v3821
      %v3823 = vmul.f32 %v3811, 1.442695
      %v3824 = vpow.pop %v3823
      %v3825 = vmul.f32 %v3812, 1.442695
      %v3826 = vpow.pop %v3825
      %v3827 = vmul.f32 %v3813, 1.442695
      %v3828 = vpow.pop %v3827
      %v3829 = vmul.f32 %v3814, 1.442695
      %v3830 = vpow.pop %v3829
      %v3831 = vsel %vm3782, %v3816, 0.0
      %3832 = vadd.xlane.f32.xlu0 %v3831
      %v3833 = vpop.xlane.xlu0 %3832
      %v3834 = vsel %vm3782, %v3818, 0.0
      %3835 = vadd.xlane.f32.xlu0 %v3834
      %v3836 = vpop.xlane.xlu0 %3835
      %v3837 = vsel %vm3782, %v3820, 0.0
      %3838 = vadd.xlane.f32.xlu0 %v3837
      %v3839 = vpop.xlane.xlu0 %3838
      %v3840 = vsel %vm3782, %v3822, 0.0
      %3841 = vadd.xlane.f32.xlu0 %v3840
      %v3842 = vpop.xlane.xlu0 %3841
      %v3843 = vsel %vm3782, %v3824, 0.0
      %3844 = vadd.xlane.f32.xlu0 %v3843
      %v3845 = vpop.xlane.xlu0 %3844
      %v3846 = vsel %vm3782, %v3826, 0.0
      %3847 = vadd.xlane.f32.xlu0 %v3846
      %v3848 = vpop.xlane.xlu0 %3847
      %v3849 = vsel %vm3782, %v3828, 0.0
      %3850 = vadd.xlane.f32.xlu0 %v3849
      %v3851 = vpop.xlane.xlu0 %3850
      %v3852 = vsel %vm3782, %v3830, 0.0
      %3853 = vadd.xlane.f32.xlu0 %v3852
      %v3854 = vpop.xlane.xlu0 %3853
      %v3855 = vrcp.pop %v3833
      %v3856 = vrcp.pop %v3836
      %v3857 = vrcp.pop %v3839
      %v3858 = vrcp.pop %v3842
      %v3859 = vrcp.pop %v3845
      %v3860 = vrcp.pop %v3848
      %v3861 = vrcp.pop %v3851
      %v3862 = vrcp.pop %v3854
      %v3863 = vmul.f32 %v3816, %v3855
      %v3864 = vmul.f32 %v3818, %v3856
      %v3865 = vmul.f32 %v3820, %v3857
      %v3866 = vmul.f32 %v3822, %v3858
      %v3867 = vmul.f32 %v3824, %v3859
      %v3868 = vmul.f32 %v3826, %v3860
      %v3869 = vmul.f32 %v3828, %v3861
      %v3870 = vmul.f32 %v3830, %v3862
      %v3871 = vld [vmem:[%s1476] sm:$0xff]
      %v3873 = vcombine.high %v3871, %v3871
      %v3875 = vunpack.c.l.s4 1966171168
      %v3876 = vunpack.c.0.s8 %v3875
      %v3877 = vlaneseq
      %v3878 = vshrl.u32 %v3877, 7
      %v3879 = vsub.s32 %v3876, %v3878
      %v3880 = vrot.slane %v3871, %v3879
      %v3882 = vunpack.c.l.s4 1966171168
      %v3883 = vunpack.c.0.s8 %v3882
      %v3884 = vlaneseq
      %v3885 = vshrl.u32 %v3884, 7
      %v3886 = vsub.s32 %v3883, %v3885
      %v3887 = vrot.slane %v3873, %v3886
      %v3888 = vcombine.high %v3880, %v3880
      %v3889 = vcombine.high %v3887, %v3887
      %v3891 = vunpack.c.l.s4 1966171168
      %v3892 = vunpack.c.0.s8 %v3891
      %v3893 = vlaneseq
      %v3894 = vshrl.u32 %v3893, 7
      %v3895 = vsub.s32 %v3892, %v3894
      %v3896 = vrot.slane %v3880, %v3895
      %v3898 = vunpack.c.l.s4 1966171168
      %v3899 = vunpack.c.0.s8 %v3898
      %v3900 = vlaneseq
      %v3901 = vshrl.u32 %v3900, 7
      %v3902 = vsub.s32 %v3899, %v3901
      %v3903 = vrot.slane %v3887, %v3902
      %v3905 = vunpack.c.l.s4 1966171168
      %v3906 = vunpack.c.0.s8 %v3905
      %v3907 = vlaneseq
      %v3908 = vshrl.u32 %v3907, 7
      %v3909 = vsub.s32 %v3906, %v3908
      %v3910 = vrot.slane %v3888, %v3909
      %v3912 = vunpack.c.l.s4 1966171168
      %v3913 = vunpack.c.0.s8 %v3912
      %v3914 = vlaneseq
      %v3915 = vshrl.u32 %v3914, 7
      %v3916 = vsub.s32 %v3913, %v3915
      %v3917 = vrot.slane %v3889, %v3916
      %v3918 = vcombine.high %v3896, %v3896
      %v3919 = vcombine.high %v3903, %v3903
      %v3920 = vcombine.high %v3910, %v3910
      %v3921 = vcombine.high %v3917, %v3917
      %v3930 = vmul.f32 %v3896, 0.25
      %v3931 = vmul.f32 %v3910, 0.25
      %v3932 = vmul.f32 %v3918, 0.25
      %v3933 = vmul.f32 %v3920, 0.25
      %v3934 = vmul.f32 %v3903, 0.25
      %v3935 = vmul.f32 %v3917, 0.25
      %v3936 = vmul.f32 %v3919, 0.25
      %v3937 = vmul.f32 %v3921, 0.25
      %v3946 = vlaneseq
      %v3947 = vshrl.u32 %v3946, 7
      %v3948 = vsub.s32 0, %v3947
      %v3949 = vrot.slane %v3930, %v3948
      %v3950 = vlaneseq
      %v3951 = vshrl.u32 %v3950, 7
      %v3952 = vsub.s32 0, %v3951
      %v3953 = vrot.slane %v3931, %v3952
      %v3954 = vlaneseq
      %v3955 = vshrl.u32 %v3954, 7
      %v3956 = vsub.s32 0, %v3955
      %v3957 = vrot.slane %v3932, %v3956
      %v3958 = vlaneseq
      %v3959 = vshrl.u32 %v3958, 7
      %v3960 = vsub.s32 0, %v3959
      %v3961 = vrot.slane %v3933, %v3960
      %v3962 = vlaneseq
      %v3963 = vshrl.u32 %v3962, 7
      %v3964 = vsub.s32 0, %v3963
      %v3965 = vrot.slane %v3934, %v3964
      %v3966 = vlaneseq
      %v3967 = vshrl.u32 %v3966, 7
      %v3968 = vsub.s32 0, %v3967
      %v3969 = vrot.slane %v3935, %v3968
      %v3970 = vlaneseq
      %v3971 = vshrl.u32 %v3970, 7
      %v3972 = vsub.s32 0, %v3971
      %v3973 = vrot.slane %v3936, %v3972
      %v3974 = vlaneseq
      %v3975 = vshrl.u32 %v3974, 7
      %v3976 = vsub.s32 0, %v3975
      %v3977 = vrot.slane %v3937, %v3976
      %3978 = vset.pattern.permute.xlu0 2
      %3979 = vperm.xlu0 %3978, %v3949
      %v3980 = vpop.permute.xlu0 %3979
      %3982 = vset.pattern.permute.xlu0 2
      %3983 = vperm.xlu0 %3982, %v3953
      %v3984 = vpop.permute.xlu0 %3983
      %3986 = vset.pattern.permute.xlu0 2
      %3987 = vperm.xlu0 %3986, %v3957
      %v3988 = vpop.permute.xlu0 %3987
      %3990 = vset.pattern.permute.xlu0 2
      %3991 = vperm.xlu0 %3990, %v3961
      %v3992 = vpop.permute.xlu0 %3991
      %3994 = vset.pattern.permute.xlu0 2
      %3995 = vperm.xlu0 %3994, %v3965
      %v3996 = vpop.permute.xlu0 %3995
      %3998 = vset.pattern.permute.xlu0 2
      %3999 = vperm.xlu0 %3998, %v3969
      %v4000 = vpop.permute.xlu0 %3999
      %4002 = vset.pattern.permute.xlu0 2
      %4003 = vperm.xlu0 %4002, %v3973
      %v4004 = vpop.permute.xlu0 %4003
      %4006 = vset.pattern.permute.xlu0 2
      %4007 = vperm.xlu0 %4006, %v3977
      %v4008 = vpop.permute.xlu0 %4007
      %v4010 = vmul.f32 %v3674, %v3980
      %v4011 = vmul.f32 %v3698, %v3984
      %v4012 = vmul.f32 %v3681, %v3988
      %v4013 = vmul.f32 %v3699, %v3992
      %v4014 = vmul.f32 %v3690, %v3996
      %v4015 = vmul.f32 %v3700, %v4000
      %v4016 = vmul.f32 %v3697, %v4004
      %v4017 = vmul.f32 %v3701, %v4008
      %v4018 = vlaneseq
      %v4019 = vshrl.u32 %v4018, 7
      %v4020 = vsub.s32 0, %v4019
      %v4021 = vrot.slane %v3896, %v4020
      %v4022 = vlaneseq
      %v4023 = vshrl.u32 %v4022, 7
      %v4024 = vsub.s32 0, %v4023
      %v4025 = vrot.slane %v3910, %v4024
      %v4026 = vlaneseq
      %v4027 = vshrl.u32 %v4026, 7
      %v4028 = vsub.s32 0, %v4027
      %v4029 = vrot.slane %v3918, %v4028
      %v4030 = vlaneseq
      %v4031 = vshrl.u32 %v4030, 7
      %v4032 = vsub.s32 0, %v4031
      %v4033 = vrot.slane %v3920, %v4032
      %v4034 = vlaneseq
      %v4035 = vshrl.u32 %v4034, 7
      %v4036 = vsub.s32 0, %v4035
      %v4037 = vrot.slane %v3903, %v4036
      %v4038 = vlaneseq
      %v4039 = vshrl.u32 %v4038, 7
      %v4040 = vsub.s32 0, %v4039
      %v4041 = vrot.slane %v3917, %v4040
      %v4042 = vlaneseq
      %v4043 = vshrl.u32 %v4042, 7
      %v4044 = vsub.s32 0, %v4043
      %v4045 = vrot.slane %v3919, %v4044
      %v4046 = vlaneseq
      %v4047 = vshrl.u32 %v4046, 7
      %v4048 = vsub.s32 0, %v4047
      %v4049 = vrot.slane %v3921, %v4048
      %4050 = vset.pattern.permute.xlu0 0
      %4051 = vperm.xlu0 %4050, %v4021
      %v4052 = vpop.permute.xlu0 %4051
      %4054 = vset.pattern.permute.xlu0 0
      %4055 = vperm.xlu0 %4054, %v4025
      %v4056 = vpop.permute.xlu0 %4055
      %4058 = vset.pattern.permute.xlu0 0
      %4059 = vperm.xlu0 %4058, %v4029
      %v4060 = vpop.permute.xlu0 %4059
      %4062 = vset.pattern.permute.xlu0 0
      %4063 = vperm.xlu0 %4062, %v4033
      %v4064 = vpop.permute.xlu0 %4063
      %4066 = vset.pattern.permute.xlu0 0
      %4067 = vperm.xlu0 %4066, %v4037
      %v4068 = vpop.permute.xlu0 %4067
      %4070 = vset.pattern.permute.xlu0 0
      %4071 = vperm.xlu0 %4070, %v4041
      %v4072 = vpop.permute.xlu0 %4071
      %4074 = vset.pattern.permute.xlu0 0
      %4075 = vperm.xlu0 %4074, %v4045
      %v4076 = vpop.permute.xlu0 %4075
      %4078 = vset.pattern.permute.xlu0 0
      %4079 = vperm.xlu0 %4078, %v4049
      %v4080 = vpop.permute.xlu0 %4079
      %v4082 = vadd.f32 %v4052, %v4010
      %v4083 = vadd.f32 %v4056, %v4011
      %v4084 = vadd.f32 %v4060, %v4012
      %v4085 = vadd.f32 %v4064, %v4013
      %v4086 = vadd.f32 %v4068, %v4014
      %v4087 = vadd.f32 %v4072, %v4015
      %v4088 = vadd.f32 %v4076, %v4016
      %v4089 = vadd.f32 %v4080, %v4017
      %v4090 = vmul.f32 %v4082, 16.0
      %v4091 = vmul.f32 %v4083, 16.0
      %v4092 = vmul.f32 %v4084, 16.0
      %v4093 = vmul.f32 %v4085, 16.0
      %v4094 = vmul.f32 %v4086, 16.0
      %v4095 = vmul.f32 %v4087, 16.0
      %v4096 = vmul.f32 %v4088, 16.0
      %v4097 = vmul.f32 %v4089, 16.0
      %v4098 = vsub.f32 %v4090, 0.5
      %v4099 = vsub.f32 %v4091, 0.5
      %v4100 = vsub.f32 %v4092, 0.5
      %v4101 = vsub.f32 %v4093, 0.5
      %v4102 = vsub.f32 %v4094, 0.5
      %v4103 = vsub.f32 %v4095, 0.5
      %v4104 = vsub.f32 %v4096, 0.5
      %v4105 = vsub.f32 %v4097, 0.5
      %v4106 = vlaneseq
      %v4107 = vand.u32 %v4106, 127
      %v4108 = vcvt.s32.f32 %v4107
      %4110 = vset.pattern.permute.xlu0 0
      %4111 = vperm.xlu0 %4110, %v4098
      %v4112 = vpop.permute.xlu0 %4111
      %4115 = vset.pattern.permute.xlu0 0
      %4116 = vperm.xlu0 %4115, %v4099
      %v4117 = vpop.permute.xlu0 %4116
      %4120 = vset.pattern.permute.xlu0 0
      %4121 = vperm.xlu0 %4120, %v4100
      %v4122 = vpop.permute.xlu0 %4121
      %4125 = vset.pattern.permute.xlu0 0
      %4126 = vperm.xlu0 %4125, %v4101
      %v4127 = vpop.permute.xlu0 %4126
      %4130 = vset.pattern.permute.xlu0 0
      %4131 = vperm.xlu0 %4130, %v4102
      %v4132 = vpop.permute.xlu0 %4131
      %4135 = vset.pattern.permute.xlu0 0
      %4136 = vperm.xlu0 %4135, %v4103
      %v4137 = vpop.permute.xlu0 %4136
      %4140 = vset.pattern.permute.xlu0 0
      %4141 = vperm.xlu0 %4140, %v4104
      %v4142 = vpop.permute.xlu0 %4141
      %4145 = vset.pattern.permute.xlu0 0
      %4146 = vperm.xlu0 %4145, %v4105
      %v4147 = vpop.permute.xlu0 %4146
      %v4149 = vsub.f32 %v4108, %v4112
      %v4150 = vsub.f32 %v4108, %v4117
      %v4151 = vsub.f32 %v4108, %v4122
      %v4152 = vsub.f32 %v4108, %v4127
      %v4153 = vsub.f32 %v4108, %v4132
      %v4154 = vsub.f32 %v4108, %v4137
      %v4155 = vsub.f32 %v4108, %v4142
      %v4156 = vsub.f32 %v4108, %v4147
      %v4157 = vand.u32 2147483647, %v4149
      %v4158 = vand.u32 2147483647, %v4150
      %v4159 = vand.u32 2147483647, %v4151
      %v4160 = vand.u32 2147483647, %v4152
      %v4161 = vand.u32 2147483647, %v4153
      %v4162 = vand.u32 2147483647, %v4154
      %v4163 = vand.u32 2147483647, %v4155
      %v4164 = vand.u32 2147483647, %v4156
      %v4165 = vsub.f32 1.0, %v4157
      %v4166 = vsub.f32 1.0, %v4158
      %v4167 = vsub.f32 1.0, %v4159
      %v4168 = vsub.f32 1.0, %v4160
      %v4169 = vsub.f32 1.0, %v4161
      %v4170 = vsub.f32 1.0, %v4162
      %v4171 = vsub.f32 1.0, %v4163
      %v4172 = vsub.f32 1.0, %v4164
      %v4173 = vmax.f32 %v4165, 0.0
      %v4174 = vmax.f32 %v4166, 0.0
      %v4175 = vmax.f32 %v4167, 0.0
      %v4176 = vmax.f32 %v4168, 0.0
      %v4177 = vmax.f32 %v4169, 0.0
      %v4178 = vmax.f32 %v4170, 0.0
      %v4179 = vmax.f32 %v4171, 0.0
      %v4180 = vmax.f32 %v4172, 0.0
      %4182 = vset.pattern.permute.xlu0 0
      %4183 = vperm.xlu0 %4182, %v3863
      %v4184 = vpop.permute.xlu0 %4183
      %4187 = vset.pattern.permute.xlu0 0
      %4188 = vperm.xlu0 %4187, %v3864
      %v4189 = vpop.permute.xlu0 %4188
      %4192 = vset.pattern.permute.xlu0 0
      %4193 = vperm.xlu0 %4192, %v3865
      %v4194 = vpop.permute.xlu0 %4193
      %4197 = vset.pattern.permute.xlu0 0
      %4198 = vperm.xlu0 %4197, %v3866
      %v4199 = vpop.permute.xlu0 %4198
      %4202 = vset.pattern.permute.xlu0 0
      %4203 = vperm.xlu0 %4202, %v3867
      %v4204 = vpop.permute.xlu0 %4203
      %4207 = vset.pattern.permute.xlu0 0
      %4208 = vperm.xlu0 %4207, %v3868
      %v4209 = vpop.permute.xlu0 %4208
      %4212 = vset.pattern.permute.xlu0 0
      %4213 = vperm.xlu0 %4212, %v3869
      %v4214 = vpop.permute.xlu0 %4213
      %4217 = vset.pattern.permute.xlu0 0
      %4218 = vperm.xlu0 %4217, %v3870
      %v4219 = vpop.permute.xlu0 %4218
      %v4221 = vmul.f32 %v4184, %v4173
      %v4222 = vmul.f32 %v4189, %v4174
      %v4223 = vmul.f32 %v4194, %v4175
      %v4224 = vmul.f32 %v4199, %v4176
      %v4225 = vmul.f32 %v4204, %v4177
      %v4226 = vmul.f32 %v4209, %v4178
      %v4227 = vmul.f32 %v4214, %v4179
      %v4228 = vmul.f32 %v4219, %v4180
      %v4229 = vadd.f32 %v4221, 0.0
      %v4230 = vadd.f32 %v4222, 0.0
      %v4231 = vadd.f32 %v4223, 0.0
      %v4232 = vadd.f32 %v4224, 0.0
      %v4233 = vadd.f32 %v4225, 0.0
      %v4234 = vadd.f32 %v4226, 0.0
      %v4235 = vadd.f32 %v4227, 0.0
      %v4236 = vadd.f32 %v4228, 0.0
      %4237 = vset.pattern.permute.xlu0 1
      %4238 = vperm.xlu0 %4237, %v4098
      %v4239 = vpop.permute.xlu0 %4238
      %4241 = vset.pattern.permute.xlu0 1
      %4242 = vperm.xlu0 %4241, %v4099
      %v4243 = vpop.permute.xlu0 %4242
      %4245 = vset.pattern.permute.xlu0 1
      %4246 = vperm.xlu0 %4245, %v4100
      %v4247 = vpop.permute.xlu0 %4246
      %4249 = vset.pattern.permute.xlu0 1
      %4250 = vperm.xlu0 %4249, %v4101
      %v4251 = vpop.permute.xlu0 %4250
      %4253 = vset.pattern.permute.xlu0 1
      %4254 = vperm.xlu0 %4253, %v4102
      %v4255 = vpop.permute.xlu0 %4254
      %4257 = vset.pattern.permute.xlu0 1
      %4258 = vperm.xlu0 %4257, %v4103
      %v4259 = vpop.permute.xlu0 %4258
      %4261 = vset.pattern.permute.xlu0 1
      %4262 = vperm.xlu0 %4261, %v4104
      %v4263 = vpop.permute.xlu0 %4262
      %4265 = vset.pattern.permute.xlu0 1
      %4266 = vperm.xlu0 %4265, %v4105
      %v4267 = vpop.permute.xlu0 %4266
      %v4269 = vsub.f32 %v4108, %v4239
      %v4270 = vsub.f32 %v4108, %v4243
      %v4271 = vsub.f32 %v4108, %v4247
      %v4272 = vsub.f32 %v4108, %v4251
      %v4273 = vsub.f32 %v4108, %v4255
      %v4274 = vsub.f32 %v4108, %v4259
      %v4275 = vsub.f32 %v4108, %v4263
      %v4276 = vsub.f32 %v4108, %v4267
      %v4277 = vand.u32 2147483647, %v4269
      %v4278 = vand.u32 2147483647, %v4270
      %v4279 = vand.u32 2147483647, %v4271
      %v4280 = vand.u32 2147483647, %v4272
      %v4281 = vand.u32 2147483647, %v4273
      %v4282 = vand.u32 2147483647, %v4274
      %v4283 = vand.u32 2147483647, %v4275
      %v4284 = vand.u32 2147483647, %v4276
      %v4285 = vsub.f32 1.0, %v4277
      %v4286 = vsub.f32 1.0, %v4278
      %v4287 = vsub.f32 1.0, %v4279
      %v4288 = vsub.f32 1.0, %v4280
      %v4289 = vsub.f32 1.0, %v4281
      %v4290 = vsub.f32 1.0, %v4282
      %v4291 = vsub.f32 1.0, %v4283
      %v4292 = vsub.f32 1.0, %v4284
      %v4293 = vmax.f32 %v4285, 0.0
      %v4294 = vmax.f32 %v4286, 0.0
      %v4295 = vmax.f32 %v4287, 0.0
      %v4296 = vmax.f32 %v4288, 0.0
      %v4297 = vmax.f32 %v4289, 0.0
      %v4298 = vmax.f32 %v4290, 0.0
      %v4299 = vmax.f32 %v4291, 0.0
      %v4300 = vmax.f32 %v4292, 0.0
      %4301 = vset.pattern.permute.xlu0 1
      %4302 = vperm.xlu0 %4301, %v3863
      %v4303 = vpop.permute.xlu0 %4302
      %4305 = vset.pattern.permute.xlu0 1
      %4306 = vperm.xlu0 %4305, %v3864
      %v4307 = vpop.permute.xlu0 %4306
      %4309 = vset.pattern.permute.xlu0 1
      %4310 = vperm.xlu0 %4309, %v3865
      %v4311 = vpop.permute.xlu0 %4310
      %4313 = vset.pattern.permute.xlu0 1
      %4314 = vperm.xlu0 %4313, %v3866
      %v4315 = vpop.permute.xlu0 %4314
      %4317 = vset.pattern.permute.xlu0 1
      %4318 = vperm.xlu0 %4317, %v3867
      %v4319 = vpop.permute.xlu0 %4318
      %4321 = vset.pattern.permute.xlu0 1
      %4322 = vperm.xlu0 %4321, %v3868
      %v4323 = vpop.permute.xlu0 %4322
      %4325 = vset.pattern.permute.xlu0 1
      %4326 = vperm.xlu0 %4325, %v3869
      %v4327 = vpop.permute.xlu0 %4326
      %4329 = vset.pattern.permute.xlu0 1
      %4330 = vperm.xlu0 %4329, %v3870
      %v4331 = vpop.permute.xlu0 %4330
      %v4333 = vmul.f32 %v4303, %v4293
      %v4334 = vmul.f32 %v4307, %v4294
      %v4335 = vmul.f32 %v4311, %v4295
      %v4336 = vmul.f32 %v4315, %v4296
      %v4337 = vmul.f32 %v4319, %v4297
      %v4338 = vmul.f32 %v4323, %v4298
      %v4339 = vmul.f32 %v4327, %v4299
      %v4340 = vmul.f32 %v4331, %v4300
      %v4341 = vadd.f32 %v4229, %v4333
      %v4342 = vadd.f32 %v4230, %v4334
      %v4343 = vadd.f32 %v4231, %v4335
      %v4344 = vadd.f32 %v4232, %v4336
      %v4345 = vadd.f32 %v4233, %v4337
      %v4346 = vadd.f32 %v4234, %v4338
      %v4347 = vadd.f32 %v4235, %v4339
      %v4348 = vadd.f32 %v4236, %v4340
      %v4349 = vpack.c.bf16 %v4341, %v4341
      %v4350 = vpack.c.bf16 %v4342, %v4342
      %v4351 = vpack.c.bf16 %v4343, %v4343
      %v4352 = vpack.c.bf16 %v4344, %v4344
      %v4353 = vpack.c.bf16 %v4345, %v4345
      %v4354 = vpack.c.bf16 %v4346, %v4346
      %v4355 = vpack.c.bf16 %v4347, %v4347
      %v4356 = vpack.c.bf16 %v4348, %v4348
      %v4357 = vpack.c.bf16 %v3393, %v3393
      %v4358 = vpack.c.bf16 %v3417, %v3417
      %v4359 = vpack.c.bf16 %v3400, %v3400
      %v4360 = vpack.c.bf16 %v3418, %v3418
      %v4361 = vpack.c.bf16 %v3409, %v3409
      %v4362 = vpack.c.bf16 %v3419, %v3419
      %v4363 = vpack.c.bf16 %v3416, %v3416
      %v4364 = vpack.c.bf16 %v3420, %v3420
      %v4365 = vpack.c.bf16 %v3461, %v3461
      %v4366 = vpack.c.bf16 %v3485, %v3485
      %v4367 = vpack.c.bf16 %v3468, %v3468
      %v4368 = vpack.c.bf16 %v3486, %v3486
      %v4369 = vpack.c.bf16 %v3477, %v3477
      %v4370 = vpack.c.bf16 %v3487, %v3487
      %v4371 = vpack.c.bf16 %v3484, %v3484
      %v4372 = vpack.c.bf16 %v3488, %v3488
      %4373 = vset.pattern.permute.xlu0 3
      %4374 = vperm.xlu0 %4373, %v3949
      %v4375 = vpop.permute.xlu0 %4374
      %4377 = vset.pattern.permute.xlu0 3
      %4378 = vperm.xlu0 %4377, %v3953
      %v4379 = vpop.permute.xlu0 %4378
      %4381 = vset.pattern.permute.xlu0 3
      %4382 = vperm.xlu0 %4381, %v3957
      %v4383 = vpop.permute.xlu0 %4382
      %4385 = vset.pattern.permute.xlu0 3
      %4386 = vperm.xlu0 %4385, %v3961
      %v4387 = vpop.permute.xlu0 %4386
      %4389 = vset.pattern.permute.xlu0 3
      %4390 = vperm.xlu0 %4389, %v3965
      %v4391 = vpop.permute.xlu0 %4390
      %4393 = vset.pattern.permute.xlu0 3
      %4394 = vperm.xlu0 %4393, %v3969
      %v4395 = vpop.permute.xlu0 %4394
      %4397 = vset.pattern.permute.xlu0 3
      %4398 = vperm.xlu0 %4397, %v3973
      %v4399 = vpop.permute.xlu0 %4398
      %4401 = vset.pattern.permute.xlu0 3
      %4402 = vperm.xlu0 %4401, %v3977
      %v4403 = vpop.permute.xlu0 %4402
      %v4405 = vmul.f32 %v3674, %v4375
      %v4406 = vmul.f32 %v3698, %v4379
      %v4407 = vmul.f32 %v3681, %v4383
      %v4408 = vmul.f32 %v3699, %v4387
      %v4409 = vmul.f32 %v3690, %v4391
      %v4410 = vmul.f32 %v3700, %v4395
      %v4411 = vmul.f32 %v3697, %v4399
      %v4412 = vmul.f32 %v3701, %v4403
      %4413 = vset.pattern.permute.xlu0 1
      %4414 = vperm.xlu0 %4413, %v4021
      %v4415 = vpop.permute.xlu0 %4414
      %4417 = vset.pattern.permute.xlu0 1
      %4418 = vperm.xlu0 %4417, %v4025
      %v4419 = vpop.permute.xlu0 %4418
      %4421 = vset.pattern.permute.xlu0 1
      %4422 = vperm.xlu0 %4421, %v4029
      %v4423 = vpop.permute.xlu0 %4422
      %4425 = vset.pattern.permute.xlu0 1
      %4426 = vperm.xlu0 %4425, %v4033
      %v4427 = vpop.permute.xlu0 %4426
      %4429 = vset.pattern.permute.xlu0 1
      %4430 = vperm.xlu0 %4429, %v4037
      %v4431 = vpop.permute.xlu0 %4430
      %4433 = vset.pattern.permute.xlu0 1
      %4434 = vperm.xlu0 %4433, %v4041
      %v4435 = vpop.permute.xlu0 %4434
      %4437 = vset.pattern.permute.xlu0 1
      %4438 = vperm.xlu0 %4437, %v4045
      %v4439 = vpop.permute.xlu0 %4438
      %4441 = vset.pattern.permute.xlu0 1
      %4442 = vperm.xlu0 %4441, %v4049
      %v4443 = vpop.permute.xlu0 %4442
      %v4445 = vadd.f32 %v4415, %v4405
      %v4446 = vadd.f32 %v4419, %v4406
      %v4447 = vadd.f32 %v4423, %v4407
      %v4448 = vadd.f32 %v4427, %v4408
      %v4449 = vadd.f32 %v4431, %v4409
      %v4450 = vadd.f32 %v4435, %v4410
      %v4451 = vadd.f32 %v4439, %v4411
      %v4452 = vadd.f32 %v4443, %v4412
      %v4453 = vmul.f32 %v4445, 8.0
      %v4454 = vmul.f32 %v4446, 8.0
      %v4455 = vmul.f32 %v4447, 8.0
      %v4456 = vmul.f32 %v4448, 8.0
      %v4457 = vmul.f32 %v4449, 8.0
      %v4458 = vmul.f32 %v4450, 8.0
      %v4459 = vmul.f32 %v4451, 8.0
      %v4460 = vmul.f32 %v4452, 8.0
      %v4461 = vsub.f32 %v4453, 0.5
      %v4462 = vsub.f32 %v4454, 0.5
      %v4463 = vsub.f32 %v4455, 0.5
      %v4464 = vsub.f32 %v4456, 0.5
      %v4465 = vsub.f32 %v4457, 0.5
      %v4466 = vsub.f32 %v4458, 0.5
      %v4467 = vsub.f32 %v4459, 0.5
      %v4468 = vsub.f32 %v4460, 0.5
      %4470 = vset.pattern.permute.xlu0 2
      %4471 = vperm.xlu0 %4470, %v4461
      %v4472 = vpop.permute.xlu0 %4471
      %4475 = vset.pattern.permute.xlu0 2
      %4476 = vperm.xlu0 %4475, %v4462
      %v4477 = vpop.permute.xlu0 %4476
      %4480 = vset.pattern.permute.xlu0 2
      %4481 = vperm.xlu0 %4480, %v4463
      %v4482 = vpop.permute.xlu0 %4481
      %4485 = vset.pattern.permute.xlu0 2
      %4486 = vperm.xlu0 %4485, %v4464
      %v4487 = vpop.permute.xlu0 %4486
      %4490 = vset.pattern.permute.xlu0 2
      %4491 = vperm.xlu0 %4490, %v4465
      %v4492 = vpop.permute.xlu0 %4491
      %4495 = vset.pattern.permute.xlu0 2
      %4496 = vperm.xlu0 %4495, %v4466
      %v4497 = vpop.permute.xlu0 %4496
      %4500 = vset.pattern.permute.xlu0 2
      %4501 = vperm.xlu0 %4500, %v4467
      %v4502 = vpop.permute.xlu0 %4501
      %4505 = vset.pattern.permute.xlu0 2
      %4506 = vperm.xlu0 %4505, %v4468
      %v4507 = vpop.permute.xlu0 %4506
      %v4509 = vsub.f32 %v4108, %v4472
      %v4510 = vsub.f32 %v4108, %v4477
      %v4511 = vsub.f32 %v4108, %v4482
      %v4512 = vsub.f32 %v4108, %v4487
      %v4513 = vsub.f32 %v4108, %v4492
      %v4514 = vsub.f32 %v4108, %v4497
      %v4515 = vsub.f32 %v4108, %v4502
      %v4516 = vsub.f32 %v4108, %v4507
      %v4517 = vand.u32 2147483647, %v4509
      %v4518 = vand.u32 2147483647, %v4510
      %v4519 = vand.u32 2147483647, %v4511
      %v4520 = vand.u32 2147483647, %v4512
      %v4521 = vand.u32 2147483647, %v4513
      %v4522 = vand.u32 2147483647, %v4514
      %v4523 = vand.u32 2147483647, %v4515
      %v4524 = vand.u32 2147483647, %v4516
      %v4525 = vsub.f32 1.0, %v4517
      %v4526 = vsub.f32 1.0, %v4518
      %v4527 = vsub.f32 1.0, %v4519
      %v4528 = vsub.f32 1.0, %v4520
      %v4529 = vsub.f32 1.0, %v4521
      %v4530 = vsub.f32 1.0, %v4522
      %v4531 = vsub.f32 1.0, %v4523
      %v4532 = vsub.f32 1.0, %v4524
      %v4533 = vmax.f32 %v4525, 0.0
      %v4534 = vmax.f32 %v4526, 0.0
      %v4535 = vmax.f32 %v4527, 0.0
      %v4536 = vmax.f32 %v4528, 0.0
      %v4537 = vmax.f32 %v4529, 0.0
      %v4538 = vmax.f32 %v4530, 0.0
      %v4539 = vmax.f32 %v4531, 0.0
      %v4540 = vmax.f32 %v4532, 0.0
      %4541 = vset.pattern.permute.xlu0 2
      %4542 = vperm.xlu0 %4541, %v3863
      %v4543 = vpop.permute.xlu0 %4542
      %4545 = vset.pattern.permute.xlu0 2
      %4546 = vperm.xlu0 %4545, %v3864
      %v4547 = vpop.permute.xlu0 %4546
      %4549 = vset.pattern.permute.xlu0 2
      %4550 = vperm.xlu0 %4549, %v3865
      %v4551 = vpop.permute.xlu0 %4550
      %4553 = vset.pattern.permute.xlu0 2
      %4554 = vperm.xlu0 %4553, %v3866
      %v4555 = vpop.permute.xlu0 %4554
      %4557 = vset.pattern.permute.xlu0 2
      %4558 = vperm.xlu0 %4557, %v3867
      %v4559 = vpop.permute.xlu0 %4558
      %4561 = vset.pattern.permute.xlu0 2
      %4562 = vperm.xlu0 %4561, %v3868
      %v4563 = vpop.permute.xlu0 %4562
      %4565 = vset.pattern.permute.xlu0 2
      %4566 = vperm.xlu0 %4565, %v3869
      %v4567 = vpop.permute.xlu0 %4566
      %4569 = vset.pattern.permute.xlu0 2
      %4570 = vperm.xlu0 %4569, %v3870
      %v4571 = vpop.permute.xlu0 %4570
      %v4573 = vmul.f32 %v4543, %v4533
      %v4574 = vmul.f32 %v4547, %v4534
      %v4575 = vmul.f32 %v4551, %v4535
      %v4576 = vmul.f32 %v4555, %v4536
      %v4577 = vmul.f32 %v4559, %v4537
      %v4578 = vmul.f32 %v4563, %v4538
      %v4579 = vmul.f32 %v4567, %v4539
      %v4580 = vmul.f32 %v4571, %v4540
      %v4581 = vadd.f32 %v4573, 0.0
      %v4582 = vadd.f32 %v4574, 0.0
      %v4583 = vadd.f32 %v4575, 0.0
      %v4584 = vadd.f32 %v4576, 0.0
      %v4585 = vadd.f32 %v4577, 0.0
      %v4586 = vadd.f32 %v4578, 0.0
      %v4587 = vadd.f32 %v4579, 0.0
      %v4588 = vadd.f32 %v4580, 0.0
      %4589 = vset.pattern.permute.xlu0 3
      %4590 = vperm.xlu0 %4589, %v4461
      %v4591 = vpop.permute.xlu0 %4590
      %4593 = vset.pattern.permute.xlu0 3
      %4594 = vperm.xlu0 %4593, %v4462
      %v4595 = vpop.permute.xlu0 %4594
      %4597 = vset.pattern.permute.xlu0 3
      %4598 = vperm.xlu0 %4597, %v4463
      %v4599 = vpop.permute.xlu0 %4598
      %4601 = vset.pattern.permute.xlu0 3
      %4602 = vperm.xlu0 %4601, %v4464
      %v4603 = vpop.permute.xlu0 %4602
      %4605 = vset.pattern.permute.xlu0 3
      %4606 = vperm.xlu0 %4605, %v4465
      %v4607 = vpop.permute.xlu0 %4606
      %4609 = vset.pattern.permute.xlu0 3
      %4610 = vperm.xlu0 %4609, %v4466
      %v4611 = vpop.permute.xlu0 %4610
      %4613 = vset.pattern.permute.xlu0 3
      %4614 = vperm.xlu0 %4613, %v4467
      %v4615 = vpop.permute.xlu0 %4614
      %4617 = vset.pattern.permute.xlu0 3
      %4618 = vperm.xlu0 %4617, %v4468
      %v4619 = vpop.permute.xlu0 %4618
      %v4621 = vsub.f32 %v4108, %v4591
      %v4622 = vsub.f32 %v4108, %v4595
      %v4623 = vsub.f32 %v4108, %v4599
      %v4624 = vsub.f32 %v4108, %v4603
      %v4625 = vsub.f32 %v4108, %v4607
      %v4626 = vsub.f32 %v4108, %v4611
      %v4627 = vsub.f32 %v4108, %v4615
      %v4628 = vsub.f32 %v4108, %v4619
      %v4629 = vand.u32 2147483647, %v4621
      %v4630 = vand.u32 2147483647, %v4622
      %v4631 = vand.u32 2147483647, %v4623
      %v4632 = vand.u32 2147483647, %v4624
      %v4633 = vand.u32 2147483647, %v4625
      %v4634 = vand.u32 2147483647, %v4626
      %v4635 = vand.u32 2147483647, %v4627
      %v4636 = vand.u32 2147483647, %v4628
      %v4637 = vsub.f32 1.0, %v4629
      %v4638 = vsub.f32 1.0, %v4630
      %v4639 = vsub.f32 1.0, %v4631
      %v4640 = vsub.f32 1.0, %v4632
      %v4641 = vsub.f32 1.0, %v4633
      %v4642 = vsub.f32 1.0, %v4634
      %v4643 = vsub.f32 1.0, %v4635
      %v4644 = vsub.f32 1.0, %v4636
      %v4645 = vmax.f32 %v4637, 0.0
      %v4646 = vmax.f32 %v4638, 0.0
      %v4647 = vmax.f32 %v4639, 0.0
      %v4648 = vmax.f32 %v4640, 0.0
      %v4649 = vmax.f32 %v4641, 0.0
      %v4650 = vmax.f32 %v4642, 0.0
      %v4651 = vmax.f32 %v4643, 0.0
      %v4652 = vmax.f32 %v4644, 0.0
      %4653 = vset.pattern.permute.xlu0 3
      %4654 = vperm.xlu0 %4653, %v3863
      %v4655 = vpop.permute.xlu0 %4654
      %4657 = vset.pattern.permute.xlu0 3
      %4658 = vperm.xlu0 %4657, %v3864
      %v4659 = vpop.permute.xlu0 %4658
      %4661 = vset.pattern.permute.xlu0 3
      %4662 = vperm.xlu0 %4661, %v3865
      %v4663 = vpop.permute.xlu0 %4662
      %4665 = vset.pattern.permute.xlu0 3
      %4666 = vperm.xlu0 %4665, %v3866
      %v4667 = vpop.permute.xlu0 %4666
      %4669 = vset.pattern.permute.xlu0 3
      %4670 = vperm.xlu0 %4669, %v3867
      %v4671 = vpop.permute.xlu0 %4670
      %4673 = vset.pattern.permute.xlu0 3
      %4674 = vperm.xlu0 %4673, %v3868
      %v4675 = vpop.permute.xlu0 %4674
      %4677 = vset.pattern.permute.xlu0 3
      %4678 = vperm.xlu0 %4677, %v3869
      %v4679 = vpop.permute.xlu0 %4678
      %4681 = vset.pattern.permute.xlu0 3
      %4682 = vperm.xlu0 %4681, %v3870
      %v4683 = vpop.permute.xlu0 %4682
      %v4685 = vmul.f32 %v4655, %v4645
      %v4686 = vmul.f32 %v4659, %v4646
      %v4687 = vmul.f32 %v4663, %v4647
      %v4688 = vmul.f32 %v4667, %v4648
      %v4689 = vmul.f32 %v4671, %v4649
      %v4690 = vmul.f32 %v4675, %v4650
      %v4691 = vmul.f32 %v4679, %v4651
      %v4692 = vmul.f32 %v4683, %v4652
      %v4693 = vadd.f32 %v4581, %v4685
      %v4694 = vadd.f32 %v4582, %v4686
      %v4695 = vadd.f32 %v4583, %v4687
      %v4696 = vadd.f32 %v4584, %v4688
      %v4697 = vadd.f32 %v4585, %v4689
      %v4698 = vadd.f32 %v4586, %v4690
      %v4699 = vadd.f32 %v4587, %v4691
      %v4700 = vadd.f32 %v4588, %v4692
      %v4701 = vpack.c.bf16 %v4693, %v4693
      %v4702 = vpack.c.bf16 %v4694, %v4694
      %v4703 = vpack.c.bf16 %v4695, %v4695
      %v4704 = vpack.c.bf16 %v4696, %v4696
      %v4705 = vpack.c.bf16 %v4697, %v4697
      %v4706 = vpack.c.bf16 %v4698, %v4698
      %v4707 = vpack.c.bf16 %v4699, %v4699
      %v4708 = vpack.c.bf16 %v4700, %v4700
      %v4709 = vpack.c.bf16 %v3529, %v3529
      %v4710 = vpack.c.bf16 %v3553, %v3553
      %v4711 = vpack.c.bf16 %v3536, %v3536
      %v4712 = vpack.c.bf16 %v3554, %v3554
      %v4713 = vpack.c.bf16 %v3545, %v3545
      %v4714 = vpack.c.bf16 %v3555, %v3555
      %v4715 = vpack.c.bf16 %v3552, %v3552
      %v4716 = vpack.c.bf16 %v3556, %v3556
      %v4717 = vcombine.low %v4701, %v4705
      %v4719 = vunpack.c.l.s4 1983009808
      %v4720 = vunpack.c.0.s8 %v4719
      %v4721 = vlaneseq
      %v4722 = vshrl.u32 %v4721, 7
      %v4723 = vsub.s32 %v4720, %v4722
      %v4724 = vrot.slane %v4717, %v4723
      %v4725 = vcombine.low %v4703, %v4707
      %v4727 = vunpack.c.l.s4 1983009808
      %v4728 = vunpack.c.0.s8 %v4727
      %v4729 = vlaneseq
      %v4730 = vshrl.u32 %v4729, 7
      %v4731 = vsub.s32 %v4728, %v4730
      %v4732 = vrot.slane %v4725, %v4731
      %v4733 = vcombine.low %v4724, %v4732
      %v4735 = vunpack.c.l.s4 1934713408
      %v4736 = vunpack.c.0.s8 %v4735
      %v4737 = vlaneseq
      %v4738 = vshrl.u32 %v4737, 7
      %v4739 = vsub.s32 %v4736, %v4738
      %v4740 = vrot.slane %v4733, %v4739
      %v4741 = vcombine.high %v4740, 0
      %v4742 = vcombine.low %v4702, %v4706
      %v4744 = vunpack.c.l.s4 1983009808
      %v4745 = vunpack.c.0.s8 %v4744
      %v4746 = vlaneseq
      %v4747 = vshrl.u32 %v4746, 7
      %v4748 = vsub.s32 %v4745, %v4747
      %v4749 = vrot.slane %v4742, %v4748
      %v4750 = vcombine.low %v4704, %v4708
      %v4752 = vunpack.c.l.s4 1983009808
      %v4753 = vunpack.c.0.s8 %v4752
      %v4754 = vlaneseq
      %v4755 = vshrl.u32 %v4754, 7
      %v4756 = vsub.s32 %v4753, %v4755
      %v4757 = vrot.slane %v4750, %v4756
      %v4758 = vcombine.low %v4749, %v4757
      %v4760 = vunpack.c.l.s4 1934713408
      %v4761 = vunpack.c.0.s8 %v4760
      %v4762 = vlaneseq
      %v4763 = vshrl.u32 %v4762, 7
      %v4764 = vsub.s32 %v4761, %v4763
      %v4765 = vrot.slane %v4758, %v4764
      %v4766 = vcombine.high %v4765, 0
      %v4769 = vpack.i.b16 %v4765, %v4740
      %v4770 = vshrl.u32 %v4740, 16
      %v4771 = vshrl.u32 %v4765, 16
      %v4772 = vpack.i.b16 %v4771, %v4770
      %v4775 = vpack.i.b16 %v4766, %v4741
      %v4776 = vshrl.u32 %v4741, 16
      %v4777 = vshrl.u32 %v4766, 16
      %v4778 = vpack.i.b16 %v4777, %v4776
      %v4779 = vcombine.low %v4709, %v4713
      %v4781 = vunpack.c.l.s4 1983009808
      %v4782 = vunpack.c.0.s8 %v4781
      %v4783 = vlaneseq
      %v4784 = vshrl.u32 %v4783, 7
      %v4785 = vsub.s32 %v4782, %v4784
      %v4786 = vrot.slane %v4779, %v4785
      %v4787 = vcombine.low %v4711, %v4715
      %v4789 = vunpack.c.l.s4 1983009808
      %v4790 = vunpack.c.0.s8 %v4789
      %v4791 = vlaneseq
      %v4792 = vshrl.u32 %v4791, 7
      %v4793 = vsub.s32 %v4790, %v4792
      %v4794 = vrot.slane %v4787, %v4793
      %v4795 = vcombine.low %v4786, %v4794
      %v4797 = vunpack.c.l.s4 1934713408
      %v4798 = vunpack.c.0.s8 %v4797
      %v4799 = vlaneseq
      %v4800 = vshrl.u32 %v4799, 7
      %v4801 = vsub.s32 %v4798, %v4800
      %v4802 = vrot.slane %v4795, %v4801
      %v4803 = vcombine.high %v4802, 0
      %v4804 = vcombine.low %v4710, %v4714
      %v4806 = vunpack.c.l.s4 1983009808
      %v4807 = vunpack.c.0.s8 %v4806
      %v4808 = vlaneseq
      %v4809 = vshrl.u32 %v4808, 7
      %v4810 = vsub.s32 %v4807, %v4809
      %v4811 = vrot.slane %v4804, %v4810
      %v4812 = vcombine.low %v4712, %v4716
      %v4814 = vunpack.c.l.s4 1983009808
      %v4815 = vunpack.c.0.s8 %v4814
      %v4816 = vlaneseq
      %v4817 = vshrl.u32 %v4816, 7
      %v4818 = vsub.s32 %v4815, %v4817
      %v4819 = vrot.slane %v4812, %v4818
      %v4820 = vcombine.low %v4811, %v4819
      %v4822 = vunpack.c.l.s4 1934713408
      %v4823 = vunpack.c.0.s8 %v4822
      %v4824 = vlaneseq
      %v4825 = vshrl.u32 %v4824, 7
      %v4826 = vsub.s32 %v4823, %v4825
      %v4827 = vrot.slane %v4820, %v4826
      %v4828 = vcombine.high %v4827, 0
      %v4831 = vpack.i.b16 %v4827, %v4802
      %v4832 = vshrl.u32 %v4802, 16
      %v4833 = vshrl.u32 %v4827, 16
      %v4834 = vpack.i.b16 %v4833, %v4832
      %v4837 = vpack.i.b16 %v4828, %v4803
      %v4838 = vshrl.u32 %v4803, 16
      %v4839 = vshrl.u32 %v4828, 16
      %v4840 = vpack.i.b16 %v4839, %v4838
      %v4842 = vsel %vm2463, %v4769, 0
      %v4845 = vsel %vm2467, %v4831, 0
      %4847 = vmatprep.subr.bf16.mxu0 0
      %4848 = vmatpush1.bf16.msra.mxu0 %v4845
      %4849 = vmatprep.subr.bf16.mxu0 0
      %4850 = vmatpush1.bf16.msra.mxu0 0
      %4851 = vmatprep.subr.bf16.mxu0 0
      %4852 = vmatpush1.bf16.msra.mxu0 0
      %4853 = vmatprep.subr.bf16.mxu0 0
      %4854 = vmatpush1.bf16.msra.mxu0 0
      %4855 = vmatprep.subr.bf16.mxu0 0
      %4856 = vmatpush1.bf16.msra.mxu0 0
      %4857 = vmatprep.subr.bf16.mxu0 0
      %4858 = vmatpush1.bf16.msra.mxu0 0
      %4859 = vmatprep.subr.bf16.mxu0 0
      %4860 = vmatpush1.bf16.msra.mxu0 0
      %4861 = vmatprep.subr.bf16.mxu0 0
      %4862 = vmatpush1.bf16.msra.mxu0 0
      %4863 = vmatprep.subr.bf16.mxu0 0
      %4864 = vmatpush1.bf16.msra.mxu0 0
      %4865 = vmatprep.subr.bf16.mxu0 0
      %4866 = vmatpush1.bf16.msra.mxu0 0
      %4867 = vmatprep.subr.bf16.mxu0 0
      %4868 = vmatpush1.bf16.msra.mxu0 0
      %4869 = vmatprep.subr.bf16.mxu0 0
      %4870 = vmatpush1.bf16.msra.mxu0 0
      %4871 = vmatprep.subr.bf16.mxu0 0
      %4872 = vmatpush1.bf16.msra.mxu0 0
      %4873 = vmatprep.subr.bf16.mxu0 0
      %4874 = vmatpush1.bf16.msra.mxu0 0
      %4875 = vmatprep.subr.bf16.mxu0 0
      %4876 = vmatpush1.bf16.msra.mxu0 0
      %4877 = vmatprep.subr.bf16.mxu0 0
      %4878 = vmatpush1.bf16.msra.mxu0 0
      %4879 = vmatprep.mubr.bf16.mxu0 0
      %4880 = vmatmul.mubr.bf16.gmra.mrb[0].mxu0 %v4842
      %v4881 = vpop.f32.mrb[0].mxu0
      %v4882 = vadd.f32 0.0, %v4881
      %v4883 = vpop.f32.mrb[0].mxu0
      %v4884 = vpop.f32.mrb[0].mxu0
      %v4885 = vpop.f32.mrb[0].mxu0
      %4886 = vdwg.mxu0
      %v4888 = vsel %vm2463, %v4772, 0
      %v4891 = vsel %vm2467, %v4834, 0
      %4893 = vmatprep.subr.bf16.mxu0 0
      %4894 = vmatpush1.bf16.msra.mxu0 %v4891
      %4895 = vmatprep.subr.bf16.mxu0 0
      %4896 = vmatpush1.bf16.msra.mxu0 0
      %4897 = vmatprep.subr.bf16.mxu0 0
      %4898 = vmatpush1.bf16.msra.mxu0 0
      %4899 = vmatprep.subr.bf16.mxu0 0
      %4900 = vmatpush1.bf16.msra.mxu0 0
      %4901 = vmatprep.subr.bf16.mxu0 0
      %4902 = vmatpush1.bf16.msra.mxu0 0
      %4903 = vmatprep.subr.bf16.mxu0 0
      %4904 = vmatpush1.bf16.msra.mxu0 0
      %4905 = vmatprep.subr.bf16.mxu0 0
      %4906 = vmatpush1.bf16.msra.mxu0 0
      %4907 = vmatprep.subr.bf16.mxu0 0
      %4908 = vmatpush1.bf16.msra.mxu0 0
      %4909 = vmatprep.subr.bf16.mxu0 0
      %4910 = vmatpush1.bf16.msra.mxu0 0
      %4911 = vmatprep.subr.bf16.mxu0 0
      %4912 = vmatpush1.bf16.msra.mxu0 0
      %4913 = vmatprep.subr.bf16.mxu0 0
      %4914 = vmatpush1.bf16.msra.mxu0 0
      %4915 = vmatprep.subr.bf16.mxu0 0
      %4916 = vmatpush1.bf16.msra.mxu0 0
      %4917 = vmatprep.subr.bf16.mxu0 0
      %4918 = vmatpush1.bf16.msra.mxu0 0
      %4919 = vmatprep.subr.bf16.mxu0 0
      %4920 = vmatpush1.bf16.msra.mxu0 0
      %4921 = vmatprep.subr.bf16.mxu0 0
      %4922 = vmatpush1.bf16.msra.mxu0 0
      %4923 = vmatprep.subr.bf16.mxu0 0
      %4924 = vmatpush1.bf16.msra.mxu0 0
      %4925 = vmatprep.mubr.bf16.mxu0 0
      %4926 = vmatmul.mubr.bf16.gmra.mrb[0].mxu0 %v4888
      %v4927 = vpop.f32.mrb[0].mxu0
      %v4928 = vadd.f32 0.0, %v4927
      %v4929 = vpop.f32.mrb[0].mxu0
      %v4930 = vpop.f32.mrb[0].mxu0
      %v4931 = vpop.f32.mrb[0].mxu0
      %4932 = vdwg.mxu0
      %v4934 = vsel %vm2463, %v4775, 0
      %v4937 = vsel %vm2467, %v4837, 0
      %4939 = vmatprep.subr.bf16.mxu0 0
      %4940 = vmatpush1.bf16.msra.mxu0 %v4937
      %4941 = vmatprep.subr.bf16.mxu0 0
      %4942 = vmatpush1.bf16.msra.mxu0 0
      %4943 = vmatprep.subr.bf16.mxu0 0
      %4944 = vmatpush1.bf16.msra.mxu0 0
      %4945 = vmatprep.subr.bf16.mxu0 0
      %4946 = vmatpush1.bf16.msra.mxu0 0
      %4947 = vmatprep.subr.bf16.mxu0 0
      %4948 = vmatpush1.bf16.msra.mxu0 0
      %4949 = vmatprep.subr.bf16.mxu0 0
      %4950 = vmatpush1.bf16.msra.mxu0 0
      %4951 = vmatprep.subr.bf16.mxu0 0
      %4952 = vmatpush1.bf16.msra.mxu0 0
      %4953 = vmatprep.subr.bf16.mxu0 0
      %4954 = vmatpush1.bf16.msra.mxu0 0
      %4955 = vmatprep.subr.bf16.mxu0 0
      %4956 = vmatpush1.bf16.msra.mxu0 0
      %4957 = vmatprep.subr.bf16.mxu0 0
      %4958 = vmatpush1.bf16.msra.mxu0 0
      %4959 = vmatprep.subr.bf16.mxu0 0
      %4960 = vmatpush1.bf16.msra.mxu0 0
      %4961 = vmatprep.subr.bf16.mxu0 0
      %4962 = vmatpush1.bf16.msra.mxu0 0
      %4963 = vmatprep.subr.bf16.mxu0 0
      %4964 = vmatpush1.bf16.msra.mxu0 0
      %4965 = vmatprep.subr.bf16.mxu0 0
      %4966 = vmatpush1.bf16.msra.mxu0 0
      %4967 = vmatprep.subr.bf16.mxu0 0
      %4968 = vmatpush1.bf16.msra.mxu0 0
      %4969 = vmatprep.subr.bf16.mxu0 0
      %4970 = vmatpush1.bf16.msra.mxu0 0
      %4971 = vmatprep.mubr.bf16.mxu0 0
      %4972 = vmatmul.mubr.bf16.gmra.mrb[0].mxu0 %v4934
      %v4973 = vpop.f32.mrb[0].mxu0
      %v4974 = vadd.f32 0.0, %v4973
      %v4975 = vpop.f32.mrb[0].mxu0
      %v4976 = vpop.f32.mrb[0].mxu0
      %v4977 = vpop.f32.mrb[0].mxu0
      %4978 = vdwg.mxu0
      %v4980 = vsel %vm2463, %v4778, 0
      %v4983 = vsel %vm2467, %v4840, 0
      %4985 = vmatprep.subr.bf16.mxu0 0
      %4986 = vmatpush1.bf16.msra.mxu0 %v4983
      %4987 = vmatprep.subr.bf16.mxu0 0
      %4988 = vmatpush1.bf16.msra.mxu0 0
      %4989 = vmatprep.subr.bf16.mxu0 0
      %4990 = vmatpush1.bf16.msra.mxu0 0
      %4991 = vmatprep.subr.bf16.mxu0 0
      %4992 = vmatpush1.bf16.msra.mxu0 0
      %4993 = vmatprep.subr.bf16.mxu0 0
      %4994 = vmatpush1.bf16.msra.mxu0 0
      %4995 = vmatprep.subr.bf16.mxu0 0
      %4996 = vmatpush1.bf16.msra.mxu0 0
      %4997 = vmatprep.subr.bf16.mxu0 0
      %4998 = vmatpush1.bf16.msra.mxu0 0
      %4999 = vmatprep.subr.bf16.mxu0 0
      %5000 = vmatpush1.bf16.msra.mxu0 0
      %5001 = vmatprep.subr.bf16.mxu0 0
      %5002 = vmatpush1.bf16.msra.mxu0 0
      %5003 = vmatprep.subr.bf16.mxu0 0
      %5004 = vmatpush1.bf16.msra.mxu0 0
      %5005 = vmatprep.subr.bf16.mxu0 0
      %5006 = vmatpush1.bf16.msra.mxu0 0
      %5007 = vmatprep.subr.bf16.mxu0 0
      %5008 = vmatpush1.bf16.msra.mxu0 0
      %5009 = vmatprep.subr.bf16.mxu0 0
      %5010 = vmatpush1.bf16.msra.mxu0 0
      %5011 = vmatprep.subr.bf16.mxu0 0
      %5012 = vmatpush1.bf16.msra.mxu0 0
      %5013 = vmatprep.subr.bf16.mxu0 0
      %5014 = vmatpush1.bf16.msra.mxu0 0
      %5015 = vmatprep.subr.bf16.mxu0 0
      %5016 = vmatpush1.bf16.msra.mxu0 0
      %5017 = vmatprep.mubr.bf16.mxu0 0
      %5018 = vmatmul.mubr.bf16.gmra.mrb[0].mxu0 %v4980
      %v5019 = vpop.f32.mrb[0].mxu0
      %v5020 = vadd.f32 0.0, %v5019
      %v5021 = vpop.f32.mrb[0].mxu0
      %v5022 = vpop.f32.mrb[0].mxu0
      %v5023 = vpop.f32.mrb[0].mxu0
      %5024 = vdwg.mxu0
      %v5025 = vcombine.low %v4349, %v4353
      %v5027 = vunpack.c.l.s4 1983009808
      %v5028 = vunpack.c.0.s8 %v5027
      %v5029 = vlaneseq
      %v5030 = vshrl.u32 %v5029, 7
      %v5031 = vsub.s32 %v5028, %v5030
      %v5032 = vrot.slane %v5025, %v5031
      %v5033 = vcombine.low %v4351, %v4355
      %v5035 = vunpack.c.l.s4 1983009808
      %v5036 = vunpack.c.0.s8 %v5035
      %v5037 = vlaneseq
      %v5038 = vshrl.u32 %v5037, 7
      %v5039 = vsub.s32 %v5036, %v5038
      %v5040 = vrot.slane %v5033, %v5039
      %v5041 = vcombine.low %v5032, %v5040
      %v5043 = vunpack.c.l.s4 1934713408
      %v5044 = vunpack.c.0.s8 %v5043
      %v5045 = vlaneseq
      %v5046 = vshrl.u32 %v5045, 7
      %v5047 = vsub.s32 %v5044, %v5046
      %v5048 = vrot.slane %v5041, %v5047
      %v5049 = vcombine.high %v5048, 0
      %v5050 = vcombine.low %v4350, %v4354
      %v5052 = vunpack.c.l.s4 1983009808
      %v5053 = vunpack.c.0.s8 %v5052
      %v5054 = vlaneseq
      %v5055 = vshrl.u32 %v5054, 7
      %v5056 = vsub.s32 %v5053, %v5055
      %v5057 = vrot.slane %v5050, %v5056
      %v5058 = vcombine.low %v4352, %v4356
      %v5060 = vunpack.c.l.s4 1983009808
      %v5061 = vunpack.c.0.s8 %v5060
      %v5062 = vlaneseq
      %v5063 = vshrl.u32 %v5062, 7
      %v5064 = vsub.s32 %v5061, %v5063
      %v5065 = vrot.slane %v5058, %v5064
      %v5066 = vcombine.low %v5057, %v5065
      %v5068 = vunpack.c.l.s4 1934713408
      %v5069 = vunpack.c.0.s8 %v5068
      %v5070 = vlaneseq
      %v5071 = vshrl.u32 %v5070, 7
      %v5072 = vsub.s32 %v5069, %v5071
      %v5073 = vrot.slane %v5066, %v5072
      %v5074 = vcombine.high %v5073, 0
      %v5077 = vpack.i.b16 %v5073, %v5048
      %v5078 = vshrl.u32 %v5048, 16
      %v5079 = vshrl.u32 %v5073, 16
      %v5080 = vpack.i.b16 %v5079, %v5078
      %v5083 = vpack.i.b16 %v5074, %v5049
      %v5084 = vshrl.u32 %v5049, 16
      %v5085 = vshrl.u32 %v5074, 16
      %v5086 = vpack.i.b16 %v5085, %v5084
      %v5087 = vcombine.low %v4357, %v4361
      %v5089 = vunpack.c.l.s4 1983009808
      %v5090 = vunpack.c.0.s8 %v5089
      %v5091 = vlaneseq
      %v5092 = vshrl.u32 %v5091, 7
      %v5093 = vsub.s32 %v5090, %v5092
      %v5094 = vrot.slane %v5087, %v5093
      %v5095 = vcombine.low %v4359, %v4363
      %v5097 = vunpack.c.l.s4 1983009808
      %v5098 = vunpack.c.0.s8 %v5097
      %v5099 = vlaneseq
      %v5100 = vshrl.u32 %v5099, 7
      %v5101 = vsub.s32 %v5098, %v5100
      %v5102 = vrot.slane %v5095, %v5101
      %v5103 = vcombine.low %v4365, %v4369
      %v5105 = vunpack.c.l.s4 1983009808
      %v5106 = vunpack.c.0.s8 %v5105
      %v5107 = vlaneseq
      %v5108 = vshrl.u32 %v5107, 7
      %v5109 = vsub.s32 %v5106, %v5108
      %v5110 = vrot.slane %v5103, %v5109
      %v5111 = vcombine.low %v4367, %v4371
      %v5113 = vunpack.c.l.s4 1983009808
      %v5114 = vunpack.c.0.s8 %v5113
      %v5115 = vlaneseq
      %v5116 = vshrl.u32 %v5115, 7
      %v5117 = vsub.s32 %v5114, %v5116
      %v5118 = vrot.slane %v5111, %v5117
      %v5119 = vcombine.low %v5094, %v5102
      %v5121 = vunpack.c.l.s4 1934713408
      %v5122 = vunpack.c.0.s8 %v5121
      %v5123 = vlaneseq
      %v5124 = vshrl.u32 %v5123, 7
      %v5125 = vsub.s32 %v5122, %v5124
      %v5126 = vrot.slane %v5119, %v5125
      %v5127 = vcombine.low %v5110, %v5118
      %v5129 = vunpack.c.l.s4 1934713408
      %v5130 = vunpack.c.0.s8 %v5129
      %v5131 = vlaneseq
      %v5132 = vshrl.u32 %v5131, 7
      %v5133 = vsub.s32 %v5130, %v5132
      %v5134 = vrot.slane %v5127, %v5133
      %v5135 = vcombine.low %v5126, %v5134
      %v5136 = vcombine.high %v5126, %v5134
      %v5137 = vcombine.low %v4358, %v4362
      %v5139 = vunpack.c.l.s4 1983009808
      %v5140 = vunpack.c.0.s8 %v5139
      %v5141 = vlaneseq
      %v5142 = vshrl.u32 %v5141, 7
      %v5143 = vsub.s32 %v5140, %v5142
      %v5144 = vrot.slane %v5137, %v5143
      %v5145 = vcombine.low %v4360, %v4364
      %v5147 = vunpack.c.l.s4 1983009808
      %v5148 = vunpack.c.0.s8 %v5147
      %v5149 = vlaneseq
      %v5150 = vshrl.u32 %v5149, 7
      %v5151 = vsub.s32 %v5148, %v5150
      %v5152 = vrot.slane %v5145, %v5151
      %v5153 = vcombine.low %v4366, %v4370
      %v5155 = vunpack.c.l.s4 1983009808
      %v5156 = vunpack.c.0.s8 %v5155
      %v5157 = vlaneseq
      %v5158 = vshrl.u32 %v5157, 7
      %v5159 = vsub.s32 %v5156, %v5158
      %v5160 = vrot.slane %v5153, %v5159
      %v5161 = vcombine.low %v4368, %v4372
      %v5163 = vunpack.c.l.s4 1983009808
      %v5164 = vunpack.c.0.s8 %v5163
      %v5165 = vlaneseq
      %v5166 = vshrl.u32 %v5165, 7
      %v5167 = vsub.s32 %v5164, %v5166
      %v5168 = vrot.slane %v5161, %v5167
      %v5169 = vcombine.low %v5144, %v5152
      %v5171 = vunpack.c.l.s4 1934713408
      %v5172 = vunpack.c.0.s8 %v5171
      %v5173 = vlaneseq
      %v5174 = vshrl.u32 %v5173, 7
      %v5175 = vsub.s32 %v5172, %v5174
      %v5176 = vrot.slane %v5169, %v5175
      %v5177 = vcombine.low %v5160, %v5168
      %v5179 = vunpack.c.l.s4 1934713408
      %v5180 = vunpack.c.0.s8 %v5179
      %v5181 = vlaneseq
      %v5182 = vshrl.u32 %v5181, 7
      %v5183 = vsub.s32 %v5180, %v5182
      %v5184 = vrot.slane %v5177, %v5183
      %v5185 = vcombine.low %v5176, %v5184
      %v5186 = vcombine.high %v5176, %v5184
      %v5189 = vpack.i.b16 %v5185, %v5135
      %v5191 = vshrl.u32 %v5135, 16
      %v5192 = vshrl.u32 %v5185, 16
      %v5193 = vpack.i.b16 %v5192, %v5191
      %v5197 = vpack.i.b16 %v5186, %v5136
      %v5199 = vshrl.u32 %v5136, 16
      %v5200 = vshrl.u32 %v5186, 16
      %v5201 = vpack.i.b16 %v5200, %v5199
      %v5204 = vsel %vm3115, %v5077, 0
      %5206 = vmatprep.subr.bf16.mxu0 0
      %5207 = vmatpush1.bf16.msra.mxu0 %v5189
      %5208 = vmatprep.subr.bf16.mxu0 0
      %5209 = vmatpush1.bf16.msra.mxu0 0
      %5210 = vmatprep.subr.bf16.mxu0 0
      %5211 = vmatpush1.bf16.msra.mxu0 0
      %5212 = vmatprep.subr.bf16.mxu0 0
      %5213 = vmatpush1.bf16.msra.mxu0 0
      %5214 = vmatprep.subr.bf16.mxu0 0
      %5215 = vmatpush1.bf16.msra.mxu0 0
      %5216 = vmatprep.subr.bf16.mxu0 0
      %5217 = vmatpush1.bf16.msra.mxu0 0
      %5218 = vmatprep.subr.bf16.mxu0 0
      %5219 = vmatpush1.bf16.msra.mxu0 0
      %5220 = vmatprep.subr.bf16.mxu0 0
      %5221 = vmatpush1.bf16.msra.mxu0 0
      %5222 = vmatprep.subr.bf16.mxu0 0
      %5223 = vmatpush1.bf16.msra.mxu0 0
      %5224 = vmatprep.subr.bf16.mxu0 0
      %5225 = vmatpush1.bf16.msra.mxu0 0
      %5226 = vmatprep.subr.bf16.mxu0 0
      %5227 = vmatpush1.bf16.msra.mxu0 0
      %5228 = vmatprep.subr.bf16.mxu0 0
      %5229 = vmatpush1.bf16.msra.mxu0 0
      %5230 = vmatprep.subr.bf16.mxu0 0
      %5231 = vmatpush1.bf16.msra.mxu0 0
      %5232 = vmatprep.subr.bf16.mxu0 0
      %5233 = vmatpush1.bf16.msra.mxu0 0
      %5234 = vmatprep.subr.bf16.mxu0 0
      %5235 = vmatpush1.bf16.msra.mxu0 0
      %5236 = vmatprep.subr.bf16.mxu0 0
      %5237 = vmatpush1.bf16.msra.mxu0 0
      %5238 = vmatprep.mubr.bf16.mxu0 0
      %5239 = vmatmul.mubr.bf16.gmra.mrb[0].mxu0 %v5204
      %v5240 = vpop.f32.mrb[0].mxu0
      %v5241 = vadd.f32 %v4882, %v5240
      %v5242 = vpop.f32.mrb[0].mxu0
      %v5243 = vpop.f32.mrb[0].mxu0
      %v5244 = vpop.f32.mrb[0].mxu0
      %5245 = vdwg.mxu0
      %v5247 = vsel %vm3115, %v5080, 0
      %5249 = vmatprep.subr.bf16.mxu0 0
      %5250 = vmatpush1.bf16.msra.mxu0 %v5193
      %5251 = vmatprep.subr.bf16.mxu0 0
      %5252 = vmatpush1.bf16.msra.mxu0 0
      %5253 = vmatprep.subr.bf16.mxu0 0
      %5254 = vmatpush1.bf16.msra.mxu0 0
      %5255 = vmatprep.subr.bf16.mxu0 0
      %5256 = vmatpush1.bf16.msra.mxu0 0
      %5257 = vmatprep.subr.bf16.mxu0 0
      %5258 = vmatpush1.bf16.msra.mxu0 0
      %5259 = vmatprep.subr.bf16.mxu0 0
      %5260 = vmatpush1.bf16.msra.mxu0 0
      %5261 = vmatprep.subr.bf16.mxu0 0
      %5262 = vmatpush1.bf16.msra.mxu0 0
      %5263 = vmatprep.subr.bf16.mxu0 0
      %5264 = vmatpush1.bf16.msra.mxu0 0
      %5265 = vmatprep.subr.bf16.mxu0 0
      %5266 = vmatpush1.bf16.msra.mxu0 0
      %5267 = vmatprep.subr.bf16.mxu0 0
      %5268 = vmatpush1.bf16.msra.mxu0 0
      %5269 = vmatprep.subr.bf16.mxu0 0
      %5270 = vmatpush1.bf16.msra.mxu0 0
      %5271 = vmatprep.subr.bf16.mxu0 0
      %5272 = vmatpush1.bf16.msra.mxu0 0
      %5273 = vmatprep.subr.bf16.mxu0 0
      %5274 = vmatpush1.bf16.msra.mxu0 0
      %5275 = vmatprep.subr.bf16.mxu0 0
      %5276 = vmatpush1.bf16.msra.mxu0 0
      %5277 = vmatprep.subr.bf16.mxu0 0
      %5278 = vmatpush1.bf16.msra.mxu0 0
      %5279 = vmatprep.subr.bf16.mxu0 0
      %5280 = vmatpush1.bf16.msra.mxu0 0
      %5281 = vmatprep.mubr.bf16.mxu0 0
      %5282 = vmatmul.mubr.bf16.gmra.mrb[0].mxu0 %v5247
      %v5283 = vpop.f32.mrb[0].mxu0
      %v5284 = vadd.f32 %v4928, %v5283
      %v5285 = vpop.f32.mrb[0].mxu0
      %v5286 = vpop.f32.mrb[0].mxu0
      %v5287 = vpop.f32.mrb[0].mxu0
      %5288 = vdwg.mxu0
      %v5290 = vsel %vm3115, %v5083, 0
      %5292 = vmatprep.subr.bf16.mxu0 0
      %5293 = vmatpush1.bf16.msra.mxu0 %v5197
      %5294 = vmatprep.subr.bf16.mxu0 0
      %5295 = vmatpush1.bf16.msra.mxu0 0
      %5296 = vmatprep.subr.bf16.mxu0 0
      %5297 = vmatpush1.bf16.msra.mxu0 0
      %5298 = vmatprep.subr.bf16.mxu0 0
      %5299 = vmatpush1.bf16.msra.mxu0 0
      %5300 = vmatprep.subr.bf16.mxu0 0
      %5301 = vmatpush1.bf16.msra.mxu0 0
      %5302 = vmatprep.subr.bf16.mxu0 0
      %5303 = vmatpush1.bf16.msra.mxu0 0
      %5304 = vmatprep.subr.bf16.mxu0 0
      %5305 = vmatpush1.bf16.msra.mxu0 0
      %5306 = vmatprep.subr.bf16.mxu0 0
      %5307 = vmatpush1.bf16.msra.mxu0 0
      %5308 = vmatprep.subr.bf16.mxu0 0
      %5309 = vmatpush1.bf16.msra.mxu0 0
      %5310 = vmatprep.subr.bf16.mxu0 0
      %5311 = vmatpush1.bf16.msra.mxu0 0
      %5312 = vmatprep.subr.bf16.mxu0 0
      %5313 = vmatpush1.bf16.msra.mxu0 0
      %5314 = vmatprep.subr.bf16.mxu0 0
      %5315 = vmatpush1.bf16.msra.mxu0 0
      %5316 = vmatprep.subr.bf16.mxu0 0
      %5317 = vmatpush1.bf16.msra.mxu0 0
      %5318 = vmatprep.subr.bf16.mxu0 0
      %5319 = vmatpush1.bf16.msra.mxu0 0
      %5320 = vmatprep.subr.bf16.mxu0 0
      %5321 = vmatpush1.bf16.msra.mxu0 0
      %5322 = vmatprep.subr.bf16.mxu0 0
      %5323 = vmatpush1.bf16.msra.mxu0 0
      %5324 = vmatprep.mubr.bf16.mxu0 0
      %5325 = vmatmul.mubr.bf16.gmra.mrb[0].mxu0 %v5290
      %v5326 = vpop.f32.mrb[0].mxu0
      %v5327 = vadd.f32 %v4974, %v5326
      %v5328 = vpop.f32.mrb[0].mxu0
      %v5329 = vpop.f32.mrb[0].mxu0
      %v5330 = vpop.f32.mrb[0].mxu0
      %5331 = vdwg.mxu0
      %v5333 = vsel %vm3115, %v5086, 0
      %5335 = vmatprep.subr.bf16.mxu0 0
      %5336 = vmatpush1.bf16.msra.mxu0 %v5201
      %5337 = vmatprep.subr.bf16.mxu0 0
      %5338 = vmatpush1.bf16.msra.mxu0 0
      %5339 = vmatprep.subr.bf16.mxu0 0
      %5340 = vmatpush1.bf16.msra.mxu0 0
      %5341 = vmatprep.subr.bf16.mxu0 0
      %5342 = vmatpush1.bf16.msra.mxu0 0
      %5343 = vmatprep.subr.bf16.mxu0 0
      %5344 = vmatpush1.bf16.msra.mxu0 0
      %5345 = vmatprep.subr.bf16.mxu0 0
      %5346 = vmatpush1.bf16.msra.mxu0 0
      %5347 = vmatprep.subr.bf16.mxu0 0
      %5348 = vmatpush1.bf16.msra.mxu0 0
      %5349 = vmatprep.subr.bf16.mxu0 0
      %5350 = vmatpush1.bf16.msra.mxu0 0
      %5351 = vmatprep.subr.bf16.mxu0 0
      %5352 = vmatpush1.bf16.msra.mxu0 0
      %5353 = vmatprep.subr.bf16.mxu0 0
      %5354 = vmatpush1.bf16.msra.mxu0 0
      %5355 = vmatprep.subr.bf16.mxu0 0
      %5356 = vmatpush1.bf16.msra.mxu0 0
      %5357 = vmatprep.subr.bf16.mxu0 0
      %5358 = vmatpush1.bf16.msra.mxu0 0
      %5359 = vmatprep.subr.bf16.mxu0 0
      %5360 = vmatpush1.bf16.msra.mxu0 0
      %5361 = vmatprep.subr.bf16.mxu0 0
      %5362 = vmatpush1.bf16.msra.mxu0 0
      %5363 = vmatprep.subr.bf16.mxu0 0
      %5364 = vmatpush1.bf16.msra.mxu0 0
      %5365 = vmatprep.subr.bf16.mxu0 0
      %5366 = vmatpush1.bf16.msra.mxu0 0
      %5367 = vmatprep.mubr.bf16.mxu0 0
      %5368 = vmatmul.mubr.bf16.gmra.mrb[0].mxu0 %v5333
      %v5369 = vpop.f32.mrb[0].mxu0
      %v5370 = vadd.f32 %v5020, %v5369
      %v5371 = vpop.f32.mrb[0].mxu0
      %v5372 = vpop.f32.mrb[0].mxu0
      %v5373 = vpop.f32.mrb[0].mxu0
      %5374 = vdwg.mxu0
      %v5375 = vcombine.low %v5241, %v5327
      %v5376 = vcombine.high %v5241, %v5327
      %v5378 = vunpack.c.l.s4 1983009808
      %v5379 = vunpack.c.0.s8 %v5378
      %v5380 = vlaneseq
      %v5381 = vshrl.u32 %v5380, 7
      %v5382 = vsub.s32 %v5379, %v5381
      %v5383 = vrot.slane %v5375, %v5382
      %v5385 = vunpack.c.l.s4 1983009808
      %v5386 = vunpack.c.0.s8 %v5385
      %v5387 = vlaneseq
      %v5388 = vshrl.u32 %v5387, 7
      %v5389 = vsub.s32 %v5386, %v5388
      %v5390 = vrot.slane %v5376, %v5389
      %v5391 = vcombine.low %v5284, %v5370
      %v5392 = vcombine.high %v5284, %v5370
      %v5394 = vunpack.c.l.s4 1983009808
      %v5395 = vunpack.c.0.s8 %v5394
      %v5396 = vlaneseq
      %v5397 = vshrl.u32 %v5396, 7
      %v5398 = vsub.s32 %v5395, %v5397
      %v5399 = vrot.slane %v5391, %v5398
      %v5401 = vunpack.c.l.s4 1983009808
      %v5402 = vunpack.c.0.s8 %v5401
      %v5403 = vlaneseq
      %v5404 = vshrl.u32 %v5403, 7
      %v5405 = vsub.s32 %v5402, %v5404
      %v5406 = vrot.slane %v5392, %v5405
      %v5407 = vcombine.low %v5383, %v5399
      %v5408 = vcombine.high %v5383, %v5399
      %v5410 = vunpack.c.l.s4 1934713408
      %v5411 = vunpack.c.0.s8 %v5410
      %v5412 = vlaneseq
      %v5413 = vshrl.u32 %v5412, 7
      %v5414 = vsub.s32 %v5411, %v5413
      %v5415 = vrot.slane %v5407, %v5414
      %v5417 = vunpack.c.l.s4 1934713408
      %v5418 = vunpack.c.0.s8 %v5417
      %v5419 = vlaneseq
      %v5420 = vshrl.u32 %v5419, 7
      %v5421 = vsub.s32 %v5418, %v5420
      %v5422 = vrot.slane %v5408, %v5421
      %v5423 = vcombine.low %v5390, %v5406
      %v5424 = vcombine.high %v5390, %v5406
      %v5426 = vunpack.c.l.s4 1934713408
      %v5427 = vunpack.c.0.s8 %v5426
      %v5428 = vlaneseq
      %v5429 = vshrl.u32 %v5428, 7
      %v5430 = vsub.s32 %v5427, %v5429
      %v5431 = vrot.slane %v5423, %v5430
      %v5433 = vunpack.c.l.s4 1934713408
      %v5434 = vunpack.c.0.s8 %v5433
      %v5435 = vlaneseq
      %v5436 = vshrl.u32 %v5435, 7
      %v5437 = vsub.s32 %v5434, %v5436
      %v5438 = vrot.slane %v5424, %v5437
      %v5439 = vcombine.high %v5415, 0.0
      %v5440 = vcombine.high %v5422, 0.0
      %v5441 = vcombine.high %v5431, 0.0
      %v5442 = vcombine.high %v5438, 0.0
      %v5443 = vcombine.low %v5415, %v5422
      %v5445 = vunpack.c.l.s4 1983009808
      %v5446 = vunpack.c.0.s8 %v5445
      %v5447 = vlaneseq
      %v5448 = vshrl.u32 %v5447, 7
      %v5449 = vsub.s32 %v5446, %v5448
      %v5450 = vrot.slane %v5443, %v5449
      %v5451 = vcombine.low %v5439, %v5440
      %v5453 = vunpack.c.l.s4 1983009808
      %v5454 = vunpack.c.0.s8 %v5453
      %v5455 = vlaneseq
      %v5456 = vshrl.u32 %v5455, 7
      %v5457 = vsub.s32 %v5454, %v5456
      %v5458 = vrot.slane %v5451, %v5457
      %v5459 = vcombine.low %v5431, %v5438
      %v5461 = vunpack.c.l.s4 1983009808
      %v5462 = vunpack.c.0.s8 %v5461
      %v5463 = vlaneseq
      %v5464 = vshrl.u32 %v5463, 7
      %v5465 = vsub.s32 %v5462, %v5464
      %v5466 = vrot.slane %v5459, %v5465
      %v5467 = vcombine.low %v5441, %v5442
      %v5469 = vunpack.c.l.s4 1983009808
      %v5470 = vunpack.c.0.s8 %v5469
      %v5471 = vlaneseq
      %v5472 = vshrl.u32 %v5471, 7
      %v5473 = vsub.s32 %v5470, %v5472
      %v5474 = vrot.slane %v5467, %v5473
      %v5475 = vcombine.low %v5450, %v5458
      %v5476 = vcombine.high %v5450, %v5458
      %v5478 = vunpack.c.l.s4 1934713408
      %v5479 = vunpack.c.0.s8 %v5478
      %v5480 = vlaneseq
      %v5481 = vshrl.u32 %v5480, 7
      %v5482 = vsub.s32 %v5479, %v5481
      %v5483 = vrot.slane %v5475, %v5482
      %v5485 = vunpack.c.l.s4 1934713408
      %v5486 = vunpack.c.0.s8 %v5485
      %v5487 = vlaneseq
      %v5488 = vshrl.u32 %v5487, 7
      %v5489 = vsub.s32 %v5486, %v5488
      %v5490 = vrot.slane %v5476, %v5489
      %v5491 = vcombine.low %v5466, %v5474
      %v5492 = vcombine.high %v5466, %v5474
      %v5494 = vunpack.c.l.s4 1934713408
      %v5495 = vunpack.c.0.s8 %v5494
      %v5496 = vlaneseq
      %v5497 = vshrl.u32 %v5496, 7
      %v5498 = vsub.s32 %v5495, %v5497
      %v5499 = vrot.slane %v5491, %v5498
      %v5501 = vunpack.c.l.s4 1934713408
      %v5502 = vunpack.c.0.s8 %v5501
      %v5503 = vlaneseq
      %v5504 = vshrl.u32 %v5503, 7
      %v5505 = vsub.s32 %v5502, %v5504
      %v5506 = vrot.slane %v5492, %v5505
      %v5507 = vcombine.low %v5483, %v5499
      %v5508 = vcombine.high %v5483, %v5499
      %v5509 = vcombine.low %v5490, %v5506
      %v5510 = vcombine.high %v5490, %v5506
      %5512 = vrot.lane.b32.xlu0 %v5508, 8
      %v5513 = vpop.permute.xlu0 %5512
      %5516 = vrot.lane.b32.xlu0 %v5509, 16
      %v5517 = vpop.permute.xlu0 %5516
      %5520 = vrot.lane.b32.xlu0 %v5510, 24
      %v5521 = vpop.permute.xlu0 %5520
      %v5523 = vsel %vm2463, %v5507, %v5513
      %v5524 = vsel %vm3115, %v5523, %v5517
      %v5525 = vsel %vm3117, %v5524, %v5521
      %v5526 = vld [vmem:[%s1525] sm:$0xf]
      %v5527 = vld [vmem:[%s1525 + $0x4] sm:$0xf]
      %v5528 = vld [vmem:[%s1525 + $0x8] sm:$0xf]
      %v5529 = vld [vmem:[%s1525 + $0xc] sm:$0xf]
      %v5530 = vpack.c.bf16 %v5525, %v5525
      %v5531 = vld [vmem:[%s1528] sm:$0x1]
      %v5533 = vlaneseq
      %v5534 = vshrl.u32 %v5533, 7
      %v5535 = vsub.s32 0, %v5534
      %v5536 = vrot.slane %v5531, %v5535
      %v5542 = vunpack.c.l.b16 %v5526
      %v5543 = vunpack.c.l.b16 %v5527
      %v5544 = vunpack.c.l.b16 %v5528
      %v5545 = vunpack.c.l.b16 %v5529
      %v5546 = vpack.c.b16 %v5543, %v5542
      %v5547 = vpack.c.b16 %v5545, %v5544
      %v5551 = vsel %vm1620, %v5530, 0
      %5553 = vmatprep.subr.bf16.mxu0 0
      %5554 = vmatpush1.bf16.msra.mxu0 %v5546
      %5555 = vmatprep.subr.bf16.mxu0 0
      %5556 = vmatpush1.bf16.msra.mxu0 %v5547
      %5557 = vmatprep.subr.bf16.mxu0 0
      %5558 = vmatpush1.bf16.msra.mxu0 0
      %5559 = vmatprep.subr.bf16.mxu0 0
      %5560 = vmatpush1.bf16.msra.mxu0 0
      %5561 = vmatprep.subr.bf16.mxu0 0
      %5562 = vmatpush1.bf16.msra.mxu0 0
      %5563 = vmatprep.subr.bf16.mxu0 0
      %5564 = vmatpush1.bf16.msra.mxu0 0
      %5565 = vmatprep.subr.bf16.mxu0 0
      %5566 = vmatpush1.bf16.msra.mxu0 0
      %5567 = vmatprep.subr.bf16.mxu0 0
      %5568 = vmatpush1.bf16.msra.mxu0 0
      %5569 = vmatprep.subr.bf16.mxu0 0
      %5570 = vmatpush1.bf16.msra.mxu0 0
      %5571 = vmatprep.subr.bf16.mxu0 0
      %5572 = vmatpush1.bf16.msra.mxu0 0
      %5573 = vmatprep.subr.bf16.mxu0 0
      %5574 = vmatpush1.bf16.msra.mxu0 0
      %5575 = vmatprep.subr.bf16.mxu0 0
      %5576 = vmatpush1.bf16.msra.mxu0 0
      %5577 = vmatprep.subr.bf16.mxu0 0
      %5578 = vmatpush1.bf16.msra.mxu0 0
      %5579 = vmatprep.subr.bf16.mxu0 0
      %5580 = vmatpush1.bf16.msra.mxu0 0
      %5581 = vmatprep.subr.bf16.mxu0 0
      %5582 = vmatpush1.bf16.msra.mxu0 0
      %5583 = vmatprep.subr.bf16.mxu0 0
      %5584 = vmatpush1.bf16.msra.mxu0 0
      %5585 = vmatprep.mubr.bf16.mxu0 0
      %5586 = vmatmul.mubr.bf16.gmra.mrb[0].mxu0 %v5551
      %v5587 = vpop.f32.mrb[0].mxu0
      %v5588 = vadd.f32 %v5536, %v5587
      %v5589 = vpop.f32.mrb[0].mxu0
      %v5590 = vpop.f32.mrb[0].mxu0
      %v5591 = vpop.f32.mrb[0].mxu0
      %5592 = vdwg.mxu0
      %v5593 = vadd.f32 %v3212, %v5588
      %v5594 = vsel %vm1620, %v5593, 0.0
      %5595 = vadd.xlane.f32.xlu0 %v5594
      %v5596 = vpop.xlane.xlu0 %5595
      %v5597 = vmul.f32 %v5596, %v3192
      %v5598 = vsub.f32 %v5593, %v5597
      %v5599 = vmul.f32 %v5598, %v5598
      %v5600 = vsel %vm1620, %v5599, 0.0
      %5601 = vadd.xlane.f32.xlu0 %v5600
      %v5602 = vpop.xlane.xlu0 %5601
      %v5603 = vmul.f32 %v5602, %v3192
      %v5604 = vadd.f32 %v5603, 1e-05
      %v5605 = vrsqrt.pop %v5604
      %v5606 = vmul.f32 %v5598, %v5605
      %v5607 = vlaneseq
      %v5608 = vshrl.u32 %v5607, 7
      %v5609 = vsub.s32 1, %v5608
      %v5610 = vrot.slane %v3187, %v5609
      %v5611 = vmul.f32 %v5606, %v5610
      %v5612 = vlaneseq
      %v5613 = vshrl.u32 %v5612, 7
      %v5614 = vsub.s32 1, %v5613
      %v5615 = vrot.slane %v3188, %v5614
      %v5616 = vadd.f32 %v5611, %v5615
      %v5617 = vadd.f32 %v5616, %v1594
      %v5618 = vld [vmem:[%s1459] sm:$0xf]
      %v5619 = vld [vmem:[%s1459 + $0x4] sm:$0x3]
      %v5620 = vld [vmem:[%s1533] sm:$0xf]
      %v5621 = vld [vmem:[%s1533 + $0x4] sm:$0xf]
      %v5622 = vld [vmem:[%s1533 + $0x8] sm:$0xf]
      %v5623 = vld [vmem:[%s1533 + $0xc] sm:$0xf]
      %v5624 = vld [vmem:[%s1536] sm:$0x1]
      %v5626 = vlaneseq
      %v5627 = vshrl.u32 %v5626, 7
      %v5628 = vsub.s32 0, %v5627
      %v5629 = vrot.slane %v5624, %v5628
      %v5633 = vunpack.c.l.b16 %v5618
      %v5634 = vunpack.c.l.b16 %v5619
      %v5635 = vpack.c.b16 %v5634, %v5633
      %v5640 = vunpack.c.l.b16 %v5620
      %v5641 = vunpack.c.l.b16 %v5621
      %v5642 = vunpack.c.l.b16 %v5622
      %v5643 = vunpack.c.l.b16 %v5623
      %v5644 = vpack.c.b16 %v5641, %v5640
      %v5645 = vpack.c.b16 %v5643, %v5642
      %v5649 = vsel %vm1620, %v5635, 0
      %5651 = vmatprep.subr.bf16.mxu0 0
      %5652 = vmatpush1.bf16.msra.mxu0 %v5644
      %5653 = vmatprep.subr.bf16.mxu0 0
      %5654 = vmatpush1.bf16.msra.mxu0 %v5645
      %5655 = vmatprep.subr.bf16.mxu0 0
      %5656 = vmatpush1.bf16.msra.mxu0 0
      %5657 = vmatprep.subr.bf16.mxu0 0
      %5658 = vmatpush1.bf16.msra.mxu0 0
      %5659 = vmatprep.subr.bf16.mxu0 0
      %5660 = vmatpush1.bf16.msra.mxu0 0
      %5661 = vmatprep.subr.bf16.mxu0 0
      %5662 = vmatpush1.bf16.msra.mxu0 0
      %5663 = vmatprep.subr.bf16.mxu0 0
      %5664 = vmatpush1.bf16.msra.mxu0 0
      %5665 = vmatprep.subr.bf16.mxu0 0
      %5666 = vmatpush1.bf16.msra.mxu0 0
      %5667 = vmatprep.subr.bf16.mxu0 0
      %5668 = vmatpush1.bf16.msra.mxu0 0
      %5669 = vmatprep.subr.bf16.mxu0 0
      %5670 = vmatpush1.bf16.msra.mxu0 0
      %5671 = vmatprep.subr.bf16.mxu0 0
      %5672 = vmatpush1.bf16.msra.mxu0 0
      %5673 = vmatprep.subr.bf16.mxu0 0
      %5674 = vmatpush1.bf16.msra.mxu0 0
      %5675 = vmatprep.subr.bf16.mxu0 0
      %5676 = vmatpush1.bf16.msra.mxu0 0
      %5677 = vmatprep.subr.bf16.mxu0 0
      %5678 = vmatpush1.bf16.msra.mxu0 0
      %5679 = vmatprep.subr.bf16.mxu0 0
      %5680 = vmatpush1.bf16.msra.mxu0 0
      %5681 = vmatprep.subr.bf16.mxu0 0
      %5682 = vmatpush1.bf16.msra.mxu0 0
      %5683 = vmatprep.mubr.bf16.mxu0 0
      %5684 = vmatmul.mubr.bf16.gmra.mrb[0].mxu0 %v5649
      %v5685 = vpop.f32.mrb[0].mxu0
      %v5686 = vadd.f32 %v5629, %v5685
      %v5687 = vpop.f32.mrb[0].mxu0
      %v5688 = vpop.f32.mrb[0].mxu0
      %v5689 = vadd.f32 %v5629, %v5688
      %v5690 = vpop.f32.mrb[0].mxu0
      %5691 = vdwg.mxu0
      %v5692 = vld [vmem:[%s1469] sm:$0xff]
      %v5693 = vld [vmem:[%s1469 + $0x8] sm:$0xf]
      %5695 = vset.pattern.permute.xlu0 0
      %5696 = vperm.xlu0 %5695, %v5692
      %v5697 = vpop.permute.xlu0 %5696
      %5700 = vset.pattern.permute.xlu0 0
      %5701 = vperm.xlu0 %5700, %v5693
      %v5702 = vpop.permute.xlu0 %5701
      %v5704 = vmul.f32 %v5686, %v5697
      %v5705 = vmul.f32 %v5689, %v5702
      %5708 = vrot.lane.b32.xlu0 %v5704, 120
      %v5709 = vpop.permute.xlu0 %5708
      %5710 = vrot.lane.b32.xlu0 %v5705, 120
      %v5711 = vpop.permute.xlu0 %5710
      %5714 = vrot.lane.b32.xlu0 %v5704, 112
      %v5715 = vpop.permute.xlu0 %5714
      %5716 = vrot.lane.b32.xlu0 %v5705, 112
      %v5717 = vpop.permute.xlu0 %5716
      %5720 = vrot.lane.b32.xlu0 %v5704, 104
      %v5721 = vpop.permute.xlu0 %5720
      %5722 = vrot.lane.b32.xlu0 %v5705, 104
      %v5723 = vpop.permute.xlu0 %5722
      %v5726 = vcombine.low %v5704, %v5715
      %v5727 = vcombine.high %v5704, %v5715
      %v5729 = vunpack.c.l.s4 1983009808
      %v5730 = vunpack.c.0.s8 %v5729
      %v5731 = vlaneseq
      %v5732 = vshrl.u32 %v5731, 7
      %v5733 = vsub.s32 %v5730, %v5732
      %v5734 = vrot.slane %v5726, %v5733
      %v5736 = vunpack.c.l.s4 1983009808
      %v5737 = vunpack.c.0.s8 %v5736
      %v5738 = vlaneseq
      %v5739 = vshrl.u32 %v5738, 7
      %v5740 = vsub.s32 %v5737, %v5739
      %v5741 = vrot.slane %v5727, %v5740
      %v5742 = vcombine.low %v5709, %v5721
      %v5743 = vcombine.high %v5709, %v5721
      %v5745 = vunpack.c.l.s4 1983009808
      %v5746 = vunpack.c.0.s8 %v5745
      %v5747 = vlaneseq
      %v5748 = vshrl.u32 %v5747, 7
      %v5749 = vsub.s32 %v5746, %v5748
      %v5750 = vrot.slane %v5742, %v5749
      %v5752 = vunpack.c.l.s4 1983009808
      %v5753 = vunpack.c.0.s8 %v5752
      %v5754 = vlaneseq
      %v5755 = vshrl.u32 %v5754, 7
      %v5756 = vsub.s32 %v5753, %v5755
      %v5757 = vrot.slane %v5743, %v5756
      %v5758 = vcombine.low %v5734, %v5750
      %v5759 = vcombine.high %v5734, %v5750
      %v5761 = vunpack.c.l.s4 1934713408
      %v5762 = vunpack.c.0.s8 %v5761
      %v5763 = vlaneseq
      %v5764 = vshrl.u32 %v5763, 7
      %v5765 = vsub.s32 %v5762, %v5764
      %v5766 = vrot.slane %v5758, %v5765
      %v5768 = vunpack.c.l.s4 1934713408
      %v5769 = vunpack.c.0.s8 %v5768
      %v5770 = vlaneseq
      %v5771 = vshrl.u32 %v5770, 7
      %v5772 = vsub.s32 %v5769, %v5771
      %v5773 = vrot.slane %v5759, %v5772
      %v5774 = vcombine.low %v5741, %v5757
      %v5775 = vcombine.high %v5741, %v5757
      %v5777 = vunpack.c.l.s4 1934713408
      %v5778 = vunpack.c.0.s8 %v5777
      %v5779 = vlaneseq
      %v5780 = vshrl.u32 %v5779, 7
      %v5781 = vsub.s32 %v5778, %v5780
      %v5782 = vrot.slane %v5774, %v5781
      %v5784 = vunpack.c.l.s4 1934713408
      %v5785 = vunpack.c.0.s8 %v5784
      %v5786 = vlaneseq
      %v5787 = vshrl.u32 %v5786, 7
      %v5788 = vsub.s32 %v5785, %v5787
      %v5789 = vrot.slane %v5775, %v5788
      %v5790 = vcombine.high %v5766, 0.0
      %v5791 = vcombine.high %v5773, 0.0
      %v5792 = vcombine.high %v5782, 0.0
      %v5793 = vcombine.high %v5789, 0.0
      %v5794 = vcombine.low %v5705, %v5717
      %v5796 = vunpack.c.l.s4 1983009808
      %v5797 = vunpack.c.0.s8 %v5796
      %v5798 = vlaneseq
      %v5799 = vshrl.u32 %v5798, 7
      %v5800 = vsub.s32 %v5797, %v5799
      %v5801 = vrot.slane %v5794, %v5800
      %v5802 = vcombine.low %v5711, %v5723
      %v5804 = vunpack.c.l.s4 1983009808
      %v5805 = vunpack.c.0.s8 %v5804
      %v5806 = vlaneseq
      %v5807 = vshrl.u32 %v5806, 7
      %v5808 = vsub.s32 %v5805, %v5807
      %v5809 = vrot.slane %v5802, %v5808
      %v5810 = vcombine.low %v5801, %v5809
      %v5811 = vcombine.high %v5801, %v5809
      %v5813 = vunpack.c.l.s4 1934713408
      %v5814 = vunpack.c.0.s8 %v5813
      %v5815 = vlaneseq
      %v5816 = vshrl.u32 %v5815, 7
      %v5817 = vsub.s32 %v5814, %v5816
      %v5818 = vrot.slane %v5810, %v5817
      %v5820 = vunpack.c.l.s4 1934713408
      %v5821 = vunpack.c.0.s8 %v5820
      %v5822 = vlaneseq
      %v5823 = vshrl.u32 %v5822, 7
      %v5824 = vsub.s32 %v5821, %v5823
      %v5825 = vrot.slane %v5811, %v5824
      %v5826 = vcombine.high %v5818, 0.0
      %v5827 = vcombine.high %v5825, 0.0
      %v5828 = vld [vmem:[%s1541] sm:$0xf]
      %v5829 = vld [vmem:[%s1541 + $0x4] sm:$0xf]
      %v5830 = vld [vmem:[%s1541 + $0x8] sm:$0xf]
      %v5831 = vld [vmem:[%s1541 + $0xc] sm:$0xf]
      %v5832 = vpack.c.bf16 %v5617, %v5617
      %v5833 = vld [vmem:[%s1544] sm:$0x1]
      %v5835 = vlaneseq
      %v5836 = vshrl.u32 %v5835, 7
      %v5837 = vsub.s32 0, %v5836
      %v5838 = vrot.slane %v5833, %v5837
      %v5844 = vunpack.c.l.b16 %v5828
      %v5845 = vunpack.c.l.b16 %v5829
      %v5846 = vunpack.c.l.b16 %v5830
      %v5847 = vunpack.c.l.b16 %v5831
      %v5848 = vpack.c.b16 %v5845, %v5844
      %v5849 = vpack.c.b16 %v5847, %v5846
      %v5853 = vsel %vm1620, %v5832, 0
      %5855 = vmatprep.subr.bf16.mxu0 0
      %5856 = vmatpush1.bf16.msra.mxu0 %v5848
      %5857 = vmatprep.subr.bf16.mxu0 0
      %5858 = vmatpush1.bf16.msra.mxu0 %v5849
      %5859 = vmatprep.subr.bf16.mxu0 0
      %5860 = vmatpush1.bf16.msra.mxu0 0
      %5861 = vmatprep.subr.bf16.mxu0 0
      %5862 = vmatpush1.bf16.msra.mxu0 0
      %5863 = vmatprep.subr.bf16.mxu0 0
      %5864 = vmatpush1.bf16.msra.mxu0 0
      %5865 = vmatprep.subr.bf16.mxu0 0
      %5866 = vmatpush1.bf16.msra.mxu0 0
      %5867 = vmatprep.subr.bf16.mxu0 0
      %5868 = vmatpush1.bf16.msra.mxu0 0
      %5869 = vmatprep.subr.bf16.mxu0 0
      %5870 = vmatpush1.bf16.msra.mxu0 0
      %5871 = vmatprep.subr.bf16.mxu0 0
      %5872 = vmatpush1.bf16.msra.mxu0 0
      %5873 = vmatprep.subr.bf16.mxu0 0
      %5874 = vmatpush1.bf16.msra.mxu0 0
      %5875 = vmatprep.subr.bf16.mxu0 0
      %5876 = vmatpush1.bf16.msra.mxu0 0
      %5877 = vmatprep.subr.bf16.mxu0 0
      %5878 = vmatpush1.bf16.msra.mxu0 0
      %5879 = vmatprep.subr.bf16.mxu0 0
      %5880 = vmatpush1.bf16.msra.mxu0 0
      %5881 = vmatprep.subr.bf16.mxu0 0
      %5882 = vmatpush1.bf16.msra.mxu0 0
      %5883 = vmatprep.subr.bf16.mxu0 0
      %5884 = vmatpush1.bf16.msra.mxu0 0
      %5885 = vmatprep.subr.bf16.mxu0 0
      %5886 = vmatpush1.bf16.msra.mxu0 0
      %5887 = vmatprep.mubr.bf16.mxu0 0
      %5888 = vmatmul.mubr.bf16.gmra.mrb[0].mxu0 %v5853
      %v5889 = vpop.f32.mrb[0].mxu0
      %v5890 = vadd.f32 %v5838, %v5889
      %v5891 = vpop.f32.mrb[0].mxu0
      %v5892 = vpop.f32.mrb[0].mxu0
      %v5893 = vpop.f32.mrb[0].mxu0
      %5894 = vdwg.mxu0
      %5896 = vrot.lane.b32.xlu0 %v5890, 124
      %v5897 = vpop.permute.xlu0 %5896
      %5899 = vrot.lane.b32.xlu0 %v5890, 120
      %v5900 = vpop.permute.xlu0 %5899
      %5902 = vrot.lane.b32.xlu0 %v5890, 116
      %v5903 = vpop.permute.xlu0 %5902
      %v5905 = vcombine.low %v5890, %v5900
      %v5906 = vcombine.high %v5890, %v5900
      %v5908 = vunpack.c.l.s4 1983009808
      %v5909 = vunpack.c.0.s8 %v5908
      %v5910 = vlaneseq
      %v5911 = vshrl.u32 %v5910, 7
      %v5912 = vsub.s32 %v5909, %v5911
      %v5913 = vrot.slane %v5905, %v5912
      %v5915 = vunpack.c.l.s4 1983009808
      %v5916 = vunpack.c.0.s8 %v5915
      %v5917 = vlaneseq
      %v5918 = vshrl.u32 %v5917, 7
      %v5919 = vsub.s32 %v5916, %v5918
      %v5920 = vrot.slane %v5906, %v5919
      %v5921 = vcombine.low %v5897, %v5903
      %v5922 = vcombine.high %v5897, %v5903
      %v5924 = vunpack.c.l.s4 1983009808
      %v5925 = vunpack.c.0.s8 %v5924
      %v5926 = vlaneseq
      %v5927 = vshrl.u32 %v5926, 7
      %v5928 = vsub.s32 %v5925, %v5927
      %v5929 = vrot.slane %v5921, %v5928
      %v5931 = vunpack.c.l.s4 1983009808
      %v5932 = vunpack.c.0.s8 %v5931
      %v5933 = vlaneseq
      %v5934 = vshrl.u32 %v5933, 7
      %v5935 = vsub.s32 %v5932, %v5934
      %v5936 = vrot.slane %v5922, %v5935
      %v5937 = vcombine.low %v5913, %v5929
      %v5938 = vcombine.high %v5913, %v5929
      %v5940 = vunpack.c.l.s4 1934713408
      %v5941 = vunpack.c.0.s8 %v5940
      %v5942 = vlaneseq
      %v5943 = vshrl.u32 %v5942, 7
      %v5944 = vsub.s32 %v5941, %v5943
      %v5945 = vrot.slane %v5937, %v5944
      %v5947 = vunpack.c.l.s4 1934713408
      %v5948 = vunpack.c.0.s8 %v5947
      %v5949 = vlaneseq
      %v5950 = vshrl.u32 %v5949, 7
      %v5951 = vsub.s32 %v5948, %v5950
      %v5952 = vrot.slane %v5938, %v5951
      %v5953 = vcombine.low %v5920, %v5936
      %v5954 = vcombine.high %v5920, %v5936
      %v5956 = vunpack.c.l.s4 1934713408
      %v5957 = vunpack.c.0.s8 %v5956
      %v5958 = vlaneseq
      %v5959 = vshrl.u32 %v5958, 7
      %v5960 = vsub.s32 %v5957, %v5959
      %v5961 = vrot.slane %v5953, %v5960
      %v5963 = vunpack.c.l.s4 1934713408
      %v5964 = vunpack.c.0.s8 %v5963
      %v5965 = vlaneseq
      %v5966 = vshrl.u32 %v5965, 7
      %v5967 = vsub.s32 %v5964, %v5966
      %v5968 = vrot.slane %v5954, %v5967
      %v5969 = vcombine.high %v5945, 0.0
      %v5970 = vcombine.high %v5952, 0.0
      %v5971 = vcombine.high %v5961, 0.0
      %v5972 = vcombine.high %v5968, 0.0
      %5973 = vrot.lane.b32.xlu0 %v5890, 112
      %v5974 = vpop.permute.xlu0 %5973
      %5975 = vrot.lane.b32.xlu0 %v5897, 112
      %v5976 = vpop.permute.xlu0 %5975
      %5977 = vrot.lane.b32.xlu0 %v5900, 112
      %v5978 = vpop.permute.xlu0 %5977
      %5979 = vrot.lane.b32.xlu0 %v5903, 112
      %v5980 = vpop.permute.xlu0 %5979
      %v5985 = vcombine.low %v5974, %v5978
      %v5986 = vcombine.high %v5974, %v5978
      %v5988 = vunpack.c.l.s4 1983009808
      %v5989 = vunpack.c.0.s8 %v5988
      %v5990 = vlaneseq
      %v5991 = vshrl.u32 %v5990, 7
      %v5992 = vsub.s32 %v5989, %v5991
      %v5993 = vrot.slane %v5985, %v5992
      %v5995 = vunpack.c.l.s4 1983009808
      %v5996 = vunpack.c.0.s8 %v5995
      %v5997 = vlaneseq
      %v5998 = vshrl.u32 %v5997, 7
      %v5999 = vsub.s32 %v5996, %v5998
      %v6000 = vrot.slane %v5986, %v5999
      %v6001 = vcombine.low %v5976, %v5980
      %v6002 = vcombine.high %v5976, %v5980
      %v6004 = vunpack.c.l.s4 1983009808
      %v6005 = vunpack.c.0.s8 %v6004
      %v6006 = vlaneseq
      %v6007 = vshrl.u32 %v6006, 7
      %v6008 = vsub.s32 %v6005, %v6007
      %v6009 = vrot.slane %v6001, %v6008
      %v6011 = vunpack.c.l.s4 1983009808
      %v6012 = vunpack.c.0.s8 %v6011
      %v6013 = vlaneseq
      %v6014 = vshrl.u32 %v6013, 7
      %v6015 = vsub.s32 %v6012, %v6014
      %v6016 = vrot.slane %v6002, %v6015
      %v6017 = vcombine.low %v5993, %v6009
      %v6018 = vcombine.high %v5993, %v6009
      %v6020 = vunpack.c.l.s4 1934713408
      %v6021 = vunpack.c.0.s8 %v6020
      %v6022 = vlaneseq
      %v6023 = vshrl.u32 %v6022, 7
      %v6024 = vsub.s32 %v6021, %v6023
      %v6025 = vrot.slane %v6017, %v6024
      %v6027 = vunpack.c.l.s4 1934713408
      %v6028 = vunpack.c.0.s8 %v6027
      %v6029 = vlaneseq
      %v6030 = vshrl.u32 %v6029, 7
      %v6031 = vsub.s32 %v6028, %v6030
      %v6032 = vrot.slane %v6018, %v6031
      %v6033 = vcombine.low %v6000, %v6016
      %v6034 = vcombine.high %v6000, %v6016
      %v6036 = vunpack.c.l.s4 1934713408
      %v6037 = vunpack.c.0.s8 %v6036
      %v6038 = vlaneseq
      %v6039 = vshrl.u32 %v6038, 7
      %v6040 = vsub.s32 %v6037, %v6039
      %v6041 = vrot.slane %v6033, %v6040
      %v6043 = vunpack.c.l.s4 1934713408
      %v6044 = vunpack.c.0.s8 %v6043
      %v6045 = vlaneseq
      %v6046 = vshrl.u32 %v6045, 7
      %v6047 = vsub.s32 %v6044, %v6046
      %v6048 = vrot.slane %v6034, %v6047
      %v6049 = vcombine.high %v6025, 0.0
      %v6050 = vcombine.high %v6032, 0.0
      %v6051 = vcombine.high %v6041, 0.0
      %v6052 = vcombine.high %v6048, 0.0
      %v6053 = vsel %vm3782, %v6025, -inf
      %6054 = vmax.xlane.f32.xlu0 %v6053
      %v6055 = vpop.xlane.xlu0 %6054
      %v6056 = vsel %vm3782, %v6049, -inf
      %6057 = vmax.xlane.f32.xlu0 %v6056
      %v6058 = vpop.xlane.xlu0 %6057
      %v6059 = vsel %vm3782, %v6032, -inf
      %6060 = vmax.xlane.f32.xlu0 %v6059
      %v6061 = vpop.xlane.xlu0 %6060
      %v6062 = vsel %vm3782, %v6050, -inf
      %6063 = vmax.xlane.f32.xlu0 %v6062
      %v6064 = vpop.xlane.xlu0 %6063
      %v6065 = vsel %vm3782, %v6041, -inf
      %6066 = vmax.xlane.f32.xlu0 %v6065
      %v6067 = vpop.xlane.xlu0 %6066
      %v6068 = vsel %vm3782, %v6051, -inf
      %6069 = vmax.xlane.f32.xlu0 %v6068
      %v6070 = vpop.xlane.xlu0 %6069
      %v6071 = vsel %vm3782, %v6048, -inf
      %6072 = vmax.xlane.f32.xlu0 %v6071
      %v6073 = vpop.xlane.xlu0 %6072
      %v6074 = vsel %vm3782, %v6052, -inf
      %6075 = vmax.xlane.f32.xlu0 %v6074
      %v6076 = vpop.xlane.xlu0 %6075
      %v6077 = vsub.f32 %v6025, %v6055
      %v6078 = vsub.f32 %v6049, %v6058
      %v6079 = vsub.f32 %v6032, %v6061
      %v6080 = vsub.f32 %v6050, %v6064
      %v6081 = vsub.f32 %v6041, %v6067
      %v6082 = vsub.f32 %v6051, %v6070
      %v6083 = vsub.f32 %v6048, %v6073
      %v6084 = vsub.f32 %v6052, %v6076
      %v6085 = vmul.f32 %v6077, 1.442695
      %v6086 = vpow.pop %v6085
      %v6087 = vmul.f32 %v6078, 1.442695
      %v6088 = vpow.pop %v6087
      %v6089 = vmul.f32 %v6079, 1.442695
      %v6090 = vpow.pop %v6089
      %v6091 = vmul.f32 %v6080, 1.442695
      %v6092 = vpow.pop %v6091
      %v6093 = vmul.f32 %v6081, 1.442695
      %v6094 = vpow.pop %v6093
      %v6095 = vmul.f32 %v6082, 1.442695
      %v6096 = vpow.pop %v6095
      %v6097 = vmul.f32 %v6083, 1.442695
      %v6098 = vpow.pop %v6097
      %v6099 = vmul.f32 %v6084, 1.442695
      %v6100 = vpow.pop %v6099
      %v6101 = vsel %vm3782, %v6086, 0.0
      %6102 = vadd.xlane.f32.xlu0 %v6101
      %v6103 = vpop.xlane.xlu0 %6102
      %v6104 = vsel %vm3782, %v6088, 0.0
      %6105 = vadd.xlane.f32.xlu0 %v6104
      %v6106 = vpop.xlane.xlu0 %6105
      %v6107 = vsel %vm3782, %v6090, 0.0
      %6108 = vadd.xlane.f32.xlu0 %v6107
      %v6109 = vpop.xlane.xlu0 %6108
      %v6110 = vsel %vm3782, %v6092, 0.0
      %6111 = vadd.xlane.f32.xlu0 %v6110
      %v6112 = vpop.xlane.xlu0 %6111
      %v6113 = vsel %vm3782, %v6094, 0.0
      %6114 = vadd.xlane.f32.xlu0 %v6113
      %v6115 = vpop.xlane.xlu0 %6114
      %v6116 = vsel %vm3782, %v6096, 0.0
      %6117 = vadd.xlane.f32.xlu0 %v6116
      %v6118 = vpop.xlane.xlu0 %6117
      %v6119 = vsel %vm3782, %v6098, 0.0
      %6120 = vadd.xlane.f32.xlu0 %v6119
      %v6121 = vpop.xlane.xlu0 %6120
      %v6122 = vsel %vm3782, %v6100, 0.0
      %6123 = vadd.xlane.f32.xlu0 %v6122
      %v6124 = vpop.xlane.xlu0 %6123
      %v6125 = vrcp.pop %v6103
      %v6126 = vrcp.pop %v6106
      %v6127 = vrcp.pop %v6109
      %v6128 = vrcp.pop %v6112
      %v6129 = vrcp.pop %v6115
      %v6130 = vrcp.pop %v6118
      %v6131 = vrcp.pop %v6121
      %v6132 = vrcp.pop %v6124
      %v6133 = vmul.f32 %v6086, %v6125
      %v6134 = vmul.f32 %v6088, %v6126
      %v6135 = vmul.f32 %v6090, %v6127
      %v6136 = vmul.f32 %v6092, %v6128
      %v6137 = vmul.f32 %v6094, %v6129
      %v6138 = vmul.f32 %v6096, %v6130
      %v6139 = vmul.f32 %v6098, %v6131
      %v6140 = vmul.f32 %v6100, %v6132
      %v6141 = vld [vmem:[%s1480] sm:$0xff]
      %v6143 = vcombine.high %v6141, %v6141
      %v6145 = vunpack.c.l.s4 1966171168
      %v6146 = vunpack.c.0.s8 %v6145
      %v6147 = vlaneseq
      %v6148 = vshrl.u32 %v6147, 7
      %v6149 = vsub.s32 %v6146, %v6148
      %v6150 = vrot.slane %v6141, %v6149
      %v6152 = vunpack.c.l.s4 1966171168
      %v6153 = vunpack.c.0.s8 %v6152
      %v6154 = vlaneseq
      %v6155 = vshrl.u32 %v6154, 7
      %v6156 = vsub.s32 %v6153, %v6155
      %v6157 = vrot.slane %v6143, %v6156
      %v6158 = vcombine.high %v6150, %v6150
      %v6159 = vcombine.high %v6157, %v6157
      %v6161 = vunpack.c.l.s4 1966171168
      %v6162 = vunpack.c.0.s8 %v6161
      %v6163 = vlaneseq
      %v6164 = vshrl.u32 %v6163, 7
      %v6165 = vsub.s32 %v6162, %v6164
      %v6166 = vrot.slane %v6150, %v6165
      %v6168 = vunpack.c.l.s4 1966171168
      %v6169 = vunpack.c.0.s8 %v6168
      %v6170 = vlaneseq
      %v6171 = vshrl.u32 %v6170, 7
      %v6172 = vsub.s32 %v6169, %v6171
      %v6173 = vrot.slane %v6157, %v6172
      %v6175 = vunpack.c.l.s4 1966171168
      %v6176 = vunpack.c.0.s8 %v6175
      %v6177 = vlaneseq
      %v6178 = vshrl.u32 %v6177, 7
      %v6179 = vsub.s32 %v6176, %v6178
      %v6180 = vrot.slane %v6158, %v6179
      %v6182 = vunpack.c.l.s4 1966171168
      %v6183 = vunpack.c.0.s8 %v6182
      %v6184 = vlaneseq
      %v6185 = vshrl.u32 %v6184, 7
      %v6186 = vsub.s32 %v6183, %v6185
      %v6187 = vrot.slane %v6159, %v6186
      %v6188 = vcombine.high %v6166, %v6166
      %v6189 = vcombine.high %v6173, %v6173
      %v6190 = vcombine.high %v6180, %v6180
      %v6191 = vcombine.high %v6187, %v6187
      %v6200 = vmul.f32 %v6166, 0.25
      %v6201 = vmul.f32 %v6180, 0.25
      %v6202 = vmul.f32 %v6188, 0.25
      %v6203 = vmul.f32 %v6190, 0.25
      %v6204 = vmul.f32 %v6173, 0.25
      %v6205 = vmul.f32 %v6187, 0.25
      %v6206 = vmul.f32 %v6189, 0.25
      %v6207 = vmul.f32 %v6191, 0.25
      %v6216 = vlaneseq
      %v6217 = vshrl.u32 %v6216, 7
      %v6218 = vsub.s32 0, %v6217
      %v6219 = vrot.slane %v6200, %v6218
      %v6220 = vlaneseq
      %v6221 = vshrl.u32 %v6220, 7
      %v6222 = vsub.s32 0, %v6221
      %v6223 = vrot.slane %v6201, %v6222
      %v6224 = vlaneseq
      %v6225 = vshrl.u32 %v6224, 7
      %v6226 = vsub.s32 0, %v6225
      %v6227 = vrot.slane %v6202, %v6226
      %v6228 = vlaneseq
      %v6229 = vshrl.u32 %v6228, 7
      %v6230 = vsub.s32 0, %v6229
      %v6231 = vrot.slane %v6203, %v6230
      %v6232 = vlaneseq
      %v6233 = vshrl.u32 %v6232, 7
      %v6234 = vsub.s32 0, %v6233
      %v6235 = vrot.slane %v6204, %v6234
      %v6236 = vlaneseq
      %v6237 = vshrl.u32 %v6236, 7
      %v6238 = vsub.s32 0, %v6237
      %v6239 = vrot.slane %v6205, %v6238
      %v6240 = vlaneseq
      %v6241 = vshrl.u32 %v6240, 7
      %v6242 = vsub.s32 0, %v6241
      %v6243 = vrot.slane %v6206, %v6242
      %v6244 = vlaneseq
      %v6245 = vshrl.u32 %v6244, 7
      %v6246 = vsub.s32 0, %v6245
      %v6247 = vrot.slane %v6207, %v6246
      %6248 = vset.pattern.permute.xlu0 2
      %6249 = vperm.xlu0 %6248, %v6219
      %v6250 = vpop.permute.xlu0 %6249
      %6252 = vset.pattern.permute.xlu0 2
      %6253 = vperm.xlu0 %6252, %v6223
      %v6254 = vpop.permute.xlu0 %6253
      %6256 = vset.pattern.permute.xlu0 2
      %6257 = vperm.xlu0 %6256, %v6227
      %v6258 = vpop.permute.xlu0 %6257
      %6260 = vset.pattern.permute.xlu0 2
      %6261 = vperm.xlu0 %6260, %v6231
      %v6262 = vpop.permute.xlu0 %6261
      %6264 = vset.pattern.permute.xlu0 2
      %6265 = vperm.xlu0 %6264, %v6235
      %v6266 = vpop.permute.xlu0 %6265
      %6268 = vset.pattern.permute.xlu0 2
      %6269 = vperm.xlu0 %6268, %v6239
      %v6270 = vpop.permute.xlu0 %6269
      %6272 = vset.pattern.permute.xlu0 2
      %6273 = vperm.xlu0 %6272, %v6243
      %v6274 = vpop.permute.xlu0 %6273
      %6276 = vset.pattern.permute.xlu0 2
      %6277 = vperm.xlu0 %6276, %v6247
      %v6278 = vpop.permute.xlu0 %6277
      %v6280 = vmul.f32 %v5945, %v6250
      %v6281 = vmul.f32 %v5969, %v6254
      %v6282 = vmul.f32 %v5952, %v6258
      %v6283 = vmul.f32 %v5970, %v6262
      %v6284 = vmul.f32 %v5961, %v6266
      %v6285 = vmul.f32 %v5971, %v6270
      %v6286 = vmul.f32 %v5968, %v6274
      %v6287 = vmul.f32 %v5972, %v6278
      %v6288 = vlaneseq
      %v6289 = vshrl.u32 %v6288, 7
      %v6290 = vsub.s32 0, %v6289
      %v6291 = vrot.slane %v6166, %v6290
      %v6292 = vlaneseq
      %v6293 = vshrl.u32 %v6292, 7
      %v6294 = vsub.s32 0, %v6293
      %v6295 = vrot.slane %v6180, %v6294
      %v6296 = vlaneseq
      %v6297 = vshrl.u32 %v6296, 7
      %v6298 = vsub.s32 0, %v6297
      %v6299 = vrot.slane %v6188, %v6298
      %v6300 = vlaneseq
      %v6301 = vshrl.u32 %v6300, 7
      %v6302 = vsub.s32 0, %v6301
      %v6303 = vrot.slane %v6190, %v6302
      %v6304 = vlaneseq
      %v6305 = vshrl.u32 %v6304, 7
      %v6306 = vsub.s32 0, %v6305
      %v6307 = vrot.slane %v6173, %v6306
      %v6308 = vlaneseq
      %v6309 = vshrl.u32 %v6308, 7
      %v6310 = vsub.s32 0, %v6309
      %v6311 = vrot.slane %v6187, %v6310
      %v6312 = vlaneseq
      %v6313 = vshrl.u32 %v6312, 7
      %v6314 = vsub.s32 0, %v6313
      %v6315 = vrot.slane %v6189, %v6314
      %v6316 = vlaneseq
      %v6317 = vshrl.u32 %v6316, 7
      %v6318 = vsub.s32 0, %v6317
      %v6319 = vrot.slane %v6191, %v6318
      %6320 = vset.pattern.permute.xlu0 0
      %6321 = vperm.xlu0 %6320, %v6291
      %v6322 = vpop.permute.xlu0 %6321
      %6324 = vset.pattern.permute.xlu0 0
      %6325 = vperm.xlu0 %6324, %v6295
      %v6326 = vpop.permute.xlu0 %6325
      %6328 = vset.pattern.permute.xlu0 0
      %6329 = vperm.xlu0 %6328, %v6299
      %v6330 = vpop.permute.xlu0 %6329
      %6332 = vset.pattern.permute.xlu0 0
      %6333 = vperm.xlu0 %6332, %v6303
      %v6334 = vpop.permute.xlu0 %6333
      %6336 = vset.pattern.permute.xlu0 0
      %6337 = vperm.xlu0 %6336, %v6307
      %v6338 = vpop.permute.xlu0 %6337
      %6340 = vset.pattern.permute.xlu0 0
      %6341 = vperm.xlu0 %6340, %v6311
      %v6342 = vpop.permute.xlu0 %6341
      %6344 = vset.pattern.permute.xlu0 0
      %6345 = vperm.xlu0 %6344, %v6315
      %v6346 = vpop.permute.xlu0 %6345
      %6348 = vset.pattern.permute.xlu0 0
      %6349 = vperm.xlu0 %6348, %v6319
      %v6350 = vpop.permute.xlu0 %6349
      %v6352 = vadd.f32 %v6322, %v6280
      %v6353 = vadd.f32 %v6326, %v6281
      %v6354 = vadd.f32 %v6330, %v6282
      %v6355 = vadd.f32 %v6334, %v6283
      %v6356 = vadd.f32 %v6338, %v6284
      %v6357 = vadd.f32 %v6342, %v6285
      %v6358 = vadd.f32 %v6346, %v6286
      %v6359 = vadd.f32 %v6350, %v6287
      %v6360 = vmul.f32 %v6352, 8.0
      %v6361 = vmul.f32 %v6353, 8.0
      %v6362 = vmul.f32 %v6354, 8.0
      %v6363 = vmul.f32 %v6355, 8.0
      %v6364 = vmul.f32 %v6356, 8.0
      %v6365 = vmul.f32 %v6357, 8.0
      %v6366 = vmul.f32 %v6358, 8.0
      %v6367 = vmul.f32 %v6359, 8.0
      %v6368 = vsub.f32 %v6360, 0.5
      %v6369 = vsub.f32 %v6361, 0.5
      %v6370 = vsub.f32 %v6362, 0.5
      %v6371 = vsub.f32 %v6363, 0.5
      %v6372 = vsub.f32 %v6364, 0.5
      %v6373 = vsub.f32 %v6365, 0.5
      %v6374 = vsub.f32 %v6366, 0.5
      %v6375 = vsub.f32 %v6367, 0.5
      %6377 = vset.pattern.permute.xlu0 0
      %6378 = vperm.xlu0 %6377, %v6368
      %v6379 = vpop.permute.xlu0 %6378
      %6382 = vset.pattern.permute.xlu0 0
      %6383 = vperm.xlu0 %6382, %v6369
      %v6384 = vpop.permute.xlu0 %6383
      %6387 = vset.pattern.permute.xlu0 0
      %6388 = vperm.xlu0 %6387, %v6370
      %v6389 = vpop.permute.xlu0 %6388
      %6392 = vset.pattern.permute.xlu0 0
      %6393 = vperm.xlu0 %6392, %v6371
      %v6394 = vpop.permute.xlu0 %6393
      %6397 = vset.pattern.permute.xlu0 0
      %6398 = vperm.xlu0 %6397, %v6372
      %v6399 = vpop.permute.xlu0 %6398
      %6402 = vset.pattern.permute.xlu0 0
      %6403 = vperm.xlu0 %6402, %v6373
      %v6404 = vpop.permute.xlu0 %6403
      %6407 = vset.pattern.permute.xlu0 0
      %6408 = vperm.xlu0 %6407, %v6374
      %v6409 = vpop.permute.xlu0 %6408
      %6412 = vset.pattern.permute.xlu0 0
      %6413 = vperm.xlu0 %6412, %v6375
      %v6414 = vpop.permute.xlu0 %6413
      %v6416 = vsub.f32 %v4108, %v6379
      %v6417 = vsub.f32 %v4108, %v6384
      %v6418 = vsub.f32 %v4108, %v6389
      %v6419 = vsub.f32 %v4108, %v6394
      %v6420 = vsub.f32 %v4108, %v6399
      %v6421 = vsub.f32 %v4108, %v6404
      %v6422 = vsub.f32 %v4108, %v6409
      %v6423 = vsub.f32 %v4108, %v6414
      %v6424 = vand.u32 2147483647, %v6416
      %v6425 = vand.u32 2147483647, %v6417
      %v6426 = vand.u32 2147483647, %v6418
      %v6427 = vand.u32 2147483647, %v6419
      %v6428 = vand.u32 2147483647, %v6420
      %v6429 = vand.u32 2147483647, %v6421
      %v6430 = vand.u32 2147483647, %v6422
      %v6431 = vand.u32 2147483647, %v6423
      %v6432 = vsub.f32 1.0, %v6424
      %v6433 = vsub.f32 1.0, %v6425
      %v6434 = vsub.f32 1.0, %v6426
      %v6435 = vsub.f32 1.0, %v6427
      %v6436 = vsub.f32 1.0, %v6428
      %v6437 = vsub.f32 1.0, %v6429
      %v6438 = vsub.f32 1.0, %v6430
      %v6439 = vsub.f32 1.0, %v6431
      %v6440 = vmax.f32 %v6432, 0.0
      %v6441 = vmax.f32 %v6433, 0.0
      %v6442 = vmax.f32 %v6434, 0.0
      %v6443 = vmax.f32 %v6435, 0.0
      %v6444 = vmax.f32 %v6436, 0.0
      %v6445 = vmax.f32 %v6437, 0.0
      %v6446 = vmax.f32 %v6438, 0.0
      %v6447 = vmax.f32 %v6439, 0.0
      %6449 = vset.pattern.permute.xlu0 0
      %6450 = vperm.xlu0 %6449, %v6133
      %v6451 = vpop.permute.xlu0 %6450
      %6454 = vset.pattern.permute.xlu0 0
      %6455 = vperm.xlu0 %6454, %v6134
      %v6456 = vpop.permute.xlu0 %6455
      %6459 = vset.pattern.permute.xlu0 0
      %6460 = vperm.xlu0 %6459, %v6135
      %v6461 = vpop.permute.xlu0 %6460
      %6464 = vset.pattern.permute.xlu0 0
      %6465 = vperm.xlu0 %6464, %v6136
      %v6466 = vpop.permute.xlu0 %6465
      %6469 = vset.pattern.permute.xlu0 0
      %6470 = vperm.xlu0 %6469, %v6137
      %v6471 = vpop.permute.xlu0 %6470
      %6474 = vset.pattern.permute.xlu0 0
      %6475 = vperm.xlu0 %6474, %v6138
      %v6476 = vpop.permute.xlu0 %6475
      %6479 = vset.pattern.permute.xlu0 0
      %6480 = vperm.xlu0 %6479, %v6139
      %v6481 = vpop.permute.xlu0 %6480
      %6484 = vset.pattern.permute.xlu0 0
      %6485 = vperm.xlu0 %6484, %v6140
      %v6486 = vpop.permute.xlu0 %6485
      %v6488 = vmul.f32 %v6451, %v6440
      %v6489 = vmul.f32 %v6456, %v6441
      %v6490 = vmul.f32 %v6461, %v6442
      %v6491 = vmul.f32 %v6466, %v6443
      %v6492 = vmul.f32 %v6471, %v6444
      %v6493 = vmul.f32 %v6476, %v6445
      %v6494 = vmul.f32 %v6481, %v6446
      %v6495 = vmul.f32 %v6486, %v6447
      %v6496 = vadd.f32 %v6488, 0.0
      %v6497 = vadd.f32 %v6489, 0.0
      %v6498 = vadd.f32 %v6490, 0.0
      %v6499 = vadd.f32 %v6491, 0.0
      %v6500 = vadd.f32 %v6492, 0.0
      %v6501 = vadd.f32 %v6493, 0.0
      %v6502 = vadd.f32 %v6494, 0.0
      %v6503 = vadd.f32 %v6495, 0.0
      %6504 = vset.pattern.permute.xlu0 1
      %6505 = vperm.xlu0 %6504, %v6368
      %v6506 = vpop.permute.xlu0 %6505
      %6508 = vset.pattern.permute.xlu0 1
      %6509 = vperm.xlu0 %6508, %v6369
      %v6510 = vpop.permute.xlu0 %6509
      %6512 = vset.pattern.permute.xlu0 1
      %6513 = vperm.xlu0 %6512, %v6370
      %v6514 = vpop.permute.xlu0 %6513
      %6516 = vset.pattern.permute.xlu0 1
      %6517 = vperm.xlu0 %6516, %v6371
      %v6518 = vpop.permute.xlu0 %6517
      %6520 = vset.pattern.permute.xlu0 1
      %6521 = vperm.xlu0 %6520, %v6372
      %v6522 = vpop.permute.xlu0 %6521
      %6524 = vset.pattern.permute.xlu0 1
      %6525 = vperm.xlu0 %6524, %v6373
      %v6526 = vpop.permute.xlu0 %6525
      %6528 = vset.pattern.permute.xlu0 1
      %6529 = vperm.xlu0 %6528, %v6374
      %v6530 = vpop.permute.xlu0 %6529
      %6532 = vset.pattern.permute.xlu0 1
      %6533 = vperm.xlu0 %6532, %v6375
      %v6534 = vpop.permute.xlu0 %6533
      %v6536 = vsub.f32 %v4108, %v6506
      %v6537 = vsub.f32 %v4108, %v6510
      %v6538 = vsub.f32 %v4108, %v6514
      %v6539 = vsub.f32 %v4108, %v6518
      %v6540 = vsub.f32 %v4108, %v6522
      %v6541 = vsub.f32 %v4108, %v6526
      %v6542 = vsub.f32 %v4108, %v6530
      %v6543 = vsub.f32 %v4108, %v6534
      %v6544 = vand.u32 2147483647, %v6536
      %v6545 = vand.u32 2147483647, %v6537
      %v6546 = vand.u32 2147483647, %v6538
      %v6547 = vand.u32 2147483647, %v6539
      %v6548 = vand.u32 2147483647, %v6540
      %v6549 = vand.u32 2147483647, %v6541
      %v6550 = vand.u32 2147483647, %v6542
      %v6551 = vand.u32 2147483647, %v6543
      %v6552 = vsub.f32 1.0, %v6544
      %v6553 = vsub.f32 1.0, %v6545
      %v6554 = vsub.f32 1.0, %v6546
      %v6555 = vsub.f32 1.0, %v6547
      %v6556 = vsub.f32 1.0, %v6548
      %v6557 = vsub.f32 1.0, %v6549
      %v6558 = vsub.f32 1.0, %v6550
      %v6559 = vsub.f32 1.0, %v6551
      %v6560 = vmax.f32 %v6552, 0.0
      %v6561 = vmax.f32 %v6553, 0.0
      %v6562 = vmax.f32 %v6554, 0.0
      %v6563 = vmax.f32 %v6555, 0.0
      %v6564 = vmax.f32 %v6556, 0.0
      %v6565 = vmax.f32 %v6557, 0.0
      %v6566 = vmax.f32 %v6558, 0.0
      %v6567 = vmax.f32 %v6559, 0.0
      %6568 = vset.pattern.permute.xlu0 1
      %6569 = vperm.xlu0 %6568, %v6133
      %v6570 = vpop.permute.xlu0 %6569
      %6572 = vset.pattern.permute.xlu0 1
      %6573 = vperm.xlu0 %6572, %v6134
      %v6574 = vpop.permute.xlu0 %6573
      %6576 = vset.pattern.permute.xlu0 1
      %6577 = vperm.xlu0 %6576, %v6135
      %v6578 = vpop.permute.xlu0 %6577
      %6580 = vset.pattern.permute.xlu0 1
      %6581 = vperm.xlu0 %6580, %v6136
      %v6582 = vpop.permute.xlu0 %6581
      %6584 = vset.pattern.permute.xlu0 1
      %6585 = vperm.xlu0 %6584, %v6137
      %v6586 = vpop.permute.xlu0 %6585
      %6588 = vset.pattern.permute.xlu0 1
      %6589 = vperm.xlu0 %6588, %v6138
      %v6590 = vpop.permute.xlu0 %6589
      %6592 = vset.pattern.permute.xlu0 1
      %6593 = vperm.xlu0 %6592, %v6139
      %v6594 = vpop.permute.xlu0 %6593
      %6596 = vset.pattern.permute.xlu0 1
      %6597 = vperm.xlu0 %6596, %v6140
      %v6598 = vpop.permute.xlu0 %6597
      %v6600 = vmul.f32 %v6570, %v6560
      %v6601 = vmul.f32 %v6574, %v6561
      %v6602 = vmul.f32 %v6578, %v6562
      %v6603 = vmul.f32 %v6582, %v6563
      %v6604 = vmul.f32 %v6586, %v6564
      %v6605 = vmul.f32 %v6590, %v6565
      %v6606 = vmul.f32 %v6594, %v6566
      %v6607 = vmul.f32 %v6598, %v6567
      %v6608 = vadd.f32 %v6496, %v6600
      %v6609 = vadd.f32 %v6497, %v6601
      %v6610 = vadd.f32 %v6498, %v6602
      %v6611 = vadd.f32 %v6499, %v6603
      %v6612 = vadd.f32 %v6500, %v6604
      %v6613 = vadd.f32 %v6501, %v6605
      %v6614 = vadd.f32 %v6502, %v6606
      %v6615 = vadd.f32 %v6503, %v6607
      %v6616 = vpack.c.bf16 %v6608, %v6608
      %v6617 = vpack.c.bf16 %v6609, %v6609
      %v6618 = vpack.c.bf16 %v6610, %v6610
      %v6619 = vpack.c.bf16 %v6611, %v6611
      %v6620 = vpack.c.bf16 %v6612, %v6612
      %v6621 = vpack.c.bf16 %v6613, %v6613
      %v6622 = vpack.c.bf16 %v6614, %v6614
      %v6623 = vpack.c.bf16 %v6615, %v6615
      %v6624 = vpack.c.bf16 %v5766, %v5766
      %v6625 = vpack.c.bf16 %v5790, %v5790
      %v6626 = vpack.c.bf16 %v5773, %v5773
      %v6627 = vpack.c.bf16 %v5791, %v5791
      %v6628 = vpack.c.bf16 %v5782, %v5782
      %v6629 = vpack.c.bf16 %v5792, %v5792
      %v6630 = vpack.c.bf16 %v5789, %v5789
      %v6631 = vpack.c.bf16 %v5793, %v5793
      %6632 = vset.pattern.permute.xlu0 3
      %6633 = vperm.xlu0 %6632, %v6219
      %v6634 = vpop.permute.xlu0 %6633
      %6636 = vset.pattern.permute.xlu0 3
      %6637 = vperm.xlu0 %6636, %v6223
      %v6638 = vpop.permute.xlu0 %6637
      %6640 = vset.pattern.permute.xlu0 3
      %6641 = vperm.xlu0 %6640, %v6227
      %v6642 = vpop.permute.xlu0 %6641
      %6644 = vset.pattern.permute.xlu0 3
      %6645 = vperm.xlu0 %6644, %v6231
      %v6646 = vpop.permute.xlu0 %6645
      %6648 = vset.pattern.permute.xlu0 3
      %6649 = vperm.xlu0 %6648, %v6235
      %v6650 = vpop.permute.xlu0 %6649
      %6652 = vset.pattern.permute.xlu0 3
      %6653 = vperm.xlu0 %6652, %v6239
      %v6654 = vpop.permute.xlu0 %6653
      %6656 = vset.pattern.permute.xlu0 3
      %6657 = vperm.xlu0 %6656, %v6243
      %v6658 = vpop.permute.xlu0 %6657
      %6660 = vset.pattern.permute.xlu0 3
      %6661 = vperm.xlu0 %6660, %v6247
      %v6662 = vpop.permute.xlu0 %6661
      %v6664 = vmul.f32 %v5945, %v6634
      %v6665 = vmul.f32 %v5969, %v6638
      %v6666 = vmul.f32 %v5952, %v6642
      %v6667 = vmul.f32 %v5970, %v6646
      %v6668 = vmul.f32 %v5961, %v6650
      %v6669 = vmul.f32 %v5971, %v6654
      %v6670 = vmul.f32 %v5968, %v6658
      %v6671 = vmul.f32 %v5972, %v6662
      %6672 = vset.pattern.permute.xlu0 1
      %6673 = vperm.xlu0 %6672, %v6291
      %v6674 = vpop.permute.xlu0 %6673
      %6676 = vset.pattern.permute.xlu0 1
      %6677 = vperm.xlu0 %6676, %v6295
      %v6678 = vpop.permute.xlu0 %6677
      %6680 = vset.pattern.permute.xlu0 1
      %6681 = vperm.xlu0 %6680, %v6299
      %v6682 = vpop.permute.xlu0 %6681
      %6684 = vset.pattern.permute.xlu0 1
      %6685 = vperm.xlu0 %6684, %v6303
      %v6686 = vpop.permute.xlu0 %6685
      %6688 = vset.pattern.permute.xlu0 1
      %6689 = vperm.xlu0 %6688, %v6307
      %v6690 = vpop.permute.xlu0 %6689
      %6692 = vset.pattern.permute.xlu0 1
      %6693 = vperm.xlu0 %6692, %v6311
      %v6694 = vpop.permute.xlu0 %6693
      %6696 = vset.pattern.permute.xlu0 1
      %6697 = vperm.xlu0 %6696, %v6315
      %v6698 = vpop.permute.xlu0 %6697
      %6700 = vset.pattern.permute.xlu0 1
      %6701 = vperm.xlu0 %6700, %v6319
      %v6702 = vpop.permute.xlu0 %6701
      %v6704 = vadd.f32 %v6674, %v6664
      %v6705 = vadd.f32 %v6678, %v6665
      %v6706 = vadd.f32 %v6682, %v6666
      %v6707 = vadd.f32 %v6686, %v6667
      %v6708 = vadd.f32 %v6690, %v6668
      %v6709 = vadd.f32 %v6694, %v6669
      %v6710 = vadd.f32 %v6698, %v6670
      %v6711 = vadd.f32 %v6702, %v6671
      %v6712 = vmul.f32 %v6704, 4.0
      %v6713 = vmul.f32 %v6705, 4.0
      %v6714 = vmul.f32 %v6706, 4.0
      %v6715 = vmul.f32 %v6707, 4.0
      %v6716 = vmul.f32 %v6708, 4.0
      %v6717 = vmul.f32 %v6709, 4.0
      %v6718 = vmul.f32 %v6710, 4.0
      %v6719 = vmul.f32 %v6711, 4.0
      %v6720 = vsub.f32 %v6712, 0.5
      %v6721 = vsub.f32 %v6713, 0.5
      %v6722 = vsub.f32 %v6714, 0.5
      %v6723 = vsub.f32 %v6715, 0.5
      %v6724 = vsub.f32 %v6716, 0.5
      %v6725 = vsub.f32 %v6717, 0.5
      %v6726 = vsub.f32 %v6718, 0.5
      %v6727 = vsub.f32 %v6719, 0.5
      %6729 = vset.pattern.permute.xlu0 2
      %6730 = vperm.xlu0 %6729, %v6720
      %v6731 = vpop.permute.xlu0 %6730
      %6734 = vset.pattern.permute.xlu0 2
      %6735 = vperm.xlu0 %6734, %v6721
      %v6736 = vpop.permute.xlu0 %6735
      %6739 = vset.pattern.permute.xlu0 2
      %6740 = vperm.xlu0 %6739, %v6722
      %v6741 = vpop.permute.xlu0 %6740
      %6744 = vset.pattern.permute.xlu0 2
      %6745 = vperm.xlu0 %6744, %v6723
      %v6746 = vpop.permute.xlu0 %6745
      %6749 = vset.pattern.permute.xlu0 2
      %6750 = vperm.xlu0 %6749, %v6724
      %v6751 = vpop.permute.xlu0 %6750
      %6754 = vset.pattern.permute.xlu0 2
      %6755 = vperm.xlu0 %6754, %v6725
      %v6756 = vpop.permute.xlu0 %6755
      %6759 = vset.pattern.permute.xlu0 2
      %6760 = vperm.xlu0 %6759, %v6726
      %v6761 = vpop.permute.xlu0 %6760
      %6764 = vset.pattern.permute.xlu0 2
      %6765 = vperm.xlu0 %6764, %v6727
      %v6766 = vpop.permute.xlu0 %6765
      %v6768 = vsub.f32 %v4108, %v6731
      %v6769 = vsub.f32 %v4108, %v6736
      %v6770 = vsub.f32 %v4108, %v6741
      %v6771 = vsub.f32 %v4108, %v6746
      %v6772 = vsub.f32 %v4108, %v6751
      %v6773 = vsub.f32 %v4108, %v6756
      %v6774 = vsub.f32 %v4108, %v6761
      %v6775 = vsub.f32 %v4108, %v6766
      %v6776 = vand.u32 2147483647, %v6768
      %v6777 = vand.u32 2147483647, %v6769
      %v6778 = vand.u32 2147483647, %v6770
      %v6779 = vand.u32 2147483647, %v6771
      %v6780 = vand.u32 2147483647, %v6772
      %v6781 = vand.u32 2147483647, %v6773
      %v6782 = vand.u32 2147483647, %v6774
      %v6783 = vand.u32 2147483647, %v6775
      %v6784 = vsub.f32 1.0, %v6776
      %v6785 = vsub.f32 1.0, %v6777
      %v6786 = vsub.f32 1.0, %v6778
      %v6787 = vsub.f32 1.0, %v6779
      %v6788 = vsub.f32 1.0, %v6780
      %v6789 = vsub.f32 1.0, %v6781
      %v6790 = vsub.f32 1.0, %v6782
      %v6791 = vsub.f32 1.0, %v6783
      %v6792 = vmax.f32 %v6784, 0.0
      %v6793 = vmax.f32 %v6785, 0.0
      %v6794 = vmax.f32 %v6786, 0.0
      %v6795 = vmax.f32 %v6787, 0.0
      %v6796 = vmax.f32 %v6788, 0.0
      %v6797 = vmax.f32 %v6789, 0.0
      %v6798 = vmax.f32 %v6790, 0.0
      %v6799 = vmax.f32 %v6791, 0.0
      %6800 = vset.pattern.permute.xlu0 2
      %6801 = vperm.xlu0 %6800, %v6133
      %v6802 = vpop.permute.xlu0 %6801
      %6804 = vset.pattern.permute.xlu0 2
      %6805 = vperm.xlu0 %6804, %v6134
      %v6806 = vpop.permute.xlu0 %6805
      %6808 = vset.pattern.permute.xlu0 2
      %6809 = vperm.xlu0 %6808, %v6135
      %v6810 = vpop.permute.xlu0 %6809
      %6812 = vset.pattern.permute.xlu0 2
      %6813 = vperm.xlu0 %6812, %v6136
      %v6814 = vpop.permute.xlu0 %6813
      %6816 = vset.pattern.permute.xlu0 2
      %6817 = vperm.xlu0 %6816, %v6137
      %v6818 = vpop.permute.xlu0 %6817
      %6820 = vset.pattern.permute.xlu0 2
      %6821 = vperm.xlu0 %6820, %v6138
      %v6822 = vpop.permute.xlu0 %6821
      %6824 = vset.pattern.permute.xlu0 2
      %6825 = vperm.xlu0 %6824, %v6139
      %v6826 = vpop.permute.xlu0 %6825
      %6828 = vset.pattern.permute.xlu0 2
      %6829 = vperm.xlu0 %6828, %v6140
      %v6830 = vpop.permute.xlu0 %6829
      %v6832 = vmul.f32 %v6802, %v6792
      %v6833 = vmul.f32 %v6806, %v6793
      %v6834 = vmul.f32 %v6810, %v6794
      %v6835 = vmul.f32 %v6814, %v6795
      %v6836 = vmul.f32 %v6818, %v6796
      %v6837 = vmul.f32 %v6822, %v6797
      %v6838 = vmul.f32 %v6826, %v6798
      %v6839 = vmul.f32 %v6830, %v6799
      %v6840 = vadd.f32 %v6832, 0.0
      %v6841 = vadd.f32 %v6833, 0.0
      %v6842 = vadd.f32 %v6834, 0.0
      %v6843 = vadd.f32 %v6835, 0.0
      %v6844 = vadd.f32 %v6836, 0.0
      %v6845 = vadd.f32 %v6837, 0.0
      %v6846 = vadd.f32 %v6838, 0.0
      %v6847 = vadd.f32 %v6839, 0.0
      %6848 = vset.pattern.permute.xlu0 3
      %6849 = vperm.xlu0 %6848, %v6720
      %v6850 = vpop.permute.xlu0 %6849
      %6852 = vset.pattern.permute.xlu0 3
      %6853 = vperm.xlu0 %6852, %v6721
      %v6854 = vpop.permute.xlu0 %6853
      %6856 = vset.pattern.permute.xlu0 3
      %6857 = vperm.xlu0 %6856, %v6722
      %v6858 = vpop.permute.xlu0 %6857
      %6860 = vset.pattern.permute.xlu0 3
      %6861 = vperm.xlu0 %6860, %v6723
      %v6862 = vpop.permute.xlu0 %6861
      %6864 = vset.pattern.permute.xlu0 3
      %6865 = vperm.xlu0 %6864, %v6724
      %v6866 = vpop.permute.xlu0 %6865
      %6868 = vset.pattern.permute.xlu0 3
      %6869 = vperm.xlu0 %6868, %v6725
      %v6870 = vpop.permute.xlu0 %6869
      %6872 = vset.pattern.permute.xlu0 3
      %6873 = vperm.xlu0 %6872, %v6726
      %v6874 = vpop.permute.xlu0 %6873
      %6876 = vset.pattern.permute.xlu0 3
      %6877 = vperm.xlu0 %6876, %v6727
      %v6878 = vpop.permute.xlu0 %6877
      %v6880 = vsub.f32 %v4108, %v6850
      %v6881 = vsub.f32 %v4108, %v6854
      %v6882 = vsub.f32 %v4108, %v6858
      %v6883 = vsub.f32 %v4108, %v6862
      %v6884 = vsub.f32 %v4108, %v6866
      %v6885 = vsub.f32 %v4108, %v6870
      %v6886 = vsub.f32 %v4108, %v6874
      %v6887 = vsub.f32 %v4108, %v6878
      %v6888 = vand.u32 2147483647, %v6880
      %v6889 = vand.u32 2147483647, %v6881
      %v6890 = vand.u32 2147483647, %v6882
      %v6891 = vand.u32 2147483647, %v6883
      %v6892 = vand.u32 2147483647, %v6884
      %v6893 = vand.u32 2147483647, %v6885
      %v6894 = vand.u32 2147483647, %v6886
      %v6895 = vand.u32 2147483647, %v6887
      %v6896 = vsub.f32 1.0, %v6888
      %v6897 = vsub.f32 1.0, %v6889
      %v6898 = vsub.f32 1.0, %v6890
      %v6899 = vsub.f32 1.0, %v6891
      %v6900 = vsub.f32 1.0, %v6892
      %v6901 = vsub.f32 1.0, %v6893
      %v6902 = vsub.f32 1.0, %v6894
      %v6903 = vsub.f32 1.0, %v6895
      %v6904 = vmax.f32 %v6896, 0.0
      %v6905 = vmax.f32 %v6897, 0.0
      %v6906 = vmax.f32 %v6898, 0.0
      %v6907 = vmax.f32 %v6899, 0.0
      %v6908 = vmax.f32 %v6900, 0.0
      %v6909 = vmax.f32 %v6901, 0.0
      %v6910 = vmax.f32 %v6902, 0.0
      %v6911 = vmax.f32 %v6903, 0.0
      %6912 = vset.pattern.permute.xlu0 3
      %6913 = vperm.xlu0 %6912, %v6133
      %v6914 = vpop.permute.xlu0 %6913
      %6916 = vset.pattern.permute.xlu0 3
      %6917 = vperm.xlu0 %6916, %v6134
      %v6918 = vpop.permute.xlu0 %6917
      %6920 = vset.pattern.permute.xlu0 3
      %6921 = vperm.xlu0 %6920, %v6135
      %v6922 = vpop.permute.xlu0 %6921
      %6924 = vset.pattern.permute.xlu0 3
      %6925 = vperm.xlu0 %6924, %v6136
      %v6926 = vpop.permute.xlu0 %6925
      %6928 = vset.pattern.permute.xlu0 3
      %6929 = vperm.xlu0 %6928, %v6137
      %v6930 = vpop.permute.xlu0 %6929
      %6932 = vset.pattern.permute.xlu0 3
      %6933 = vperm.xlu0 %6932, %v6138
      %v6934 = vpop.permute.xlu0 %6933
      %6936 = vset.pattern.permute.xlu0 3
      %6937 = vperm.xlu0 %6936, %v6139
      %v6938 = vpop.permute.xlu0 %6937
      %6940 = vset.pattern.permute.xlu0 3
      %6941 = vperm.xlu0 %6940, %v6140
      %v6942 = vpop.permute.xlu0 %6941
      %v6944 = vmul.f32 %v6914, %v6904
      %v6945 = vmul.f32 %v6918, %v6905
      %v6946 = vmul.f32 %v6922, %v6906
      %v6947 = vmul.f32 %v6926, %v6907
      %v6948 = vmul.f32 %v6930, %v6908
      %v6949 = vmul.f32 %v6934, %v6909
      %v6950 = vmul.f32 %v6938, %v6910
      %v6951 = vmul.f32 %v6942, %v6911
      %v6952 = vadd.f32 %v6840, %v6944
      %v6953 = vadd.f32 %v6841, %v6945
      %v6954 = vadd.f32 %v6842, %v6946
      %v6955 = vadd.f32 %v6843, %v6947
      %v6956 = vadd.f32 %v6844, %v6948
      %v6957 = vadd.f32 %v6845, %v6949
      %v6958 = vadd.f32 %v6846, %v6950
      %v6959 = vadd.f32 %v6847, %v6951
      %v6960 = vpack.c.bf16 %v6952, %v6952
      %v6961 = vpack.c.bf16 %v6953, %v6953
      %v6962 = vpack.c.bf16 %v6954, %v6954
      %v6963 = vpack.c.bf16 %v6955, %v6955
      %v6964 = vpack.c.bf16 %v6956, %v6956
      %v6965 = vpack.c.bf16 %v6957, %v6957
      %v6966 = vpack.c.bf16 %v6958, %v6958
      %v6967 = vpack.c.bf16 %v6959, %v6959
      %v6968 = vcombine.low %v6960, %v6964
      %v6970 = vunpack.c.l.s4 1983009808
      %v6971 = vunpack.c.0.s8 %v6970
      %v6972 = vlaneseq
      %v6973 = vshrl.u32 %v6972, 7
      %v6974 = vsub.s32 %v6971, %v6973
      %v6975 = vrot.slane %v6968, %v6974
      %v6976 = vcombine.low %v6962, %v6966
      %v6978 = vunpack.c.l.s4 1983009808
      %v6979 = vunpack.c.0.s8 %v6978
      %v6980 = vlaneseq
      %v6981 = vshrl.u32 %v6980, 7
      %v6982 = vsub.s32 %v6979, %v6981
      %v6983 = vrot.slane %v6976, %v6982
      %v6984 = vcombine.low %v6975, %v6983
      %v6986 = vunpack.c.l.s4 1934713408
      %v6987 = vunpack.c.0.s8 %v6986
      %v6988 = vlaneseq
      %v6989 = vshrl.u32 %v6988, 7
      %v6990 = vsub.s32 %v6987, %v6989
      %v6991 = vrot.slane %v6984, %v6990
      %v6992 = vcombine.high %v6991, 0
      %v6993 = vcombine.low %v6961, %v6965
      %v6995 = vunpack.c.l.s4 1983009808
      %v6996 = vunpack.c.0.s8 %v6995
      %v6997 = vlaneseq
      %v6998 = vshrl.u32 %v6997, 7
      %v6999 = vsub.s32 %v6996, %v6998
      %v7000 = vrot.slane %v6993, %v6999
      %v7001 = vcombine.low %v6963, %v6967
      %v7003 = vunpack.c.l.s4 1983009808
      %v7004 = vunpack.c.0.s8 %v7003
      %v7005 = vlaneseq
      %v7006 = vshrl.u32 %v7005, 7
      %v7007 = vsub.s32 %v7004, %v7006
      %v7008 = vrot.slane %v7001, %v7007
      %v7009 = vcombine.low %v7000, %v7008
      %v7011 = vunpack.c.l.s4 1934713408
      %v7012 = vunpack.c.0.s8 %v7011
      %v7013 = vlaneseq
      %v7014 = vshrl.u32 %v7013, 7
      %v7015 = vsub.s32 %v7012, %v7014
      %v7016 = vrot.slane %v7009, %v7015
      %v7017 = vcombine.high %v7016, 0
      %v7020 = vpack.i.b16 %v7016, %v6991
      %v7021 = vshrl.u32 %v6991, 16
      %v7022 = vshrl.u32 %v7016, 16
      %v7023 = vpack.i.b16 %v7022, %v7021
      %v7026 = vpack.i.b16 %v7017, %v6992
      %v7027 = vshrl.u32 %v6992, 16
      %v7028 = vshrl.u32 %v7017, 16
      %v7029 = vpack.i.b16 %v7028, %v7027
      %v7030 = vpack.c.bf16 %v5818, %v5818
      %v7031 = vpack.c.bf16 %v5825, %v5825
      %v7032 = vcombine.low %v7030, %v7031
      %v7034 = vunpack.c.l.s4 1934713408
      %v7035 = vunpack.c.0.s8 %v7034
      %v7036 = vlaneseq
      %v7037 = vshrl.u32 %v7036, 7
      %v7038 = vsub.s32 %v7035, %v7037
      %v7039 = vrot.slane %v7032, %v7038
      %v7040 = vcombine.high %v7039, 0
      %v7041 = vpack.c.bf16 %v5826, %v5826
      %v7042 = vpack.c.bf16 %v5827, %v5827
      %v7043 = vcombine.low %v7041, %v7042
      %v7045 = vunpack.c.l.s4 1934713408
      %v7046 = vunpack.c.0.s8 %v7045
      %v7047 = vlaneseq
      %v7048 = vshrl.u32 %v7047, 7
      %v7049 = vsub.s32 %v7046, %v7048
      %v7050 = vrot.slane %v7043, %v7049
      %v7051 = vcombine.high %v7050, 0
      %v7054 = vpack.i.b16 %v7050, %v7039
      %v7055 = vshrl.u32 %v7039, 16
      %v7056 = vshrl.u32 %v7050, 16
      %v7057 = vpack.i.b16 %v7056, %v7055
      %v7060 = vpack.i.b16 %v7051, %v7040
      %v7061 = vshrl.u32 %v7040, 16
      %v7062 = vshrl.u32 %v7051, 16
      %v7063 = vpack.i.b16 %v7062, %v7061
      %vm7064 = vcmask 31744
      %v7066 = vsel %vm7064, %v7020, 0
      %vm7068 = vcmask 1041408
      %v7070 = vsel %vm7068, %v7054, 0
      %7072 = vmatprep.subr.bf16.mxu0 0
      %7073 = vmatpush1.bf16.msra.mxu0 %v7070
      %7074 = vmatprep.subr.bf16.mxu0 0
      %7075 = vmatpush1.bf16.msra.mxu0 0
      %7076 = vmatprep.subr.bf16.mxu0 0
      %7077 = vmatpush1.bf16.msra.mxu0 0
      %7078 = vmatprep.subr.bf16.mxu0 0
      %7079 = vmatpush1.bf16.msra.mxu0 0
      %7080 = vmatprep.subr.bf16.mxu0 0
      %7081 = vmatpush1.bf16.msra.mxu0 0
      %7082 = vmatprep.subr.bf16.mxu0 0
      %7083 = vmatpush1.bf16.msra.mxu0 0
      %7084 = vmatprep.subr.bf16.mxu0 0
      %7085 = vmatpush1.bf16.msra.mxu0 0
      %7086 = vmatprep.subr.bf16.mxu0 0
      %7087 = vmatpush1.bf16.msra.mxu0 0
      %7088 = vmatprep.subr.bf16.mxu0 0
      %7089 = vmatpush1.bf16.msra.mxu0 0
      %7090 = vmatprep.subr.bf16.mxu0 0
      %7091 = vmatpush1.bf16.msra.mxu0 0
      %7092 = vmatprep.subr.bf16.mxu0 0
      %7093 = vmatpush1.bf16.msra.mxu0 0
      %7094 = vmatprep.subr.bf16.mxu0 0
      %7095 = vmatpush1.bf16.msra.mxu0 0
      %7096 = vmatprep.subr.bf16.mxu0 0
      %7097 = vmatpush1.bf16.msra.mxu0 0
      %7098 = vmatprep.subr.bf16.mxu0 0
      %7099 = vmatpush1.bf16.msra.mxu0 0
      %7100 = vmatprep.subr.bf16.mxu0 0
      %7101 = vmatpush1.bf16.msra.mxu0 0
      %7102 = vmatprep.subr.bf16.mxu0 0
      %7103 = vmatpush1.bf16.msra.mxu0 0
      %7104 = vmatprep.mubr.bf16.mxu0 0
      %7105 = vmatmul.mubr.bf16.gmra.mrb[0].mxu0 %v7066
      %v7106 = vpop.f32.mrb[0].mxu0
      %v7107 = vadd.f32 0.0, %v7106
      %v7108 = vpop.f32.mrb[0].mxu0
      %v7109 = vpop.f32.mrb[0].mxu0
      %v7110 = vpop.f32.mrb[0].mxu0
      %7111 = vdwg.mxu0
      %v7113 = vsel %vm7064, %v7023, 0
      %v7116 = vsel %vm7068, %v7057, 0
      %7118 = vmatprep.subr.bf16.mxu0 0
      %7119 = vmatpush1.bf16.msra.mxu0 %v7116
      %7120 = vmatprep.subr.bf16.mxu0 0
      %7121 = vmatpush1.bf16.msra.mxu0 0
      %7122 = vmatprep.subr.bf16.mxu0 0
      %7123 = vmatpush1.bf16.msra.mxu0 0
      %7124 = vmatprep.subr.bf16.mxu0 0
      %7125 = vmatpush1.bf16.msra.mxu0 0
      %7126 = vmatprep.subr.bf16.mxu0 0
      %7127 = vmatpush1.bf16.msra.mxu0 0
      %7128 = vmatprep.subr.bf16.mxu0 0
      %7129 = vmatpush1.bf16.msra.mxu0 0
      %7130 = vmatprep.subr.bf16.mxu0 0
      %7131 = vmatpush1.bf16.msra.mxu0 0
      %7132 = vmatprep.subr.bf16.mxu0 0
      %7133 = vmatpush1.bf16.msra.mxu0 0
      %7134 = vmatprep.subr.bf16.mxu0 0
      %7135 = vmatpush1.bf16.msra.mxu0 0
      %7136 = vmatprep.subr.bf16.mxu0 0
      %7137 = vmatpush1.bf16.msra.mxu0 0
      %7138 = vmatprep.subr.bf16.mxu0 0
      %7139 = vmatpush1.bf16.msra.mxu0 0
      %7140 = vmatprep.subr.bf16.mxu0 0
      %7141 = vmatpush1.bf16.msra.mxu0 0
      %7142 = vmatprep.subr.bf16.mxu0 0
      %7143 = vmatpush1.bf16.msra.mxu0 0
      %7144 = vmatprep.subr.bf16.mxu0 0
      %7145 = vmatpush1.bf16.msra.mxu0 0
      %7146 = vmatprep.subr.bf16.mxu0 0
      %7147 = vmatpush1.bf16.msra.mxu0 0
      %7148 = vmatprep.subr.bf16.mxu0 0
      %7149 = vmatpush1.bf16.msra.mxu0 0
      %7150 = vmatprep.mubr.bf16.mxu0 0
      %7151 = vmatmul.mubr.bf16.gmra.mrb[0].mxu0 %v7113
      %v7152 = vpop.f32.mrb[0].mxu0
      %v7153 = vadd.f32 0.0, %v7152
      %v7154 = vpop.f32.mrb[0].mxu0
      %v7155 = vpop.f32.mrb[0].mxu0
      %v7156 = vpop.f32.mrb[0].mxu0
      %7157 = vdwg.mxu0
      %v7159 = vsel %vm7064, %v7026, 0
      %v7162 = vsel %vm7068, %v7060, 0
      %7164 = vmatprep.subr.bf16.mxu0 0
      %7165 = vmatpush1.bf16.msra.mxu0 %v7162
      %7166 = vmatprep.subr.bf16.mxu0 0
      %7167 = vmatpush1.bf16.msra.mxu0 0
      %7168 = vmatprep.subr.bf16.mxu0 0
      %7169 = vmatpush1.bf16.msra.mxu0 0
      %7170 = vmatprep.subr.bf16.mxu0 0
      %7171 = vmatpush1.bf16.msra.mxu0 0
      %7172 = vmatprep.subr.bf16.mxu0 0
      %7173 = vmatpush1.bf16.msra.mxu0 0
      %7174 = vmatprep.subr.bf16.mxu0 0
      %7175 = vmatpush1.bf16.msra.mxu0 0
      %7176 = vmatprep.subr.bf16.mxu0 0
      %7177 = vmatpush1.bf16.msra.mxu0 0
      %7178 = vmatprep.subr.bf16.mxu0 0
      %7179 = vmatpush1.bf16.msra.mxu0 0
      %7180 = vmatprep.subr.bf16.mxu0 0
      %7181 = vmatpush1.bf16.msra.mxu0 0
      %7182 = vmatprep.subr.bf16.mxu0 0
      %7183 = vmatpush1.bf16.msra.mxu0 0
      %7184 = vmatprep.subr.bf16.mxu0 0
      %7185 = vmatpush1.bf16.msra.mxu0 0
      %7186 = vmatprep.subr.bf16.mxu0 0
      %7187 = vmatpush1.bf16.msra.mxu0 0
      %7188 = vmatprep.subr.bf16.mxu0 0
      %7189 = vmatpush1.bf16.msra.mxu0 0
      %7190 = vmatprep.subr.bf16.mxu0 0
      %7191 = vmatpush1.bf16.msra.mxu0 0
      %7192 = vmatprep.subr.bf16.mxu0 0
      %7193 = vmatpush1.bf16.msra.mxu0 0
      %7194 = vmatprep.subr.bf16.mxu0 0
      %7195 = vmatpush1.bf16.msra.mxu0 0
      %7196 = vmatprep.mubr.bf16.mxu0 0
      %7197 = vmatmul.mubr.bf16.gmra.mrb[0].mxu0 %v7159
      %v7198 = vpop.f32.mrb[0].mxu0
      %v7199 = vadd.f32 0.0, %v7198
      %v7200 = vpop.f32.mrb[0].mxu0
      %v7201 = vpop.f32.mrb[0].mxu0
      %v7202 = vpop.f32.mrb[0].mxu0
      %7203 = vdwg.mxu0
      %v7205 = vsel %vm7064, %v7029, 0
      %v7208 = vsel %vm7068, %v7063, 0
      %7210 = vmatprep.subr.bf16.mxu0 0
      %7211 = vmatpush1.bf16.msra.mxu0 %v7208
      %7212 = vmatprep.subr.bf16.mxu0 0
      %7213 = vmatpush1.bf16.msra.mxu0 0
      %7214 = vmatprep.subr.bf16.mxu0 0
      %7215 = vmatpush1.bf16.msra.mxu0 0
      %7216 = vmatprep.subr.bf16.mxu0 0
      %7217 = vmatpush1.bf16.msra.mxu0 0
      %7218 = vmatprep.subr.bf16.mxu0 0
      %7219 = vmatpush1.bf16.msra.mxu0 0
      %7220 = vmatprep.subr.bf16.mxu0 0
      %7221 = vmatpush1.bf16.msra.mxu0 0
      %7222 = vmatprep.subr.bf16.mxu0 0
      %7223 = vmatpush1.bf16.msra.mxu0 0
      %7224 = vmatprep.subr.bf16.mxu0 0
      %7225 = vmatpush1.bf16.msra.mxu0 0
      %7226 = vmatprep.subr.bf16.mxu0 0
      %7227 = vmatpush1.bf16.msra.mxu0 0
      %7228 = vmatprep.subr.bf16.mxu0 0
      %7229 = vmatpush1.bf16.msra.mxu0 0
      %7230 = vmatprep.subr.bf16.mxu0 0
      %7231 = vmatpush1.bf16.msra.mxu0 0
      %7232 = vmatprep.subr.bf16.mxu0 0
      %7233 = vmatpush1.bf16.msra.mxu0 0
      %7234 = vmatprep.subr.bf16.mxu0 0
      %7235 = vmatpush1.bf16.msra.mxu0 0
      %7236 = vmatprep.subr.bf16.mxu0 0
      %7237 = vmatpush1.bf16.msra.mxu0 0
      %7238 = vmatprep.subr.bf16.mxu0 0
      %7239 = vmatpush1.bf16.msra.mxu0 0
      %7240 = vmatprep.subr.bf16.mxu0 0
      %7241 = vmatpush1.bf16.msra.mxu0 0
      %7242 = vmatprep.mubr.bf16.mxu0 0
      %7243 = vmatmul.mubr.bf16.gmra.mrb[0].mxu0 %v7205
      %v7244 = vpop.f32.mrb[0].mxu0
      %v7245 = vadd.f32 0.0, %v7244
      %v7246 = vpop.f32.mrb[0].mxu0
      %v7247 = vpop.f32.mrb[0].mxu0
      %v7248 = vpop.f32.mrb[0].mxu0
      %7249 = vdwg.mxu0
      %v7250 = vcombine.low %v6616, %v6620
      %v7252 = vunpack.c.l.s4 1983009808
      %v7253 = vunpack.c.0.s8 %v7252
      %v7254 = vlaneseq
      %v7255 = vshrl.u32 %v7254, 7
      %v7256 = vsub.s32 %v7253, %v7255
      %v7257 = vrot.slane %v7250, %v7256
      %v7258 = vcombine.low %v6618, %v6622
      %v7260 = vunpack.c.l.s4 1983009808
      %v7261 = vunpack.c.0.s8 %v7260
      %v7262 = vlaneseq
      %v7263 = vshrl.u32 %v7262, 7
      %v7264 = vsub.s32 %v7261, %v7263
      %v7265 = vrot.slane %v7258, %v7264
      %v7266 = vcombine.low %v7257, %v7265
      %v7268 = vunpack.c.l.s4 1934713408
      %v7269 = vunpack.c.0.s8 %v7268
      %v7270 = vlaneseq
      %v7271 = vshrl.u32 %v7270, 7
      %v7272 = vsub.s32 %v7269, %v7271
      %v7273 = vrot.slane %v7266, %v7272
      %v7274 = vcombine.high %v7273, 0
      %v7275 = vcombine.low %v6617, %v6621
      %v7277 = vunpack.c.l.s4 1983009808
      %v7278 = vunpack.c.0.s8 %v7277
      %v7279 = vlaneseq
      %v7280 = vshrl.u32 %v7279, 7
      %v7281 = vsub.s32 %v7278, %v7280
      %v7282 = vrot.slane %v7275, %v7281
      %v7283 = vcombine.low %v6619, %v6623
      %v7285 = vunpack.c.l.s4 1983009808
      %v7286 = vunpack.c.0.s8 %v7285
      %v7287 = vlaneseq
      %v7288 = vshrl.u32 %v7287, 7
      %v7289 = vsub.s32 %v7286, %v7288
      %v7290 = vrot.slane %v7283, %v7289
      %v7291 = vcombine.low %v7282, %v7290
      %v7293 = vunpack.c.l.s4 1934713408
      %v7294 = vunpack.c.0.s8 %v7293
      %v7295 = vlaneseq
      %v7296 = vshrl.u32 %v7295, 7
      %v7297 = vsub.s32 %v7294, %v7296
      %v7298 = vrot.slane %v7291, %v7297
      %v7299 = vcombine.high %v7298, 0
      %v7302 = vpack.i.b16 %v7298, %v7273
      %v7303 = vshrl.u32 %v7273, 16
      %v7304 = vshrl.u32 %v7298, 16
      %v7305 = vpack.i.b16 %v7304, %v7303
      %v7308 = vpack.i.b16 %v7299, %v7274
      %v7309 = vshrl.u32 %v7274, 16
      %v7310 = vshrl.u32 %v7299, 16
      %v7311 = vpack.i.b16 %v7310, %v7309
      %v7312 = vcombine.low %v6624, %v6628
      %v7314 = vunpack.c.l.s4 1983009808
      %v7315 = vunpack.c.0.s8 %v7314
      %v7316 = vlaneseq
      %v7317 = vshrl.u32 %v7316, 7
      %v7318 = vsub.s32 %v7315, %v7317
      %v7319 = vrot.slane %v7312, %v7318
      %v7320 = vcombine.low %v6626, %v6630
      %v7322 = vunpack.c.l.s4 1983009808
      %v7323 = vunpack.c.0.s8 %v7322
      %v7324 = vlaneseq
      %v7325 = vshrl.u32 %v7324, 7
      %v7326 = vsub.s32 %v7323, %v7325
      %v7327 = vrot.slane %v7320, %v7326
      %v7328 = vcombine.low %v7319, %v7327
      %v7330 = vunpack.c.l.s4 1934713408
      %v7331 = vunpack.c.0.s8 %v7330
      %v7332 = vlaneseq
      %v7333 = vshrl.u32 %v7332, 7
      %v7334 = vsub.s32 %v7331, %v7333
      %v7335 = vrot.slane %v7328, %v7334
      %v7336 = vcombine.high %v7335, 0
      %v7337 = vcombine.low %v6625, %v6629
      %v7339 = vunpack.c.l.s4 1983009808
      %v7340 = vunpack.c.0.s8 %v7339
      %v7341 = vlaneseq
      %v7342 = vshrl.u32 %v7341, 7
      %v7343 = vsub.s32 %v7340, %v7342
      %v7344 = vrot.slane %v7337, %v7343
      %v7345 = vcombine.low %v6627, %v6631
      %v7347 = vunpack.c.l.s4 1983009808
      %v7348 = vunpack.c.0.s8 %v7347
      %v7349 = vlaneseq
      %v7350 = vshrl.u32 %v7349, 7
      %v7351 = vsub.s32 %v7348, %v7350
      %v7352 = vrot.slane %v7345, %v7351
      %v7353 = vcombine.low %v7344, %v7352
      %v7355 = vunpack.c.l.s4 1934713408
      %v7356 = vunpack.c.0.s8 %v7355
      %v7357 = vlaneseq
      %v7358 = vshrl.u32 %v7357, 7
      %v7359 = vsub.s32 %v7356, %v7358
      %v7360 = vrot.slane %v7353, %v7359
      %v7361 = vcombine.high %v7360, 0
      %v7364 = vpack.i.b16 %v7360, %v7335
      %v7365 = vshrl.u32 %v7335, 16
      %v7366 = vshrl.u32 %v7360, 16
      %v7367 = vpack.i.b16 %v7366, %v7365
      %v7370 = vpack.i.b16 %v7361, %v7336
      %v7371 = vshrl.u32 %v7336, 16
      %v7372 = vshrl.u32 %v7361, 16
      %v7373 = vpack.i.b16 %v7372, %v7371
      %v7375 = vsel %vm2463, %v7302, 0
      %v7378 = vsel %vm2467, %v7364, 0
      %7380 = vmatprep.subr.bf16.mxu0 0
      %7381 = vmatpush1.bf16.msra.mxu0 %v7378
      %7382 = vmatprep.subr.bf16.mxu0 0
      %7383 = vmatpush1.bf16.msra.mxu0 0
      %7384 = vmatprep.subr.bf16.mxu0 0
      %7385 = vmatpush1.bf16.msra.mxu0 0
      %7386 = vmatprep.subr.bf16.mxu0 0
      %7387 = vmatpush1.bf16.msra.mxu0 0
      %7388 = vmatprep.subr.bf16.mxu0 0
      %7389 = vmatpush1.bf16.msra.mxu0 0
      %7390 = vmatprep.subr.bf16.mxu0 0
      %7391 = vmatpush1.bf16.msra.mxu0 0
      %7392 = vmatprep.subr.bf16.mxu0 0
      %7393 = vmatpush1.bf16.msra.mxu0 0
      %7394 = vmatprep.subr.bf16.mxu0 0
      %7395 = vmatpush1.bf16.msra.mxu0 0
      %7396 = vmatprep.subr.bf16.mxu0 0
      %7397 = vmatpush1.bf16.msra.mxu0 0
      %7398 = vmatprep.subr.bf16.mxu0 0
      %7399 = vmatpush1.bf16.msra.mxu0 0
      %7400 = vmatprep.subr.bf16.mxu0 0
      %7401 = vmatpush1.bf16.msra.mxu0 0
      %7402 = vmatprep.subr.bf16.mxu0 0
      %7403 = vmatpush1.bf16.msra.mxu0 0
      %7404 = vmatprep.subr.bf16.mxu0 0
      %7405 = vmatpush1.bf16.msra.mxu0 0
      %7406 = vmatprep.subr.bf16.mxu0 0
      %7407 = vmatpush1.bf16.msra.mxu0 0
      %7408 = vmatprep.subr.bf16.mxu0 0
      %7409 = vmatpush1.bf16.msra.mxu0 0
      %7410 = vmatprep.subr.bf16.mxu0 0
      %7411 = vmatpush1.bf16.msra.mxu0 0
      %7412 = vmatprep.mubr.bf16.mxu0 0
      %7413 = vmatmul.mubr.bf16.gmra.mrb[0].mxu0 %v7375
      %v7414 = vpop.f32.mrb[0].mxu0
      %v7415 = vadd.f32 %v7107, %v7414
      %v7416 = vpop.f32.mrb[0].mxu0
      %v7417 = vpop.f32.mrb[0].mxu0
      %v7418 = vpop.f32.mrb[0].mxu0
      %7419 = vdwg.mxu0
      %v7421 = vsel %vm2463, %v7305, 0
      %v7424 = vsel %vm2467, %v7367, 0
      %7426 = vmatprep.subr.bf16.mxu0 0
      %7427 = vmatpush1.bf16.msra.mxu0 %v7424
      %7428 = vmatprep.subr.bf16.mxu0 0
      %7429 = vmatpush1.bf16.msra.mxu0 0
      %7430 = vmatprep.subr.bf16.mxu0 0
      %7431 = vmatpush1.bf16.msra.mxu0 0
      %7432 = vmatprep.subr.bf16.mxu0 0
      %7433 = vmatpush1.bf16.msra.mxu0 0
      %7434 = vmatprep.subr.bf16.mxu0 0
      %7435 = vmatpush1.bf16.msra.mxu0 0
      %7436 = vmatprep.subr.bf16.mxu0 0
      %7437 = vmatpush1.bf16.msra.mxu0 0
      %7438 = vmatprep.subr.bf16.mxu0 0
      %7439 = vmatpush1.bf16.msra.mxu0 0
      %7440 = vmatprep.subr.bf16.mxu0 0
      %7441 = vmatpush1.bf16.msra.mxu0 0
      %7442 = vmatprep.subr.bf16.mxu0 0
      %7443 = vmatpush1.bf16.msra.mxu0 0
      %7444 = vmatprep.subr.bf16.mxu0 0
      %7445 = vmatpush1.bf16.msra.mxu0 0
      %7446 = vmatprep.subr.bf16.mxu0 0
      %7447 = vmatpush1.bf16.msra.mxu0 0
      %7448 = vmatprep.subr.bf16.mxu0 0
      %7449 = vmatpush1.bf16.msra.mxu0 0
      %7450 = vmatprep.subr.bf16.mxu0 0
      %7451 = vmatpush1.bf16.msra.mxu0 0
      %7452 = vmatprep.subr.bf16.mxu0 0
      %7453 = vmatpush1.bf16.msra.mxu0 0
      %7454 = vmatprep.subr.bf16.mxu0 0
      %7455 = vmatpush1.bf16.msra.mxu0 0
      %7456 = vmatprep.subr.bf16.mxu0 0
      %7457 = vmatpush1.bf16.msra.mxu0 0
      %7458 = vmatprep.mubr.bf16.mxu0 0
      %7459 = vmatmul.mubr.bf16.gmra.mrb[0].mxu0 %v7421
      %v7460 = vpop.f32.mrb[0].mxu0
      %v7461 = vadd.f32 %v7153, %v7460
      %v7462 = vpop.f32.mrb[0].mxu0
      %v7463 = vpop.f32.mrb[0].mxu0
      %v7464 = vpop.f32.mrb[0].mxu0
      %7465 = vdwg.mxu0
      %v7467 = vsel %vm2463, %v7308, 0
      %v7470 = vsel %vm2467, %v7370, 0
      %7472 = vmatprep.subr.bf16.mxu0 0
      %7473 = vmatpush1.bf16.msra.mxu0 %v7470
      %7474 = vmatprep.subr.bf16.mxu0 0
      %7475 = vmatpush1.bf16.msra.mxu0 0
      %7476 = vmatprep.subr.bf16.mxu0 0
      %7477 = vmatpush1.bf16.msra.mxu0 0
      %7478 = vmatprep.subr.bf16.mxu0 0
      %7479 = vmatpush1.bf16.msra.mxu0 0
      %7480 = vmatprep.subr.bf16.mxu0 0
      %7481 = vmatpush1.bf16.msra.mxu0 0
      %7482 = vmatprep.subr.bf16.mxu0 0
      %7483 = vmatpush1.bf16.msra.mxu0 0
      %7484 = vmatprep.subr.bf16.mxu0 0
      %7485 = vmatpush1.bf16.msra.mxu0 0
      %7486 = vmatprep.subr.bf16.mxu0 0
      %7487 = vmatpush1.bf16.msra.mxu0 0
      %7488 = vmatprep.subr.bf16.mxu0 0
      %7489 = vmatpush1.bf16.msra.mxu0 0
      %7490 = vmatprep.subr.bf16.mxu0 0
      %7491 = vmatpush1.bf16.msra.mxu0 0
      %7492 = vmatprep.subr.bf16.mxu0 0
      %7493 = vmatpush1.bf16.msra.mxu0 0
      %7494 = vmatprep.subr.bf16.mxu0 0
      %7495 = vmatpush1.bf16.msra.mxu0 0
      %7496 = vmatprep.subr.bf16.mxu0 0
      %7497 = vmatpush1.bf16.msra.mxu0 0
      %7498 = vmatprep.subr.bf16.mxu0 0
      %7499 = vmatpush1.bf16.msra.mxu0 0
      %7500 = vmatprep.subr.bf16.mxu0 0
      %7501 = vmatpush1.bf16.msra.mxu0 0
      %7502 = vmatprep.subr.bf16.mxu0 0
      %7503 = vmatpush1.bf16.msra.mxu0 0
      %7504 = vmatprep.mubr.bf16.mxu0 0
      %7505 = vmatmul.mubr.bf16.gmra.mrb[0].mxu0 %v7467
      %v7506 = vpop.f32.mrb[0].mxu0
      %v7507 = vadd.f32 %v7199, %v7506
      %v7508 = vpop.f32.mrb[0].mxu0
      %v7509 = vpop.f32.mrb[0].mxu0
      %v7510 = vpop.f32.mrb[0].mxu0
      %7511 = vdwg.mxu0
      %v7513 = vsel %vm2463, %v7311, 0
      %v7516 = vsel %vm2467, %v7373, 0
      %7518 = vmatprep.subr.bf16.mxu0 0
      %7519 = vmatpush1.bf16.msra.mxu0 %v7516
      %7520 = vmatprep.subr.bf16.mxu0 0
      %7521 = vmatpush1.bf16.msra.mxu0 0
      %7522 = vmatprep.subr.bf16.mxu0 0
      %7523 = vmatpush1.bf16.msra.mxu0 0
      %7524 = vmatprep.subr.bf16.mxu0 0
      %7525 = vmatpush1.bf16.msra.mxu0 0
      %7526 = vmatprep.subr.bf16.mxu0 0
      %7527 = vmatpush1.bf16.msra.mxu0 0
      %7528 = vmatprep.subr.bf16.mxu0 0
      %7529 = vmatpush1.bf16.msra.mxu0 0
      %7530 = vmatprep.subr.bf16.mxu0 0
      %7531 = vmatpush1.bf16.msra.mxu0 0
      %7532 = vmatprep.subr.bf16.mxu0 0
      %7533 = vmatpush1.bf16.msra.mxu0 0
      %7534 = vmatprep.subr.bf16.mxu0 0
      %7535 = vmatpush1.bf16.msra.mxu0 0
      %7536 = vmatprep.subr.bf16.mxu0 0
      %7537 = vmatpush1.bf16.msra.mxu0 0
      %7538 = vmatprep.subr.bf16.mxu0 0
      %7539 = vmatpush1.bf16.msra.mxu0 0
      %7540 = vmatprep.subr.bf16.mxu0 0
      %7541 = vmatpush1.bf16.msra.mxu0 0
      %7542 = vmatprep.subr.bf16.mxu0 0
      %7543 = vmatpush1.bf16.msra.mxu0 0
      %7544 = vmatprep.subr.bf16.mxu0 0
      %7545 = vmatpush1.bf16.msra.mxu0 0
      %7546 = vmatprep.subr.bf16.mxu0 0
      %7547 = vmatpush1.bf16.msra.mxu0 0
      %7548 = vmatprep.subr.bf16.mxu0 0
      %7549 = vmatpush1.bf16.msra.mxu0 0
      %7550 = vmatprep.mubr.bf16.mxu0 0
      %7551 = vmatmul.mubr.bf16.gmra.mrb[0].mxu0 %v7513
      %v7552 = vpop.f32.mrb[0].mxu0
      %v7553 = vadd.f32 %v7245, %v7552
      %v7554 = vpop.f32.mrb[0].mxu0
      %v7555 = vpop.f32.mrb[0].mxu0
      %v7556 = vpop.f32.mrb[0].mxu0
      %7557 = vdwg.mxu0
      %v7558 = vcombine.low %v7415, %v7507
      %v7559 = vcombine.high %v7415, %v7507
      %v7561 = vunpack.c.l.s4 1983009808
      %v7562 = vunpack.c.0.s8 %v7561
      %v7563 = vlaneseq
      %v7564 = vshrl.u32 %v7563, 7
      %v7565 = vsub.s32 %v7562, %v7564
      %v7566 = vrot.slane %v7558, %v7565
      %v7568 = vunpack.c.l.s4 1983009808
      %v7569 = vunpack.c.0.s8 %v7568
      %v7570 = vlaneseq
      %v7571 = vshrl.u32 %v7570, 7
      %v7572 = vsub.s32 %v7569, %v7571
      %v7573 = vrot.slane %v7559, %v7572
      %v7574 = vcombine.low %v7461, %v7553
      %v7575 = vcombine.high %v7461, %v7553
      %v7577 = vunpack.c.l.s4 1983009808
      %v7578 = vunpack.c.0.s8 %v7577
      %v7579 = vlaneseq
      %v7580 = vshrl.u32 %v7579, 7
      %v7581 = vsub.s32 %v7578, %v7580
      %v7582 = vrot.slane %v7574, %v7581
      %v7584 = vunpack.c.l.s4 1983009808
      %v7585 = vunpack.c.0.s8 %v7584
      %v7586 = vlaneseq
      %v7587 = vshrl.u32 %v7586, 7
      %v7588 = vsub.s32 %v7585, %v7587
      %v7589 = vrot.slane %v7575, %v7588
      %v7590 = vcombine.low %v7566, %v7582
      %v7591 = vcombine.high %v7566, %v7582
      %v7593 = vunpack.c.l.s4 1934713408
      %v7594 = vunpack.c.0.s8 %v7593
      %v7595 = vlaneseq
      %v7596 = vshrl.u32 %v7595, 7
      %v7597 = vsub.s32 %v7594, %v7596
      %v7598 = vrot.slane %v7590, %v7597
      %v7600 = vunpack.c.l.s4 1934713408
      %v7601 = vunpack.c.0.s8 %v7600
      %v7602 = vlaneseq
      %v7603 = vshrl.u32 %v7602, 7
      %v7604 = vsub.s32 %v7601, %v7603
      %v7605 = vrot.slane %v7591, %v7604
      %v7606 = vcombine.low %v7573, %v7589
      %v7607 = vcombine.high %v7573, %v7589
      %v7609 = vunpack.c.l.s4 1934713408
      %v7610 = vunpack.c.0.s8 %v7609
      %v7611 = vlaneseq
      %v7612 = vshrl.u32 %v7611, 7
      %v7613 = vsub.s32 %v7610, %v7612
      %v7614 = vrot.slane %v7606, %v7613
      %v7616 = vunpack.c.l.s4 1934713408
      %v7617 = vunpack.c.0.s8 %v7616
      %v7618 = vlaneseq
      %v7619 = vshrl.u32 %v7618, 7
      %v7620 = vsub.s32 %v7617, %v7619
      %v7621 = vrot.slane %v7607, %v7620
      %v7622 = vcombine.high %v7598, 0.0
      %v7623 = vcombine.high %v7605, 0.0
      %v7624 = vcombine.high %v7614, 0.0
      %v7625 = vcombine.high %v7621, 0.0
      %v7626 = vcombine.low %v7598, %v7605
      %v7628 = vunpack.c.l.s4 1983009808
      %v7629 = vunpack.c.0.s8 %v7628
      %v7630 = vlaneseq
      %v7631 = vshrl.u32 %v7630, 7
      %v7632 = vsub.s32 %v7629, %v7631
      %v7633 = vrot.slane %v7626, %v7632
      %v7634 = vcombine.low %v7622, %v7623
      %v7636 = vunpack.c.l.s4 1983009808
      %v7637 = vunpack.c.0.s8 %v7636
      %v7638 = vlaneseq
      %v7639 = vshrl.u32 %v7638, 7
      %v7640 = vsub.s32 %v7637, %v7639
      %v7641 = vrot.slane %v7634, %v7640
      %v7642 = vcombine.low %v7614, %v7621
      %v7644 = vunpack.c.l.s4 1983009808
      %v7645 = vunpack.c.0.s8 %v7644
      %v7646 = vlaneseq
      %v7647 = vshrl.u32 %v7646, 7
      %v7648 = vsub.s32 %v7645, %v7647
      %v7649 = vrot.slane %v7642, %v7648
      %v7650 = vcombine.low %v7624, %v7625
      %v7652 = vunpack.c.l.s4 1983009808
      %v7653 = vunpack.c.0.s8 %v7652
      %v7654 = vlaneseq
      %v7655 = vshrl.u32 %v7654, 7
      %v7656 = vsub.s32 %v7653, %v7655
      %v7657 = vrot.slane %v7650, %v7656
      %v7658 = vcombine.low %v7633, %v7641
      %v7659 = vcombine.high %v7633, %v7641
      %v7661 = vunpack.c.l.s4 1934713408
      %v7662 = vunpack.c.0.s8 %v7661
      %v7663 = vlaneseq
      %v7664 = vshrl.u32 %v7663, 7
      %v7665 = vsub.s32 %v7662, %v7664
      %v7666 = vrot.slane %v7658, %v7665
      %v7668 = vunpack.c.l.s4 1934713408
      %v7669 = vunpack.c.0.s8 %v7668
      %v7670 = vlaneseq
      %v7671 = vshrl.u32 %v7670, 7
      %v7672 = vsub.s32 %v7669, %v7671
      %v7673 = vrot.slane %v7659, %v7672
      %v7674 = vcombine.low %v7649, %v7657
      %v7675 = vcombine.high %v7649, %v7657
      %v7677 = vunpack.c.l.s4 1934713408
      %v7678 = vunpack.c.0.s8 %v7677
      %v7679 = vlaneseq
      %v7680 = vshrl.u32 %v7679, 7
      %v7681 = vsub.s32 %v7678, %v7680
      %v7682 = vrot.slane %v7674, %v7681
      %v7684 = vunpack.c.l.s4 1934713408
      %v7685 = vunpack.c.0.s8 %v7684
      %v7686 = vlaneseq
      %v7687 = vshrl.u32 %v7686, 7
      %v7688 = vsub.s32 %v7685, %v7687
      %v7689 = vrot.slane %v7675, %v7688
      %v7690 = vcombine.low %v7666, %v7682
      %v7691 = vcombine.high %v7666, %v7682
      %v7692 = vcombine.low %v7673, %v7689
      %v7693 = vcombine.high %v7673, %v7689
      %7695 = vrot.lane.b32.xlu0 %v7691, 8
      %v7696 = vpop.permute.xlu0 %7695
      %7699 = vrot.lane.b32.xlu0 %v7692, 16
      %v7700 = vpop.permute.xlu0 %7699
      %7703 = vrot.lane.b32.xlu0 %v7693, 24
      %v7704 = vpop.permute.xlu0 %7703
      %v7706 = vsel %vm2463, %v7690, %v7696
      %v7707 = vsel %vm3115, %v7706, %v7700
      %v7708 = vsel %vm3117, %v7707, %v7704
      %v7709 = vld [vmem:[%s1549] sm:$0xf]
      %v7710 = vld [vmem:[%s1549 + $0x4] sm:$0xf]
      %v7711 = vld [vmem:[%s1549 + $0x8] sm:$0xf]
      %v7712 = vld [vmem:[%s1549 + $0xc] sm:$0xf]
      %v7713 = vpack.c.bf16 %v7708, %v7708
      %v7714 = vld [vmem:[%s1552] sm:$0x1]
      %v7716 = vlaneseq
      %v7717 = vshrl.u32 %v7716, 7
      %v7718 = vsub.s32 0, %v7717
      %v7719 = vrot.slane %v7714, %v7718
      %v7725 = vunpack.c.l.b16 %v7709
      %v7726 = vunpack.c.l.b16 %v7710
      %v7727 = vunpack.c.l.b16 %v7711
      %v7728 = vunpack.c.l.b16 %v7712
      %v7729 = vpack.c.b16 %v7726, %v7725
      %v7730 = vpack.c.b16 %v7728, %v7727
      %v7734 = vsel %vm1620, %v7713, 0
      %7736 = vmatprep.subr.bf16.mxu0 0
      %7737 = vmatpush1.bf16.msra.mxu0 %v7729
      %7738 = vmatprep.subr.bf16.mxu0 0
      %7739 = vmatpush1.bf16.msra.mxu0 %v7730
      %7740 = vmatprep.subr.bf16.mxu0 0
      %7741 = vmatpush1.bf16.msra.mxu0 0
      %7742 = vmatprep.subr.bf16.mxu0 0
      %7743 = vmatpush1.bf16.msra.mxu0 0
      %7744 = vmatprep.subr.bf16.mxu0 0
      %7745 = vmatpush1.bf16.msra.mxu0 0
      %7746 = vmatprep.subr.bf16.mxu0 0
      %7747 = vmatpush1.bf16.msra.mxu0 0
      %7748 = vmatprep.subr.bf16.mxu0 0
      %7749 = vmatpush1.bf16.msra.mxu0 0
      %7750 = vmatprep.subr.bf16.mxu0 0
      %7751 = vmatpush1.bf16.msra.mxu0 0
      %7752 = vmatprep.subr.bf16.mxu0 0
      %7753 = vmatpush1.bf16.msra.mxu0 0
      %7754 = vmatprep.subr.bf16.mxu0 0
      %7755 = vmatpush1.bf16.msra.mxu0 0
      %7756 = vmatprep.subr.bf16.mxu0 0
      %7757 = vmatpush1.bf16.msra.mxu0 0
      %7758 = vmatprep.subr.bf16.mxu0 0
      %7759 = vmatpush1.bf16.msra.mxu0 0
      %7760 = vmatprep.subr.bf16.mxu0 0
      %7761 = vmatpush1.bf16.msra.mxu0 0
      %7762 = vmatprep.subr.bf16.mxu0 0
      %7763 = vmatpush1.bf16.msra.mxu0 0
      %7764 = vmatprep.subr.bf16.mxu0 0
      %7765 = vmatpush1.bf16.msra.mxu0 0
      %7766 = vmatprep.subr.bf16.mxu0 0
      %7767 = vmatpush1.bf16.msra.mxu0 0
      %7768 = vmatprep.mubr.bf16.mxu0 0
      %7769 = vmatmul.mubr.bf16.gmra.mrb[0].mxu0 %v7734
      %v7770 = vpop.f32.mrb[0].mxu0
      %v7771 = vadd.f32 %v7719, %v7770
      %v7772 = vpop.f32.mrb[0].mxu0
      %v7773 = vpop.f32.mrb[0].mxu0
      %v7774 = vpop.f32.mrb[0].mxu0
      %7775 = vdwg.mxu0
      %v7776 = vadd.f32 %v5616, %v7771
      %v7777 = vsel %vm1620, %v7776, 0.0
      %7778 = vadd.xlane.f32.xlu0 %v7777
      %v7779 = vpop.xlane.xlu0 %7778
      %v7780 = vmul.f32 %v7779, %v3192
      %v7781 = vsub.f32 %v7776, %v7780
      %v7782 = vmul.f32 %v7781, %v7781
      %v7783 = vsel %vm1620, %v7782, 0.0
      %7784 = vadd.xlane.f32.xlu0 %v7783
      %v7785 = vpop.xlane.xlu0 %7784
      %v7786 = vmul.f32 %v7785, %v3192
      %v7787 = vadd.f32 %v7786, 1e-05
      %v7788 = vrsqrt.pop %v7787
      %v7789 = vmul.f32 %v7781, %v7788
      %v7790 = vlaneseq
      %v7791 = vshrl.u32 %v7790, 7
      %v7792 = vsub.s32 2, %v7791
      %v7793 = vrot.slane %v3187, %v7792
      %v7794 = vmul.f32 %v7789, %v7793
      %v7795 = vlaneseq
      %v7796 = vshrl.u32 %v7795, 7
      %v7797 = vsub.s32 2, %v7796
      %v7798 = vrot.slane %v3188, %v7797
      %v7799 = vadd.f32 %v7794, %v7798
      %v7800 = vld [vmem:[%s1557] sm:$0xf]
      %v7801 = vld [vmem:[%s1557 + $0x4] sm:$0xf]
      %v7802 = vld [vmem:[%s1557 + $0x8] sm:$0xf]
      %v7803 = vld [vmem:[%s1557 + $0xc] sm:$0xf]
      %v7804 = vpack.c.bf16 %v7799, %v7799
      %v7805 = vld [vmem:[%s1560] sm:$0x1]
      %v7807 = vlaneseq
      %v7808 = vshrl.u32 %v7807, 7
      %v7809 = vsub.s32 0, %v7808
      %v7810 = vrot.slane %v7805, %v7809
      %v7816 = vunpack.c.l.b16 %v7800
      %v7817 = vunpack.c.l.b16 %v7801
      %v7818 = vunpack.c.l.b16 %v7802
      %v7819 = vunpack.c.l.b16 %v7803
      %v7820 = vpack.c.b16 %v7817, %v7816
      %v7821 = vpack.c.b16 %v7819, %v7818
      %v7825 = vsel %vm1620, %v7804, 0
      %7827 = vmatprep.subr.bf16.mxu0 0
      %7828 = vmatpush1.bf16.msra.mxu0 %v7820
      %7829 = vmatprep.subr.bf16.mxu0 0
      %7830 = vmatpush1.bf16.msra.mxu0 %v7821
      %7831 = vmatprep.subr.bf16.mxu0 0
      %7832 = vmatpush1.bf16.msra.mxu0 0
      %7833 = vmatprep.subr.bf16.mxu0 0
      %7834 = vmatpush1.bf16.msra.mxu0 0
      %7835 = vmatprep.subr.bf16.mxu0 0
      %7836 = vmatpush1.bf16.msra.mxu0 0
      %7837 = vmatprep.subr.bf16.mxu0 0
      %7838 = vmatpush1.bf16.msra.mxu0 0
      %7839 = vmatprep.subr.bf16.mxu0 0
      %7840 = vmatpush1.bf16.msra.mxu0 0
      %7841 = vmatprep.subr.bf16.mxu0 0
      %7842 = vmatpush1.bf16.msra.mxu0 0
      %7843 = vmatprep.subr.bf16.mxu0 0
      %7844 = vmatpush1.bf16.msra.mxu0 0
      %7845 = vmatprep.subr.bf16.mxu0 0
      %7846 = vmatpush1.bf16.msra.mxu0 0
      %7847 = vmatprep.subr.bf16.mxu0 0
      %7848 = vmatpush1.bf16.msra.mxu0 0
      %7849 = vmatprep.subr.bf16.mxu0 0
      %7850 = vmatpush1.bf16.msra.mxu0 0
      %7851 = vmatprep.subr.bf16.mxu0 0
      %7852 = vmatpush1.bf16.msra.mxu0 0
      %7853 = vmatprep.subr.bf16.mxu0 0
      %7854 = vmatpush1.bf16.msra.mxu0 0
      %7855 = vmatprep.subr.bf16.mxu0 0
      %7856 = vmatpush1.bf16.msra.mxu0 0
      %7857 = vmatprep.subr.bf16.mxu0 0
      %7858 = vmatpush1.bf16.msra.mxu0 0
      %7859 = vmatprep.mubr.bf16.mxu0 0
      %7860 = vmatmul.mubr.bf16.gmra.mrb[0].mxu0 %v7825
      %v7861 = vpop.f32.mrb[0].mxu0
      %v7862 = vadd.f32 %v7810, %v7861
      %v7863 = vpop.f32.mrb[0].mxu0
      %v7864 = vpop.f32.mrb[0].mxu0
      %v7865 = vpop.f32.mrb[0].mxu0
      %7866 = vdwg.mxu0
      %v7867 = vmax.f32 %v7862, 0.0
      %v7868 = vld [vmem:[%s1565] sm:$0xf]
      %v7869 = vld [vmem:[%s1565 + $0x4] sm:$0xf]
      %v7870 = vld [vmem:[%s1565 + $0x8] sm:$0xf]
      %v7871 = vld [vmem:[%s1565 + $0xc] sm:$0xf]
      %v7872 = vld [vmem:[%s1565 + $0x10] sm:$0xf]
      %v7873 = vld [vmem:[%s1565 + $0x14] sm:$0xf]
      %v7874 = vld [vmem:[%s1565 + $0x18] sm:$0xf]
      %v7875 = vld [vmem:[%s1565 + $0x1c] sm:$0xf]
      %v7876 = vpack.c.bf16 %v7867, %v7867
      %v7877 = vld [vmem:[%s1568] sm:$0x1]
      %v7879 = vlaneseq
      %v7880 = vshrl.u32 %v7879, 7
      %v7881 = vsub.s32 0, %v7880
      %v7882 = vrot.slane %v7877, %v7881
      %v7892 = vunpack.c.l.b16 %v7868
      %v7893 = vunpack.c.l.b16 %v7869
      %v7894 = vunpack.c.l.b16 %v7870
      %v7895 = vunpack.c.l.b16 %v7871
      %v7896 = vunpack.c.l.b16 %v7872
      %v7897 = vunpack.c.l.b16 %v7873
      %v7898 = vunpack.c.l.b16 %v7874
      %v7899 = vunpack.c.l.b16 %v7875
      %v7900 = vpack.c.b16 %v7893, %v7892
      %v7901 = vpack.c.b16 %v7895, %v7894
      %v7902 = vpack.c.b16 %v7897, %v7896
      %v7903 = vpack.c.b16 %v7899, %v7898
      %vm7908 = vcmask 523264
      %v7910 = vsel %vm7908, %v7876, 0
      %7912 = vmatprep.subr.bf16.mxu0 0
      %7913 = vmatpush1.bf16.msra.mxu0 %v7900
      %7914 = vmatprep.subr.bf16.mxu0 0
      %7915 = vmatpush1.bf16.msra.mxu0 %v7901
      %7916 = vmatprep.subr.bf16.mxu0 0
      %7917 = vmatpush1.bf16.msra.mxu0 %v7902
      %7918 = vmatprep.subr.bf16.mxu0 0
      %7919 = vmatpush1.bf16.msra.mxu0 %v7903
      %7920 = vmatprep.subr.bf16.mxu0 0
      %7921 = vmatpush1.bf16.msra.mxu0 0
      %7922 = vmatprep.subr.bf16.mxu0 0
      %7923 = vmatpush1.bf16.msra.mxu0 0
      %7924 = vmatprep.subr.bf16.mxu0 0
      %7925 = vmatpush1.bf16.msra.mxu0 0
      %7926 = vmatprep.subr.bf16.mxu0 0
      %7927 = vmatpush1.bf16.msra.mxu0 0
      %7928 = vmatprep.subr.bf16.mxu0 0
      %7929 = vmatpush1.bf16.msra.mxu0 0
      %7930 = vmatprep.subr.bf16.mxu0 0
      %7931 = vmatpush1.bf16.msra.mxu0 0
      %7932 = vmatprep.subr.bf16.mxu0 0
      %7933 = vmatpush1.bf16.msra.mxu0 0
      %7934 = vmatprep.subr.bf16.mxu0 0
      %7935 = vmatpush1.bf16.msra.mxu0 0
      %7936 = vmatprep.subr.bf16.mxu0 0
      %7937 = vmatpush1.bf16.msra.mxu0 0
      %7938 = vmatprep.subr.bf16.mxu0 0
      %7939 = vmatpush1.bf16.msra.mxu0 0
      %7940 = vmatprep.subr.bf16.mxu0 0
      %7941 = vmatpush1.bf16.msra.mxu0 0
      %7942 = vmatprep.subr.bf16.mxu0 0
      %7943 = vmatpush1.bf16.msra.mxu0 0
      %7944 = vmatprep.mubr.bf16.mxu0 0
      %7945 = vmatmul.mubr.bf16.gmra.mrb[0].mxu0 %v7910
      %v7946 = vpop.f32.mrb[0].mxu0
      %v7947 = vadd.f32 %v7882, %v7946
      %v7948 = vpop.f32.mrb[0].mxu0
      %v7949 = vpop.f32.mrb[0].mxu0
      %v7950 = vpop.f32.mrb[0].mxu0
      %7951 = vdwg.mxu0
      %v7952 = vadd.f32 %v7799, %v7947
      %v7953 = vsel %vm1620, %v7952, 0.0
      %7954 = vadd.xlane.f32.xlu0 %v7953
      %v7955 = vpop.xlane.xlu0 %7954
      %v7956 = vmul.f32 %v7955, %v3192
      %v7957 = vsub.f32 %v7952, %v7956
      %v7958 = vmul.f32 %v7957, %v7957
      %v7959 = vsel %vm1620, %v7958, 0.0
      %7960 = vadd.xlane.f32.xlu0 %v7959
      %v7961 = vpop.xlane.xlu0 %7960
      %v7962 = vmul.f32 %v7961, %v3192
      %v7963 = vadd.f32 %v7962, 1e-05
      %v7964 = vrsqrt.pop %v7963
      %v7965 = vmul.f32 %v7957, %v7964
      %v7966 = vlaneseq
      %v7967 = vshrl.u32 %v7966, 7
      %v7968 = vsub.s32 3, %v7967
      %v7969 = vrot.slane %v3187, %v7968
      %v7970 = vmul.f32 %v7965, %v7969
      %v7971 = vlaneseq
      %v7972 = vshrl.u32 %v7971, 7
      %v7973 = vsub.s32 3, %v7972
      %v7974 = vrot.slane %v3188, %v7973
      %v7975 = vadd.f32 %v7970, %v7974
      %7976 = vst.msk [vmem:[#allocation2] sm:$0xff] %vm1620, %v7975
      %7977 = vst.msk [vmem:[%s1584] sm:$0xff] %vm1620, %v7975
      %p7978 = scmp.lt.s32.totalorder %s83, 1
      %s7979 = scalar_select %p7978, %s83, 1
      %p7980 = scmp.lt.s32.totalorder %s82, 1
      %s7981 = scalar_select %p7980, %s82, 1
      %s7982 = smul.addr %s7979, 2
      %s7983 = sadd.s32 %s7981, %s7982
      %s7984 = smul.addr %s7983, 8
      %s7985 = scalar_lea.vmem %s67, %s7984
      // Predicated region
      $region157: #{run.1} parent=151 // pred_check
        %p7986 = pneg %p968
      $region158: #{run.1} parent=151 // pred_check_branch
        %7988 = sbr.rel (%p7986) target = $region160
      $region159: #{run.1} parent=151 // pred_region
        _
      $region160: #{run.1} parent=151 // pred_fallthru
        _
    $region152: #{run.1} parent=5 // pred_fallthru
      _
    %p7989 = scmp.le.s32.totalorder 2, %s73
    // Predicated region
    $region161: #{run.1} parent=5 // pred_check
      %p7990 = pneg %p7989
    $region162: #{run.1} parent=5 // pred_check_branch
      %7992 = sbr.rel (%p7990) target = $region164
    $region163: #{run.1} parent=5 // pred_region
      %s7993 = ssub.s32 %s73, 2
      // Predicated region
      $region165: #{run.1} parent=163 // pred_check
        %p7994 = pneg %p974
      $region166: #{run.1} parent=163 // pred_check_branch
        %7996 = sbr.rel (%p7994) target = $region168
      $region167: #{run.1} parent=163 // pred_region
        %p7997 = scmp.lt.s32.totalorder %s85, 1
        %s7998 = scalar_select %p7997, %s85, 1
        %p7999 = scmp.lt.s32.totalorder %s84, 1
        %s8000 = scalar_select %p7999, %s84, 1
        %s8001 = smul.addr %s7998, 2
        %s8002 = sadd.s32 %s8000, %s8001
        %s8003 = smul.addr %s8002, 8
        %s8004 = scalar_lea.vmem %s67, %s8003
      $region168: #{run.1} parent=163 // pred_fallthru
        _
    $region164: #{run.1} parent=5 // pred_fallthru
      _
  $region6: #{run.1} parent=0 // loop_footer
    %s77 = sadd.s32 1, %s73
  $region7: #{run.1} parent=0 // loop_footer_branch
    %72 = sbr.rel target = $region3
  $region8: #{run.1} parent=0 // loop_exit
    _

</llo_original>
